<compile_context>
chip_gen: v7x
topology: tpu7x:2x2x1
jax: 0.10.0
libtpu: 0.0.40
codegen_flags: <defaults>
</compile_context>

<pallas_src>
import numpy as np
import jax
import jax.numpy as jnp
from jax.experimental import pallas as pl
from jax.experimental.pallas import tpu as pltpu

F_IN_PAD = 8          # real input features = 1 channel * 3 length = 3, padded to 8
BIAS_LANE = 3         # spare input lane held at 1.0 so conv1's bias rides its matrix
FPAD = 128            # conv-path feature width, padded to a full lane group
NUM_CLASSES = 256
TB = 512              # batch tile: multiple of 128 (MXU M) on every generation


# ----------------------------- Pallas kernel ------------------------------- #
def coordnet_kernel(x_ref,
                    a1, a2, b2, a3, b3, a4, b4,
                    w1, c1, w2, c2, w3, c3,
                    o_ref):
    f32 = jnp.float32
    bf16 = jnp.bfloat16

    def mm(h, w):                                   # bf16 MXU operands, f32 accumulation
        return jnp.dot(h.astype(bf16), w[...], preferred_element_type=f32)

    h = x_ref[...]                                              # (TB, 8) f32; lane 3 == 1.0 carries conv1 bias
    h = jnp.maximum(mm(h, a1), 0.0)                             # conv1 + relu                  -> (TB, 128)
    y = jnp.maximum(mm(h, a2) + b2[...], 0.0)                   # conv2 + relu, both pool taps  -> (TB, 256)
    h = jnp.maximum(y[:, :FPAD], y[:, FPAD:])                   # maxpool1 (lane-group select)  -> (TB, 128)
    h = jnp.maximum(mm(h, a3) + b3[...], 0.0)                   # conv3 + relu                  -> (TB, 128)
    y = jnp.maximum(mm(h, a4) + b4[...], 0.0)                   # conv4 + relu, both pool taps  -> (TB, 256)
    h = jnp.maximum(y[:, :FPAD], y[:, FPAD:])                   # maxpool2                      -> (TB, 128)
    h = jnp.maximum(mm(h, w1) + c1[...], 0.0)                   # fc1 + relu (dropout1 = identity)
    h = jnp.maximum(mm(h, w2) + c2[...], 0.0)                   # fc2 + relu (dropout2 = identity)
    o_ref[...] = jnp.tanh(mm(h, w3) + c3[...])                  # output + tanh (fusion=True)


# ------------------------------ glue (setup) -------------------------------- #
def conv1d_as_matmul(w, b, L_in, pad=1):
    """Conv1d(C_in->C_out, k, pad) as a dense (C_in*L_in, C_out*L_out) matrix."""
    w = np.asarray(w, np.float32)
    b = np.asarray(b, np.float32)
    C_out, C_in, K = w.shape
    L_out = L_in + 2 * pad - K + 1
    A = np.zeros((C_in * L_in, C_out * L_out), np.float32)
    beff = np.zeros((1, C_out * L_out), np.float32)
    for co in range(C_out):
        for lo in range(L_out):
            beff[0, co * L_out + lo] = b[co]
            for ci in range(C_in):
                for k in range(K):
                    src = lo + k - pad
                    if 0 <= src < L_in:
                        A[ci * L_in + src, co * L_out + lo] = w[co, ci, k]
    return A, beff, L_out


def maxpool1d_as_matmuls(C, L_in, k=2, stride=2, pad=1):
    """MaxPool1d(k=2, s=2, pad=1) as max of two selection matmuls.

    Zero columns stand in for -inf padding; exact because the pooled inputs are
    post-ReLU (>= 0) and each selection column has at most one nonzero."""
    L_out = (L_in + 2 * pad - k) // stride + 1
    S0 = np.zeros((C * L_in, C * L_out), np.float32)
    S1 = np.zeros((C * L_in, C * L_out), np.float32)
    for c in range(C):
        for i in range(L_out):
            p0 = i * stride - pad
            for tap, S in ((p0, S0), (p0 + 1, S1)):
                if 0 <= tap < L_in:
                    S[c * L_in + tap, c * L_out + i] = 1.0
    return S0, S1, L_out


def pad2d(a, rows, cols):
    out = np.zeros((rows, cols), np.float32)
    out[: a.shape[0], : a.shape[1]] = a
    return out


def init_params(key, num_classes=NUM_CLASSES):
    specs = {
        "w_c1": (20, 1, 2), "b_c1": (20,),
        "w_c2": (10, 20, 2), "b_c2": (10,),
        "w_c3": (20, 10, 2), "b_c3": (20,),
        "w_c4": (10, 20, 2), "b_c4": (10,),
        "w_fc1": (30, 1024), "b_fc1": (1024,),
        "w_fc2": (1024, 512), "b_fc2": (512,),
        "w_out": (512, num_classes), "b_out": (num_classes,),
    }
    fan_in = {"w_c1": 2, "b_c1": 2, "w_c2": 40, "b_c2": 40,
              "w_c3": 20, "b_c3": 20, "w_c4": 40, "b_c4": 40,
              "w_fc1": 30, "b_fc1": 30, "w_fc2": 1024, "b_fc2": 1024,
              "w_out": 512, "b_out": 512}
    params = {}
    names = sorted(specs)
    keys = jax.random.split(key, len(names))
    for k_, name in zip(keys, names):
        scale = 1.0 / np.sqrt(fan_in[name])
        params[name] = (jax.random.normal(k_, specs[name], jnp.float32) * scale)
    return params


def build_kernel_operands(params):
    A1, B1, L1 = conv1d_as_matmul(params["w_c1"], params["b_c1"], L_in=3)    # 3 -> 4 (F=80)
    A2, B2, L2 = conv1d_as_matmul(params["w_c2"], params["b_c2"], L_in=L1)   # 4 -> 5 (F=50)
    P1a, P1b, Lp1 = maxpool1d_as_matmuls(10, L2)                             # 5 -> 3 (F=30)
    A3, B3, L3 = conv1d_as_matmul(params["w_c3"], params["b_c3"], L_in=Lp1)  # 3 -> 4 (F=80)
    A4, B4, L4 = conv1d_as_matmul(params["w_c4"], params["b_c4"], L_in=L3)   # 4 -> 5 (F=50)
    P2a, P2b, _ = maxpool1d_as_matmuls(10, L4)                               # 5 -> 3 (F=30)

    # Fold each pool's selection matrices into the preceding conv (exact: relu
    # commutes with a 0/1 selection matrix with at most one nonzero per column).
    A2a, A2b = A2 @ P1a, A2 @ P1b
    b2a, b2b = B2 @ P1a, B2 @ P1b
    A4a, A4b = A4 @ P2a, A4 @ P2b
    b4a, b4b = B4 @ P2a, B4 @ P2b

    # conv1: fold the bias into the matrix via the constant-1.0 input lane.
    A1p = pad2d(A1, F_IN_PAD, FPAD)
    A1p[BIAS_LANE, : B1.shape[1]] = B1[0]

    # Fuse both pool taps of conv2 / conv4 into one 256-wide matmul each; the
    # max is taken over the two 128-lane halves in-kernel (keep the split at the
    # lane-group boundary).
    A2w = np.concatenate([pad2d(A2a, FPAD, FPAD), pad2d(A2b, FPAD, FPAD)], axis=1)
    b2w = np.concatenate([pad2d(b2a, 1, FPAD), pad2d(b2b, 1, FPAD)], axis=1)
    A4w = np.concatenate([pad2d(A4a, FPAD, FPAD), pad2d(A4b, FPAD, FPAD)], axis=1)
    b4w = np.concatenate([pad2d(b4a, 1, FPAD), pad2d(b4b, 1, FPAD)], axis=1)

    w1 = pad2d(np.asarray(params["w_fc1"], np.float32), FPAD, 1024)  # pad 30 -> 128 rows (zeros)

    ops = [
        jnp.asarray(A1p, jnp.bfloat16),
        jnp.asarray(A2w, jnp.bfloat16), jnp.asarray(b2w, jnp.float32),
        jnp.asarray(pad2d(A3, FPAD, FPAD), jnp.bfloat16), jnp.asarray(pad2d(B3, 1, FPAD), jnp.float32),
        jnp.asarray(A4w, jnp.bfloat16), jnp.asarray(b4w, jnp.float32),
        jnp.asarray(w1, jnp.bfloat16), jnp.asarray(params["b_fc1"], jnp.float32)[None, :],
        jnp.asarray(params["w_fc2"], jnp.bfloat16), jnp.asarray(params["b_fc2"], jnp.float32)[None, :],
        jnp.asarray(params["w_out"], jnp.bfloat16), jnp.asarray(params["b_out"], jnp.float32)[None, :],
    ]
    return ops


def coordnet_forward(x, params):
    """x: (B, 3, 1) float — same layout the PyTorch module receives."""
    B = x.shape[0]
    nt = max(2, -(-B // TB))      # >= 2 grid steps so v7x's 2nd TensorCore gets work
    nt += nt % 2                  # ... and an even number of them
    Bp = nt * TB

    xf = jnp.zeros((Bp, F_IN_PAD), jnp.float32)
    xf = xf.at[:, BIAS_LANE].set(1.0)                        # constant lane -> conv1 bias via matmul
    xf = xf.at[:B, :3].set(x[:, :, 0].astype(jnp.float32))

    ops = build_kernel_operands(params)
    # Weights are grid-invariant: DMA'd once, stay VMEM-resident across steps (~1.7 MB).
    weight_specs = [pl.BlockSpec(o.shape, lambda i: (0, 0)) for o in ops]

    out = pl.pallas_call(
        coordnet_kernel,
        out_shape=jax.ShapeDtypeStruct((Bp, NUM_CLASSES), jnp.float32),
        grid=(nt,),
        in_specs=[pl.BlockSpec((TB, F_IN_PAD), lambda i: (i, 0))] + weight_specs,
        out_specs=pl.BlockSpec((TB, NUM_CLASSES), lambda i: (i, 0)),
        # Disjoint output tiles, no carried accumulator -> parallel (v7x: 2 TCs).
        compiler_params=pltpu.CompilerParams(dimension_semantics=("parallel",)),
    )(xf, *ops)
    return out[:B]


# ------------------------- pure-JAX reference check ------------------------- #
def ref_forward(x, p):
    """Same numerics as the kernel: bf16-operand / f32-accumulate matmuls everywhere,
    f32 elementwise epilogues, conv1 bias rounded through bf16 (it rides the bf16 matrix)."""
    h = jnp.transpose(x.astype(jnp.float32), (0, 2, 1))        # (B, 1, 3) NCL

    def conv(h, w, b):
        y = jax.lax.conv_general_dilated(
            h.astype(jnp.bfloat16), jnp.asarray(w, jnp.bfloat16),
            window_strides=(1,), padding=[(1, 1)],
            dimension_numbers=("NCH", "OIH", "NCH"),
            preferred_element_type=jnp.float32)
        return y + b[None, :, None]

    def pool(h):
        return jax.lax.reduce_window(
            h, -jnp.inf, jax.lax.max,
            window_dimensions=(1, 1, 2), window_strides=(1, 1, 2),
            padding=[(0, 0), (0, 0), (1, 1)])

    def fc(h, w, b):
        y = jnp.dot(h.astype(jnp.bfloat16), jnp.asarray(w, jnp.bfloat16),
                    preferred_element_type=jnp.float32)
        return y + b

    b1 = p["b_c1"].astype(jnp.bfloat16).astype(jnp.float32)    # matches the in-kernel bias fold
    h = jnp.maximum(conv(h, p["w_c1"], b1), 0.0)
    h = jnp.maximum(conv(h, p["w_c2"], p["b_c2"]), 0.0)
    h = pool(h)
    h = jnp.maximum(conv(h, p["w_c3"], p["b_c3"]), 0.0)
    h = jnp.maximum(conv(h, p["w_c4"], p["b_c4"]), 0.0)
    h = pool(h)
    h = h.reshape(h.shape[0], -1)                               # (B, 30) C-major, L-minor
    h = jnp.maximum(fc(h, p["w_fc1"], p["b_fc1"]), 0.0)
    h = jnp.maximum(fc(h, p["w_fc2"], p["b_fc2"]), 0.0)
    return jnp.tanh(fc(h, p["w_out"], p["b_out"]))


if __name__ == "__main__":
    key = jax.random.PRNGKey(0)
    kp, kx = jax.random.split(key)
    params = init_params(kp)

    # input length must be 3 so that flatten -> 30 features (fc1 expects 30)
    x = jax.random.normal(kx, (2, 3, 1), jnp.float32)

    out = coordnet_forward(x, params)
    jax.block_until_ready(out)
    assert out.shape == (2, NUM_CLASSES)

    ref = ref_forward(x, params)
    np.testing.assert_allclose(np.asarray(out), np.asarray(ref), rtol=1e-2, atol=2e-3)

    print("KERNEL_OK")
</pallas_src>

<mosaic_0001>
module attributes {stable_mosaic.version = 11 : i64} {
  func.func @coordnet_kernel(%arg0: i32, %arg1: memref<512x8xf32, #tpu.memory_space<vmem>>, %arg2: memref<8x128xbf16, #tpu.memory_space<vmem>>, %arg3: memref<128x256xbf16, #tpu.memory_space<vmem>>, %arg4: memref<1x256xf32, #tpu.memory_space<vmem>>, %arg5: memref<128x128xbf16, #tpu.memory_space<vmem>>, %arg6: memref<1x128xf32, #tpu.memory_space<vmem>>, %arg7: memref<128x256xbf16, #tpu.memory_space<vmem>>, %arg8: memref<1x256xf32, #tpu.memory_space<vmem>>, %arg9: memref<128x1024xbf16, #tpu.memory_space<vmem>>, %arg10: memref<1x1024xf32, #tpu.memory_space<vmem>>, %arg11: memref<1024x512xbf16, #tpu.memory_space<vmem>>, %arg12: memref<1x512xf32, #tpu.memory_space<vmem>>, %arg13: memref<512x256xbf16, #tpu.memory_space<vmem>>, %arg14: memref<1x256xf32, #tpu.memory_space<vmem>>, %arg15: memref<512x256xf32, #tpu.memory_space<vmem>>) attributes {dimension_semantics = [#tpu.dimension_semantics<parallel>], iteration_bounds = array<i64: 2>, scalar_prefetch = 0 : i64, scratch_operands = 0 : i64, tpu.core_type = #tpu.core_type<tc>, window_params = [{transform_indices = @transform_0, window_bounds = array<i64: 512, 8>}, {pipeline_mode = #tpu.pipeline_mode<synchronous>, transform_indices = @transform_1, window_bounds = array<i64: 8, 128>}, {pipeline_mode = #tpu.pipeline_mode<synchronous>, transform_indices = @transform_2, window_bounds = array<i64: 128, 256>}, {pipeline_mode = #tpu.pipeline_mode<synchronous>, transform_indices = @transform_3, window_bounds = array<i64: 1, 256>}, {pipeline_mode = #tpu.pipeline_mode<synchronous>, transform_indices = @transform_4, window_bounds = array<i64: 128, 128>}, {pipeline_mode = #tpu.pipeline_mode<synchronous>, transform_indices = @transform_5, window_bounds = array<i64: 1, 128>}, {pipeline_mode = #tpu.pipeline_mode<synchronous>, transform_indices = @transform_6, window_bounds = array<i64: 128, 256>}, {pipeline_mode = #tpu.pipeline_mode<synchronous>, transform_indices = @transform_7, window_bounds = array<i64: 1, 256>}, {pipeline_mode = #tpu.pipeline_mode<synchronous>, transform_indices = @transform_8, window_bounds = array<i64: 128, 1024>}, {pipeline_mode = #tpu.pipeline_mode<synchronous>, transform_indices = @transform_9, window_bounds = array<i64: 1, 1024>}, {pipeline_mode = #tpu.pipeline_mode<synchronous>, transform_indices = @transform_10, window_bounds = array<i64: 1024, 512>}, {pipeline_mode = #tpu.pipeline_mode<synchronous>, transform_indices = @transform_11, window_bounds = array<i64: 1, 512>}, {pipeline_mode = #tpu.pipeline_mode<synchronous>, transform_indices = @transform_12, window_bounds = array<i64: 512, 256>}, {pipeline_mode = #tpu.pipeline_mode<synchronous>, transform_indices = @transform_13, window_bounds = array<i64: 1, 256>}, {transform_indices = @transform_14, window_bounds = array<i64: 512, 256>}]} {
    %c0 = arith.constant 0 : index
    %c0_0 = arith.constant 0 : index
    %0 = vector.load %arg1[%c0, %c0_0] : memref<512x8xf32, #tpu.memory_space<vmem>>, vector<512x8xf32>
    %1 = arith.truncf %0 : vector<512x8xf32> to vector<512x8xbf16>
    %c0_1 = arith.constant 0 : index
    %c0_2 = arith.constant 0 : index
    %2 = vector.load %arg2[%c0_1, %c0_2] : memref<8x128xbf16, #tpu.memory_space<vmem>>, vector<8x128xbf16>
    %cst = arith.constant dense<0.000000e+00> : vector<512x128xf32>
    %3 = tpu.matmul %1, %2, %cst {dimension_numbers = #tpu.dot_dimension_numbers<[1], [0], [0], [1], [0, 0, 1, 1], [], []>} : vector<512x8xbf16>, vector<8x128xbf16>, vector<512x128xf32> -> vector<512x128xf32>
    %cst_3 = arith.constant 0.000000e+00 : f32
    %4 = vector.broadcast %cst_3 : f32 to vector<512x128xf32>
    %5 = arith.maximumf %3, %4 : vector<512x128xf32>
    %6 = arith.truncf %5 : vector<512x128xf32> to vector<512x128xbf16>
    %c0_4 = arith.constant 0 : index
    %c0_5 = arith.constant 0 : index
    %7 = vector.load %arg3[%c0_4, %c0_5] : memref<128x256xbf16, #tpu.memory_space<vmem>>, vector<128x256xbf16>
    %cst_6 = arith.constant dense<0.000000e+00> : vector<512x256xf32>
    %8 = tpu.matmul %6, %7, %cst_6 {dimension_numbers = #tpu.dot_dimension_numbers<[1], [0], [0], [1], [0, 0, 1, 1], [], []>} : vector<512x128xbf16>, vector<128x256xbf16>, vector<512x256xf32> -> vector<512x256xf32>
    %c0_7 = arith.constant 0 : index
    %c0_8 = arith.constant 0 : index
    %9 = vector.load %arg4[%c0_7, %c0_8] : memref<1x256xf32, #tpu.memory_space<vmem>>, vector<1x256xf32>
    %10 = vector.broadcast %9 : vector<1x256xf32> to vector<512x256xf32>
    %11 = arith.addf %8, %10 : vector<512x256xf32>
    %cst_9 = arith.constant 0.000000e+00 : f32
    %12 = vector.broadcast %cst_9 : f32 to vector<512x256xf32>
    %13 = arith.maximumf %11, %12 : vector<512x256xf32>
    %14 = vector.extract_strided_slice %13 {offsets = [0, 0], sizes = [512, 128], strides = [1, 1]} : vector<512x256xf32> to vector<512x128xf32>
    %15 = vector.extract_strided_slice %13 {offsets = [0, 128], sizes = [512, 128], strides = [1, 1]} : vector<512x256xf32> to vector<512x128xf32>
    %16 = arith.maximumf %14, %15 : vector<512x128xf32>
    %17 = arith.truncf %16 : vector<512x128xf32> to vector<512x128xbf16>
    %c0_10 = arith.constant 0 : index
    %c0_11 = arith.constant 0 : index
    %18 = vector.load %arg5[%c0_10, %c0_11] : memref<128x128xbf16, #tpu.memory_space<vmem>>, vector<128x128xbf16>
    %cst_12 = arith.constant dense<0.000000e+00> : vector<512x128xf32>
    %19 = tpu.matmul %17, %18, %cst_12 {dimension_numbers = #tpu.dot_dimension_numbers<[1], [0], [0], [1], [0, 0, 1, 1], [], []>} : vector<512x128xbf16>, vector<128x128xbf16>, vector<512x128xf32> -> vector<512x128xf32>
    %c0_13 = arith.constant 0 : index
    %c0_14 = arith.constant 0 : index
    %20 = vector.load %arg6[%c0_13, %c0_14] : memref<1x128xf32, #tpu.memory_space<vmem>>, vector<1x128xf32>
    %21 = vector.broadcast %20 : vector<1x128xf32> to vector<512x128xf32>
    %22 = arith.addf %19, %21 : vector<512x128xf32>
    %cst_15 = arith.constant 0.000000e+00 : f32
    %23 = vector.broadcast %cst_15 : f32 to vector<512x128xf32>
    %24 = arith.maximumf %22, %23 : vector<512x128xf32>
    %25 = arith.truncf %24 : vector<512x128xf32> to vector<512x128xbf16>
    %c0_16 = arith.constant 0 : index
    %c0_17 = arith.constant 0 : index
    %26 = vector.load %arg7[%c0_16, %c0_17] : memref<128x256xbf16, #tpu.memory_space<vmem>>, vector<128x256xbf16>
    %cst_18 = arith.constant dense<0.000000e+00> : vector<512x256xf32>
    %27 = tpu.matmul %25, %26, %cst_18 {dimension_numbers = #tpu.dot_dimension_numbers<[1], [0], [0], [1], [0, 0, 1, 1], [], []>} : vector<512x128xbf16>, vector<128x256xbf16>, vector<512x256xf32> -> vector<512x256xf32>
    %c0_19 = arith.constant 0 : index
    %c0_20 = arith.constant 0 : index
    %28 = vector.load %arg8[%c0_19, %c0_20] : memref<1x256xf32, #tpu.memory_space<vmem>>, vector<1x256xf32>
    %29 = vector.broadcast %28 : vector<1x256xf32> to vector<512x256xf32>
    %30 = arith.addf %27, %29 : vector<512x256xf32>
    %cst_21 = arith.constant 0.000000e+00 : f32
    %31 = vector.broadcast %cst_21 : f32 to vector<512x256xf32>
    %32 = arith.maximumf %30, %31 : vector<512x256xf32>
    %33 = vector.extract_strided_slice %32 {offsets = [0, 0], sizes = [512, 128], strides = [1, 1]} : vector<512x256xf32> to vector<512x128xf32>
    %34 = vector.extract_strided_slice %32 {offsets = [0, 128], sizes = [512, 128], strides = [1, 1]} : vector<512x256xf32> to vector<512x128xf32>
    %35 = arith.maximumf %33, %34 : vector<512x128xf32>
    %36 = arith.truncf %35 : vector<512x128xf32> to vector<512x128xbf16>
    %c0_22 = arith.constant 0 : index
    %c0_23 = arith.constant 0 : index
    %37 = vector.load %arg9[%c0_22, %c0_23] : memref<128x1024xbf16, #tpu.memory_space<vmem>>, vector<128x1024xbf16>
    %cst_24 = arith.constant dense<0.000000e+00> : vector<512x1024xf32>
    %38 = tpu.matmul %36, %37, %cst_24 {dimension_numbers = #tpu.dot_dimension_numbers<[1], [0], [0], [1], [0, 0, 1, 1], [], []>} : vector<512x128xbf16>, vector<128x1024xbf16>, vector<512x1024xf32> -> vector<512x1024xf32>
    %c0_25 = arith.constant 0 : index
    %c0_26 = arith.constant 0 : index
    %39 = vector.load %arg10[%c0_25, %c0_26] : memref<1x1024xf32, #tpu.memory_space<vmem>>, vector<1x1024xf32>
    %40 = vector.broadcast %39 : vector<1x1024xf32> to vector<512x1024xf32>
    %41 = arith.addf %38, %40 : vector<512x1024xf32>
    %cst_27 = arith.constant 0.000000e+00 : f32
    %42 = vector.broadcast %cst_27 : f32 to vector<512x1024xf32>
    %43 = arith.maximumf %41, %42 : vector<512x1024xf32>
    %44 = arith.truncf %43 : vector<512x1024xf32> to vector<512x1024xbf16>
    %c0_28 = arith.constant 0 : index
    %c0_29 = arith.constant 0 : index
    %45 = vector.load %arg11[%c0_28, %c0_29] : memref<1024x512xbf16, #tpu.memory_space<vmem>>, vector<1024x512xbf16>
    %cst_30 = arith.constant dense<0.000000e+00> : vector<512x512xf32>
    %46 = tpu.matmul %44, %45, %cst_30 {dimension_numbers = #tpu.dot_dimension_numbers<[1], [0], [0], [1], [0, 0, 1, 1], [], []>} : vector<512x1024xbf16>, vector<1024x512xbf16>, vector<512x512xf32> -> vector<512x512xf32>
    %c0_31 = arith.constant 0 : index
    %c0_32 = arith.constant 0 : index
    %47 = vector.load %arg12[%c0_31, %c0_32] : memref<1x512xf32, #tpu.memory_space<vmem>>, vector<1x512xf32>
    %48 = vector.broadcast %47 : vector<1x512xf32> to vector<512x512xf32>
    %49 = arith.addf %46, %48 : vector<512x512xf32>
    %cst_33 = arith.constant 0.000000e+00 : f32
    %50 = vector.broadcast %cst_33 : f32 to vector<512x512xf32>
    %51 = arith.maximumf %49, %50 : vector<512x512xf32>
    %52 = arith.truncf %51 : vector<512x512xf32> to vector<512x512xbf16>
    %c0_34 = arith.constant 0 : index
    %c0_35 = arith.constant 0 : index
    %53 = vector.load %arg13[%c0_34, %c0_35] : memref<512x256xbf16, #tpu.memory_space<vmem>>, vector<512x256xbf16>
    %cst_36 = arith.constant dense<0.000000e+00> : vector<512x256xf32>
    %54 = tpu.matmul %52, %53, %cst_36 {dimension_numbers = #tpu.dot_dimension_numbers<[1], [0], [0], [1], [0, 0, 1, 1], [], []>} : vector<512x512xbf16>, vector<512x256xbf16>, vector<512x256xf32> -> vector<512x256xf32>
    %c0_37 = arith.constant 0 : index
    %c0_38 = arith.constant 0 : index
    %55 = vector.load %arg14[%c0_37, %c0_38] : memref<1x256xf32, #tpu.memory_space<vmem>>, vector<1x256xf32>
    %56 = vector.broadcast %55 : vector<1x256xf32> to vector<512x256xf32>
    %57 = arith.addf %54, %56 : vector<512x256xf32>
    %58 = math.tanh %57 : vector<512x256xf32>
    %c0_39 = arith.constant 0 : index
    %c0_40 = arith.constant 0 : index
    %59 = vector.load %arg15[%c0_39, %c0_40] : memref<512x256xf32, #tpu.memory_space<vmem>>, vector<512x256xf32>
    tpu.vector_store %arg15[%c0_39, %c0_40], %58 {strides = array<i32>} : memref<512x256xf32, #tpu.memory_space<vmem>>, vector<512x256xf32>,
    return
  }
  func.func @transform_0(%arg0: i32) -> (i32, i32) {
    %c0_i32 = arith.constant 0 : i32
    %c0_i32_0 = arith.constant 0 : i32
    return %arg0, %c0_i32 : i32, i32
  }
  func.func @transform_1(%arg0: i32) -> (i32, i32) {
    %c0_i32 = arith.constant 0 : i32
    %c0_i32_0 = arith.constant 0 : i32
    %c0_i32_1 = arith.constant 0 : i32
    return %c0_i32, %c0_i32_0 : i32, i32
  }
  func.func @transform_2(%arg0: i32) -> (i32, i32) {
    %c0_i32 = arith.constant 0 : i32
    %c0_i32_0 = arith.constant 0 : i32
    %c0_i32_1 = arith.constant 0 : i32
    return %c0_i32, %c0_i32_0 : i32, i32
  }
  func.func @transform_3(%arg0: i32) -> (i32, i32) {
    %c0_i32 = arith.constant 0 : i32
    %c0_i32_0 = arith.constant 0 : i32
    %c0_i32_1 = arith.constant 0 : i32
    return %c0_i32, %c0_i32_0 : i32, i32
  }
  func.func @transform_4(%arg0: i32) -> (i32, i32) {
    %c0_i32 = arith.constant 0 : i32
    %c0_i32_0 = arith.constant 0 : i32
    %c0_i32_1 = arith.constant 0 : i32
    return %c0_i32, %c0_i32_0 : i32, i32
  }
  func.func @transform_5(%arg0: i32) -> (i32, i32) {
    %c0_i32 = arith.constant 0 : i32
    %c0_i32_0 = arith.constant 0 : i32
    %c0_i32_1 = arith.constant 0 : i32
    return %c0_i32, %c0_i32_0 : i32, i32
  }
  func.func @transform_6(%arg0: i32) -> (i32, i32) {
    %c0_i32 = arith.constant 0 : i32
    %c0_i32_0 = arith.constant 0 : i32
    %c0_i32_1 = arith.constant 0 : i32
    return %c0_i32, %c0_i32_0 : i32, i32
  }
  func.func @transform_7(%arg0: i32) -> (i32, i32) {
    %c0_i32 = arith.constant 0 : i32
    %c0_i32_0 = arith.constant 0 : i32
    %c0_i32_1 = arith.constant 0 : i32
    return %c0_i32, %c0_i32_0 : i32, i32
  }
  func.func @transform_8(%arg0: i32) -> (i32, i32) {
    %c0_i32 = arith.constant 0 : i32
    %c0_i32_0 = arith.constant 0 : i32
    %c0_i32_1 = arith.constant 0 : i32
    return %c0_i32, %c0_i32_0 : i32, i32
  }
  func.func @transform_9(%arg0: i32) -> (i32, i32) {
    %c0_i32 = arith.constant 0 : i32
    %c0_i32_0 = arith.constant 0 : i32
    %c0_i32_1 = arith.constant 0 : i32
    return %c0_i32, %c0_i32_0 : i32, i32
  }
  func.func @transform_10(%arg0: i32) -> (i32, i32) {
    %c0_i32 = arith.constant 0 : i32
    %c0_i32_0 = arith.constant 0 : i32
    %c0_i32_1 = arith.constant 0 : i32
    return %c0_i32, %c0_i32_0 : i32, i32
  }
  func.func @transform_11(%arg0: i32) -> (i32, i32) {
    %c0_i32 = arith.constant 0 : i32
    %c0_i32_0 = arith.constant 0 : i32
    %c0_i32_1 = arith.constant 0 : i32
    return %c0_i32, %c0_i32_0 : i32, i32
  }
  func.func @transform_12(%arg0: i32) -> (i32, i32) {
    %c0_i32 = arith.constant 0 : i32
    %c0_i32_0 = arith.constant 0 : i32
    %c0_i32_1 = arith.constant 0 : i32
    return %c0_i32, %c0_i32_0 : i32, i32
  }
  func.func @transform_13(%arg0: i32) -> (i32, i32) {
    %c0_i32 = arith.constant 0 : i32
    %c0_i32_0 = arith.constant 0 : i32
    %c0_i32_1 = arith.constant 0 : i32
    return %c0_i32, %c0_i32_0 : i32, i32
  }
  func.func @transform_14(%arg0: i32) -> (i32, i32) {
    %c0_i32 = arith.constant 0 : i32
    %c0_i32_0 = arith.constant 0 : i32
    return %arg0, %c0_i32 : i32, i32
  }
}

</mosaic_0001>

<llo_original>
// kernel: tpu_custom_call.1
$region0: #{tpu_custom_call.1}
  #allocation0 [shape = 'u32[]', space=smem, size = 0x4, offset = 0x4, fixed_abs, tag = 'smem constant byte address 0x4 - core index']
  #allocation1 [shape = 'u32[144,128]{1,0:T(1,128)}', space=vmem, size = 0x12000, scoped, tag = 'internal scratch']
  %s0 = inlined_call_operand.vmem [shape: f32[1024,8], index: 0, kind: input, shape index: {}]
  %s1 = inlined_call_operand.hbm [shape: bf16[8,128], index: 1, kind: input, shape index: {}]
  %s2 = inlined_call_operand.hbm [shape: bf16[128,256], index: 2, kind: input, shape index: {}]
  %s3 = inlined_call_operand.vmem [shape: f32[1,256], index: 3, kind: input, shape index: {}]
  %s4 = inlined_call_operand.vmem [shape: bf16[128,128], index: 4, kind: input, shape index: {}]
  %s5 = inlined_call_operand.vmem [shape: f32[1,128], index: 5, kind: input, shape index: {}]
  %s6 = inlined_call_operand.hbm [shape: bf16[128,256], index: 6, kind: input, shape index: {}]
  %s7 = inlined_call_operand.vmem [shape: f32[1,256], index: 7, kind: input, shape index: {}]
  %s8 = inlined_call_operand.vmem [shape: bf16[128,1024], index: 8, kind: input, shape index: {}]
  %s9 = inlined_call_operand.vmem [shape: f32[1,1024], index: 9, kind: input, shape index: {}]
  %s10 = inlined_call_operand.hbm [shape: bf16[1024,512], index: 10, kind: input, shape index: {}]
  %s11 = inlined_call_operand.vmem [shape: f32[1,512], index: 11, kind: input, shape index: {}]
  %s12 = inlined_call_operand.vmem [shape: bf16[512,256], index: 12, kind: input, shape index: {}]
  %s13 = inlined_call_operand.vmem [shape: f32[1,256], index: 13, kind: input, shape index: {}]
  %s14 = inlined_call_operand.hbm [shape: f32[1024,256], index: 14, kind: output, shape index: {}]
  %s15 = sld [smem:[#allocation0]]
  $region105: #{tpu_custom_call.1} parent=0
    _
  %s17 = ssub.s32 1, %s15
  %s18 = scalar_select 0, %s17, %s15
  $region1: #{tpu_custom_call.1} parent=0
    #allocation2 [shape = 'u8[2048]{0}', space=vmem, size = 0x800, scoped, tag = 'input window, operand 1, single buffered']
    #allocation3 [shape = 's32[2]{0}', space=sflag, size = 0x8, scoped, tag = 'scoped memory for tpu_custom_call.1']
    #allocation4 [shape = 's32[2]{0}', space=sflag, size = 0x8, scoped, tag = 'scoped memory for tpu_custom_call.1']
    #allocation5 [shape = 'u8[65536]{0}', space=vmem, size = 0x10000, scoped, tag = 'input window, operand 2, single buffered']
    #allocation6 [shape = 's32[1]{0}', space=sflag, size = 0x4, scoped, tag = 'scoped memory for tpu_custom_call.1']
    #allocation7 [shape = 'u8[65536]{0}', space=vmem, size = 0x10000, scoped, tag = 'input window, operand 6, single buffered']
    #allocation8 [shape = 'u8[1048576]{0}', space=vmem, size = 0x100000, scoped, tag = 'input window, operand 10, single buffered']
    #allocation9 [shape = 's32[1]{0}', space=sflag, size = 0x4, scoped, tag = 'scoped memory for tpu_custom_call.1']
    #allocation10 [shape = 'u8[1048576]{0}', space=vmem, size = 0x100000, scoped, tag = 'output window, operand 0']
    %19 = vsyncpa [#allocation3], 0
    %20 = vsyncpa [#allocation6], 0
    %21 = vsyncpa [#allocation9], 0
    %22 = vsyncpa [#allocation4], 0
    %s23 = scalar_lea.sflag [#allocation4], 1
    %24 = vsyncpa %s23, 0
    loop: start=0, step=1, limit=4
    $region2: #{tpu_custom_call.1} parent=1 // loop_pre_header
      _
    $region3: #{tpu_custom_call.1} parent=1 // loop_header
      %s26 = sphi 0, %s30
      %p27 = scmp.ge.s32.totalorder %s26, 4
      %s36 = sphi 0, %s38
      %s39 = sphi 0, %s36
      %s40 = sphi 0, %s39
      %s56 = sphi 0, %s40
      %s60 = sphi 0, %s60
      %s62 = sphi 0, %s60
      %s63 = sphi 0, %s62
      %s77 = sphi 0, %s63
      %s81 = sphi 0, %s81
      %s83 = sphi 0, %s81
      %s84 = sphi 0, %s83
      %s98 = sphi 0, %s84
      %s102 = sphi 0, %s102
      %s104 = sphi 0, %s102
      %s105 = sphi 0, %s104
      %s119 = sphi 0, %s105
      %s123 = sphi 0, %s123
      %s125 = sphi 0, %s123
      %s126 = sphi 0, %s125
      %s140 = sphi 0, %s126
      %s144 = sphi 0, %s144
      %s146 = sphi 0, %s144
      %s147 = sphi 0, %s146
      %s161 = sphi 0, %s147
      %s165 = sphi 0, %s165
      %s167 = sphi 0, %s165
      %s168 = sphi 0, %s167
      %s182 = sphi 0, %s168
      %s186 = sphi 0, %s186
      %s188 = sphi 0, %s186
      %s189 = sphi 0, %s188
      %s203 = sphi 0, %s189
      %s207 = sphi 0, %s207
      %s209 = sphi 0, %s207
      %s210 = sphi 0, %s209
      %s224 = sphi 0, %s210
      %s228 = sphi 0, %s228
      %s230 = sphi 0, %s228
      %s231 = sphi 0, %s230
      %s245 = sphi 0, %s231
      %s249 = sphi 0, %s249
      %s251 = sphi 0, %s249
      %s252 = sphi 0, %s251
      %s266 = sphi 0, %s252
      %s270 = sphi 0, %s270
      %s272 = sphi 0, %s270
      %s273 = sphi 0, %s272
      %s287 = sphi 0, %s273
      %s291 = sphi 0, %s291
      %s293 = sphi 0, %s291
      %s294 = sphi 0, %s293
      %s308 = sphi 0, %s294
      %s312 = sphi 0, %s312
      %s314 = sphi 0, %s312
      %s315 = sphi 0, %s314
      %s329 = sphi 0, %s315
      %s335 = sphi 0, %s337
      %s338 = sphi 0, %s335
      %s339 = sphi 0, %s338
      %s355 = sphi 0, %s339
    $region4: #{tpu_custom_call.1} parent=1 // loop_header_branch
      %29 = sbr.rel (%p27) target = $region8
    $region5: #{tpu_custom_call.1} parent=1 // loop_body
      %s31 = ssub.s32 %s26, 1
      %s32 = ssub.s32 %s26, 2
      %s33 = sadd.s32 %s26, 1
      %s34 = ssub.s32 %s26, %s33
      %p35 = scmp.eq.s32.totalorder %s34, 0
      %s37 = sadd.s32 %s36, 1
      %s38 = scalar_select %p35, %s36, %s37
      %p41 = pneg %p35
      %p42 = scmp.eq.s32.totalorder %s26, 1
      %p43 = por %p41, %p42
      %p44 = scmp.ne.s32.totalorder %s36, %s39
      %p45 = scmp.eq.s32.totalorder %s26, 0
      %p46 = por %p44, %p45
      %p47 = scmp.ne.s32.totalorder %s36, %s39
      %p48 = scmp.eq.s32.totalorder %s31, 1
      %p49 = por %p47, %p48
      %p50 = scmp.ne.s32.totalorder %s39, %s40
      %p51 = scmp.eq.s32.totalorder %s31, 0
      %p52 = por %p50, %p51
      %p53 = scmp.ne.s32.totalorder %s39, %s40
      %p54 = scmp.eq.s32.totalorder %s32, 1
      %p55 = por %p53, %p54
      %p57 = scmp.ne.s32.totalorder %s40, %s56
      %p58 = scmp.eq.s32.totalorder %s32, 0
      %p59 = por %p57, %p58
      %s61 = sadd.s32 %s60, 1
      %p64 = scmp.eq.s32.totalorder %s26, 1
      %p65 = scmp.ne.s32.totalorder %s60, %s62
      %p66 = scmp.eq.s32.totalorder %s26, 0
      %p67 = por %p65, %p66
      %p68 = scmp.ne.s32.totalorder %s60, %s62
      %p69 = scmp.eq.s32.totalorder %s31, 1
      %p70 = por %p68, %p69
      %p71 = scmp.ne.s32.totalorder %s62, %s63
      %p72 = scmp.eq.s32.totalorder %s31, 0
      %p73 = por %p71, %p72
      %p74 = scmp.ne.s32.totalorder %s62, %s63
      %p75 = scmp.eq.s32.totalorder %s32, 1
      %p76 = por %p74, %p75
      %p78 = scmp.ne.s32.totalorder %s63, %s77
      %p79 = scmp.eq.s32.totalorder %s32, 0
      %p80 = por %p78, %p79
      %s82 = sadd.s32 %s81, 1
      %p85 = scmp.eq.s32.totalorder %s26, 1
      %p86 = scmp.ne.s32.totalorder %s81, %s83
      %p87 = scmp.eq.s32.totalorder %s26, 0
      %p88 = por %p86, %p87
      %p89 = scmp.ne.s32.totalorder %s81, %s83
      %p90 = scmp.eq.s32.totalorder %s31, 1
      %p91 = por %p89, %p90
      %p92 = scmp.ne.s32.totalorder %s83, %s84
      %p93 = scmp.eq.s32.totalorder %s31, 0
      %p94 = por %p92, %p93
      %p95 = scmp.ne.s32.totalorder %s83, %s84
      %p96 = scmp.eq.s32.totalorder %s32, 1
      %p97 = por %p95, %p96
      %p99 = scmp.ne.s32.totalorder %s84, %s98
      %p100 = scmp.eq.s32.totalorder %s32, 0
      %p101 = por %p99, %p100
      %s103 = sadd.s32 %s102, 1
      %p106 = scmp.eq.s32.totalorder %s26, 1
      %p107 = scmp.ne.s32.totalorder %s102, %s104
      %p108 = scmp.eq.s32.totalorder %s26, 0
      %p109 = por %p107, %p108
      %p110 = scmp.ne.s32.totalorder %s102, %s104
      %p111 = scmp.eq.s32.totalorder %s31, 1
      %p112 = por %p110, %p111
      %p113 = scmp.ne.s32.totalorder %s104, %s105
      %p114 = scmp.eq.s32.totalorder %s31, 0
      %p115 = por %p113, %p114
      %p116 = scmp.ne.s32.totalorder %s104, %s105
      %p117 = scmp.eq.s32.totalorder %s32, 1
      %p118 = por %p116, %p117
      %p120 = scmp.ne.s32.totalorder %s105, %s119
      %p121 = scmp.eq.s32.totalorder %s32, 0
      %p122 = por %p120, %p121
      %s124 = sadd.s32 %s123, 1
      %p127 = scmp.eq.s32.totalorder %s26, 1
      %p128 = scmp.ne.s32.totalorder %s123, %s125
      %p129 = scmp.eq.s32.totalorder %s26, 0
      %p130 = por %p128, %p129
      %p131 = scmp.ne.s32.totalorder %s123, %s125
      %p132 = scmp.eq.s32.totalorder %s31, 1
      %p133 = por %p131, %p132
      %p134 = scmp.ne.s32.totalorder %s125, %s126
      %p135 = scmp.eq.s32.totalorder %s31, 0
      %p136 = por %p134, %p135
      %p137 = scmp.ne.s32.totalorder %s125, %s126
      %p138 = scmp.eq.s32.totalorder %s32, 1
      %p139 = por %p137, %p138
      %p141 = scmp.ne.s32.totalorder %s126, %s140
      %p142 = scmp.eq.s32.totalorder %s32, 0
      %p143 = por %p141, %p142
      %s145 = sadd.s32 %s144, 1
      %p148 = scmp.eq.s32.totalorder %s26, 1
      %p149 = scmp.ne.s32.totalorder %s144, %s146
      %p150 = scmp.eq.s32.totalorder %s26, 0
      %p151 = por %p149, %p150
      %p152 = scmp.ne.s32.totalorder %s144, %s146
      %p153 = scmp.eq.s32.totalorder %s31, 1
      %p154 = por %p152, %p153
      %p155 = scmp.ne.s32.totalorder %s146, %s147
      %p156 = scmp.eq.s32.totalorder %s31, 0
      %p157 = por %p155, %p156
      %p158 = scmp.ne.s32.totalorder %s146, %s147
      %p159 = scmp.eq.s32.totalorder %s32, 1
      %p160 = por %p158, %p159
      %p162 = scmp.ne.s32.totalorder %s147, %s161
      %p163 = scmp.eq.s32.totalorder %s32, 0
      %p164 = por %p162, %p163
      %s166 = sadd.s32 %s165, 1
      %p169 = scmp.eq.s32.totalorder %s26, 1
      %p170 = scmp.ne.s32.totalorder %s165, %s167
      %p171 = scmp.eq.s32.totalorder %s26, 0
      %p172 = por %p170, %p171
      %p173 = scmp.ne.s32.totalorder %s165, %s167
      %p174 = scmp.eq.s32.totalorder %s31, 1
      %p175 = por %p173, %p174
      %p176 = scmp.ne.s32.totalorder %s167, %s168
      %p177 = scmp.eq.s32.totalorder %s31, 0
      %p178 = por %p176, %p177
      %p179 = scmp.ne.s32.totalorder %s167, %s168
      %p180 = scmp.eq.s32.totalorder %s32, 1
      %p181 = por %p179, %p180
      %p183 = scmp.ne.s32.totalorder %s168, %s182
      %p184 = scmp.eq.s32.totalorder %s32, 0
      %p185 = por %p183, %p184
      %s187 = sadd.s32 %s186, 1
      %p190 = scmp.eq.s32.totalorder %s26, 1
      %p191 = scmp.ne.s32.totalorder %s186, %s188
      %p192 = scmp.eq.s32.totalorder %s26, 0
      %p193 = por %p191, %p192
      %p194 = scmp.ne.s32.totalorder %s186, %s188
      %p195 = scmp.eq.s32.totalorder %s31, 1
      %p196 = por %p194, %p195
      %p197 = scmp.ne.s32.totalorder %s188, %s189
      %p198 = scmp.eq.s32.totalorder %s31, 0
      %p199 = por %p197, %p198
      %p200 = scmp.ne.s32.totalorder %s188, %s189
      %p201 = scmp.eq.s32.totalorder %s32, 1
      %p202 = por %p200, %p201
      %p204 = scmp.ne.s32.totalorder %s189, %s203
      %p205 = scmp.eq.s32.totalorder %s32, 0
      %p206 = por %p204, %p205
      %s208 = sadd.s32 %s207, 1
      %p211 = scmp.eq.s32.totalorder %s26, 1
      %p212 = scmp.ne.s32.totalorder %s207, %s209
      %p213 = scmp.eq.s32.totalorder %s26, 0
      %p214 = por %p212, %p213
      %p215 = scmp.ne.s32.totalorder %s207, %s209
      %p216 = scmp.eq.s32.totalorder %s31, 1
      %p217 = por %p215, %p216
      %p218 = scmp.ne.s32.totalorder %s209, %s210
      %p219 = scmp.eq.s32.totalorder %s31, 0
      %p220 = por %p218, %p219
      %p221 = scmp.ne.s32.totalorder %s209, %s210
      %p222 = scmp.eq.s32.totalorder %s32, 1
      %p223 = por %p221, %p222
      %p225 = scmp.ne.s32.totalorder %s210, %s224
      %p226 = scmp.eq.s32.totalorder %s32, 0
      %p227 = por %p225, %p226
      %s229 = sadd.s32 %s228, 1
      %p232 = scmp.eq.s32.totalorder %s26, 1
      %p233 = scmp.ne.s32.totalorder %s228, %s230
      %p234 = scmp.eq.s32.totalorder %s26, 0
      %p235 = por %p233, %p234
      %p236 = scmp.ne.s32.totalorder %s228, %s230
      %p237 = scmp.eq.s32.totalorder %s31, 1
      %p238 = por %p236, %p237
      %p239 = scmp.ne.s32.totalorder %s230, %s231
      %p240 = scmp.eq.s32.totalorder %s31, 0
      %p241 = por %p239, %p240
      %p242 = scmp.ne.s32.totalorder %s230, %s231
      %p243 = scmp.eq.s32.totalorder %s32, 1
      %p244 = por %p242, %p243
      %p246 = scmp.ne.s32.totalorder %s231, %s245
      %p247 = scmp.eq.s32.totalorder %s32, 0
      %p248 = por %p246, %p247
      %s250 = sadd.s32 %s249, 1
      %p253 = scmp.eq.s32.totalorder %s26, 1
      %p254 = scmp.ne.s32.totalorder %s249, %s251
      %p255 = scmp.eq.s32.totalorder %s26, 0
      %p256 = por %p254, %p255
      %p257 = scmp.ne.s32.totalorder %s249, %s251
      %p258 = scmp.eq.s32.totalorder %s31, 1
      %p259 = por %p257, %p258
      %p260 = scmp.ne.s32.totalorder %s251, %s252
      %p261 = scmp.eq.s32.totalorder %s31, 0
      %p262 = por %p260, %p261
      %p263 = scmp.ne.s32.totalorder %s251, %s252
      %p264 = scmp.eq.s32.totalorder %s32, 1
      %p265 = por %p263, %p264
      %p267 = scmp.ne.s32.totalorder %s252, %s266
      %p268 = scmp.eq.s32.totalorder %s32, 0
      %p269 = por %p267, %p268
      %s271 = sadd.s32 %s270, 1
      %p274 = scmp.eq.s32.totalorder %s26, 1
      %p275 = scmp.ne.s32.totalorder %s270, %s272
      %p276 = scmp.eq.s32.totalorder %s26, 0
      %p277 = por %p275, %p276
      %p278 = scmp.ne.s32.totalorder %s270, %s272
      %p279 = scmp.eq.s32.totalorder %s31, 1
      %p280 = por %p278, %p279
      %p281 = scmp.ne.s32.totalorder %s272, %s273
      %p282 = scmp.eq.s32.totalorder %s31, 0
      %p283 = por %p281, %p282
      %p284 = scmp.ne.s32.totalorder %s272, %s273
      %p285 = scmp.eq.s32.totalorder %s32, 1
      %p286 = por %p284, %p285
      %p288 = scmp.ne.s32.totalorder %s273, %s287
      %p289 = scmp.eq.s32.totalorder %s32, 0
      %p290 = por %p288, %p289
      %s292 = sadd.s32 %s291, 1
      %p295 = scmp.eq.s32.totalorder %s26, 1
      %p296 = scmp.ne.s32.totalorder %s291, %s293
      %p297 = scmp.eq.s32.totalorder %s26, 0
      %p298 = por %p296, %p297
      %p299 = scmp.ne.s32.totalorder %s291, %s293
      %p300 = scmp.eq.s32.totalorder %s31, 1
      %p301 = por %p299, %p300
      %p302 = scmp.ne.s32.totalorder %s293, %s294
      %p303 = scmp.eq.s32.totalorder %s31, 0
      %p304 = por %p302, %p303
      %p305 = scmp.ne.s32.totalorder %s293, %s294
      %p306 = scmp.eq.s32.totalorder %s32, 1
      %p307 = por %p305, %p306
      %p309 = scmp.ne.s32.totalorder %s294, %s308
      %p310 = scmp.eq.s32.totalorder %s32, 0
      %p311 = por %p309, %p310
      %s313 = sadd.s32 %s312, 1
      %p316 = scmp.eq.s32.totalorder %s26, 1
      %p317 = scmp.ne.s32.totalorder %s312, %s314
      %p318 = scmp.eq.s32.totalorder %s26, 0
      %p319 = por %p317, %p318
      %p320 = scmp.ne.s32.totalorder %s312, %s314
      %p321 = scmp.eq.s32.totalorder %s31, 1
      %p322 = por %p320, %p321
      %p323 = scmp.ne.s32.totalorder %s314, %s315
      %p324 = scmp.eq.s32.totalorder %s31, 0
      %p325 = por %p323, %p324
      %p326 = scmp.ne.s32.totalorder %s314, %s315
      %p327 = scmp.eq.s32.totalorder %s32, 1
      %p328 = por %p326, %p327
      %p330 = scmp.ne.s32.totalorder %s315, %s329
      %p331 = scmp.eq.s32.totalorder %s32, 0
      %p332 = por %p330, %p331
      %s333 = ssub.s32 %s26, %s33
      %p334 = scmp.eq.s32.totalorder %s333, 0
      %s336 = sadd.s32 %s335, 1
      %s337 = scalar_select %p334, %s335, %s336
      %p340 = pneg %p334
      %p341 = scmp.eq.s32.totalorder %s26, 1
      %p342 = por %p340, %p341
      %p343 = scmp.ne.s32.totalorder %s335, %s338
      %p344 = scmp.eq.s32.totalorder %s26, 0
      %p345 = por %p343, %p344
      %p346 = scmp.ne.s32.totalorder %s335, %s338
      %p347 = scmp.eq.s32.totalorder %s31, 1
      %p348 = por %p346, %p347
      %p349 = scmp.ne.s32.totalorder %s338, %s339
      %p350 = scmp.eq.s32.totalorder %s31, 0
      %p351 = por %p349, %p350
      %p352 = scmp.ne.s32.totalorder %s338, %s339
      %p353 = scmp.eq.s32.totalorder %s32, 1
      %p354 = por %p352, %p353
      %p356 = scmp.ne.s32.totalorder %s339, %s355
      %p357 = scmp.eq.s32.totalorder %s32, 0
      %p358 = por %p356, %p357
      %p359 = scmp.le.s32.totalorder 1, %s26
      %p360 = scmp.lt.s32.totalorder %s26, 3
      %p361 = pnand %p359, %p360
      %p362 = pneg %p361
      // Predicated region
      $region9: #{tpu_custom_call.1} parent=5 // pred_check
        _
      $region10: #{tpu_custom_call.1} parent=5 // pred_check_branch
        %364 = sbr.rel (%p361) target = $region12
      $region11: #{tpu_custom_call.1} parent=5 // pred_region
        %s365 = ssub.s32 %s26, 1
        // Predicated region
        $region13: #{tpu_custom_call.1} parent=11 // pred_check
          %p366 = pneg %p73
        $region14: #{tpu_custom_call.1} parent=11 // pred_check_branch
          %368 = sbr.rel (%p366) target = $region16
        $region15: #{tpu_custom_call.1} parent=11 // pred_region
          %s370 = ssub.s32 64, 64
          %371 = vsyncadd [#allocation3], %s370
          %s373 = sshll.u32 [#allocation2], 4
          %s374 = int_to_ptr.vmem [resolvable:$true] %s373
          %376 = dma.hbm_to_vmem [thread:$0]  %s1, 64, %s374, [#allocation3]
        $region16: #{tpu_custom_call.1} parent=11 // pred_fallthru
          _
        // Predicated region
        $region17: #{tpu_custom_call.1} parent=11 // pred_check
          %p377 = pneg %p94
        $region18: #{tpu_custom_call.1} parent=11 // pred_check_branch
          %379 = sbr.rel (%p377) target = $region20
        $region19: #{tpu_custom_call.1} parent=11 // pred_region
          %s381 = ssub.s32 2048, 2048
          %382 = vsyncadd [#allocation6], %s381
          %s383 = sshll.u32 [#allocation5], 4
          %s384 = int_to_ptr.vmem [resolvable:$true] %s383
          %389 = dma.hbm_to_vmem [thread:$0]  %s2, 2048, %s384, [#allocation6], 128, 128, 8
        $region20: #{tpu_custom_call.1} parent=11 // pred_fallthru
          _
        // Predicated region
        $region21: #{tpu_custom_call.1} parent=11 // pred_check
          %p390 = pneg %p115
        $region22: #{tpu_custom_call.1} parent=11 // pred_check_branch
          %392 = sbr.rel (%p390) target = $region24
        $region23: #{tpu_custom_call.1} parent=11 // pred_region
          _
        $region24: #{tpu_custom_call.1} parent=11 // pred_fallthru
          _
        // Predicated region
        $region25: #{tpu_custom_call.1} parent=11 // pred_check
          %p393 = pneg %p136
        $region26: #{tpu_custom_call.1} parent=11 // pred_check_branch
          %395 = sbr.rel (%p393) target = $region28
        $region27: #{tpu_custom_call.1} parent=11 // pred_region
          _
        $region28: #{tpu_custom_call.1} parent=11 // pred_fallthru
          _
        // Predicated region
        $region29: #{tpu_custom_call.1} parent=11 // pred_check
          %p396 = pneg %p157
        $region30: #{tpu_custom_call.1} parent=11 // pred_check_branch
          %398 = sbr.rel (%p396) target = $region32
        $region31: #{tpu_custom_call.1} parent=11 // pred_region
          _
        $region32: #{tpu_custom_call.1} parent=11 // pred_fallthru
          _
        // Predicated region
        $region33: #{tpu_custom_call.1} parent=11 // pred_check
          %p399 = pneg %p178
        $region34: #{tpu_custom_call.1} parent=11 // pred_check_branch
          %401 = sbr.rel (%p399) target = $region36
        $region35: #{tpu_custom_call.1} parent=11 // pred_region
          %s403 = ssub.s32 2048, 2048
          %404 = vsyncadd [#allocation6], %s403
          %s405 = sshll.u32 [#allocation7], 4
          %s406 = int_to_ptr.vmem [resolvable:$true] %s405
          %411 = dma.hbm_to_vmem [thread:$0]  %s6, 2048, %s406, [#allocation6], 128, 128, 8
        $region36: #{tpu_custom_call.1} parent=11 // pred_fallthru
          _
        // Predicated region
        $region37: #{tpu_custom_call.1} parent=11 // pred_check
          %p412 = pneg %p199
        $region38: #{tpu_custom_call.1} parent=11 // pred_check_branch
          %414 = sbr.rel (%p412) target = $region40
        $region39: #{tpu_custom_call.1} parent=11 // pred_region
          _
        $region40: #{tpu_custom_call.1} parent=11 // pred_fallthru
          _
        // Predicated region
        $region41: #{tpu_custom_call.1} parent=11 // pred_check
          %p415 = pneg %p220
        $region42: #{tpu_custom_call.1} parent=11 // pred_check_branch
          %417 = sbr.rel (%p415) target = $region44
        $region43: #{tpu_custom_call.1} parent=11 // pred_region
          _
        $region44: #{tpu_custom_call.1} parent=11 // pred_fallthru
          _
        // Predicated region
        $region45: #{tpu_custom_call.1} parent=11 // pred_check
          %p418 = pneg %p241
        $region46: #{tpu_custom_call.1} parent=11 // pred_check_branch
          %420 = sbr.rel (%p418) target = $region48
        $region47: #{tpu_custom_call.1} parent=11 // pred_region
          _
        $region48: #{tpu_custom_call.1} parent=11 // pred_fallthru
          _
        // Predicated region
        $region49: #{tpu_custom_call.1} parent=11 // pred_check
          %p421 = pneg %p262
        $region50: #{tpu_custom_call.1} parent=11 // pred_check_branch
          %423 = sbr.rel (%p421) target = $region52
        $region51: #{tpu_custom_call.1} parent=11 // pred_region
          %s425 = ssub.s32 32768, 32768
          %426 = vsyncadd [#allocation9], %s425
          %s427 = sshll.u32 [#allocation8], 4
          %s428 = int_to_ptr.vmem [resolvable:$true] %s427
          %433 = dma.hbm_to_vmem [thread:$0]  %s10, 32768, %s428, [#allocation9], 256, 256, 16
        $region52: #{tpu_custom_call.1} parent=11 // pred_fallthru
          _
        // Predicated region
        $region53: #{tpu_custom_call.1} parent=11 // pred_check
          %p434 = pneg %p283
        $region54: #{tpu_custom_call.1} parent=11 // pred_check_branch
          %436 = sbr.rel (%p434) target = $region56
        $region55: #{tpu_custom_call.1} parent=11 // pred_region
          _
        $region56: #{tpu_custom_call.1} parent=11 // pred_fallthru
          _
        // Predicated region
        $region57: #{tpu_custom_call.1} parent=11 // pred_check
          %p437 = pneg %p304
        $region58: #{tpu_custom_call.1} parent=11 // pred_check_branch
          %439 = sbr.rel (%p437) target = $region60
        $region59: #{tpu_custom_call.1} parent=11 // pred_region
          _
        $region60: #{tpu_custom_call.1} parent=11 // pred_fallthru
          _
        // Predicated region
        $region61: #{tpu_custom_call.1} parent=11 // pred_check
          %p440 = pneg %p325
        $region62: #{tpu_custom_call.1} parent=11 // pred_check_branch
          %442 = sbr.rel (%p440) target = $region64
        $region63: #{tpu_custom_call.1} parent=11 // pred_region
          _
        $region64: #{tpu_custom_call.1} parent=11 // pred_fallthru
          _
      $region12: #{tpu_custom_call.1} parent=5 // pred_fallthru
        _
      %p443 = scmp.lt.s32.totalorder %s26, 2
      // Predicated region
      $region65: #{tpu_custom_call.1} parent=5 // pred_check
        %p444 = pneg %p443
      $region66: #{tpu_custom_call.1} parent=5 // pred_check_branch
        %446 = sbr.rel (%p444) target = $region68
      $region67: #{tpu_custom_call.1} parent=5 // pred_region
        // Predicated region
        $region69: #{tpu_custom_call.1} parent=67 // pred_check
          %p447 = pneg %p46
        $region70: #{tpu_custom_call.1} parent=67 // pred_check_branch
          %449 = sbr.rel (%p447) target = $region72
        $region71: #{tpu_custom_call.1} parent=67 // pred_region
          %s450 = smul.u32 64, %s26
          %p451 = scmp.lt.s32.totalorder %s450, 127
          %s452 = scalar_select %p451, %s450, 127
          %s453 = smul.addr %s452, 8
          %s454 = scalar_lea.vmem %s0, %s453
          %s455 = smul.u32 64, %s26
        $region72: #{tpu_custom_call.1} parent=67 // pred_fallthru
          _
      $region68: #{tpu_custom_call.1} parent=5 // pred_fallthru
        _
      %p456 = scmp.le.s32.totalorder 1, %s26
      %p457 = scmp.lt.s32.totalorder %s26, 3
      %p458 = pnand %p456, %p457
      %p459 = pneg %p458
      // Predicated region
      $region73: #{tpu_custom_call.1} parent=5 // pred_check
        _
      $region74: #{tpu_custom_call.1} parent=5 // pred_check_branch
        %461 = sbr.rel (%p458) target = $region76
      $region75: #{tpu_custom_call.1} parent=5 // pred_region
        %s462 = ssub.s32 %s26, 1
        // Predicated region
        $region77: #{tpu_custom_call.1} parent=75 // pred_check
          %p463 = pneg %p73
        $region78: #{tpu_custom_call.1} parent=75 // pred_check_branch
          %465 = sbr.rel (%p463) target = $region80
        $region79: #{tpu_custom_call.1} parent=75 // pred_region
          %466 = dma.done [#allocation3], 64
        $region80: #{tpu_custom_call.1} parent=75 // pred_fallthru
          _
        // Predicated region
        $region81: #{tpu_custom_call.1} parent=75 // pred_check
          %p467 = pneg %p94
        $region82: #{tpu_custom_call.1} parent=75 // pred_check_branch
          %469 = sbr.rel (%p467) target = $region84
        $region83: #{tpu_custom_call.1} parent=75 // pred_region
          %470 = dma.done [#allocation6], 2048
        $region84: #{tpu_custom_call.1} parent=75 // pred_fallthru
          _
        // Predicated region
        $region85: #{tpu_custom_call.1} parent=75 // pred_check
          %p471 = pneg %p178
        $region86: #{tpu_custom_call.1} parent=75 // pred_check_branch
          %473 = sbr.rel (%p471) target = $region88
        $region87: #{tpu_custom_call.1} parent=75 // pred_region
          %474 = dma.done [#allocation6], 2048
        $region88: #{tpu_custom_call.1} parent=75 // pred_fallthru
          _
        // Predicated region
        $region89: #{tpu_custom_call.1} parent=75 // pred_check
          %p475 = pneg %p262
        $region90: #{tpu_custom_call.1} parent=75 // pred_check_branch
          %477 = sbr.rel (%p475) target = $region92
        $region91: #{tpu_custom_call.1} parent=75 // pred_region
          %478 = dma.done [#allocation9], 32768
        $region92: #{tpu_custom_call.1} parent=75 // pred_fallthru
          _
        %s479 = smul.u32 64, %s31
        %p480 = scmp.lt.s32.totalorder %s479, 127
        %s481 = scalar_select %p480, %s479, 127
        %s482 = smul.addr %s481, 8
        %s483 = scalar_lea.vmem %s0, %s482
        %p484 = pneg %p52
        %p485 = pneg %p49
        %p486 = pneg %p73
        %p487 = pneg %p70
        %p488 = pneg %p94
        %p489 = pneg %p91
        %p490 = pneg %p115
        %p491 = pneg %p112
        %p492 = pneg %p136
        %p493 = pneg %p133
        %p494 = pneg %p157
        %p495 = pneg %p154
        %p496 = pneg %p178
        %p497 = pneg %p175
        %p498 = pneg %p199
        %p499 = pneg %p196
        %p500 = pneg %p220
        %p501 = pneg %p217
        %p502 = pneg %p241
        %p503 = pneg %p238
        %p504 = pneg %p262
        %p505 = pneg %p259
        %p506 = pneg %p283
        %p507 = pneg %p280
        %p508 = pneg %p304
        %p509 = pneg %p301
        %p510 = pneg %p325
        %p511 = pneg %p322
        %p512 = pneg %p351
        %p513 = pneg %p348
        %s514 = sand.u32 %s338, 1
        %s515 = scalar_lea.sflag [#allocation4], %s514
        %s516 = sand.u32 %s338, 1
        %s517 = smul.addr %s516, 1024
        %s518 = scalar_lea.vmem [#allocation10], %s517
        %s519 = smul.u32 64, %s31
        %p520 = scmp.lt.s32.totalorder %s519, 127
        %s521 = scalar_select %p520, %s519, 127
        %s522 = smul.addr %s521, 8
        %s523 = scalar_lea.vmem %s0, %s522
        %s524 = smul.u32 64, %s31
        %s525 = smul.u32 64, %s31
        %v527 = vld [vmem:[%s523] sm:$0xff]
        %v528 = vld [vmem:[%s523 + $0x8] sm:$0xff]
        %v529 = vld [vmem:[%s523 + $0x10] sm:$0xff]
        %v530 = vld [vmem:[%s523 + $0x18] sm:$0xff]
        %v531 = vld [vmem:[%s523 + $0x20] sm:$0xff]
        %v532 = vld [vmem:[%s523 + $0x28] sm:$0xff]
        %v533 = vld [vmem:[%s523 + $0x30] sm:$0xff]
        %v534 = vld [vmem:[%s523 + $0x38] sm:$0xff]
        %v535 = vld [vmem:[%s523 + $0x40] sm:$0xff]
        %v536 = vld [vmem:[%s523 + $0x48] sm:$0xff]
        %v537 = vld [vmem:[%s523 + $0x50] sm:$0xff]
        %v538 = vld [vmem:[%s523 + $0x58] sm:$0xff]
        %v539 = vld [vmem:[%s523 + $0x60] sm:$0xff]
        %v540 = vld [vmem:[%s523 + $0x68] sm:$0xff]
        %v541 = vld [vmem:[%s523 + $0x70] sm:$0xff]
        %v542 = vld [vmem:[%s523 + $0x78] sm:$0xff]
        %v543 = vld [vmem:[%s523 + $0x80] sm:$0xff]
        %v544 = vld [vmem:[%s523 + $0x88] sm:$0xff]
        %v545 = vld [vmem:[%s523 + $0x90] sm:$0xff]
        %v546 = vld [vmem:[%s523 + $0x98] sm:$0xff]
        %v547 = vld [vmem:[%s523 + $0xa0] sm:$0xff]
        %v548 = vld [vmem:[%s523 + $0xa8] sm:$0xff]
        %v549 = vld [vmem:[%s523 + $0xb0] sm:$0xff]
        %v550 = vld [vmem:[%s523 + $0xb8] sm:$0xff]
        %v551 = vld [vmem:[%s523 + $0xc0] sm:$0xff]
        %v552 = vld [vmem:[%s523 + $0xc8] sm:$0xff]
        %v553 = vld [vmem:[%s523 + $0xd0] sm:$0xff]
        %v554 = vld [vmem:[%s523 + $0xd8] sm:$0xff]
        %v555 = vld [vmem:[%s523 + $0xe0] sm:$0xff]
        %v556 = vld [vmem:[%s523 + $0xe8] sm:$0xff]
        %v557 = vld [vmem:[%s523 + $0xf0] sm:$0xff]
        %v558 = vld [vmem:[%s523 + $0xf8] sm:$0xff]
        %v559 = vld [vmem:[%s523 + $0x100] sm:$0xff]
        %v560 = vld [vmem:[%s523 + $0x108] sm:$0xff]
        %v561 = vld [vmem:[%s523 + $0x110] sm:$0xff]
        %v562 = vld [vmem:[%s523 + $0x118] sm:$0xff]
        %v563 = vld [vmem:[%s523 + $0x120] sm:$0xff]
        %v564 = vld [vmem:[%s523 + $0x128] sm:$0xff]
        %v565 = vld [vmem:[%s523 + $0x130] sm:$0xff]
        %v566 = vld [vmem:[%s523 + $0x138] sm:$0xff]
        %v567 = vld [vmem:[%s523 + $0x140] sm:$0xff]
        %v568 = vld [vmem:[%s523 + $0x148] sm:$0xff]
        %v569 = vld [vmem:[%s523 + $0x150] sm:$0xff]
        %v570 = vld [vmem:[%s523 + $0x158] sm:$0xff]
        %v571 = vld [vmem:[%s523 + $0x160] sm:$0xff]
        %v572 = vld [vmem:[%s523 + $0x168] sm:$0xff]
        %v573 = vld [vmem:[%s523 + $0x170] sm:$0xff]
        %v574 = vld [vmem:[%s523 + $0x178] sm:$0xff]
        %v575 = vld [vmem:[%s523 + $0x180] sm:$0xff]
        %v576 = vld [vmem:[%s523 + $0x188] sm:$0xff]
        %v577 = vld [vmem:[%s523 + $0x190] sm:$0xff]
        %v578 = vld [vmem:[%s523 + $0x198] sm:$0xff]
        %v579 = vld [vmem:[%s523 + $0x1a0] sm:$0xff]
        %v580 = vld [vmem:[%s523 + $0x1a8] sm:$0xff]
        %v581 = vld [vmem:[%s523 + $0x1b0] sm:$0xff]
        %v582 = vld [vmem:[%s523 + $0x1b8] sm:$0xff]
        %v583 = vld [vmem:[%s523 + $0x1c0] sm:$0xff]
        %v584 = vld [vmem:[%s523 + $0x1c8] sm:$0xff]
        %v585 = vld [vmem:[%s523 + $0x1d0] sm:$0xff]
        %v586 = vld [vmem:[%s523 + $0x1d8] sm:$0xff]
        %v587 = vld [vmem:[%s523 + $0x1e0] sm:$0xff]
        %v588 = vld [vmem:[%s523 + $0x1e8] sm:$0xff]
        %v589 = vld [vmem:[%s523 + $0x1f0] sm:$0xff]
        %v590 = vld [vmem:[%s523 + $0x1f8] sm:$0xff]
        %v591 = vpack.c.bf16 %v528, %v527
        %v592 = vpack.c.bf16 %v530, %v529
        %v593 = vpack.c.bf16 %v532, %v531
        %v594 = vpack.c.bf16 %v534, %v533
        %v595 = vpack.c.bf16 %v536, %v535
        %v596 = vpack.c.bf16 %v538, %v537
        %v597 = vpack.c.bf16 %v540, %v539
        %v598 = vpack.c.bf16 %v542, %v541
        %v599 = vpack.c.bf16 %v544, %v543
        %v600 = vpack.c.bf16 %v546, %v545
        %v601 = vpack.c.bf16 %v548, %v547
        %v602 = vpack.c.bf16 %v550, %v549
        %v603 = vpack.c.bf16 %v552, %v551
        %v604 = vpack.c.bf16 %v554, %v553
        %v605 = vpack.c.bf16 %v556, %v555
        %v606 = vpack.c.bf16 %v558, %v557
        %v607 = vpack.c.bf16 %v560, %v559
        %v608 = vpack.c.bf16 %v562, %v561
        %v609 = vpack.c.bf16 %v564, %v563
        %v610 = vpack.c.bf16 %v566, %v565
        %v611 = vpack.c.bf16 %v568, %v567
        %v612 = vpack.c.bf16 %v570, %v569
        %v613 = vpack.c.bf16 %v572, %v571
        %v614 = vpack.c.bf16 %v574, %v573
        %v615 = vpack.c.bf16 %v576, %v575
        %v616 = vpack.c.bf16 %v578, %v577
        %v617 = vpack.c.bf16 %v580, %v579
        %v618 = vpack.c.bf16 %v582, %v581
        %v619 = vpack.c.bf16 %v584, %v583
        %v620 = vpack.c.bf16 %v586, %v585
        %v621 = vpack.c.bf16 %v588, %v587
        %v622 = vpack.c.bf16 %v590, %v589
        %v623 = vld [vmem:[#allocation2] sm:$0xf]
        %vm624 = vcmask 64512
        %v626 = vsel %vm624, %v591, 0
        %v629 = vsel %vm624, %v592, 0
        %v632 = vsel %vm624, %v593, 0
        %v635 = vsel %vm624, %v594, 0
        %v638 = vsel %vm624, %v595, 0
        %v641 = vsel %vm624, %v596, 0
        %v644 = vsel %vm624, %v597, 0
        %v647 = vsel %vm624, %v598, 0
        %v650 = vsel %vm624, %v599, 0
        %v653 = vsel %vm624, %v600, 0
        %v656 = vsel %vm624, %v601, 0
        %v659 = vsel %vm624, %v602, 0
        %v662 = vsel %vm624, %v603, 0
        %v665 = vsel %vm624, %v604, 0
        %v668 = vsel %vm624, %v605, 0
        %v671 = vsel %vm624, %v606, 0
        %v674 = vsel %vm624, %v607, 0
        %v677 = vsel %vm624, %v608, 0
        %v680 = vsel %vm624, %v609, 0
        %v683 = vsel %vm624, %v610, 0
        %v686 = vsel %vm624, %v611, 0
        %v689 = vsel %vm624, %v612, 0
        %v692 = vsel %vm624, %v613, 0
        %v695 = vsel %vm624, %v614, 0
        %v698 = vsel %vm624, %v615, 0
        %v701 = vsel %vm624, %v616, 0
        %v704 = vsel %vm624, %v617, 0
        %v707 = vsel %vm624, %v618, 0
        %v710 = vsel %vm624, %v619, 0
        %v713 = vsel %vm624, %v620, 0
        %v716 = vsel %vm624, %v621, 0
        %v719 = vsel %vm624, %v622, 0
        %vm721 = vcmask 1043456
        %v723 = vsel %vm721, %v623, 0
        %725 = vmatprep.subr.bf16.mxu0 0
        %726 = vmatpush1.bf16.msra.mxu0 %v723
        %727 = vmatprep.subr.bf16.mxu0 0
        %728 = vmatpush1.bf16.msra.mxu0 0
        %729 = vmatprep.subr.bf16.mxu0 0
        %730 = vmatpush1.bf16.msra.mxu0 0
        %731 = vmatprep.subr.bf16.mxu0 0
        %732 = vmatpush1.bf16.msra.mxu0 0
        %733 = vmatprep.subr.bf16.mxu0 0
        %734 = vmatpush1.bf16.msra.mxu0 0
        %735 = vmatprep.subr.bf16.mxu0 0
        %736 = vmatpush1.bf16.msra.mxu0 0
        %737 = vmatprep.subr.bf16.mxu0 0
        %738 = vmatpush1.bf16.msra.mxu0 0
        %739 = vmatprep.subr.bf16.mxu0 0
        %740 = vmatpush1.bf16.msra.mxu0 0
        %741 = vmatprep.subr.bf16.mxu0 0
        %742 = vmatpush1.bf16.msra.mxu0 0
        %743 = vmatprep.subr.bf16.mxu0 0
        %744 = vmatpush1.bf16.msra.mxu0 0
        %745 = vmatprep.subr.bf16.mxu0 0
        %746 = vmatpush1.bf16.msra.mxu0 0
        %747 = vmatprep.subr.bf16.mxu0 0
        %748 = vmatpush1.bf16.msra.mxu0 0
        %749 = vmatprep.subr.bf16.mxu0 0
        %750 = vmatpush1.bf16.msra.mxu0 0
        %751 = vmatprep.subr.bf16.mxu0 0
        %752 = vmatpush1.bf16.msra.mxu0 0
        %753 = vmatprep.subr.bf16.mxu0 0
        %754 = vmatpush1.bf16.msra.mxu0 0
        %755 = vmatprep.subr.bf16.mxu0 0
        %756 = vmatpush1.bf16.msra.mxu0 0
        %757 = vmatprep.mubr.bf16.mxu0 0
        %758 = vmatmul.mubr.bf16.gmra.mrb[0].mxu0 %v626
        %v759 = vpop.f32.mrb[0].mxu0
        %v760 = vadd.f32 0.0, %v759
        %v761 = vpop.f32.mrb[0].mxu0
        %v762 = vpop.f32.mrb[0].mxu0
        %v763 = vadd.f32 0.0, %v762
        %v764 = vpop.f32.mrb[0].mxu0
        %765 = vmatprep.mubr.bf16.mxu0 0
        %766 = vmatmul.mubr.bf16.gmra.mrb[0].mxu0 %v629
        %v767 = vpop.f32.mrb[0].mxu0
        %v768 = vadd.f32 0.0, %v767
        %v769 = vpop.f32.mrb[0].mxu0
        %v770 = vpop.f32.mrb[0].mxu0
        %v771 = vadd.f32 0.0, %v770
        %v772 = vpop.f32.mrb[0].mxu0
        %773 = vmatprep.mubr.bf16.mxu0 0
        %774 = vmatmul.mubr.bf16.gmra.mrb[0].mxu0 %v632
        %v775 = vpop.f32.mrb[0].mxu0
        %v776 = vadd.f32 0.0, %v775
        %v777 = vpop.f32.mrb[0].mxu0
        %v778 = vpop.f32.mrb[0].mxu0
        %v779 = vadd.f32 0.0, %v778
        %v780 = vpop.f32.mrb[0].mxu0
        %781 = vmatprep.mubr.bf16.mxu0 0
        %782 = vmatmul.mubr.bf16.gmra.mrb[0].mxu0 %v635
        %v783 = vpop.f32.mrb[0].mxu0
        %v784 = vadd.f32 0.0, %v783
        %v785 = vpop.f32.mrb[0].mxu0
        %v786 = vpop.f32.mrb[0].mxu0
        %v787 = vadd.f32 0.0, %v786
        %v788 = vpop.f32.mrb[0].mxu0
        %789 = vmatprep.mubr.bf16.mxu0 0
        %790 = vmatmul.mubr.bf16.gmra.mrb[0].mxu0 %v638
        %v791 = vpop.f32.mrb[0].mxu0
        %v792 = vadd.f32 0.0, %v791
        %v793 = vpop.f32.mrb[0].mxu0
        %v794 = vpop.f32.mrb[0].mxu0
        %v795 = vadd.f32 0.0, %v794
        %v796 = vpop.f32.mrb[0].mxu0
        %797 = vmatprep.mubr.bf16.mxu0 0
        %798 = vmatmul.mubr.bf16.gmra.mrb[0].mxu0 %v641
        %v799 = vpop.f32.mrb[0].mxu0
        %v800 = vadd.f32 0.0, %v799
        %v801 = vpop.f32.mrb[0].mxu0
        %v802 = vpop.f32.mrb[0].mxu0
        %v803 = vadd.f32 0.0, %v802
        %v804 = vpop.f32.mrb[0].mxu0
        %805 = vmatprep.mubr.bf16.mxu0 0
        %806 = vmatmul.mubr.bf16.gmra.mrb[0].mxu0 %v644
        %v807 = vpop.f32.mrb[0].mxu0
        %v808 = vadd.f32 0.0, %v807
        %v809 = vpop.f32.mrb[0].mxu0
        %v810 = vpop.f32.mrb[0].mxu0
        %v811 = vadd.f32 0.0, %v810
        %v812 = vpop.f32.mrb[0].mxu0
        %813 = vmatprep.mubr.bf16.mxu0 0
        %814 = vmatmul.mubr.bf16.gmra.mrb[0].mxu0 %v647
        %v815 = vpop.f32.mrb[0].mxu0
        %v816 = vadd.f32 0.0, %v815
        %v817 = vpop.f32.mrb[0].mxu0
        %v818 = vpop.f32.mrb[0].mxu0
        %v819 = vadd.f32 0.0, %v818
        %v820 = vpop.f32.mrb[0].mxu0
        %821 = vmatprep.mubr.bf16.mxu0 0
        %822 = vmatmul.mubr.bf16.gmra.mrb[0].mxu0 %v650
        %v823 = vpop.f32.mrb[0].mxu0
        %v824 = vadd.f32 0.0, %v823
        %v825 = vpop.f32.mrb[0].mxu0
        %v826 = vpop.f32.mrb[0].mxu0
        %v827 = vadd.f32 0.0, %v826
        %v828 = vpop.f32.mrb[0].mxu0
        %829 = vmatprep.mubr.bf16.mxu0 0
        %830 = vmatmul.mubr.bf16.gmra.mrb[0].mxu0 %v653
        %v831 = vpop.f32.mrb[0].mxu0
        %v832 = vadd.f32 0.0, %v831
        %v833 = vpop.f32.mrb[0].mxu0
        %v834 = vpop.f32.mrb[0].mxu0
        %v835 = vadd.f32 0.0, %v834
        %v836 = vpop.f32.mrb[0].mxu0
        %837 = vmatprep.mubr.bf16.mxu0 0
        %838 = vmatmul.mubr.bf16.gmra.mrb[0].mxu0 %v656
        %v839 = vpop.f32.mrb[0].mxu0
        %v840 = vadd.f32 0.0, %v839
        %v841 = vpop.f32.mrb[0].mxu0
        %v842 = vpop.f32.mrb[0].mxu0
        %v843 = vadd.f32 0.0, %v842
        %v844 = vpop.f32.mrb[0].mxu0
        %845 = vmatprep.mubr.bf16.mxu0 0
        %846 = vmatmul.mubr.bf16.gmra.mrb[0].mxu0 %v659
        %v847 = vpop.f32.mrb[0].mxu0
        %v848 = vadd.f32 0.0, %v847
        %v849 = vpop.f32.mrb[0].mxu0
        %v850 = vpop.f32.mrb[0].mxu0
        %v851 = vadd.f32 0.0, %v850
        %v852 = vpop.f32.mrb[0].mxu0
        %853 = vmatprep.mubr.bf16.mxu0 0
        %854 = vmatmul.mubr.bf16.gmra.mrb[0].mxu0 %v662
        %v855 = vpop.f32.mrb[0].mxu0
        %v856 = vadd.f32 0.0, %v855
        %v857 = vpop.f32.mrb[0].mxu0
        %v858 = vpop.f32.mrb[0].mxu0
        %v859 = vadd.f32 0.0, %v858
        %v860 = vpop.f32.mrb[0].mxu0
        %861 = vmatprep.mubr.bf16.mxu0 0
        %862 = vmatmul.mubr.bf16.gmra.mrb[0].mxu0 %v665
        %v863 = vpop.f32.mrb[0].mxu0
        %v864 = vadd.f32 0.0, %v863
        %v865 = vpop.f32.mrb[0].mxu0
        %v866 = vpop.f32.mrb[0].mxu0
        %v867 = vadd.f32 0.0, %v866
        %v868 = vpop.f32.mrb[0].mxu0
        %869 = vmatprep.mubr.bf16.mxu0 0
        %870 = vmatmul.mubr.bf16.gmra.mrb[0].mxu0 %v668
        %v871 = vpop.f32.mrb[0].mxu0
        %v872 = vadd.f32 0.0, %v871
        %v873 = vpop.f32.mrb[0].mxu0
        %v874 = vpop.f32.mrb[0].mxu0
        %v875 = vadd.f32 0.0, %v874
        %v876 = vpop.f32.mrb[0].mxu0
        %877 = vmatprep.mubr.bf16.mxu0 0
        %878 = vmatmul.mubr.bf16.gmra.mrb[0].mxu0 %v671
        %v879 = vpop.f32.mrb[0].mxu0
        %v880 = vadd.f32 0.0, %v879
        %v881 = vpop.f32.mrb[0].mxu0
        %v882 = vpop.f32.mrb[0].mxu0
        %v883 = vadd.f32 0.0, %v882
        %v884 = vpop.f32.mrb[0].mxu0
        %885 = vmatprep.mubr.bf16.mxu0 0
        %886 = vmatmul.mubr.bf16.gmra.mrb[0].mxu0 %v674
        %v887 = vpop.f32.mrb[0].mxu0
        %v888 = vadd.f32 0.0, %v887
        %v889 = vpop.f32.mrb[0].mxu0
        %v890 = vpop.f32.mrb[0].mxu0
        %v891 = vadd.f32 0.0, %v890
        %v892 = vpop.f32.mrb[0].mxu0
        %893 = vmatprep.mubr.bf16.mxu0 0
        %894 = vmatmul.mubr.bf16.gmra.mrb[0].mxu0 %v677
        %v895 = vpop.f32.mrb[0].mxu0
        %v896 = vadd.f32 0.0, %v895
        %v897 = vpop.f32.mrb[0].mxu0
        %v898 = vpop.f32.mrb[0].mxu0
        %v899 = vadd.f32 0.0, %v898
        %v900 = vpop.f32.mrb[0].mxu0
        %901 = vmatprep.mubr.bf16.mxu0 0
        %902 = vmatmul.mubr.bf16.gmra.mrb[0].mxu0 %v680
        %v903 = vpop.f32.mrb[0].mxu0
        %v904 = vadd.f32 0.0, %v903
        %v905 = vpop.f32.mrb[0].mxu0
        %v906 = vpop.f32.mrb[0].mxu0
        %v907 = vadd.f32 0.0, %v906
        %v908 = vpop.f32.mrb[0].mxu0
        %909 = vmatprep.mubr.bf16.mxu0 0
        %910 = vmatmul.mubr.bf16.gmra.mrb[0].mxu0 %v683
        %v911 = vpop.f32.mrb[0].mxu0
        %v912 = vadd.f32 0.0, %v911
        %v913 = vpop.f32.mrb[0].mxu0
        %v914 = vpop.f32.mrb[0].mxu0
        %v915 = vadd.f32 0.0, %v914
        %v916 = vpop.f32.mrb[0].mxu0
        %917 = vmatprep.mubr.bf16.mxu0 0
        %918 = vmatmul.mubr.bf16.gmra.mrb[0].mxu0 %v686
        %v919 = vpop.f32.mrb[0].mxu0
        %v920 = vadd.f32 0.0, %v919
        %v921 = vpop.f32.mrb[0].mxu0
        %v922 = vpop.f32.mrb[0].mxu0
        %v923 = vadd.f32 0.0, %v922
        %v924 = vpop.f32.mrb[0].mxu0
        %925 = vmatprep.mubr.bf16.mxu0 0
        %926 = vmatmul.mubr.bf16.gmra.mrb[0].mxu0 %v689
        %v927 = vpop.f32.mrb[0].mxu0
        %v928 = vadd.f32 0.0, %v927
        %v929 = vpop.f32.mrb[0].mxu0
        %v930 = vpop.f32.mrb[0].mxu0
        %v931 = vadd.f32 0.0, %v930
        %v932 = vpop.f32.mrb[0].mxu0
        %933 = vmatprep.mubr.bf16.mxu0 0
        %934 = vmatmul.mubr.bf16.gmra.mrb[0].mxu0 %v692
        %v935 = vpop.f32.mrb[0].mxu0
        %v936 = vadd.f32 0.0, %v935
        %v937 = vpop.f32.mrb[0].mxu0
        %v938 = vpop.f32.mrb[0].mxu0
        %v939 = vadd.f32 0.0, %v938
        %v940 = vpop.f32.mrb[0].mxu0
        %941 = vmatprep.mubr.bf16.mxu0 0
        %942 = vmatmul.mubr.bf16.gmra.mrb[0].mxu0 %v695
        %v943 = vpop.f32.mrb[0].mxu0
        %v944 = vadd.f32 0.0, %v943
        %v945 = vpop.f32.mrb[0].mxu0
        %v946 = vpop.f32.mrb[0].mxu0
        %v947 = vadd.f32 0.0, %v946
        %v948 = vpop.f32.mrb[0].mxu0
        %949 = vmatprep.mubr.bf16.mxu0 0
        %950 = vmatmul.mubr.bf16.gmra.mrb[0].mxu0 %v698
        %v951 = vpop.f32.mrb[0].mxu0
        %v952 = vadd.f32 0.0, %v951
        %v953 = vpop.f32.mrb[0].mxu0
        %v954 = vpop.f32.mrb[0].mxu0
        %v955 = vadd.f32 0.0, %v954
        %v956 = vpop.f32.mrb[0].mxu0
        %957 = vmatprep.mubr.bf16.mxu0 0
        %958 = vmatmul.mubr.bf16.gmra.mrb[0].mxu0 %v701
        %v959 = vpop.f32.mrb[0].mxu0
        %v960 = vadd.f32 0.0, %v959
        %v961 = vpop.f32.mrb[0].mxu0
        %v962 = vpop.f32.mrb[0].mxu0
        %v963 = vadd.f32 0.0, %v962
        %v964 = vpop.f32.mrb[0].mxu0
        %965 = vmatprep.mubr.bf16.mxu0 0
        %966 = vmatmul.mubr.bf16.gmra.mrb[0].mxu0 %v704
        %v967 = vpop.f32.mrb[0].mxu0
        %v968 = vadd.f32 0.0, %v967
        %v969 = vpop.f32.mrb[0].mxu0
        %v970 = vpop.f32.mrb[0].mxu0
        %v971 = vadd.f32 0.0, %v970
        %v972 = vpop.f32.mrb[0].mxu0
        %973 = vmatprep.mubr.bf16.mxu0 0
        %974 = vmatmul.mubr.bf16.gmra.mrb[0].mxu0 %v707
        %v975 = vpop.f32.mrb[0].mxu0
        %v976 = vadd.f32 0.0, %v975
        %v977 = vpop.f32.mrb[0].mxu0
        %v978 = vpop.f32.mrb[0].mxu0
        %v979 = vadd.f32 0.0, %v978
        %v980 = vpop.f32.mrb[0].mxu0
        %981 = vmatprep.mubr.bf16.mxu0 0
        %982 = vmatmul.mubr.bf16.gmra.mrb[0].mxu0 %v710
        %v983 = vpop.f32.mrb[0].mxu0
        %v984 = vadd.f32 0.0, %v983
        %v985 = vpop.f32.mrb[0].mxu0
        %v986 = vpop.f32.mrb[0].mxu0
        %v987 = vadd.f32 0.0, %v986
        %v988 = vpop.f32.mrb[0].mxu0
        %989 = vmatprep.mubr.bf16.mxu0 0
        %990 = vmatmul.mubr.bf16.gmra.mrb[0].mxu0 %v713
        %v991 = vpop.f32.mrb[0].mxu0
        %v992 = vadd.f32 0.0, %v991
        %v993 = vpop.f32.mrb[0].mxu0
        %v994 = vpop.f32.mrb[0].mxu0
        %v995 = vadd.f32 0.0, %v994
        %v996 = vpop.f32.mrb[0].mxu0
        %997 = vmatprep.mubr.bf16.mxu0 0
        %998 = vmatmul.mubr.bf16.gmra.mrb[0].mxu0 %v716
        %v999 = vpop.f32.mrb[0].mxu0
        %v1000 = vadd.f32 0.0, %v999
        %v1001 = vpop.f32.mrb[0].mxu0
        %v1002 = vpop.f32.mrb[0].mxu0
        %v1003 = vadd.f32 0.0, %v1002
        %v1004 = vpop.f32.mrb[0].mxu0
        %1005 = vmatprep.mubr.bf16.mxu0 0
        %1006 = vmatmul.mubr.bf16.gmra.mrb[0].mxu0 %v719
        %v1007 = vpop.f32.mrb[0].mxu0
        %v1008 = vadd.f32 0.0, %v1007
        %v1009 = vpop.f32.mrb[0].mxu0
        %v1010 = vpop.f32.mrb[0].mxu0
        %v1011 = vadd.f32 0.0, %v1010
        %v1012 = vpop.f32.mrb[0].mxu0
        %1013 = vdwg.mxu0
        %v1014 = vmax.f32 %v760, 0.0
        %v1015 = vmax.f32 %v763, 0.0
        %v1016 = vmax.f32 %v768, 0.0
        %v1017 = vmax.f32 %v771, 0.0
        %v1018 = vmax.f32 %v776, 0.0
        %v1019 = vmax.f32 %v779, 0.0
        %v1020 = vmax.f32 %v784, 0.0
        %v1021 = vmax.f32 %v787, 0.0
        %v1022 = vmax.f32 %v792, 0.0
        %v1023 = vmax.f32 %v795, 0.0
        %v1024 = vmax.f32 %v800, 0.0
        %v1025 = vmax.f32 %v803, 0.0
        %v1026 = vmax.f32 %v808, 0.0
        %v1027 = vmax.f32 %v811, 0.0
        %v1028 = vmax.f32 %v816, 0.0
        %v1029 = vmax.f32 %v819, 0.0
        %v1030 = vmax.f32 %v824, 0.0
        %v1031 = vmax.f32 %v827, 0.0
        %v1032 = vmax.f32 %v832, 0.0
        %v1033 = vmax.f32 %v835, 0.0
        %v1034 = vmax.f32 %v840, 0.0
        %v1035 = vmax.f32 %v843, 0.0
        %v1036 = vmax.f32 %v848, 0.0
        %v1037 = vmax.f32 %v851, 0.0
        %v1038 = vmax.f32 %v856, 0.0
        %v1039 = vmax.f32 %v859, 0.0
        %v1040 = vmax.f32 %v864, 0.0
        %v1041 = vmax.f32 %v867, 0.0
        %v1042 = vmax.f32 %v872, 0.0
        %v1043 = vmax.f32 %v875, 0.0
        %v1044 = vmax.f32 %v880, 0.0
        %v1045 = vmax.f32 %v883, 0.0
        %v1046 = vmax.f32 %v888, 0.0
        %v1047 = vmax.f32 %v891, 0.0
        %v1048 = vmax.f32 %v896, 0.0
        %v1049 = vmax.f32 %v899, 0.0
        %v1050 = vmax.f32 %v904, 0.0
        %v1051 = vmax.f32 %v907, 0.0
        %v1052 = vmax.f32 %v912, 0.0
        %v1053 = vmax.f32 %v915, 0.0
        %v1054 = vmax.f32 %v920, 0.0
        %v1055 = vmax.f32 %v923, 0.0
        %v1056 = vmax.f32 %v928, 0.0
        %v1057 = vmax.f32 %v931, 0.0
        %v1058 = vmax.f32 %v936, 0.0
        %v1059 = vmax.f32 %v939, 0.0
        %v1060 = vmax.f32 %v944, 0.0
        %v1061 = vmax.f32 %v947, 0.0
        %v1062 = vmax.f32 %v952, 0.0
        %v1063 = vmax.f32 %v955, 0.0
        %v1064 = vmax.f32 %v960, 0.0
        %v1065 = vmax.f32 %v963, 0.0
        %v1066 = vmax.f32 %v968, 0.0
        %v1067 = vmax.f32 %v971, 0.0
        %v1068 = vmax.f32 %v976, 0.0
        %v1069 = vmax.f32 %v979, 0.0
        %v1070 = vmax.f32 %v984, 0.0
        %v1071 = vmax.f32 %v987, 0.0
        %v1072 = vmax.f32 %v992, 0.0
        %v1073 = vmax.f32 %v995, 0.0
        %v1074 = vmax.f32 %v1000, 0.0
        %v1075 = vmax.f32 %v1003, 0.0
        %v1076 = vmax.f32 %v1008, 0.0
        %v1077 = vmax.f32 %v1011, 0.0
        %v1078 = vpack.c.bf16 %v1015, %v1014
        %v1079 = vpack.c.bf16 %v1017, %v1016
        %v1080 = vpack.c.bf16 %v1019, %v1018
        %v1081 = vpack.c.bf16 %v1021, %v1020
        %v1082 = vpack.c.bf16 %v1023, %v1022
        %v1083 = vpack.c.bf16 %v1025, %v1024
        %v1084 = vpack.c.bf16 %v1027, %v1026
        %v1085 = vpack.c.bf16 %v1029, %v1028
        %v1086 = vpack.c.bf16 %v1031, %v1030
        %v1087 = vpack.c.bf16 %v1033, %v1032
        %v1088 = vpack.c.bf16 %v1035, %v1034
        %v1089 = vpack.c.bf16 %v1037, %v1036
        %v1090 = vpack.c.bf16 %v1039, %v1038
        %v1091 = vpack.c.bf16 %v1041, %v1040
        %v1092 = vpack.c.bf16 %v1043, %v1042
        %v1093 = vpack.c.bf16 %v1045, %v1044
        %v1094 = vpack.c.bf16 %v1047, %v1046
        %v1095 = vpack.c.bf16 %v1049, %v1048
        %v1096 = vpack.c.bf16 %v1051, %v1050
        %v1097 = vpack.c.bf16 %v1053, %v1052
        %v1098 = vpack.c.bf16 %v1055, %v1054
        %v1099 = vpack.c.bf16 %v1057, %v1056
        %v1100 = vpack.c.bf16 %v1059, %v1058
        %v1101 = vpack.c.bf16 %v1061, %v1060
        %v1102 = vpack.c.bf16 %v1063, %v1062
        %v1103 = vpack.c.bf16 %v1065, %v1064
        %v1104 = vpack.c.bf16 %v1067, %v1066
        %v1105 = vpack.c.bf16 %v1069, %v1068
        %v1106 = vpack.c.bf16 %v1071, %v1070
        %v1107 = vpack.c.bf16 %v1073, %v1072
        %v1108 = vpack.c.bf16 %v1075, %v1074
        %v1109 = vpack.c.bf16 %v1077, %v1076
        %v1110 = vld [vmem:[#allocation5] sm:$0xff]
        %v1111 = vld [vmem:[#allocation5 + $0x8] sm:$0xff]
        %v1112 = vld [vmem:[#allocation5 + $0x10] sm:$0xff]
        %v1113 = vld [vmem:[#allocation5 + $0x18] sm:$0xff]
        %v1114 = vld [vmem:[#allocation5 + $0x20] sm:$0xff]
        %v1115 = vld [vmem:[#allocation5 + $0x28] sm:$0xff]
        %v1116 = vld [vmem:[#allocation5 + $0x30] sm:$0xff]
        %v1117 = vld [vmem:[#allocation5 + $0x38] sm:$0xff]
        %v1118 = vld [vmem:[#allocation5 + $0x40] sm:$0xff]
        %v1119 = vld [vmem:[#allocation5 + $0x48] sm:$0xff]
        %v1120 = vld [vmem:[#allocation5 + $0x50] sm:$0xff]
        %v1121 = vld [vmem:[#allocation5 + $0x58] sm:$0xff]
        %v1122 = vld [vmem:[#allocation5 + $0x60] sm:$0xff]
        %v1123 = vld [vmem:[#allocation5 + $0x68] sm:$0xff]
        %v1124 = vld [vmem:[#allocation5 + $0x70] sm:$0xff]
        %v1125 = vld [vmem:[#allocation5 + $0x78] sm:$0xff]
        %v1126 = vld [vmem:[%s3] sm:$0x3]
        %v1128 = vlaneseq
        %v1129 = vshrl.u32 %v1128, 7
        %v1130 = vsub.s32 0, %v1129
        %v1131 = vrot.slane %v1126, %v1130
        %v1132 = vlaneseq
        %v1133 = vshrl.u32 %v1132, 7
        %v1134 = vsub.s32 1, %v1133
        %v1135 = vrot.slane %v1126, %v1134
        %v1154 = vunpack.c.l.b16 %v1110
        %v1155 = vunpack.c.h.b16 %v1110
        %v1156 = vunpack.c.l.b16 %v1111
        %v1157 = vunpack.c.h.b16 %v1111
        %v1158 = vunpack.c.l.b16 %v1112
        %v1159 = vunpack.c.h.b16 %v1112
        %v1160 = vunpack.c.l.b16 %v1113
        %v1161 = vunpack.c.h.b16 %v1113
        %v1162 = vunpack.c.l.b16 %v1114
        %v1163 = vunpack.c.h.b16 %v1114
        %v1164 = vunpack.c.l.b16 %v1115
        %v1165 = vunpack.c.h.b16 %v1115
        %v1166 = vunpack.c.l.b16 %v1116
        %v1167 = vunpack.c.h.b16 %v1116
        %v1168 = vunpack.c.l.b16 %v1117
        %v1169 = vunpack.c.h.b16 %v1117
        %v1170 = vunpack.c.l.b16 %v1118
        %v1171 = vunpack.c.h.b16 %v1118
        %v1172 = vunpack.c.l.b16 %v1119
        %v1173 = vunpack.c.h.b16 %v1119
        %v1174 = vunpack.c.l.b16 %v1120
        %v1175 = vunpack.c.h.b16 %v1120
        %v1176 = vunpack.c.l.b16 %v1121
        %v1177 = vunpack.c.h.b16 %v1121
        %v1178 = vunpack.c.l.b16 %v1122
        %v1179 = vunpack.c.h.b16 %v1122
        %v1180 = vunpack.c.l.b16 %v1123
        %v1181 = vunpack.c.h.b16 %v1123
        %v1182 = vunpack.c.l.b16 %v1124
        %v1183 = vunpack.c.h.b16 %v1124
        %v1184 = vunpack.c.l.b16 %v1125
        %v1185 = vunpack.c.h.b16 %v1125
        %v1186 = vpack.c.b16 %v1156, %v1154
        %v1187 = vpack.c.b16 %v1157, %v1155
        %v1188 = vpack.c.b16 %v1160, %v1158
        %v1189 = vpack.c.b16 %v1161, %v1159
        %v1190 = vpack.c.b16 %v1164, %v1162
        %v1191 = vpack.c.b16 %v1165, %v1163
        %v1192 = vpack.c.b16 %v1168, %v1166
        %v1193 = vpack.c.b16 %v1169, %v1167
        %v1194 = vpack.c.b16 %v1172, %v1170
        %v1195 = vpack.c.b16 %v1173, %v1171
        %v1196 = vpack.c.b16 %v1176, %v1174
        %v1197 = vpack.c.b16 %v1177, %v1175
        %v1198 = vpack.c.b16 %v1180, %v1178
        %v1199 = vpack.c.b16 %v1181, %v1179
        %v1200 = vpack.c.b16 %v1184, %v1182
        %v1201 = vpack.c.b16 %v1185, %v1183
        %1218 = vmatprep.subr.bf16.mxu0 %v1187
        %1219 = vmatpush1.bf16.msra.mxu0 %v1186
        %1220 = vmatprep.subr.bf16.mxu0 %v1189
        %1221 = vmatpush1.bf16.msra.mxu0 %v1188
        %1222 = vmatprep.subr.bf16.mxu0 %v1191
        %1223 = vmatpush1.bf16.msra.mxu0 %v1190
        %1224 = vmatprep.subr.bf16.mxu0 %v1193
        %1225 = vmatpush1.bf16.msra.mxu0 %v1192
        %1226 = vmatprep.subr.bf16.mxu0 %v1195
        %1227 = vmatpush1.bf16.msra.mxu0 %v1194
        %1228 = vmatprep.subr.bf16.mxu0 %v1197
        %1229 = vmatpush1.bf16.msra.mxu0 %v1196
        %1230 = vmatprep.subr.bf16.mxu0 %v1199
        %1231 = vmatpush1.bf16.msra.mxu0 %v1198
        %1232 = vmatprep.subr.bf16.mxu0 %v1201
        %1233 = vmatpush1.bf16.msra.mxu0 %v1200
        %1234 = vmatprep.subr.bf16.mxu0 0
        %1235 = vmatpush1.bf16.msra.mxu0 0
        %1236 = vmatprep.subr.bf16.mxu0 0
        %1237 = vmatpush1.bf16.msra.mxu0 0
        %1238 = vmatprep.subr.bf16.mxu0 0
        %1239 = vmatpush1.bf16.msra.mxu0 0
        %1240 = vmatprep.subr.bf16.mxu0 0
        %1241 = vmatpush1.bf16.msra.mxu0 0
        %1242 = vmatprep.subr.bf16.mxu0 0
        %1243 = vmatpush1.bf16.msra.mxu0 0
        %1244 = vmatprep.subr.bf16.mxu0 0
        %1245 = vmatpush1.bf16.msra.mxu0 0
        %1246 = vmatprep.subr.bf16.mxu0 0
        %1247 = vmatpush1.bf16.msra.mxu0 0
        %1248 = vmatprep.subr.bf16.mxu0 0
        %1249 = vmatpush1.bf16.msra.mxu0 0
        %1250 = vmatprep.mubr.bf16.mxu0 0
        %1251 = vmatmul.mubr.bf16.gmra.mrb[0].mxu0 %v1078
        %v1252 = vpop.f32.mrb[0].mxu0
        %v1253 = vadd.f32 %v1131, %v1252
        %v1254 = vpop.f32.mrb[0].mxu0
        %v1255 = vadd.f32 %v1135, %v1254
        %v1256 = vpop.f32.mrb[0].mxu0
        %v1257 = vadd.f32 %v1131, %v1256
        %v1258 = vpop.f32.mrb[0].mxu0
        %v1259 = vadd.f32 %v1135, %v1258
        %1260 = vmatprep.mubr.bf16.mxu0 0
        %1261 = vmatmul.mubr.bf16.gmra.mrb[0].mxu0 %v1079
        %v1262 = vpop.f32.mrb[0].mxu0
        %v1263 = vadd.f32 %v1131, %v1262
        %v1264 = vpop.f32.mrb[0].mxu0
        %v1265 = vadd.f32 %v1135, %v1264
        %v1266 = vpop.f32.mrb[0].mxu0
        %v1267 = vadd.f32 %v1131, %v1266
        %v1268 = vpop.f32.mrb[0].mxu0
        %v1269 = vadd.f32 %v1135, %v1268
        %1270 = vmatprep.mubr.bf16.mxu0 0
        %1271 = vmatmul.mubr.bf16.gmra.mrb[0].mxu0 %v1080
        %v1272 = vpop.f32.mrb[0].mxu0
        %v1273 = vadd.f32 %v1131, %v1272
        %v1274 = vpop.f32.mrb[0].mxu0
        %v1275 = vadd.f32 %v1135, %v1274
        %v1276 = vpop.f32.mrb[0].mxu0
        %v1277 = vadd.f32 %v1131, %v1276
        %v1278 = vpop.f32.mrb[0].mxu0
        %v1279 = vadd.f32 %v1135, %v1278
        %1280 = vmatprep.mubr.bf16.mxu0 0
        %1281 = vmatmul.mubr.bf16.gmra.mrb[0].mxu0 %v1081
        %v1282 = vpop.f32.mrb[0].mxu0
        %v1283 = vadd.f32 %v1131, %v1282
        %v1284 = vpop.f32.mrb[0].mxu0
        %v1285 = vadd.f32 %v1135, %v1284
        %v1286 = vpop.f32.mrb[0].mxu0
        %v1287 = vadd.f32 %v1131, %v1286
        %v1288 = vpop.f32.mrb[0].mxu0
        %v1289 = vadd.f32 %v1135, %v1288
        %1290 = vmatprep.mubr.bf16.mxu0 0
        %1291 = vmatmul.mubr.bf16.gmra.mrb[0].mxu0 %v1082
        %v1292 = vpop.f32.mrb[0].mxu0
        %v1293 = vadd.f32 %v1131, %v1292
        %v1294 = vpop.f32.mrb[0].mxu0
        %v1295 = vadd.f32 %v1135, %v1294
        %v1296 = vpop.f32.mrb[0].mxu0
        %v1297 = vadd.f32 %v1131, %v1296
        %v1298 = vpop.f32.mrb[0].mxu0
        %v1299 = vadd.f32 %v1135, %v1298
        %1300 = vmatprep.mubr.bf16.mxu0 0
        %1301 = vmatmul.mubr.bf16.gmra.mrb[0].mxu0 %v1083
        %v1302 = vpop.f32.mrb[0].mxu0
        %v1303 = vadd.f32 %v1131, %v1302
        %v1304 = vpop.f32.mrb[0].mxu0
        %v1305 = vadd.f32 %v1135, %v1304
        %v1306 = vpop.f32.mrb[0].mxu0
        %v1307 = vadd.f32 %v1131, %v1306
        %v1308 = vpop.f32.mrb[0].mxu0
        %v1309 = vadd.f32 %v1135, %v1308
        %1310 = vmatprep.mubr.bf16.mxu0 0
        %1311 = vmatmul.mubr.bf16.gmra.mrb[0].mxu0 %v1084
        %v1312 = vpop.f32.mrb[0].mxu0
        %v1313 = vadd.f32 %v1131, %v1312
        %v1314 = vpop.f32.mrb[0].mxu0
        %v1315 = vadd.f32 %v1135, %v1314
        %v1316 = vpop.f32.mrb[0].mxu0
        %v1317 = vadd.f32 %v1131, %v1316
        %v1318 = vpop.f32.mrb[0].mxu0
        %v1319 = vadd.f32 %v1135, %v1318
        %1320 = vmatprep.mubr.bf16.mxu0 0
        %1321 = vmatmul.mubr.bf16.gmra.mrb[0].mxu0 %v1085
        %v1322 = vpop.f32.mrb[0].mxu0
        %v1323 = vadd.f32 %v1131, %v1322
        %v1324 = vpop.f32.mrb[0].mxu0
        %v1325 = vadd.f32 %v1135, %v1324
        %v1326 = vpop.f32.mrb[0].mxu0
        %v1327 = vadd.f32 %v1131, %v1326
        %v1328 = vpop.f32.mrb[0].mxu0
        %v1329 = vadd.f32 %v1135, %v1328
        %1330 = vmatprep.mubr.bf16.mxu0 0
        %1331 = vmatmul.mubr.bf16.gmra.mrb[0].mxu0 %v1086
        %v1332 = vpop.f32.mrb[0].mxu0
        %v1333 = vadd.f32 %v1131, %v1332
        %v1334 = vpop.f32.mrb[0].mxu0
        %v1335 = vadd.f32 %v1135, %v1334
        %v1336 = vpop.f32.mrb[0].mxu0
        %v1337 = vadd.f32 %v1131, %v1336
        %v1338 = vpop.f32.mrb[0].mxu0
        %v1339 = vadd.f32 %v1135, %v1338
        %1340 = vmatprep.mubr.bf16.mxu0 0
        %1341 = vmatmul.mubr.bf16.gmra.mrb[0].mxu0 %v1087
        %v1342 = vpop.f32.mrb[0].mxu0
        %v1343 = vadd.f32 %v1131, %v1342
        %v1344 = vpop.f32.mrb[0].mxu0
        %v1345 = vadd.f32 %v1135, %v1344
        %v1346 = vpop.f32.mrb[0].mxu0
        %v1347 = vadd.f32 %v1131, %v1346
        %v1348 = vpop.f32.mrb[0].mxu0
        %v1349 = vadd.f32 %v1135, %v1348
        %1350 = vmatprep.mubr.bf16.mxu0 0
        %1351 = vmatmul.mubr.bf16.gmra.mrb[0].mxu0 %v1088
        %v1352 = vpop.f32.mrb[0].mxu0
        %v1353 = vadd.f32 %v1131, %v1352
        %v1354 = vpop.f32.mrb[0].mxu0
        %v1355 = vadd.f32 %v1135, %v1354
        %v1356 = vpop.f32.mrb[0].mxu0
        %v1357 = vadd.f32 %v1131, %v1356
        %v1358 = vpop.f32.mrb[0].mxu0
        %v1359 = vadd.f32 %v1135, %v1358
        %1360 = vmatprep.mubr.bf16.mxu0 0
        %1361 = vmatmul.mubr.bf16.gmra.mrb[0].mxu0 %v1089
        %v1362 = vpop.f32.mrb[0].mxu0
        %v1363 = vadd.f32 %v1131, %v1362
        %v1364 = vpop.f32.mrb[0].mxu0
        %v1365 = vadd.f32 %v1135, %v1364
        %v1366 = vpop.f32.mrb[0].mxu0
        %v1367 = vadd.f32 %v1131, %v1366
        %v1368 = vpop.f32.mrb[0].mxu0
        %v1369 = vadd.f32 %v1135, %v1368
        %1370 = vmatprep.mubr.bf16.mxu0 0
        %1371 = vmatmul.mubr.bf16.gmra.mrb[0].mxu0 %v1090
        %v1372 = vpop.f32.mrb[0].mxu0
        %v1373 = vadd.f32 %v1131, %v1372
        %v1374 = vpop.f32.mrb[0].mxu0
        %v1375 = vadd.f32 %v1135, %v1374
        %v1376 = vpop.f32.mrb[0].mxu0
        %v1377 = vadd.f32 %v1131, %v1376
        %v1378 = vpop.f32.mrb[0].mxu0
        %v1379 = vadd.f32 %v1135, %v1378
        %1380 = vmatprep.mubr.bf16.mxu0 0
        %1381 = vmatmul.mubr.bf16.gmra.mrb[0].mxu0 %v1091
        %v1382 = vpop.f32.mrb[0].mxu0
        %v1383 = vadd.f32 %v1131, %v1382
        %v1384 = vpop.f32.mrb[0].mxu0
        %v1385 = vadd.f32 %v1135, %v1384
        %v1386 = vpop.f32.mrb[0].mxu0
        %v1387 = vadd.f32 %v1131, %v1386
        %v1388 = vpop.f32.mrb[0].mxu0
        %v1389 = vadd.f32 %v1135, %v1388
        %1390 = vmatprep.mubr.bf16.mxu0 0
        %1391 = vmatmul.mubr.bf16.gmra.mrb[0].mxu0 %v1092
        %v1392 = vpop.f32.mrb[0].mxu0
        %v1393 = vadd.f32 %v1131, %v1392
        %v1394 = vpop.f32.mrb[0].mxu0
        %v1395 = vadd.f32 %v1135, %v1394
        %v1396 = vpop.f32.mrb[0].mxu0
        %v1397 = vadd.f32 %v1131, %v1396
        %v1398 = vpop.f32.mrb[0].mxu0
        %v1399 = vadd.f32 %v1135, %v1398
        %1400 = vmatprep.mubr.bf16.mxu0 0
        %1401 = vmatmul.mubr.bf16.gmra.mrb[0].mxu0 %v1093
        %v1402 = vpop.f32.mrb[0].mxu0
        %v1403 = vadd.f32 %v1131, %v1402
        %v1404 = vpop.f32.mrb[0].mxu0
        %v1405 = vadd.f32 %v1135, %v1404
        %v1406 = vpop.f32.mrb[0].mxu0
        %v1407 = vadd.f32 %v1131, %v1406
        %v1408 = vpop.f32.mrb[0].mxu0
        %v1409 = vadd.f32 %v1135, %v1408
        %1410 = vmatprep.mubr.bf16.mxu0 0
        %1411 = vmatmul.mubr.bf16.gmra.mrb[0].mxu0 %v1094
        %v1412 = vpop.f32.mrb[0].mxu0
        %v1413 = vadd.f32 %v1131, %v1412
        %v1414 = vpop.f32.mrb[0].mxu0
        %v1415 = vadd.f32 %v1135, %v1414
        %v1416 = vpop.f32.mrb[0].mxu0
        %v1417 = vadd.f32 %v1131, %v1416
        %v1418 = vpop.f32.mrb[0].mxu0
        %v1419 = vadd.f32 %v1135, %v1418
        %1420 = vmatprep.mubr.bf16.mxu0 0
        %1421 = vmatmul.mubr.bf16.gmra.mrb[0].mxu0 %v1095
        %v1422 = vpop.f32.mrb[0].mxu0
        %v1423 = vadd.f32 %v1131, %v1422
        %v1424 = vpop.f32.mrb[0].mxu0
        %v1425 = vadd.f32 %v1135, %v1424
        %v1426 = vpop.f32.mrb[0].mxu0
        %v1427 = vadd.f32 %v1131, %v1426
        %v1428 = vpop.f32.mrb[0].mxu0
        %v1429 = vadd.f32 %v1135, %v1428
        %1430 = vmatprep.mubr.bf16.mxu0 0
        %1431 = vmatmul.mubr.bf16.gmra.mrb[0].mxu0 %v1096
        %v1432 = vpop.f32.mrb[0].mxu0
        %v1433 = vadd.f32 %v1131, %v1432
        %v1434 = vpop.f32.mrb[0].mxu0
        %v1435 = vadd.f32 %v1135, %v1434
        %v1436 = vpop.f32.mrb[0].mxu0
        %v1437 = vadd.f32 %v1131, %v1436
        %v1438 = vpop.f32.mrb[0].mxu0
        %v1439 = vadd.f32 %v1135, %v1438
        %1440 = vmatprep.mubr.bf16.mxu0 0
        %1441 = vmatmul.mubr.bf16.gmra.mrb[0].mxu0 %v1097
        %v1442 = vpop.f32.mrb[0].mxu0
        %v1443 = vadd.f32 %v1131, %v1442
        %v1444 = vpop.f32.mrb[0].mxu0
        %v1445 = vadd.f32 %v1135, %v1444
        %v1446 = vpop.f32.mrb[0].mxu0
        %v1447 = vadd.f32 %v1131, %v1446
        %v1448 = vpop.f32.mrb[0].mxu0
        %v1449 = vadd.f32 %v1135, %v1448
        %1450 = vmatprep.mubr.bf16.mxu0 0
        %1451 = vmatmul.mubr.bf16.gmra.mrb[0].mxu0 %v1098
        %v1452 = vpop.f32.mrb[0].mxu0
        %v1453 = vadd.f32 %v1131, %v1452
        %v1454 = vpop.f32.mrb[0].mxu0
        %v1455 = vadd.f32 %v1135, %v1454
        %v1456 = vpop.f32.mrb[0].mxu0
        %v1457 = vadd.f32 %v1131, %v1456
        %v1458 = vpop.f32.mrb[0].mxu0
        %v1459 = vadd.f32 %v1135, %v1458
        %1460 = vmatprep.mubr.bf16.mxu0 0
        %1461 = vmatmul.mubr.bf16.gmra.mrb[0].mxu0 %v1099
        %v1462 = vpop.f32.mrb[0].mxu0
        %v1463 = vadd.f32 %v1131, %v1462
        %v1464 = vpop.f32.mrb[0].mxu0
        %v1465 = vadd.f32 %v1135, %v1464
        %v1466 = vpop.f32.mrb[0].mxu0
        %v1467 = vadd.f32 %v1131, %v1466
        %v1468 = vpop.f32.mrb[0].mxu0
        %v1469 = vadd.f32 %v1135, %v1468
        %1470 = vmatprep.mubr.bf16.mxu0 0
        %1471 = vmatmul.mubr.bf16.gmra.mrb[0].mxu0 %v1100
        %v1472 = vpop.f32.mrb[0].mxu0
        %v1473 = vadd.f32 %v1131, %v1472
        %v1474 = vpop.f32.mrb[0].mxu0
        %v1475 = vadd.f32 %v1135, %v1474
        %v1476 = vpop.f32.mrb[0].mxu0
        %v1477 = vadd.f32 %v1131, %v1476
        %v1478 = vpop.f32.mrb[0].mxu0
        %v1479 = vadd.f32 %v1135, %v1478
        %1480 = vmatprep.mubr.bf16.mxu0 0
        %1481 = vmatmul.mubr.bf16.gmra.mrb[0].mxu0 %v1101
        %v1482 = vpop.f32.mrb[0].mxu0
        %v1483 = vadd.f32 %v1131, %v1482
        %v1484 = vpop.f32.mrb[0].mxu0
        %v1485 = vadd.f32 %v1135, %v1484
        %v1486 = vpop.f32.mrb[0].mxu0
        %v1487 = vadd.f32 %v1131, %v1486
        %v1488 = vpop.f32.mrb[0].mxu0
        %v1489 = vadd.f32 %v1135, %v1488
        %1490 = vmatprep.mubr.bf16.mxu0 0
        %1491 = vmatmul.mubr.bf16.gmra.mrb[0].mxu0 %v1102
        %v1492 = vpop.f32.mrb[0].mxu0
        %v1493 = vadd.f32 %v1131, %v1492
        %v1494 = vpop.f32.mrb[0].mxu0
        %v1495 = vadd.f32 %v1135, %v1494
        %v1496 = vpop.f32.mrb[0].mxu0
        %v1497 = vadd.f32 %v1131, %v1496
        %v1498 = vpop.f32.mrb[0].mxu0
        %v1499 = vadd.f32 %v1135, %v1498
        %1500 = vmatprep.mubr.bf16.mxu0 0
        %1501 = vmatmul.mubr.bf16.gmra.mrb[0].mxu0 %v1103
        %v1502 = vpop.f32.mrb[0].mxu0
        %v1503 = vadd.f32 %v1131, %v1502
        %v1504 = vpop.f32.mrb[0].mxu0
        %v1505 = vadd.f32 %v1135, %v1504
        %v1506 = vpop.f32.mrb[0].mxu0
        %v1507 = vadd.f32 %v1131, %v1506
        %v1508 = vpop.f32.mrb[0].mxu0
        %v1509 = vadd.f32 %v1135, %v1508
        %1510 = vmatprep.mubr.bf16.mxu0 0
        %1511 = vmatmul.mubr.bf16.gmra.mrb[0].mxu0 %v1104
        %v1512 = vpop.f32.mrb[0].mxu0
        %v1513 = vadd.f32 %v1131, %v1512
        %v1514 = vpop.f32.mrb[0].mxu0
        %v1515 = vadd.f32 %v1135, %v1514
        %v1516 = vpop.f32.mrb[0].mxu0
        %v1517 = vadd.f32 %v1131, %v1516
        %v1518 = vpop.f32.mrb[0].mxu0
        %v1519 = vadd.f32 %v1135, %v1518
        %1520 = vmatprep.mubr.bf16.mxu0 0
        %1521 = vmatmul.mubr.bf16.gmra.mrb[0].mxu0 %v1105
        %v1522 = vpop.f32.mrb[0].mxu0
        %v1523 = vadd.f32 %v1131, %v1522
        %v1524 = vpop.f32.mrb[0].mxu0
        %v1525 = vadd.f32 %v1135, %v1524
        %v1526 = vpop.f32.mrb[0].mxu0
        %v1527 = vadd.f32 %v1131, %v1526
        %v1528 = vpop.f32.mrb[0].mxu0
        %v1529 = vadd.f32 %v1135, %v1528
        %1530 = vmatprep.mubr.bf16.mxu0 0
        %1531 = vmatmul.mubr.bf16.gmra.mrb[0].mxu0 %v1106
        %v1532 = vpop.f32.mrb[0].mxu0
        %v1533 = vadd.f32 %v1131, %v1532
        %v1534 = vpop.f32.mrb[0].mxu0
        %v1535 = vadd.f32 %v1135, %v1534
        %v1536 = vpop.f32.mrb[0].mxu0
        %v1537 = vadd.f32 %v1131, %v1536
        %v1538 = vpop.f32.mrb[0].mxu0
        %v1539 = vadd.f32 %v1135, %v1538
        %1540 = vmatprep.mubr.bf16.mxu0 0
        %1541 = vmatmul.mubr.bf16.gmra.mrb[0].mxu0 %v1107
        %v1542 = vpop.f32.mrb[0].mxu0
        %v1543 = vadd.f32 %v1131, %v1542
        %v1544 = vpop.f32.mrb[0].mxu0
        %v1545 = vadd.f32 %v1135, %v1544
        %v1546 = vpop.f32.mrb[0].mxu0
        %v1547 = vadd.f32 %v1131, %v1546
        %v1548 = vpop.f32.mrb[0].mxu0
        %v1549 = vadd.f32 %v1135, %v1548
        %1550 = vmatprep.mubr.bf16.mxu0 0
        %1551 = vmatmul.mubr.bf16.gmra.mrb[0].mxu0 %v1108
        %v1552 = vpop.f32.mrb[0].mxu0
        %v1553 = vadd.f32 %v1131, %v1552
        %v1554 = vpop.f32.mrb[0].mxu0
        %v1555 = vadd.f32 %v1135, %v1554
        %v1556 = vpop.f32.mrb[0].mxu0
        %v1557 = vadd.f32 %v1131, %v1556
        %v1558 = vpop.f32.mrb[0].mxu0
        %v1559 = vadd.f32 %v1135, %v1558
        %1560 = vmatprep.mubr.bf16.mxu0 0
        %1561 = vmatmul.mubr.bf16.gmra.mrb[0].mxu0 %v1109
        %v1562 = vpop.f32.mrb[0].mxu0
        %v1563 = vadd.f32 %v1131, %v1562
        %v1564 = vpop.f32.mrb[0].mxu0
        %v1565 = vadd.f32 %v1135, %v1564
        %v1566 = vpop.f32.mrb[0].mxu0
        %v1567 = vadd.f32 %v1131, %v1566
        %v1568 = vpop.f32.mrb[0].mxu0
        %v1569 = vadd.f32 %v1135, %v1568
        %1570 = vdwg.mxu0
        %v1571 = vmax.f32 %v1253, 0.0
        %v1572 = vmax.f32 %v1255, 0.0
        %v1573 = vmax.f32 %v1257, 0.0
        %v1574 = vmax.f32 %v1259, 0.0
        %v1575 = vmax.f32 %v1263, 0.0
        %v1576 = vmax.f32 %v1265, 0.0
        %v1577 = vmax.f32 %v1267, 0.0
        %v1578 = vmax.f32 %v1269, 0.0
        %v1579 = vmax.f32 %v1273, 0.0
        %v1580 = vmax.f32 %v1275, 0.0
        %v1581 = vmax.f32 %v1277, 0.0
        %v1582 = vmax.f32 %v1279, 0.0
        %v1583 = vmax.f32 %v1283, 0.0
        %v1584 = vmax.f32 %v1285, 0.0
        %v1585 = vmax.f32 %v1287, 0.0
        %v1586 = vmax.f32 %v1289, 0.0
        %v1587 = vmax.f32 %v1293, 0.0
        %v1588 = vmax.f32 %v1295, 0.0
        %v1589 = vmax.f32 %v1297, 0.0
        %v1590 = vmax.f32 %v1299, 0.0
        %v1591 = vmax.f32 %v1303, 0.0
        %v1592 = vmax.f32 %v1305, 0.0
        %v1593 = vmax.f32 %v1307, 0.0
        %v1594 = vmax.f32 %v1309, 0.0
        %v1595 = vmax.f32 %v1313, 0.0
        %v1596 = vmax.f32 %v1315, 0.0
        %v1597 = vmax.f32 %v1317, 0.0
        %v1598 = vmax.f32 %v1319, 0.0
        %v1599 = vmax.f32 %v1323, 0.0
        %v1600 = vmax.f32 %v1325, 0.0
        %v1601 = vmax.f32 %v1327, 0.0
        %v1602 = vmax.f32 %v1329, 0.0
        %v1603 = vmax.f32 %v1333, 0.0
        %v1604 = vmax.f32 %v1335, 0.0
        %v1605 = vmax.f32 %v1337, 0.0
        %v1606 = vmax.f32 %v1339, 0.0
        %v1607 = vmax.f32 %v1343, 0.0
        %v1608 = vmax.f32 %v1345, 0.0
        %v1609 = vmax.f32 %v1347, 0.0
        %v1610 = vmax.f32 %v1349, 0.0
        %v1611 = vmax.f32 %v1353, 0.0
        %v1612 = vmax.f32 %v1355, 0.0
        %v1613 = vmax.f32 %v1357, 0.0
        %v1614 = vmax.f32 %v1359, 0.0
        %v1615 = vmax.f32 %v1363, 0.0
        %v1616 = vmax.f32 %v1365, 0.0
        %v1617 = vmax.f32 %v1367, 0.0
        %v1618 = vmax.f32 %v1369, 0.0
        %v1619 = vmax.f32 %v1373, 0.0
        %v1620 = vmax.f32 %v1375, 0.0
        %v1621 = vmax.f32 %v1377, 0.0
        %v1622 = vmax.f32 %v1379, 0.0
        %v1623 = vmax.f32 %v1383, 0.0
        %v1624 = vmax.f32 %v1385, 0.0
        %v1625 = vmax.f32 %v1387, 0.0
        %v1626 = vmax.f32 %v1389, 0.0
        %v1627 = vmax.f32 %v1393, 0.0
        %v1628 = vmax.f32 %v1395, 0.0
        %v1629 = vmax.f32 %v1397, 0.0
        %v1630 = vmax.f32 %v1399, 0.0
        %v1631 = vmax.f32 %v1403, 0.0
        %v1632 = vmax.f32 %v1405, 0.0
        %v1633 = vmax.f32 %v1407, 0.0
        %v1634 = vmax.f32 %v1409, 0.0
        %v1635 = vmax.f32 %v1413, 0.0
        %v1636 = vmax.f32 %v1415, 0.0
        %v1637 = vmax.f32 %v1417, 0.0
        %v1638 = vmax.f32 %v1419, 0.0
        %v1639 = vmax.f32 %v1423, 0.0
        %v1640 = vmax.f32 %v1425, 0.0
        %v1641 = vmax.f32 %v1427, 0.0
        %v1642 = vmax.f32 %v1429, 0.0
        %v1643 = vmax.f32 %v1433, 0.0
        %v1644 = vmax.f32 %v1435, 0.0
        %v1645 = vmax.f32 %v1437, 0.0
        %v1646 = vmax.f32 %v1439, 0.0
        %v1647 = vmax.f32 %v1443, 0.0
        %v1648 = vmax.f32 %v1445, 0.0
        %v1649 = vmax.f32 %v1447, 0.0
        %v1650 = vmax.f32 %v1449, 0.0
        %v1651 = vmax.f32 %v1453, 0.0
        %v1652 = vmax.f32 %v1455, 0.0
        %v1653 = vmax.f32 %v1457, 0.0
        %v1654 = vmax.f32 %v1459, 0.0
        %v1655 = vmax.f32 %v1463, 0.0
        %v1656 = vmax.f32 %v1465, 0.0
        %v1657 = vmax.f32 %v1467, 0.0
        %v1658 = vmax.f32 %v1469, 0.0
        %v1659 = vmax.f32 %v1473, 0.0
        %v1660 = vmax.f32 %v1475, 0.0
        %v1661 = vmax.f32 %v1477, 0.0
        %v1662 = vmax.f32 %v1479, 0.0
        %v1663 = vmax.f32 %v1483, 0.0
        %v1664 = vmax.f32 %v1485, 0.0
        %v1665 = vmax.f32 %v1487, 0.0
        %v1666 = vmax.f32 %v1489, 0.0
        %v1667 = vmax.f32 %v1493, 0.0
        %v1668 = vmax.f32 %v1495, 0.0
        %v1669 = vmax.f32 %v1497, 0.0
        %v1670 = vmax.f32 %v1499, 0.0
        %v1671 = vmax.f32 %v1503, 0.0
        %v1672 = vmax.f32 %v1505, 0.0
        %v1673 = vmax.f32 %v1507, 0.0
        %v1674 = vmax.f32 %v1509, 0.0
        %v1675 = vmax.f32 %v1513, 0.0
        %v1676 = vmax.f32 %v1515, 0.0
        %v1677 = vmax.f32 %v1517, 0.0
        %v1678 = vmax.f32 %v1519, 0.0
        %v1679 = vmax.f32 %v1523, 0.0
        %v1680 = vmax.f32 %v1525, 0.0
        %v1681 = vmax.f32 %v1527, 0.0
        %v1682 = vmax.f32 %v1529, 0.0
        %v1683 = vmax.f32 %v1533, 0.0
        %v1684 = vmax.f32 %v1535, 0.0
        %v1685 = vmax.f32 %v1537, 0.0
        %v1686 = vmax.f32 %v1539, 0.0
        %v1687 = vmax.f32 %v1543, 0.0
        %v1688 = vmax.f32 %v1545, 0.0
        %v1689 = vmax.f32 %v1547, 0.0
        %v1690 = vmax.f32 %v1549, 0.0
        %v1691 = vmax.f32 %v1553, 0.0
        %v1692 = vmax.f32 %v1555, 0.0
        %v1693 = vmax.f32 %v1557, 0.0
        %v1694 = vmax.f32 %v1559, 0.0
        %v1695 = vmax.f32 %v1563, 0.0
        %v1696 = vmax.f32 %v1565, 0.0
        %v1697 = vmax.f32 %v1567, 0.0
        %v1698 = vmax.f32 %v1569, 0.0
        %v1699 = vmax.f32 %v1571, %v1572
        %v1700 = vmax.f32 %v1573, %v1574
        %v1701 = vmax.f32 %v1575, %v1576
        %v1702 = vmax.f32 %v1577, %v1578
        %v1703 = vmax.f32 %v1579, %v1580
        %v1704 = vmax.f32 %v1581, %v1582
        %v1705 = vmax.f32 %v1583, %v1584
        %v1706 = vmax.f32 %v1585, %v1586
        %v1707 = vmax.f32 %v1587, %v1588
        %v1708 = vmax.f32 %v1589, %v1590
        %v1709 = vmax.f32 %v1591, %v1592
        %v1710 = vmax.f32 %v1593, %v1594
        %v1711 = vmax.f32 %v1595, %v1596
        %v1712 = vmax.f32 %v1597, %v1598
        %v1713 = vmax.f32 %v1599, %v1600
        %v1714 = vmax.f32 %v1601, %v1602
        %v1715 = vmax.f32 %v1603, %v1604
        %v1716 = vmax.f32 %v1605, %v1606
        %v1717 = vmax.f32 %v1607, %v1608
        %v1718 = vmax.f32 %v1609, %v1610
        %v1719 = vmax.f32 %v1611, %v1612
        %v1720 = vmax.f32 %v1613, %v1614
        %v1721 = vmax.f32 %v1615, %v1616
        %v1722 = vmax.f32 %v1617, %v1618
        %v1723 = vmax.f32 %v1619, %v1620
        %v1724 = vmax.f32 %v1621, %v1622
        %v1725 = vmax.f32 %v1623, %v1624
        %v1726 = vmax.f32 %v1625, %v1626
        %v1727 = vmax.f32 %v1627, %v1628
        %v1728 = vmax.f32 %v1629, %v1630
        %v1729 = vmax.f32 %v1631, %v1632
        %v1730 = vmax.f32 %v1633, %v1634
        %v1731 = vmax.f32 %v1635, %v1636
        %v1732 = vmax.f32 %v1637, %v1638
        %v1733 = vmax.f32 %v1639, %v1640
        %v1734 = vmax.f32 %v1641, %v1642
        %v1735 = vmax.f32 %v1643, %v1644
        %v1736 = vmax.f32 %v1645, %v1646
        %v1737 = vmax.f32 %v1647, %v1648
        %v1738 = vmax.f32 %v1649, %v1650
        %v1739 = vmax.f32 %v1651, %v1652
        %v1740 = vmax.f32 %v1653, %v1654
        %v1741 = vmax.f32 %v1655, %v1656
        %v1742 = vmax.f32 %v1657, %v1658
        %v1743 = vmax.f32 %v1659, %v1660
        %v1744 = vmax.f32 %v1661, %v1662
        %v1745 = vmax.f32 %v1663, %v1664
        %v1746 = vmax.f32 %v1665, %v1666
        %v1747 = vmax.f32 %v1667, %v1668
        %v1748 = vmax.f32 %v1669, %v1670
        %v1749 = vmax.f32 %v1671, %v1672
        %v1750 = vmax.f32 %v1673, %v1674
        %v1751 = vmax.f32 %v1675, %v1676
        %v1752 = vmax.f32 %v1677, %v1678
        %v1753 = vmax.f32 %v1679, %v1680
        %v1754 = vmax.f32 %v1681, %v1682
        %v1755 = vmax.f32 %v1683, %v1684
        %v1756 = vmax.f32 %v1685, %v1686
        %v1757 = vmax.f32 %v1687, %v1688
        %v1758 = vmax.f32 %v1689, %v1690
        %v1759 = vmax.f32 %v1691, %v1692
        %v1760 = vmax.f32 %v1693, %v1694
        %v1761 = vmax.f32 %v1695, %v1696
        %v1762 = vmax.f32 %v1697, %v1698
        %v1763 = vpack.c.bf16 %v1700, %v1699
        %v1764 = vpack.c.bf16 %v1702, %v1701
        %v1765 = vpack.c.bf16 %v1704, %v1703
        %v1766 = vpack.c.bf16 %v1706, %v1705
        %v1767 = vpack.c.bf16 %v1708, %v1707
        %v1768 = vpack.c.bf16 %v1710, %v1709
        %v1769 = vpack.c.bf16 %v1712, %v1711
        %v1770 = vpack.c.bf16 %v1714, %v1713
        %v1771 = vpack.c.bf16 %v1716, %v1715
        %v1772 = vpack.c.bf16 %v1718, %v1717
        %v1773 = vpack.c.bf16 %v1720, %v1719
        %v1774 = vpack.c.bf16 %v1722, %v1721
        %v1775 = vpack.c.bf16 %v1724, %v1723
        %v1776 = vpack.c.bf16 %v1726, %v1725
        %v1777 = vpack.c.bf16 %v1728, %v1727
        %v1778 = vpack.c.bf16 %v1730, %v1729
        %v1779 = vpack.c.bf16 %v1732, %v1731
        %v1780 = vpack.c.bf16 %v1734, %v1733
        %v1781 = vpack.c.bf16 %v1736, %v1735
        %v1782 = vpack.c.bf16 %v1738, %v1737
        %v1783 = vpack.c.bf16 %v1740, %v1739
        %v1784 = vpack.c.bf16 %v1742, %v1741
        %v1785 = vpack.c.bf16 %v1744, %v1743
        %v1786 = vpack.c.bf16 %v1746, %v1745
        %v1787 = vpack.c.bf16 %v1748, %v1747
        %v1788 = vpack.c.bf16 %v1750, %v1749
        %v1789 = vpack.c.bf16 %v1752, %v1751
        %v1790 = vpack.c.bf16 %v1754, %v1753
        %v1791 = vpack.c.bf16 %v1756, %v1755
        %v1792 = vpack.c.bf16 %v1758, %v1757
        %v1793 = vpack.c.bf16 %v1760, %v1759
        %v1794 = vpack.c.bf16 %v1762, %v1761
        %v1795 = vld [vmem:[%s4] sm:$0xf]
        %v1796 = vld [vmem:[%s4 + $0x4] sm:$0xf]
        %v1797 = vld [vmem:[%s4 + $0x8] sm:$0xf]
        %v1798 = vld [vmem:[%s4 + $0xc] sm:$0xf]
        %v1799 = vld [vmem:[%s4 + $0x10] sm:$0xf]
        %v1800 = vld [vmem:[%s4 + $0x14] sm:$0xf]
        %v1801 = vld [vmem:[%s4 + $0x18] sm:$0xf]
        %v1802 = vld [vmem:[%s4 + $0x1c] sm:$0xf]
        %v1803 = vld [vmem:[%s4 + $0x20] sm:$0xf]
        %v1804 = vld [vmem:[%s4 + $0x24] sm:$0xf]
        %v1805 = vld [vmem:[%s4 + $0x28] sm:$0xf]
        %v1806 = vld [vmem:[%s4 + $0x2c] sm:$0xf]
        %v1807 = vld [vmem:[%s4 + $0x30] sm:$0xf]
        %v1808 = vld [vmem:[%s4 + $0x34] sm:$0xf]
        %v1809 = vld [vmem:[%s4 + $0x38] sm:$0xf]
        %v1810 = vld [vmem:[%s4 + $0x3c] sm:$0xf]
        %v1811 = vld [vmem:[%s5] sm:$0x1]
        %v1813 = vlaneseq
        %v1814 = vshrl.u32 %v1813, 7
        %v1815 = vsub.s32 0, %v1814
        %v1816 = vrot.slane %v1811, %v1815
        %v1834 = vunpack.c.l.b16 %v1795
        %v1835 = vunpack.c.l.b16 %v1796
        %v1836 = vunpack.c.l.b16 %v1797
        %v1837 = vunpack.c.l.b16 %v1798
        %v1838 = vunpack.c.l.b16 %v1799
        %v1839 = vunpack.c.l.b16 %v1800
        %v1840 = vunpack.c.l.b16 %v1801
        %v1841 = vunpack.c.l.b16 %v1802
        %v1842 = vunpack.c.l.b16 %v1803
        %v1843 = vunpack.c.l.b16 %v1804
        %v1844 = vunpack.c.l.b16 %v1805
        %v1845 = vunpack.c.l.b16 %v1806
        %v1846 = vunpack.c.l.b16 %v1807
        %v1847 = vunpack.c.l.b16 %v1808
        %v1848 = vunpack.c.l.b16 %v1809
        %v1849 = vunpack.c.l.b16 %v1810
        %v1850 = vpack.c.b16 %v1835, %v1834
        %v1851 = vpack.c.b16 %v1837, %v1836
        %v1852 = vpack.c.b16 %v1839, %v1838
        %v1853 = vpack.c.b16 %v1841, %v1840
        %v1854 = vpack.c.b16 %v1843, %v1842
        %v1855 = vpack.c.b16 %v1845, %v1844
        %v1856 = vpack.c.b16 %v1847, %v1846
        %v1857 = vpack.c.b16 %v1849, %v1848
        %1866 = vmatprep.subr.bf16.mxu0 0
        %1867 = vmatpush1.bf16.msra.mxu0 %v1850
        %1868 = vmatprep.subr.bf16.mxu0 0
        %1869 = vmatpush1.bf16.msra.mxu0 %v1851
        %1870 = vmatprep.subr.bf16.mxu0 0
        %1871 = vmatpush1.bf16.msra.mxu0 %v1852
        %1872 = vmatprep.subr.bf16.mxu0 0
        %1873 = vmatpush1.bf16.msra.mxu0 %v1853
        %1874 = vmatprep.subr.bf16.mxu0 0
        %1875 = vmatpush1.bf16.msra.mxu0 %v1854
        %1876 = vmatprep.subr.bf16.mxu0 0
        %1877 = vmatpush1.bf16.msra.mxu0 %v1855
        %1878 = vmatprep.subr.bf16.mxu0 0
        %1879 = vmatpush1.bf16.msra.mxu0 %v1856
        %1880 = vmatprep.subr.bf16.mxu0 0
        %1881 = vmatpush1.bf16.msra.mxu0 %v1857
        %1882 = vmatprep.subr.bf16.mxu0 0
        %1883 = vmatpush1.bf16.msra.mxu0 0
        %1884 = vmatprep.subr.bf16.mxu0 0
        %1885 = vmatpush1.bf16.msra.mxu0 0
        %1886 = vmatprep.subr.bf16.mxu0 0
        %1887 = vmatpush1.bf16.msra.mxu0 0
        %1888 = vmatprep.subr.bf16.mxu0 0
        %1889 = vmatpush1.bf16.msra.mxu0 0
        %1890 = vmatprep.subr.bf16.mxu0 0
        %1891 = vmatpush1.bf16.msra.mxu0 0
        %1892 = vmatprep.subr.bf16.mxu0 0
        %1893 = vmatpush1.bf16.msra.mxu0 0
        %1894 = vmatprep.subr.bf16.mxu0 0
        %1895 = vmatpush1.bf16.msra.mxu0 0
        %1896 = vmatprep.subr.bf16.mxu0 0
        %1897 = vmatpush1.bf16.msra.mxu0 0
        %1898 = vmatprep.mubr.bf16.mxu0 0
        %1899 = vmatmul.mubr.bf16.gmra.mrb[0].mxu0 %v1763
        %v1900 = vpop.f32.mrb[0].mxu0
        %v1901 = vadd.f32 %v1816, %v1900
        %v1902 = vpop.f32.mrb[0].mxu0
        %v1903 = vpop.f32.mrb[0].mxu0
        %v1904 = vadd.f32 %v1816, %v1903
        %v1905 = vpop.f32.mrb[0].mxu0
        %1906 = vmatprep.mubr.bf16.mxu0 0
        %1907 = vmatmul.mubr.bf16.gmra.mrb[0].mxu0 %v1764
        %v1908 = vpop.f32.mrb[0].mxu0
        %v1909 = vadd.f32 %v1816, %v1908
        %v1910 = vpop.f32.mrb[0].mxu0
        %v1911 = vpop.f32.mrb[0].mxu0
        %v1912 = vadd.f32 %v1816, %v1911
        %v1913 = vpop.f32.mrb[0].mxu0
        %1914 = vmatprep.mubr.bf16.mxu0 0
        %1915 = vmatmul.mubr.bf16.gmra.mrb[0].mxu0 %v1765
        %v1916 = vpop.f32.mrb[0].mxu0
        %v1917 = vadd.f32 %v1816, %v1916
        %v1918 = vpop.f32.mrb[0].mxu0
        %v1919 = vpop.f32.mrb[0].mxu0
        %v1920 = vadd.f32 %v1816, %v1919
        %v1921 = vpop.f32.mrb[0].mxu0
        %1922 = vmatprep.mubr.bf16.mxu0 0
        %1923 = vmatmul.mubr.bf16.gmra.mrb[0].mxu0 %v1766
        %v1924 = vpop.f32.mrb[0].mxu0
        %v1925 = vadd.f32 %v1816, %v1924
        %v1926 = vpop.f32.mrb[0].mxu0
        %v1927 = vpop.f32.mrb[0].mxu0
        %v1928 = vadd.f32 %v1816, %v1927
        %v1929 = vpop.f32.mrb[0].mxu0
        %1930 = vmatprep.mubr.bf16.mxu0 0
        %1931 = vmatmul.mubr.bf16.gmra.mrb[0].mxu0 %v1767
        %v1932 = vpop.f32.mrb[0].mxu0
        %v1933 = vadd.f32 %v1816, %v1932
        %v1934 = vpop.f32.mrb[0].mxu0
        %v1935 = vpop.f32.mrb[0].mxu0
        %v1936 = vadd.f32 %v1816, %v1935
        %v1937 = vpop.f32.mrb[0].mxu0
        %1938 = vmatprep.mubr.bf16.mxu0 0
        %1939 = vmatmul.mubr.bf16.gmra.mrb[0].mxu0 %v1768
        %v1940 = vpop.f32.mrb[0].mxu0
        %v1941 = vadd.f32 %v1816, %v1940
        %v1942 = vpop.f32.mrb[0].mxu0
        %v1943 = vpop.f32.mrb[0].mxu0
        %v1944 = vadd.f32 %v1816, %v1943
        %v1945 = vpop.f32.mrb[0].mxu0
        %1946 = vmatprep.mubr.bf16.mxu0 0
        %1947 = vmatmul.mubr.bf16.gmra.mrb[0].mxu0 %v1769
        %v1948 = vpop.f32.mrb[0].mxu0
        %v1949 = vadd.f32 %v1816, %v1948
        %v1950 = vpop.f32.mrb[0].mxu0
        %v1951 = vpop.f32.mrb[0].mxu0
        %v1952 = vadd.f32 %v1816, %v1951
        %v1953 = vpop.f32.mrb[0].mxu0
        %1954 = vmatprep.mubr.bf16.mxu0 0
        %1955 = vmatmul.mubr.bf16.gmra.mrb[0].mxu0 %v1770
        %v1956 = vpop.f32.mrb[0].mxu0
        %v1957 = vadd.f32 %v1816, %v1956
        %v1958 = vpop.f32.mrb[0].mxu0
        %v1959 = vpop.f32.mrb[0].mxu0
        %v1960 = vadd.f32 %v1816, %v1959
        %v1961 = vpop.f32.mrb[0].mxu0
        %1962 = vmatprep.mubr.bf16.mxu0 0
        %1963 = vmatmul.mubr.bf16.gmra.mrb[0].mxu0 %v1771
        %v1964 = vpop.f32.mrb[0].mxu0
        %v1965 = vadd.f32 %v1816, %v1964
        %v1966 = vpop.f32.mrb[0].mxu0
        %v1967 = vpop.f32.mrb[0].mxu0
        %v1968 = vadd.f32 %v1816, %v1967
        %v1969 = vpop.f32.mrb[0].mxu0
        %1970 = vmatprep.mubr.bf16.mxu0 0
        %1971 = vmatmul.mubr.bf16.gmra.mrb[0].mxu0 %v1772
        %v1972 = vpop.f32.mrb[0].mxu0
        %v1973 = vadd.f32 %v1816, %v1972
        %v1974 = vpop.f32.mrb[0].mxu0
        %v1975 = vpop.f32.mrb[0].mxu0
        %v1976 = vadd.f32 %v1816, %v1975
        %v1977 = vpop.f32.mrb[0].mxu0
        %1978 = vmatprep.mubr.bf16.mxu0 0
        %1979 = vmatmul.mubr.bf16.gmra.mrb[0].mxu0 %v1773
        %v1980 = vpop.f32.mrb[0].mxu0
        %v1981 = vadd.f32 %v1816, %v1980
        %v1982 = vpop.f32.mrb[0].mxu0
        %v1983 = vpop.f32.mrb[0].mxu0
        %v1984 = vadd.f32 %v1816, %v1983
        %v1985 = vpop.f32.mrb[0].mxu0
        %1986 = vmatprep.mubr.bf16.mxu0 0
        %1987 = vmatmul.mubr.bf16.gmra.mrb[0].mxu0 %v1774
        %v1988 = vpop.f32.mrb[0].mxu0
        %v1989 = vadd.f32 %v1816, %v1988
        %v1990 = vpop.f32.mrb[0].mxu0
        %v1991 = vpop.f32.mrb[0].mxu0
        %v1992 = vadd.f32 %v1816, %v1991
        %v1993 = vpop.f32.mrb[0].mxu0
        %1994 = vmatprep.mubr.bf16.mxu0 0
        %1995 = vmatmul.mubr.bf16.gmra.mrb[0].mxu0 %v1775
        %v1996 = vpop.f32.mrb[0].mxu0
        %v1997 = vadd.f32 %v1816, %v1996
        %v1998 = vpop.f32.mrb[0].mxu0
        %v1999 = vpop.f32.mrb[0].mxu0
        %v2000 = vadd.f32 %v1816, %v1999
        %v2001 = vpop.f32.mrb[0].mxu0
        %2002 = vmatprep.mubr.bf16.mxu0 0
        %2003 = vmatmul.mubr.bf16.gmra.mrb[0].mxu0 %v1776
        %v2004 = vpop.f32.mrb[0].mxu0
        %v2005 = vadd.f32 %v1816, %v2004
        %v2006 = vpop.f32.mrb[0].mxu0
        %v2007 = vpop.f32.mrb[0].mxu0
        %v2008 = vadd.f32 %v1816, %v2007
        %v2009 = vpop.f32.mrb[0].mxu0
        %2010 = vmatprep.mubr.bf16.mxu0 0
        %2011 = vmatmul.mubr.bf16.gmra.mrb[0].mxu0 %v1777
        %v2012 = vpop.f32.mrb[0].mxu0
        %v2013 = vadd.f32 %v1816, %v2012
        %v2014 = vpop.f32.mrb[0].mxu0
        %v2015 = vpop.f32.mrb[0].mxu0
        %v2016 = vadd.f32 %v1816, %v2015
        %v2017 = vpop.f32.mrb[0].mxu0
        %2018 = vmatprep.mubr.bf16.mxu0 0
        %2019 = vmatmul.mubr.bf16.gmra.mrb[0].mxu0 %v1778
        %v2020 = vpop.f32.mrb[0].mxu0
        %v2021 = vadd.f32 %v1816, %v2020
        %v2022 = vpop.f32.mrb[0].mxu0
        %v2023 = vpop.f32.mrb[0].mxu0
        %v2024 = vadd.f32 %v1816, %v2023
        %v2025 = vpop.f32.mrb[0].mxu0
        %2026 = vmatprep.mubr.bf16.mxu0 0
        %2027 = vmatmul.mubr.bf16.gmra.mrb[0].mxu0 %v1779
        %v2028 = vpop.f32.mrb[0].mxu0
        %v2029 = vadd.f32 %v1816, %v2028
        %v2030 = vpop.f32.mrb[0].mxu0
        %v2031 = vpop.f32.mrb[0].mxu0
        %v2032 = vadd.f32 %v1816, %v2031
        %v2033 = vpop.f32.mrb[0].mxu0
        %2034 = vmatprep.mubr.bf16.mxu0 0
        %2035 = vmatmul.mubr.bf16.gmra.mrb[0].mxu0 %v1780
        %v2036 = vpop.f32.mrb[0].mxu0
        %v2037 = vadd.f32 %v1816, %v2036
        %v2038 = vpop.f32.mrb[0].mxu0
        %v2039 = vpop.f32.mrb[0].mxu0
        %v2040 = vadd.f32 %v1816, %v2039
        %v2041 = vpop.f32.mrb[0].mxu0
        %2042 = vmatprep.mubr.bf16.mxu0 0
        %2043 = vmatmul.mubr.bf16.gmra.mrb[0].mxu0 %v1781
        %v2044 = vpop.f32.mrb[0].mxu0
        %v2045 = vadd.f32 %v1816, %v2044
        %v2046 = vpop.f32.mrb[0].mxu0
        %v2047 = vpop.f32.mrb[0].mxu0
        %v2048 = vadd.f32 %v1816, %v2047
        %v2049 = vpop.f32.mrb[0].mxu0
        %2050 = vmatprep.mubr.bf16.mxu0 0
        %2051 = vmatmul.mubr.bf16.gmra.mrb[0].mxu0 %v1782
        %v2052 = vpop.f32.mrb[0].mxu0
        %v2053 = vadd.f32 %v1816, %v2052
        %v2054 = vpop.f32.mrb[0].mxu0
        %v2055 = vpop.f32.mrb[0].mxu0
        %v2056 = vadd.f32 %v1816, %v2055
        %v2057 = vpop.f32.mrb[0].mxu0
        %2058 = vmatprep.mubr.bf16.mxu0 0
        %2059 = vmatmul.mubr.bf16.gmra.mrb[0].mxu0 %v1783
        %v2060 = vpop.f32.mrb[0].mxu0
        %v2061 = vadd.f32 %v1816, %v2060
        %v2062 = vpop.f32.mrb[0].mxu0
        %v2063 = vpop.f32.mrb[0].mxu0
        %v2064 = vadd.f32 %v1816, %v2063
        %v2065 = vpop.f32.mrb[0].mxu0
        %2066 = vmatprep.mubr.bf16.mxu0 0
        %2067 = vmatmul.mubr.bf16.gmra.mrb[0].mxu0 %v1784
        %v2068 = vpop.f32.mrb[0].mxu0
        %v2069 = vadd.f32 %v1816, %v2068
        %v2070 = vpop.f32.mrb[0].mxu0
        %v2071 = vpop.f32.mrb[0].mxu0
        %v2072 = vadd.f32 %v1816, %v2071
        %v2073 = vpop.f32.mrb[0].mxu0
        %2074 = vmatprep.mubr.bf16.mxu0 0
        %2075 = vmatmul.mubr.bf16.gmra.mrb[0].mxu0 %v1785
        %v2076 = vpop.f32.mrb[0].mxu0
        %v2077 = vadd.f32 %v1816, %v2076
        %v2078 = vpop.f32.mrb[0].mxu0
        %v2079 = vpop.f32.mrb[0].mxu0
        %v2080 = vadd.f32 %v1816, %v2079
        %v2081 = vpop.f32.mrb[0].mxu0
        %2082 = vmatprep.mubr.bf16.mxu0 0
        %2083 = vmatmul.mubr.bf16.gmra.mrb[0].mxu0 %v1786
        %v2084 = vpop.f32.mrb[0].mxu0
        %v2085 = vadd.f32 %v1816, %v2084
        %v2086 = vpop.f32.mrb[0].mxu0
        %v2087 = vpop.f32.mrb[0].mxu0
        %v2088 = vadd.f32 %v1816, %v2087
        %v2089 = vpop.f32.mrb[0].mxu0
        %2090 = vmatprep.mubr.bf16.mxu0 0
        %2091 = vmatmul.mubr.bf16.gmra.mrb[0].mxu0 %v1787
        %v2092 = vpop.f32.mrb[0].mxu0
        %v2093 = vadd.f32 %v1816, %v2092
        %v2094 = vpop.f32.mrb[0].mxu0
        %v2095 = vpop.f32.mrb[0].mxu0
        %v2096 = vadd.f32 %v1816, %v2095
        %v2097 = vpop.f32.mrb[0].mxu0
        %2098 = vmatprep.mubr.bf16.mxu0 0
        %2099 = vmatmul.mubr.bf16.gmra.mrb[0].mxu0 %v1788
        %v2100 = vpop.f32.mrb[0].mxu0
        %v2101 = vadd.f32 %v1816, %v2100
        %v2102 = vpop.f32.mrb[0].mxu0
        %v2103 = vpop.f32.mrb[0].mxu0
        %v2104 = vadd.f32 %v1816, %v2103
        %v2105 = vpop.f32.mrb[0].mxu0
        %2106 = vmatprep.mubr.bf16.mxu0 0
        %2107 = vmatmul.mubr.bf16.gmra.mrb[0].mxu0 %v1789
        %v2108 = vpop.f32.mrb[0].mxu0
        %v2109 = vadd.f32 %v1816, %v2108
        %v2110 = vpop.f32.mrb[0].mxu0
        %v2111 = vpop.f32.mrb[0].mxu0
        %v2112 = vadd.f32 %v1816, %v2111
        %v2113 = vpop.f32.mrb[0].mxu0
        %2114 = vmatprep.mubr.bf16.mxu0 0
        %2115 = vmatmul.mubr.bf16.gmra.mrb[0].mxu0 %v1790
        %v2116 = vpop.f32.mrb[0].mxu0
        %v2117 = vadd.f32 %v1816, %v2116
        %v2118 = vpop.f32.mrb[0].mxu0
        %v2119 = vpop.f32.mrb[0].mxu0
        %v2120 = vadd.f32 %v1816, %v2119
        %v2121 = vpop.f32.mrb[0].mxu0
        %2122 = vmatprep.mubr.bf16.mxu0 0
        %2123 = vmatmul.mubr.bf16.gmra.mrb[0].mxu0 %v1791
        %v2124 = vpop.f32.mrb[0].mxu0
        %v2125 = vadd.f32 %v1816, %v2124
        %v2126 = vpop.f32.mrb[0].mxu0
        %v2127 = vpop.f32.mrb[0].mxu0
        %v2128 = vadd.f32 %v1816, %v2127
        %v2129 = vpop.f32.mrb[0].mxu0
        %2130 = vmatprep.mubr.bf16.mxu0 0
        %2131 = vmatmul.mubr.bf16.gmra.mrb[0].mxu0 %v1792
        %v2132 = vpop.f32.mrb[0].mxu0
        %v2133 = vadd.f32 %v1816, %v2132
        %v2134 = vpop.f32.mrb[0].mxu0
        %v2135 = vpop.f32.mrb[0].mxu0
        %v2136 = vadd.f32 %v1816, %v2135
        %v2137 = vpop.f32.mrb[0].mxu0
        %2138 = vmatprep.mubr.bf16.mxu0 0
        %2139 = vmatmul.mubr.bf16.gmra.mrb[0].mxu0 %v1793
        %v2140 = vpop.f32.mrb[0].mxu0
        %v2141 = vadd.f32 %v1816, %v2140
        %v2142 = vpop.f32.mrb[0].mxu0
        %v2143 = vpop.f32.mrb[0].mxu0
        %v2144 = vadd.f32 %v1816, %v2143
        %v2145 = vpop.f32.mrb[0].mxu0
        %2146 = vmatprep.mubr.bf16.mxu0 0
        %2147 = vmatmul.mubr.bf16.gmra.mrb[0].mxu0 %v1794
        %v2148 = vpop.f32.mrb[0].mxu0
        %v2149 = vadd.f32 %v1816, %v2148
        %v2150 = vpop.f32.mrb[0].mxu0
        %v2151 = vpop.f32.mrb[0].mxu0
        %v2152 = vadd.f32 %v1816, %v2151
        %v2153 = vpop.f32.mrb[0].mxu0
        %2154 = vdwg.mxu0
        %v2155 = vmax.f32 %v1901, 0.0
        %v2156 = vmax.f32 %v1904, 0.0
        %v2157 = vmax.f32 %v1909, 0.0
        %v2158 = vmax.f32 %v1912, 0.0
        %v2159 = vmax.f32 %v1917, 0.0
        %v2160 = vmax.f32 %v1920, 0.0
        %v2161 = vmax.f32 %v1925, 0.0
        %v2162 = vmax.f32 %v1928, 0.0
        %v2163 = vmax.f32 %v1933, 0.0
        %v2164 = vmax.f32 %v1936, 0.0
        %v2165 = vmax.f32 %v1941, 0.0
        %v2166 = vmax.f32 %v1944, 0.0
        %v2167 = vmax.f32 %v1949, 0.0
        %v2168 = vmax.f32 %v1952, 0.0
        %v2169 = vmax.f32 %v1957, 0.0
        %v2170 = vmax.f32 %v1960, 0.0
        %v2171 = vmax.f32 %v1965, 0.0
        %v2172 = vmax.f32 %v1968, 0.0
        %v2173 = vmax.f32 %v1973, 0.0
        %v2174 = vmax.f32 %v1976, 0.0
        %v2175 = vmax.f32 %v1981, 0.0
        %v2176 = vmax.f32 %v1984, 0.0
        %v2177 = vmax.f32 %v1989, 0.0
        %v2178 = vmax.f32 %v1992, 0.0
        %v2179 = vmax.f32 %v1997, 0.0
        %v2180 = vmax.f32 %v2000, 0.0
        %v2181 = vmax.f32 %v2005, 0.0
        %v2182 = vmax.f32 %v2008, 0.0
        %v2183 = vmax.f32 %v2013, 0.0
        %v2184 = vmax.f32 %v2016, 0.0
        %v2185 = vmax.f32 %v2021, 0.0
        %v2186 = vmax.f32 %v2024, 0.0
        %v2187 = vmax.f32 %v2029, 0.0
        %v2188 = vmax.f32 %v2032, 0.0
        %v2189 = vmax.f32 %v2037, 0.0
        %v2190 = vmax.f32 %v2040, 0.0
        %v2191 = vmax.f32 %v2045, 0.0
        %v2192 = vmax.f32 %v2048, 0.0
        %v2193 = vmax.f32 %v2053, 0.0
        %v2194 = vmax.f32 %v2056, 0.0
        %v2195 = vmax.f32 %v2061, 0.0
        %v2196 = vmax.f32 %v2064, 0.0
        %v2197 = vmax.f32 %v2069, 0.0
        %v2198 = vmax.f32 %v2072, 0.0
        %v2199 = vmax.f32 %v2077, 0.0
        %v2200 = vmax.f32 %v2080, 0.0
        %v2201 = vmax.f32 %v2085, 0.0
        %v2202 = vmax.f32 %v2088, 0.0
        %v2203 = vmax.f32 %v2093, 0.0
        %v2204 = vmax.f32 %v2096, 0.0
        %v2205 = vmax.f32 %v2101, 0.0
        %v2206 = vmax.f32 %v2104, 0.0
        %v2207 = vmax.f32 %v2109, 0.0
        %v2208 = vmax.f32 %v2112, 0.0
        %v2209 = vmax.f32 %v2117, 0.0
        %v2210 = vmax.f32 %v2120, 0.0
        %v2211 = vmax.f32 %v2125, 0.0
        %v2212 = vmax.f32 %v2128, 0.0
        %v2213 = vmax.f32 %v2133, 0.0
        %v2214 = vmax.f32 %v2136, 0.0
        %v2215 = vmax.f32 %v2141, 0.0
        %v2216 = vmax.f32 %v2144, 0.0
        %v2217 = vmax.f32 %v2149, 0.0
        %v2218 = vmax.f32 %v2152, 0.0
        %v2219 = vpack.c.bf16 %v2156, %v2155
        %v2220 = vpack.c.bf16 %v2158, %v2157
        %v2221 = vpack.c.bf16 %v2160, %v2159
        %v2222 = vpack.c.bf16 %v2162, %v2161
        %v2223 = vpack.c.bf16 %v2164, %v2163
        %v2224 = vpack.c.bf16 %v2166, %v2165
        %v2225 = vpack.c.bf16 %v2168, %v2167
        %v2226 = vpack.c.bf16 %v2170, %v2169
        %v2227 = vpack.c.bf16 %v2172, %v2171
        %v2228 = vpack.c.bf16 %v2174, %v2173
        %v2229 = vpack.c.bf16 %v2176, %v2175
        %v2230 = vpack.c.bf16 %v2178, %v2177
        %v2231 = vpack.c.bf16 %v2180, %v2179
        %v2232 = vpack.c.bf16 %v2182, %v2181
        %v2233 = vpack.c.bf16 %v2184, %v2183
        %v2234 = vpack.c.bf16 %v2186, %v2185
        %v2235 = vpack.c.bf16 %v2188, %v2187
        %v2236 = vpack.c.bf16 %v2190, %v2189
        %v2237 = vpack.c.bf16 %v2192, %v2191
        %v2238 = vpack.c.bf16 %v2194, %v2193
        %v2239 = vpack.c.bf16 %v2196, %v2195
        %v2240 = vpack.c.bf16 %v2198, %v2197
        %v2241 = vpack.c.bf16 %v2200, %v2199
        %v2242 = vpack.c.bf16 %v2202, %v2201
        %v2243 = vpack.c.bf16 %v2204, %v2203
        %v2244 = vpack.c.bf16 %v2206, %v2205
        %v2245 = vpack.c.bf16 %v2208, %v2207
        %v2246 = vpack.c.bf16 %v2210, %v2209
        %v2247 = vpack.c.bf16 %v2212, %v2211
        %v2248 = vpack.c.bf16 %v2214, %v2213
        %v2249 = vpack.c.bf16 %v2216, %v2215
        %v2250 = vpack.c.bf16 %v2218, %v2217
        %v2251 = vld [vmem:[#allocation7] sm:$0xff]
        %v2252 = vld [vmem:[#allocation7 + $0x8] sm:$0xff]
        %v2253 = vld [vmem:[#allocation7 + $0x10] sm:$0xff]
        %v2254 = vld [vmem:[#allocation7 + $0x18] sm:$0xff]
        %v2255 = vld [vmem:[#allocation7 + $0x20] sm:$0xff]
        %v2256 = vld [vmem:[#allocation7 + $0x28] sm:$0xff]
        %v2257 = vld [vmem:[#allocation7 + $0x30] sm:$0xff]
        %v2258 = vld [vmem:[#allocation7 + $0x38] sm:$0xff]
        %v2259 = vld [vmem:[#allocation7 + $0x40] sm:$0xff]
        %v2260 = vld [vmem:[#allocation7 + $0x48] sm:$0xff]
        %v2261 = vld [vmem:[#allocation7 + $0x50] sm:$0xff]
        %v2262 = vld [vmem:[#allocation7 + $0x58] sm:$0xff]
        %v2263 = vld [vmem:[#allocation7 + $0x60] sm:$0xff]
        %v2264 = vld [vmem:[#allocation7 + $0x68] sm:$0xff]
        %v2265 = vld [vmem:[#allocation7 + $0x70] sm:$0xff]
        %v2266 = vld [vmem:[#allocation7 + $0x78] sm:$0xff]
        %v2267 = vld [vmem:[%s7] sm:$0x3]
        %v2269 = vlaneseq
        %v2270 = vshrl.u32 %v2269, 7
        %v2271 = vsub.s32 0, %v2270
        %v2272 = vrot.slane %v2267, %v2271
        %v2273 = vlaneseq
        %v2274 = vshrl.u32 %v2273, 7
        %v2275 = vsub.s32 1, %v2274
        %v2276 = vrot.slane %v2267, %v2275
        %v2295 = vunpack.c.l.b16 %v2251
        %v2296 = vunpack.c.h.b16 %v2251
        %v2297 = vunpack.c.l.b16 %v2252
        %v2298 = vunpack.c.h.b16 %v2252
        %v2299 = vunpack.c.l.b16 %v2253
        %v2300 = vunpack.c.h.b16 %v2253
        %v2301 = vunpack.c.l.b16 %v2254
        %v2302 = vunpack.c.h.b16 %v2254
        %v2303 = vunpack.c.l.b16 %v2255
        %v2304 = vunpack.c.h.b16 %v2255
        %v2305 = vunpack.c.l.b16 %v2256
        %v2306 = vunpack.c.h.b16 %v2256
        %v2307 = vunpack.c.l.b16 %v2257
        %v2308 = vunpack.c.h.b16 %v2257
        %v2309 = vunpack.c.l.b16 %v2258
        %v2310 = vunpack.c.h.b16 %v2258
        %v2311 = vunpack.c.l.b16 %v2259
        %v2312 = vunpack.c.h.b16 %v2259
        %v2313 = vunpack.c.l.b16 %v2260
        %v2314 = vunpack.c.h.b16 %v2260
        %v2315 = vunpack.c.l.b16 %v2261
        %v2316 = vunpack.c.h.b16 %v2261
        %v2317 = vunpack.c.l.b16 %v2262
        %v2318 = vunpack.c.h.b16 %v2262
        %v2319 = vunpack.c.l.b16 %v2263
        %v2320 = vunpack.c.h.b16 %v2263
        %v2321 = vunpack.c.l.b16 %v2264
        %v2322 = vunpack.c.h.b16 %v2264
        %v2323 = vunpack.c.l.b16 %v2265
        %v2324 = vunpack.c.h.b16 %v2265
        %v2325 = vunpack.c.l.b16 %v2266
        %v2326 = vunpack.c.h.b16 %v2266
        %v2327 = vpack.c.b16 %v2297, %v2295
        %v2328 = vpack.c.b16 %v2298, %v2296
        %v2329 = vpack.c.b16 %v2301, %v2299
        %v2330 = vpack.c.b16 %v2302, %v2300
        %v2331 = vpack.c.b16 %v2305, %v2303
        %v2332 = vpack.c.b16 %v2306, %v2304
        %v2333 = vpack.c.b16 %v2309, %v2307
        %v2334 = vpack.c.b16 %v2310, %v2308
        %v2335 = vpack.c.b16 %v2313, %v2311
        %v2336 = vpack.c.b16 %v2314, %v2312
        %v2337 = vpack.c.b16 %v2317, %v2315
        %v2338 = vpack.c.b16 %v2318, %v2316
        %v2339 = vpack.c.b16 %v2321, %v2319
        %v2340 = vpack.c.b16 %v2322, %v2320
        %v2341 = vpack.c.b16 %v2325, %v2323
        %v2342 = vpack.c.b16 %v2326, %v2324
        %2359 = vmatprep.subr.bf16.mxu0 %v2328
        %2360 = vmatpush1.bf16.msra.mxu0 %v2327
        %2361 = vmatprep.subr.bf16.mxu0 %v2330
        %2362 = vmatpush1.bf16.msra.mxu0 %v2329
        %2363 = vmatprep.subr.bf16.mxu0 %v2332
        %2364 = vmatpush1.bf16.msra.mxu0 %v2331
        %2365 = vmatprep.subr.bf16.mxu0 %v2334
        %2366 = vmatpush1.bf16.msra.mxu0 %v2333
        %2367 = vmatprep.subr.bf16.mxu0 %v2336
        %2368 = vmatpush1.bf16.msra.mxu0 %v2335
        %2369 = vmatprep.subr.bf16.mxu0 %v2338
        %2370 = vmatpush1.bf16.msra.mxu0 %v2337
        %2371 = vmatprep.subr.bf16.mxu0 %v2340
        %2372 = vmatpush1.bf16.msra.mxu0 %v2339
        %2373 = vmatprep.subr.bf16.mxu0 %v2342
        %2374 = vmatpush1.bf16.msra.mxu0 %v2341
        %2375 = vmatprep.subr.bf16.mxu0 0
        %2376 = vmatpush1.bf16.msra.mxu0 0
        %2377 = vmatprep.subr.bf16.mxu0 0
        %2378 = vmatpush1.bf16.msra.mxu0 0
        %2379 = vmatprep.subr.bf16.mxu0 0
        %2380 = vmatpush1.bf16.msra.mxu0 0
        %2381 = vmatprep.subr.bf16.mxu0 0
        %2382 = vmatpush1.bf16.msra.mxu0 0
        %2383 = vmatprep.subr.bf16.mxu0 0
        %2384 = vmatpush1.bf16.msra.mxu0 0
        %2385 = vmatprep.subr.bf16.mxu0 0
        %2386 = vmatpush1.bf16.msra.mxu0 0
        %2387 = vmatprep.subr.bf16.mxu0 0
        %2388 = vmatpush1.bf16.msra.mxu0 0
        %2389 = vmatprep.subr.bf16.mxu0 0
        %2390 = vmatpush1.bf16.msra.mxu0 0
        %2391 = vmatprep.mubr.bf16.mxu0 0
        %2392 = vmatmul.mubr.bf16.gmra.mrb[0].mxu0 %v2219
        %v2393 = vpop.f32.mrb[0].mxu0
        %v2394 = vadd.f32 %v2272, %v2393
        %v2395 = vpop.f32.mrb[0].mxu0
        %v2396 = vadd.f32 %v2276, %v2395
        %v2397 = vpop.f32.mrb[0].mxu0
        %v2398 = vadd.f32 %v2272, %v2397
        %v2399 = vpop.f32.mrb[0].mxu0
        %v2400 = vadd.f32 %v2276, %v2399
        %2401 = vmatprep.mubr.bf16.mxu0 0
        %2402 = vmatmul.mubr.bf16.gmra.mrb[0].mxu0 %v2220
        %v2403 = vpop.f32.mrb[0].mxu0
        %v2404 = vadd.f32 %v2272, %v2403
        %v2405 = vpop.f32.mrb[0].mxu0
        %v2406 = vadd.f32 %v2276, %v2405
        %v2407 = vpop.f32.mrb[0].mxu0
        %v2408 = vadd.f32 %v2272, %v2407
        %v2409 = vpop.f32.mrb[0].mxu0
        %v2410 = vadd.f32 %v2276, %v2409
        %2411 = vmatprep.mubr.bf16.mxu0 0
        %2412 = vmatmul.mubr.bf16.gmra.mrb[0].mxu0 %v2221
        %v2413 = vpop.f32.mrb[0].mxu0
        %v2414 = vadd.f32 %v2272, %v2413
        %v2415 = vpop.f32.mrb[0].mxu0
        %v2416 = vadd.f32 %v2276, %v2415
        %v2417 = vpop.f32.mrb[0].mxu0
        %v2418 = vadd.f32 %v2272, %v2417
        %v2419 = vpop.f32.mrb[0].mxu0
        %v2420 = vadd.f32 %v2276, %v2419
        %2421 = vmatprep.mubr.bf16.mxu0 0
        %2422 = vmatmul.mubr.bf16.gmra.mrb[0].mxu0 %v2222
        %v2423 = vpop.f32.mrb[0].mxu0
        %v2424 = vadd.f32 %v2272, %v2423
        %v2425 = vpop.f32.mrb[0].mxu0
        %v2426 = vadd.f32 %v2276, %v2425
        %v2427 = vpop.f32.mrb[0].mxu0
        %v2428 = vadd.f32 %v2272, %v2427
        %v2429 = vpop.f32.mrb[0].mxu0
        %v2430 = vadd.f32 %v2276, %v2429
        %2431 = vmatprep.mubr.bf16.mxu0 0
        %2432 = vmatmul.mubr.bf16.gmra.mrb[0].mxu0 %v2223
        %v2433 = vpop.f32.mrb[0].mxu0
        %v2434 = vadd.f32 %v2272, %v2433
        %v2435 = vpop.f32.mrb[0].mxu0
        %v2436 = vadd.f32 %v2276, %v2435
        %v2437 = vpop.f32.mrb[0].mxu0
        %v2438 = vadd.f32 %v2272, %v2437
        %v2439 = vpop.f32.mrb[0].mxu0
        %v2440 = vadd.f32 %v2276, %v2439
        %2441 = vmatprep.mubr.bf16.mxu0 0
        %2442 = vmatmul.mubr.bf16.gmra.mrb[0].mxu0 %v2224
        %v2443 = vpop.f32.mrb[0].mxu0
        %v2444 = vadd.f32 %v2272, %v2443
        %v2445 = vpop.f32.mrb[0].mxu0
        %v2446 = vadd.f32 %v2276, %v2445
        %v2447 = vpop.f32.mrb[0].mxu0
        %v2448 = vadd.f32 %v2272, %v2447
        %v2449 = vpop.f32.mrb[0].mxu0
        %v2450 = vadd.f32 %v2276, %v2449
        %2451 = vmatprep.mubr.bf16.mxu0 0
        %2452 = vmatmul.mubr.bf16.gmra.mrb[0].mxu0 %v2225
        %v2453 = vpop.f32.mrb[0].mxu0
        %v2454 = vadd.f32 %v2272, %v2453
        %v2455 = vpop.f32.mrb[0].mxu0
        %v2456 = vadd.f32 %v2276, %v2455
        %v2457 = vpop.f32.mrb[0].mxu0
        %v2458 = vadd.f32 %v2272, %v2457
        %v2459 = vpop.f32.mrb[0].mxu0
        %v2460 = vadd.f32 %v2276, %v2459
        %2461 = vmatprep.mubr.bf16.mxu0 0
        %2462 = vmatmul.mubr.bf16.gmra.mrb[0].mxu0 %v2226
        %v2463 = vpop.f32.mrb[0].mxu0
        %v2464 = vadd.f32 %v2272, %v2463
        %v2465 = vpop.f32.mrb[0].mxu0
        %v2466 = vadd.f32 %v2276, %v2465
        %v2467 = vpop.f32.mrb[0].mxu0
        %v2468 = vadd.f32 %v2272, %v2467
        %v2469 = vpop.f32.mrb[0].mxu0
        %v2470 = vadd.f32 %v2276, %v2469
        %2471 = vmatprep.mubr.bf16.mxu0 0
        %2472 = vmatmul.mubr.bf16.gmra.mrb[0].mxu0 %v2227
        %v2473 = vpop.f32.mrb[0].mxu0
        %v2474 = vadd.f32 %v2272, %v2473
        %v2475 = vpop.f32.mrb[0].mxu0
        %v2476 = vadd.f32 %v2276, %v2475
        %v2477 = vpop.f32.mrb[0].mxu0
        %v2478 = vadd.f32 %v2272, %v2477
        %v2479 = vpop.f32.mrb[0].mxu0
        %v2480 = vadd.f32 %v2276, %v2479
        %2481 = vmatprep.mubr.bf16.mxu0 0
        %2482 = vmatmul.mubr.bf16.gmra.mrb[0].mxu0 %v2228
        %v2483 = vpop.f32.mrb[0].mxu0
        %v2484 = vadd.f32 %v2272, %v2483
        %v2485 = vpop.f32.mrb[0].mxu0
        %v2486 = vadd.f32 %v2276, %v2485
        %v2487 = vpop.f32.mrb[0].mxu0
        %v2488 = vadd.f32 %v2272, %v2487
        %v2489 = vpop.f32.mrb[0].mxu0
        %v2490 = vadd.f32 %v2276, %v2489
        %2491 = vmatprep.mubr.bf16.mxu0 0
        %2492 = vmatmul.mubr.bf16.gmra.mrb[0].mxu0 %v2229
        %v2493 = vpop.f32.mrb[0].mxu0
        %v2494 = vadd.f32 %v2272, %v2493
        %v2495 = vpop.f32.mrb[0].mxu0
        %v2496 = vadd.f32 %v2276, %v2495
        %v2497 = vpop.f32.mrb[0].mxu0
        %v2498 = vadd.f32 %v2272, %v2497
        %v2499 = vpop.f32.mrb[0].mxu0
        %v2500 = vadd.f32 %v2276, %v2499
        %2501 = vmatprep.mubr.bf16.mxu0 0
        %2502 = vmatmul.mubr.bf16.gmra.mrb[0].mxu0 %v2230
        %v2503 = vpop.f32.mrb[0].mxu0
        %v2504 = vadd.f32 %v2272, %v2503
        %v2505 = vpop.f32.mrb[0].mxu0
        %v2506 = vadd.f32 %v2276, %v2505
        %v2507 = vpop.f32.mrb[0].mxu0
        %v2508 = vadd.f32 %v2272, %v2507
        %v2509 = vpop.f32.mrb[0].mxu0
        %v2510 = vadd.f32 %v2276, %v2509
        %2511 = vmatprep.mubr.bf16.mxu0 0
        %2512 = vmatmul.mubr.bf16.gmra.mrb[0].mxu0 %v2231
        %v2513 = vpop.f32.mrb[0].mxu0
        %v2514 = vadd.f32 %v2272, %v2513
        %v2515 = vpop.f32.mrb[0].mxu0
        %v2516 = vadd.f32 %v2276, %v2515
        %v2517 = vpop.f32.mrb[0].mxu0
        %v2518 = vadd.f32 %v2272, %v2517
        %v2519 = vpop.f32.mrb[0].mxu0
        %v2520 = vadd.f32 %v2276, %v2519
        %2521 = vmatprep.mubr.bf16.mxu0 0
        %2522 = vmatmul.mubr.bf16.gmra.mrb[0].mxu0 %v2232
        %v2523 = vpop.f32.mrb[0].mxu0
        %v2524 = vadd.f32 %v2272, %v2523
        %v2525 = vpop.f32.mrb[0].mxu0
        %v2526 = vadd.f32 %v2276, %v2525
        %v2527 = vpop.f32.mrb[0].mxu0
        %v2528 = vadd.f32 %v2272, %v2527
        %v2529 = vpop.f32.mrb[0].mxu0
        %v2530 = vadd.f32 %v2276, %v2529
        %2531 = vmatprep.mubr.bf16.mxu0 0
        %2532 = vmatmul.mubr.bf16.gmra.mrb[0].mxu0 %v2233
        %v2533 = vpop.f32.mrb[0].mxu0
        %v2534 = vadd.f32 %v2272, %v2533
        %v2535 = vpop.f32.mrb[0].mxu0
        %v2536 = vadd.f32 %v2276, %v2535
        %v2537 = vpop.f32.mrb[0].mxu0
        %v2538 = vadd.f32 %v2272, %v2537
        %v2539 = vpop.f32.mrb[0].mxu0
        %v2540 = vadd.f32 %v2276, %v2539
        %2541 = vmatprep.mubr.bf16.mxu0 0
        %2542 = vmatmul.mubr.bf16.gmra.mrb[0].mxu0 %v2234
        %v2543 = vpop.f32.mrb[0].mxu0
        %v2544 = vadd.f32 %v2272, %v2543
        %v2545 = vpop.f32.mrb[0].mxu0
        %v2546 = vadd.f32 %v2276, %v2545
        %v2547 = vpop.f32.mrb[0].mxu0
        %v2548 = vadd.f32 %v2272, %v2547
        %v2549 = vpop.f32.mrb[0].mxu0
        %v2550 = vadd.f32 %v2276, %v2549
        %2551 = vmatprep.mubr.bf16.mxu0 0
        %2552 = vmatmul.mubr.bf16.gmra.mrb[0].mxu0 %v2235
        %v2553 = vpop.f32.mrb[0].mxu0
        %v2554 = vadd.f32 %v2272, %v2553
        %v2555 = vpop.f32.mrb[0].mxu0
        %v2556 = vadd.f32 %v2276, %v2555
        %v2557 = vpop.f32.mrb[0].mxu0
        %v2558 = vadd.f32 %v2272, %v2557
        %v2559 = vpop.f32.mrb[0].mxu0
        %v2560 = vadd.f32 %v2276, %v2559
        %2561 = vmatprep.mubr.bf16.mxu0 0
        %2562 = vmatmul.mubr.bf16.gmra.mrb[0].mxu0 %v2236
        %v2563 = vpop.f32.mrb[0].mxu0
        %v2564 = vadd.f32 %v2272, %v2563
        %v2565 = vpop.f32.mrb[0].mxu0
        %v2566 = vadd.f32 %v2276, %v2565
        %v2567 = vpop.f32.mrb[0].mxu0
        %v2568 = vadd.f32 %v2272, %v2567
        %v2569 = vpop.f32.mrb[0].mxu0
        %v2570 = vadd.f32 %v2276, %v2569
        %2571 = vmatprep.mubr.bf16.mxu0 0
        %2572 = vmatmul.mubr.bf16.gmra.mrb[0].mxu0 %v2237
        %v2573 = vpop.f32.mrb[0].mxu0
        %v2574 = vadd.f32 %v2272, %v2573
        %v2575 = vpop.f32.mrb[0].mxu0
        %v2576 = vadd.f32 %v2276, %v2575
        %v2577 = vpop.f32.mrb[0].mxu0
        %v2578 = vadd.f32 %v2272, %v2577
        %v2579 = vpop.f32.mrb[0].mxu0
        %v2580 = vadd.f32 %v2276, %v2579
        %2581 = vmatprep.mubr.bf16.mxu0 0
        %2582 = vmatmul.mubr.bf16.gmra.mrb[0].mxu0 %v2238
        %v2583 = vpop.f32.mrb[0].mxu0
        %v2584 = vadd.f32 %v2272, %v2583
        %v2585 = vpop.f32.mrb[0].mxu0
        %v2586 = vadd.f32 %v2276, %v2585
        %v2587 = vpop.f32.mrb[0].mxu0
        %v2588 = vadd.f32 %v2272, %v2587
        %v2589 = vpop.f32.mrb[0].mxu0
        %v2590 = vadd.f32 %v2276, %v2589
        %2591 = vmatprep.mubr.bf16.mxu0 0
        %2592 = vmatmul.mubr.bf16.gmra.mrb[0].mxu0 %v2239
        %v2593 = vpop.f32.mrb[0].mxu0
        %v2594 = vadd.f32 %v2272, %v2593
        %v2595 = vpop.f32.mrb[0].mxu0
        %v2596 = vadd.f32 %v2276, %v2595
        %v2597 = vpop.f32.mrb[0].mxu0
        %v2598 = vadd.f32 %v2272, %v2597
        %v2599 = vpop.f32.mrb[0].mxu0
        %v2600 = vadd.f32 %v2276, %v2599
        %2601 = vmatprep.mubr.bf16.mxu0 0
        %2602 = vmatmul.mubr.bf16.gmra.mrb[0].mxu0 %v2240
        %v2603 = vpop.f32.mrb[0].mxu0
        %v2604 = vadd.f32 %v2272, %v2603
        %v2605 = vpop.f32.mrb[0].mxu0
        %v2606 = vadd.f32 %v2276, %v2605
        %v2607 = vpop.f32.mrb[0].mxu0
        %v2608 = vadd.f32 %v2272, %v2607
        %v2609 = vpop.f32.mrb[0].mxu0
        %v2610 = vadd.f32 %v2276, %v2609
        %2611 = vmatprep.mubr.bf16.mxu0 0
        %2612 = vmatmul.mubr.bf16.gmra.mrb[0].mxu0 %v2241
        %v2613 = vpop.f32.mrb[0].mxu0
        %v2614 = vadd.f32 %v2272, %v2613
        %v2615 = vpop.f32.mrb[0].mxu0
        %v2616 = vadd.f32 %v2276, %v2615
        %v2617 = vpop.f32.mrb[0].mxu0
        %v2618 = vadd.f32 %v2272, %v2617
        %v2619 = vpop.f32.mrb[0].mxu0
        %v2620 = vadd.f32 %v2276, %v2619
        %2621 = vmatprep.mubr.bf16.mxu0 0
        %2622 = vmatmul.mubr.bf16.gmra.mrb[0].mxu0 %v2242
        %v2623 = vpop.f32.mrb[0].mxu0
        %v2624 = vadd.f32 %v2272, %v2623
        %v2625 = vpop.f32.mrb[0].mxu0
        %v2626 = vadd.f32 %v2276, %v2625
        %v2627 = vpop.f32.mrb[0].mxu0
        %v2628 = vadd.f32 %v2272, %v2627
        %v2629 = vpop.f32.mrb[0].mxu0
        %v2630 = vadd.f32 %v2276, %v2629
        %2631 = vmatprep.mubr.bf16.mxu0 0
        %2632 = vmatmul.mubr.bf16.gmra.mrb[0].mxu0 %v2243
        %v2633 = vpop.f32.mrb[0].mxu0
        %v2634 = vadd.f32 %v2272, %v2633
        %v2635 = vpop.f32.mrb[0].mxu0
        %v2636 = vadd.f32 %v2276, %v2635
        %v2637 = vpop.f32.mrb[0].mxu0
        %v2638 = vadd.f32 %v2272, %v2637
        %v2639 = vpop.f32.mrb[0].mxu0
        %v2640 = vadd.f32 %v2276, %v2639
        %2641 = vmatprep.mubr.bf16.mxu0 0
        %2642 = vmatmul.mubr.bf16.gmra.mrb[0].mxu0 %v2244
        %v2643 = vpop.f32.mrb[0].mxu0
        %v2644 = vadd.f32 %v2272, %v2643
        %v2645 = vpop.f32.mrb[0].mxu0
        %v2646 = vadd.f32 %v2276, %v2645
        %v2647 = vpop.f32.mrb[0].mxu0
        %v2648 = vadd.f32 %v2272, %v2647
        %v2649 = vpop.f32.mrb[0].mxu0
        %v2650 = vadd.f32 %v2276, %v2649
        %2651 = vmatprep.mubr.bf16.mxu0 0
        %2652 = vmatmul.mubr.bf16.gmra.mrb[0].mxu0 %v2245
        %v2653 = vpop.f32.mrb[0].mxu0
        %v2654 = vadd.f32 %v2272, %v2653
        %v2655 = vpop.f32.mrb[0].mxu0
        %v2656 = vadd.f32 %v2276, %v2655
        %v2657 = vpop.f32.mrb[0].mxu0
        %v2658 = vadd.f32 %v2272, %v2657
        %v2659 = vpop.f32.mrb[0].mxu0
        %v2660 = vadd.f32 %v2276, %v2659
        %2661 = vmatprep.mubr.bf16.mxu0 0
        %2662 = vmatmul.mubr.bf16.gmra.mrb[0].mxu0 %v2246
        %v2663 = vpop.f32.mrb[0].mxu0
        %v2664 = vadd.f32 %v2272, %v2663
        %v2665 = vpop.f32.mrb[0].mxu0
        %v2666 = vadd.f32 %v2276, %v2665
        %v2667 = vpop.f32.mrb[0].mxu0
        %v2668 = vadd.f32 %v2272, %v2667
        %v2669 = vpop.f32.mrb[0].mxu0
        %v2670 = vadd.f32 %v2276, %v2669
        %2671 = vmatprep.mubr.bf16.mxu0 0
        %2672 = vmatmul.mubr.bf16.gmra.mrb[0].mxu0 %v2247
        %v2673 = vpop.f32.mrb[0].mxu0
        %v2674 = vadd.f32 %v2272, %v2673
        %v2675 = vpop.f32.mrb[0].mxu0
        %v2676 = vadd.f32 %v2276, %v2675
        %v2677 = vpop.f32.mrb[0].mxu0
        %v2678 = vadd.f32 %v2272, %v2677
        %v2679 = vpop.f32.mrb[0].mxu0
        %v2680 = vadd.f32 %v2276, %v2679
        %2681 = vmatprep.mubr.bf16.mxu0 0
        %2682 = vmatmul.mubr.bf16.gmra.mrb[0].mxu0 %v2248
        %v2683 = vpop.f32.mrb[0].mxu0
        %v2684 = vadd.f32 %v2272, %v2683
        %v2685 = vpop.f32.mrb[0].mxu0
        %v2686 = vadd.f32 %v2276, %v2685
        %v2687 = vpop.f32.mrb[0].mxu0
        %v2688 = vadd.f32 %v2272, %v2687
        %v2689 = vpop.f32.mrb[0].mxu0
        %v2690 = vadd.f32 %v2276, %v2689
        %2691 = vmatprep.mubr.bf16.mxu0 0
        %2692 = vmatmul.mubr.bf16.gmra.mrb[0].mxu0 %v2249
        %v2693 = vpop.f32.mrb[0].mxu0
        %v2694 = vadd.f32 %v2272, %v2693
        %v2695 = vpop.f32.mrb[0].mxu0
        %v2696 = vadd.f32 %v2276, %v2695
        %v2697 = vpop.f32.mrb[0].mxu0
        %v2698 = vadd.f32 %v2272, %v2697
        %v2699 = vpop.f32.mrb[0].mxu0
        %v2700 = vadd.f32 %v2276, %v2699
        %2701 = vmatprep.mubr.bf16.mxu0 0
        %2702 = vmatmul.mubr.bf16.gmra.mrb[0].mxu0 %v2250
        %v2703 = vpop.f32.mrb[0].mxu0
        %v2704 = vadd.f32 %v2272, %v2703
        %v2705 = vpop.f32.mrb[0].mxu0
        %v2706 = vadd.f32 %v2276, %v2705
        %v2707 = vpop.f32.mrb[0].mxu0
        %v2708 = vadd.f32 %v2272, %v2707
        %v2709 = vpop.f32.mrb[0].mxu0
        %v2710 = vadd.f32 %v2276, %v2709
        %2711 = vdwg.mxu0
        %v2712 = vmax.f32 %v2394, 0.0
        %v2713 = vmax.f32 %v2396, 0.0
        %v2714 = vmax.f32 %v2398, 0.0
        %v2715 = vmax.f32 %v2400, 0.0
        %v2716 = vmax.f32 %v2404, 0.0
        %v2717 = vmax.f32 %v2406, 0.0
        %v2718 = vmax.f32 %v2408, 0.0
        %v2719 = vmax.f32 %v2410, 0.0
        %v2720 = vmax.f32 %v2414, 0.0
        %v2721 = vmax.f32 %v2416, 0.0
        %v2722 = vmax.f32 %v2418, 0.0
        %v2723 = vmax.f32 %v2420, 0.0
        %v2724 = vmax.f32 %v2424, 0.0
        %v2725 = vmax.f32 %v2426, 0.0
        %v2726 = vmax.f32 %v2428, 0.0
        %v2727 = vmax.f32 %v2430, 0.0
        %v2728 = vmax.f32 %v2434, 0.0
        %v2729 = vmax.f32 %v2436, 0.0
        %v2730 = vmax.f32 %v2438, 0.0
        %v2731 = vmax.f32 %v2440, 0.0
        %v2732 = vmax.f32 %v2444, 0.0
        %v2733 = vmax.f32 %v2446, 0.0
        %v2734 = vmax.f32 %v2448, 0.0
        %v2735 = vmax.f32 %v2450, 0.0
        %v2736 = vmax.f32 %v2454, 0.0
        %v2737 = vmax.f32 %v2456, 0.0
        %v2738 = vmax.f32 %v2458, 0.0
        %v2739 = vmax.f32 %v2460, 0.0
        %v2740 = vmax.f32 %v2464, 0.0
        %v2741 = vmax.f32 %v2466, 0.0
        %v2742 = vmax.f32 %v2468, 0.0
        %v2743 = vmax.f32 %v2470, 0.0
        %v2744 = vmax.f32 %v2474, 0.0
        %v2745 = vmax.f32 %v2476, 0.0
        %v2746 = vmax.f32 %v2478, 0.0
        %v2747 = vmax.f32 %v2480, 0.0
        %v2748 = vmax.f32 %v2484, 0.0
        %v2749 = vmax.f32 %v2486, 0.0
        %v2750 = vmax.f32 %v2488, 0.0
        %v2751 = vmax.f32 %v2490, 0.0
        %v2752 = vmax.f32 %v2494, 0.0
        %v2753 = vmax.f32 %v2496, 0.0
        %v2754 = vmax.f32 %v2498, 0.0
        %v2755 = vmax.f32 %v2500, 0.0
        %v2756 = vmax.f32 %v2504, 0.0
        %v2757 = vmax.f32 %v2506, 0.0
        %v2758 = vmax.f32 %v2508, 0.0
        %v2759 = vmax.f32 %v2510, 0.0
        %v2760 = vmax.f32 %v2514, 0.0
        %v2761 = vmax.f32 %v2516, 0.0
        %v2762 = vmax.f32 %v2518, 0.0
        %v2763 = vmax.f32 %v2520, 0.0
        %v2764 = vmax.f32 %v2524, 0.0
        %v2765 = vmax.f32 %v2526, 0.0
        %v2766 = vmax.f32 %v2528, 0.0
        %v2767 = vmax.f32 %v2530, 0.0
        %v2768 = vmax.f32 %v2534, 0.0
        %v2769 = vmax.f32 %v2536, 0.0
        %v2770 = vmax.f32 %v2538, 0.0
        %v2771 = vmax.f32 %v2540, 0.0
        %v2772 = vmax.f32 %v2544, 0.0
        %v2773 = vmax.f32 %v2546, 0.0
        %v2774 = vmax.f32 %v2548, 0.0
        %v2775 = vmax.f32 %v2550, 0.0
        %v2776 = vmax.f32 %v2554, 0.0
        %v2777 = vmax.f32 %v2556, 0.0
        %v2778 = vmax.f32 %v2558, 0.0
        %v2779 = vmax.f32 %v2560, 0.0
        %v2780 = vmax.f32 %v2564, 0.0
        %v2781 = vmax.f32 %v2566, 0.0
        %v2782 = vmax.f32 %v2568, 0.0
        %v2783 = vmax.f32 %v2570, 0.0
        %v2784 = vmax.f32 %v2574, 0.0
        %v2785 = vmax.f32 %v2576, 0.0
        %v2786 = vmax.f32 %v2578, 0.0
        %v2787 = vmax.f32 %v2580, 0.0
        %v2788 = vmax.f32 %v2584, 0.0
        %v2789 = vmax.f32 %v2586, 0.0
        %v2790 = vmax.f32 %v2588, 0.0
        %v2791 = vmax.f32 %v2590, 0.0
        %v2792 = vmax.f32 %v2594, 0.0
        %v2793 = vmax.f32 %v2596, 0.0
        %v2794 = vmax.f32 %v2598, 0.0
        %v2795 = vmax.f32 %v2600, 0.0
        %v2796 = vmax.f32 %v2604, 0.0
        %v2797 = vmax.f32 %v2606, 0.0
        %v2798 = vmax.f32 %v2608, 0.0
        %v2799 = vmax.f32 %v2610, 0.0
        %v2800 = vmax.f32 %v2614, 0.0
        %v2801 = vmax.f32 %v2616, 0.0
        %v2802 = vmax.f32 %v2618, 0.0
        %v2803 = vmax.f32 %v2620, 0.0
        %v2804 = vmax.f32 %v2624, 0.0
        %v2805 = vmax.f32 %v2626, 0.0
        %v2806 = vmax.f32 %v2628, 0.0
        %v2807 = vmax.f32 %v2630, 0.0
        %v2808 = vmax.f32 %v2634, 0.0
        %v2809 = vmax.f32 %v2636, 0.0
        %v2810 = vmax.f32 %v2638, 0.0
        %v2811 = vmax.f32 %v2640, 0.0
        %v2812 = vmax.f32 %v2644, 0.0
        %v2813 = vmax.f32 %v2646, 0.0
        %v2814 = vmax.f32 %v2648, 0.0
        %v2815 = vmax.f32 %v2650, 0.0
        %v2816 = vmax.f32 %v2654, 0.0
        %v2817 = vmax.f32 %v2656, 0.0
        %v2818 = vmax.f32 %v2658, 0.0
        %v2819 = vmax.f32 %v2660, 0.0
        %v2820 = vmax.f32 %v2664, 0.0
        %v2821 = vmax.f32 %v2666, 0.0
        %v2822 = vmax.f32 %v2668, 0.0
        %v2823 = vmax.f32 %v2670, 0.0
        %v2824 = vmax.f32 %v2674, 0.0
        %v2825 = vmax.f32 %v2676, 0.0
        %v2826 = vmax.f32 %v2678, 0.0
        %v2827 = vmax.f32 %v2680, 0.0
        %v2828 = vmax.f32 %v2684, 0.0
        %v2829 = vmax.f32 %v2686, 0.0
        %v2830 = vmax.f32 %v2688, 0.0
        %v2831 = vmax.f32 %v2690, 0.0
        %v2832 = vmax.f32 %v2694, 0.0
        %v2833 = vmax.f32 %v2696, 0.0
        %v2834 = vmax.f32 %v2698, 0.0
        %v2835 = vmax.f32 %v2700, 0.0
        %v2836 = vmax.f32 %v2704, 0.0
        %v2837 = vmax.f32 %v2706, 0.0
        %v2838 = vmax.f32 %v2708, 0.0
        %v2839 = vmax.f32 %v2710, 0.0
        %v2840 = vmax.f32 %v2712, %v2713
        %v2841 = vmax.f32 %v2714, %v2715
        %v2842 = vmax.f32 %v2716, %v2717
        %v2843 = vmax.f32 %v2718, %v2719
        %v2844 = vmax.f32 %v2720, %v2721
        %v2845 = vmax.f32 %v2722, %v2723
        %v2846 = vmax.f32 %v2724, %v2725
        %v2847 = vmax.f32 %v2726, %v2727
        %v2848 = vmax.f32 %v2728, %v2729
        %v2849 = vmax.f32 %v2730, %v2731
        %v2850 = vmax.f32 %v2732, %v2733
        %v2851 = vmax.f32 %v2734, %v2735
        %v2852 = vmax.f32 %v2736, %v2737
        %v2853 = vmax.f32 %v2738, %v2739
        %v2854 = vmax.f32 %v2740, %v2741
        %v2855 = vmax.f32 %v2742, %v2743
        %v2856 = vmax.f32 %v2744, %v2745
        %v2857 = vmax.f32 %v2746, %v2747
        %v2858 = vmax.f32 %v2748, %v2749
        %v2859 = vmax.f32 %v2750, %v2751
        %v2860 = vmax.f32 %v2752, %v2753
        %v2861 = vmax.f32 %v2754, %v2755
        %v2862 = vmax.f32 %v2756, %v2757
        %v2863 = vmax.f32 %v2758, %v2759
        %v2864 = vmax.f32 %v2760, %v2761
        %v2865 = vmax.f32 %v2762, %v2763
        %v2866 = vmax.f32 %v2764, %v2765
        %v2867 = vmax.f32 %v2766, %v2767
        %v2868 = vmax.f32 %v2768, %v2769
        %v2869 = vmax.f32 %v2770, %v2771
        %v2870 = vmax.f32 %v2772, %v2773
        %v2871 = vmax.f32 %v2774, %v2775
        %v2872 = vmax.f32 %v2776, %v2777
        %v2873 = vmax.f32 %v2778, %v2779
        %v2874 = vmax.f32 %v2780, %v2781
        %v2875 = vmax.f32 %v2782, %v2783
        %v2876 = vmax.f32 %v2784, %v2785
        %v2877 = vmax.f32 %v2786, %v2787
        %v2878 = vmax.f32 %v2788, %v2789
        %v2879 = vmax.f32 %v2790, %v2791
        %v2880 = vmax.f32 %v2792, %v2793
        %v2881 = vmax.f32 %v2794, %v2795
        %v2882 = vmax.f32 %v2796, %v2797
        %v2883 = vmax.f32 %v2798, %v2799
        %v2884 = vmax.f32 %v2800, %v2801
        %v2885 = vmax.f32 %v2802, %v2803
        %v2886 = vmax.f32 %v2804, %v2805
        %v2887 = vmax.f32 %v2806, %v2807
        %v2888 = vmax.f32 %v2808, %v2809
        %v2889 = vmax.f32 %v2810, %v2811
        %v2890 = vmax.f32 %v2812, %v2813
        %v2891 = vmax.f32 %v2814, %v2815
        %v2892 = vmax.f32 %v2816, %v2817
        %v2893 = vmax.f32 %v2818, %v2819
        %v2894 = vmax.f32 %v2820, %v2821
        %v2895 = vmax.f32 %v2822, %v2823
        %v2896 = vmax.f32 %v2824, %v2825
        %v2897 = vmax.f32 %v2826, %v2827
        %v2898 = vmax.f32 %v2828, %v2829
        %v2899 = vmax.f32 %v2830, %v2831
        %v2900 = vmax.f32 %v2832, %v2833
        %v2901 = vmax.f32 %v2834, %v2835
        %v2902 = vmax.f32 %v2836, %v2837
        %v2903 = vmax.f32 %v2838, %v2839
        %v2904 = vpack.c.bf16 %v2841, %v2840
        %v2905 = vpack.c.bf16 %v2843, %v2842
        %v2906 = vpack.c.bf16 %v2845, %v2844
        %v2907 = vpack.c.bf16 %v2847, %v2846
        %v2908 = vpack.c.bf16 %v2849, %v2848
        %v2909 = vpack.c.bf16 %v2851, %v2850
        %v2910 = vpack.c.bf16 %v2853, %v2852
        %v2911 = vpack.c.bf16 %v2855, %v2854
        %v2912 = vpack.c.bf16 %v2857, %v2856
        %v2913 = vpack.c.bf16 %v2859, %v2858
        %v2914 = vpack.c.bf16 %v2861, %v2860
        %v2915 = vpack.c.bf16 %v2863, %v2862
        %v2916 = vpack.c.bf16 %v2865, %v2864
        %v2917 = vpack.c.bf16 %v2867, %v2866
        %v2918 = vpack.c.bf16 %v2869, %v2868
        %v2919 = vpack.c.bf16 %v2871, %v2870
        %v2920 = vpack.c.bf16 %v2873, %v2872
        %v2921 = vpack.c.bf16 %v2875, %v2874
        %v2922 = vpack.c.bf16 %v2877, %v2876
        %v2923 = vpack.c.bf16 %v2879, %v2878
        %v2924 = vpack.c.bf16 %v2881, %v2880
        %v2925 = vpack.c.bf16 %v2883, %v2882
        %v2926 = vpack.c.bf16 %v2885, %v2884
        %v2927 = vpack.c.bf16 %v2887, %v2886
        %v2928 = vpack.c.bf16 %v2889, %v2888
        %v2929 = vpack.c.bf16 %v2891, %v2890
        %v2930 = vpack.c.bf16 %v2893, %v2892
        %v2931 = vpack.c.bf16 %v2895, %v2894
        %v2932 = vpack.c.bf16 %v2897, %v2896
        %v2933 = vpack.c.bf16 %v2899, %v2898
        %v2934 = vpack.c.bf16 %v2901, %v2900
        %v2935 = vpack.c.bf16 %v2903, %v2902
        %v2936 = vld [vmem:[%s8] sm:$0xff]
        %v2937 = vld [vmem:[%s8 + $0x8] sm:$0xff]
        %v2938 = vld [vmem:[%s8 + $0x10] sm:$0xff]
        %v2939 = vld [vmem:[%s8 + $0x18] sm:$0xff]
        %v2940 = vld [vmem:[%s8 + $0x20] sm:$0xff]
        %v2941 = vld [vmem:[%s8 + $0x28] sm:$0xff]
        %v2942 = vld [vmem:[%s8 + $0x30] sm:$0xff]
        %v2943 = vld [vmem:[%s8 + $0x38] sm:$0xff]
        %v2944 = vld [vmem:[%s8 + $0x40] sm:$0xff]
        %v2945 = vld [vmem:[%s8 + $0x48] sm:$0xff]
        %v2946 = vld [vmem:[%s8 + $0x50] sm:$0xff]
        %v2947 = vld [vmem:[%s8 + $0x58] sm:$0xff]
        %v2948 = vld [vmem:[%s8 + $0x60] sm:$0xff]
        %v2949 = vld [vmem:[%s8 + $0x68] sm:$0xff]
        %v2950 = vld [vmem:[%s8 + $0x70] sm:$0xff]
        %v2951 = vld [vmem:[%s8 + $0x78] sm:$0xff]
        %v2952 = vld [vmem:[%s8 + $0x80] sm:$0xff]
        %v2953 = vld [vmem:[%s8 + $0x88] sm:$0xff]
        %v2954 = vld [vmem:[%s8 + $0x90] sm:$0xff]
        %v2955 = vld [vmem:[%s8 + $0x98] sm:$0xff]
        %v2956 = vld [vmem:[%s8 + $0xa0] sm:$0xff]
        %v2957 = vld [vmem:[%s8 + $0xa8] sm:$0xff]
        %v2958 = vld [vmem:[%s8 + $0xb0] sm:$0xff]
        %v2959 = vld [vmem:[%s8 + $0xb8] sm:$0xff]
        %v2960 = vld [vmem:[%s8 + $0xc0] sm:$0xff]
        %v2961 = vld [vmem:[%s8 + $0xc8] sm:$0xff]
        %v2962 = vld [vmem:[%s8 + $0xd0] sm:$0xff]
        %v2963 = vld [vmem:[%s8 + $0xd8] sm:$0xff]
        %v2964 = vld [vmem:[%s8 + $0xe0] sm:$0xff]
        %v2965 = vld [vmem:[%s8 + $0xe8] sm:$0xff]
        %v2966 = vld [vmem:[%s8 + $0xf0] sm:$0xff]
        %v2967 = vld [vmem:[%s8 + $0xf8] sm:$0xff]
        %v2968 = vld [vmem:[%s8 + $0x100] sm:$0xff]
        %v2969 = vld [vmem:[%s8 + $0x108] sm:$0xff]
        %v2970 = vld [vmem:[%s8 + $0x110] sm:$0xff]
        %v2971 = vld [vmem:[%s8 + $0x118] sm:$0xff]
        %v2972 = vld [vmem:[%s8 + $0x120] sm:$0xff]
        %v2973 = vld [vmem:[%s8 + $0x128] sm:$0xff]
        %v2974 = vld [vmem:[%s8 + $0x130] sm:$0xff]
        %v2975 = vld [vmem:[%s8 + $0x138] sm:$0xff]
        %v2976 = vld [vmem:[%s8 + $0x140] sm:$0xff]
        %v2977 = vld [vmem:[%s8 + $0x148] sm:$0xff]
        %v2978 = vld [vmem:[%s8 + $0x150] sm:$0xff]
        %v2979 = vld [vmem:[%s8 + $0x158] sm:$0xff]
        %v2980 = vld [vmem:[%s8 + $0x160] sm:$0xff]
        %v2981 = vld [vmem:[%s8 + $0x168] sm:$0xff]
        %v2982 = vld [vmem:[%s8 + $0x170] sm:$0xff]
        %v2983 = vld [vmem:[%s8 + $0x178] sm:$0xff]
        %v2984 = vld [vmem:[%s8 + $0x180] sm:$0xff]
        %v2985 = vld [vmem:[%s8 + $0x188] sm:$0xff]
        %v2986 = vld [vmem:[%s8 + $0x190] sm:$0xff]
        %v2987 = vld [vmem:[%s8 + $0x198] sm:$0xff]
        %v2988 = vld [vmem:[%s8 + $0x1a0] sm:$0xff]
        %v2989 = vld [vmem:[%s8 + $0x1a8] sm:$0xff]
        %v2990 = vld [vmem:[%s8 + $0x1b0] sm:$0xff]
        %v2991 = vld [vmem:[%s8 + $0x1b8] sm:$0xff]
        %v2992 = vld [vmem:[%s8 + $0x1c0] sm:$0xff]
        %v2993 = vld [vmem:[%s8 + $0x1c8] sm:$0xff]
        %v2994 = vld [vmem:[%s8 + $0x1d0] sm:$0xff]
        %v2995 = vld [vmem:[%s8 + $0x1d8] sm:$0xff]
        %v2996 = vld [vmem:[%s8 + $0x1e0] sm:$0xff]
        %v2997 = vld [vmem:[%s8 + $0x1e8] sm:$0xff]
        %v2998 = vld [vmem:[%s8 + $0x1f0] sm:$0xff]
        %v2999 = vld [vmem:[%s8 + $0x1f8] sm:$0xff]
        %v3000 = vld [vmem:[%s9] sm:$0xff]
        %v3002 = vlaneseq
        %v3003 = vshrl.u32 %v3002, 7
        %v3004 = vsub.s32 0, %v3003
        %v3005 = vrot.slane %v3000, %v3004
        %v3006 = vlaneseq
        %v3007 = vshrl.u32 %v3006, 7
        %v3008 = vsub.s32 1, %v3007
        %v3009 = vrot.slane %v3000, %v3008
        %v3010 = vlaneseq
        %v3011 = vshrl.u32 %v3010, 7
        %v3012 = vsub.s32 2, %v3011
        %v3013 = vrot.slane %v3000, %v3012
        %v3014 = vlaneseq
        %v3015 = vshrl.u32 %v3014, 7
        %v3016 = vsub.s32 3, %v3015
        %v3017 = vrot.slane %v3000, %v3016
        %v3018 = vlaneseq
        %v3019 = vshrl.u32 %v3018, 7
        %v3020 = vsub.s32 4, %v3019
        %v3021 = vrot.slane %v3000, %v3020
        %v3022 = vlaneseq
        %v3023 = vshrl.u32 %v3022, 7
        %v3024 = vsub.s32 5, %v3023
        %v3025 = vrot.slane %v3000, %v3024
        %v3026 = vlaneseq
        %v3027 = vshrl.u32 %v3026, 7
        %v3028 = vsub.s32 6, %v3027
        %v3029 = vrot.slane %v3000, %v3028
        %v3030 = vlaneseq
        %v3031 = vshrl.u32 %v3030, 7
        %v3032 = vsub.s32 7, %v3031
        %v3033 = vrot.slane %v3000, %v3032
        %v3106 = vunpack.c.l.b16 %v2936
        %v3107 = vunpack.c.h.b16 %v2936
        %v3108 = vunpack.c.l.b16 %v2937
        %v3109 = vunpack.c.h.b16 %v2937
        %v3110 = vunpack.c.l.b16 %v2938
        %v3111 = vunpack.c.h.b16 %v2938
        %v3112 = vunpack.c.l.b16 %v2939
        %v3113 = vunpack.c.h.b16 %v2939
        %v3114 = vunpack.c.l.b16 %v2940
        %v3115 = vunpack.c.h.b16 %v2940
        %v3116 = vunpack.c.l.b16 %v2941
        %v3117 = vunpack.c.h.b16 %v2941
        %v3118 = vunpack.c.l.b16 %v2942
        %v3119 = vunpack.c.h.b16 %v2942
        %v3120 = vunpack.c.l.b16 %v2943
        %v3121 = vunpack.c.h.b16 %v2943
        %v3122 = vunpack.c.l.b16 %v2944
        %v3123 = vunpack.c.h.b16 %v2944
        %v3124 = vunpack.c.l.b16 %v2945
        %v3125 = vunpack.c.h.b16 %v2945
        %v3126 = vunpack.c.l.b16 %v2946
        %v3127 = vunpack.c.h.b16 %v2946
        %v3128 = vunpack.c.l.b16 %v2947
        %v3129 = vunpack.c.h.b16 %v2947
        %v3130 = vunpack.c.l.b16 %v2948
        %v3131 = vunpack.c.h.b16 %v2948
        %v3132 = vunpack.c.l.b16 %v2949
        %v3133 = vunpack.c.h.b16 %v2949
        %v3134 = vunpack.c.l.b16 %v2950
        %v3135 = vunpack.c.h.b16 %v2950
        %v3136 = vunpack.c.l.b16 %v2951
        %v3137 = vunpack.c.h.b16 %v2951
        %v3138 = vunpack.c.l.b16 %v2952
        %v3139 = vunpack.c.h.b16 %v2952
        %v3140 = vunpack.c.l.b16 %v2953
        %v3141 = vunpack.c.h.b16 %v2953
        %v3142 = vunpack.c.l.b16 %v2954
        %v3143 = vunpack.c.h.b16 %v2954
        %v3144 = vunpack.c.l.b16 %v2955
        %v3145 = vunpack.c.h.b16 %v2955
        %v3146 = vunpack.c.l.b16 %v2956
        %v3147 = vunpack.c.h.b16 %v2956
        %v3148 = vunpack.c.l.b16 %v2957
        %v3149 = vunpack.c.h.b16 %v2957
        %v3150 = vunpack.c.l.b16 %v2958
        %v3151 = vunpack.c.h.b16 %v2958
        %v3152 = vunpack.c.l.b16 %v2959
        %v3153 = vunpack.c.h.b16 %v2959
        %v3154 = vunpack.c.l.b16 %v2960
        %v3155 = vunpack.c.h.b16 %v2960
        %v3156 = vunpack.c.l.b16 %v2961
        %v3157 = vunpack.c.h.b16 %v2961
        %v3158 = vunpack.c.l.b16 %v2962
        %v3159 = vunpack.c.h.b16 %v2962
        %v3160 = vunpack.c.l.b16 %v2963
        %v3161 = vunpack.c.h.b16 %v2963
        %v3162 = vunpack.c.l.b16 %v2964
        %v3163 = vunpack.c.h.b16 %v2964
        %v3164 = vunpack.c.l.b16 %v2965
        %v3165 = vunpack.c.h.b16 %v2965
        %v3166 = vunpack.c.l.b16 %v2966
        %v3167 = vunpack.c.h.b16 %v2966
        %v3168 = vunpack.c.l.b16 %v2967
        %v3169 = vunpack.c.h.b16 %v2967
        %v3170 = vunpack.c.l.b16 %v2968
        %v3171 = vunpack.c.h.b16 %v2968
        %v3172 = vunpack.c.l.b16 %v2969
        %v3173 = vunpack.c.h.b16 %v2969
        %v3174 = vunpack.c.l.b16 %v2970
        %v3175 = vunpack.c.h.b16 %v2970
        %v3176 = vunpack.c.l.b16 %v2971
        %v3177 = vunpack.c.h.b16 %v2971
        %v3178 = vunpack.c.l.b16 %v2972
        %v3179 = vunpack.c.h.b16 %v2972
        %v3180 = vunpack.c.l.b16 %v2973
        %v3181 = vunpack.c.h.b16 %v2973
        %v3182 = vunpack.c.l.b16 %v2974
        %v3183 = vunpack.c.h.b16 %v2974
        %v3184 = vunpack.c.l.b16 %v2975
        %v3185 = vunpack.c.h.b16 %v2975
        %v3186 = vunpack.c.l.b16 %v2976
        %v3187 = vunpack.c.h.b16 %v2976
        %v3188 = vunpack.c.l.b16 %v2977
        %v3189 = vunpack.c.h.b16 %v2977
        %v3190 = vunpack.c.l.b16 %v2978
        %v3191 = vunpack.c.h.b16 %v2978
        %v3192 = vunpack.c.l.b16 %v2979
        %v3193 = vunpack.c.h.b16 %v2979
        %v3194 = vunpack.c.l.b16 %v2980
        %v3195 = vunpack.c.h.b16 %v2980
        %v3196 = vunpack.c.l.b16 %v2981
        %v3197 = vunpack.c.h.b16 %v2981
        %v3198 = vunpack.c.l.b16 %v2982
        %v3199 = vunpack.c.h.b16 %v2982
        %v3200 = vunpack.c.l.b16 %v2983
        %v3201 = vunpack.c.h.b16 %v2983
        %v3202 = vunpack.c.l.b16 %v2984
        %v3203 = vunpack.c.h.b16 %v2984
        %v3204 = vunpack.c.l.b16 %v2985
        %v3205 = vunpack.c.h.b16 %v2985
        %v3206 = vunpack.c.l.b16 %v2986
        %v3207 = vunpack.c.h.b16 %v2986
        %v3208 = vunpack.c.l.b16 %v2987
        %v3209 = vunpack.c.h.b16 %v2987
        %v3210 = vunpack.c.l.b16 %v2988
        %v3211 = vunpack.c.h.b16 %v2988
        %v3212 = vunpack.c.l.b16 %v2989
        %v3213 = vunpack.c.h.b16 %v2989
        %v3214 = vunpack.c.l.b16 %v2990
        %v3215 = vunpack.c.h.b16 %v2990
        %v3216 = vunpack.c.l.b16 %v2991
        %v3217 = vunpack.c.h.b16 %v2991
        %v3218 = vunpack.c.l.b16 %v2992
        %v3219 = vunpack.c.h.b16 %v2992
        %v3220 = vunpack.c.l.b16 %v2993
        %v3221 = vunpack.c.h.b16 %v2993
        %v3222 = vunpack.c.l.b16 %v2994
        %v3223 = vunpack.c.h.b16 %v2994
        %v3224 = vunpack.c.l.b16 %v2995
        %v3225 = vunpack.c.h.b16 %v2995
        %v3226 = vunpack.c.l.b16 %v2996
        %v3227 = vunpack.c.h.b16 %v2996
        %v3228 = vunpack.c.l.b16 %v2997
        %v3229 = vunpack.c.h.b16 %v2997
        %v3230 = vunpack.c.l.b16 %v2998
        %v3231 = vunpack.c.h.b16 %v2998
        %v3232 = vunpack.c.l.b16 %v2999
        %v3233 = vunpack.c.h.b16 %v2999
        %v3234 = vpack.c.b16 %v3114, %v3106
        %v3235 = vpack.c.b16 %v3115, %v3107
        %v3236 = vpack.c.b16 %v3116, %v3108
        %v3237 = vpack.c.b16 %v3117, %v3109
        %v3238 = vpack.c.b16 %v3118, %v3110
        %v3239 = vpack.c.b16 %v3119, %v3111
        %v3240 = vpack.c.b16 %v3120, %v3112
        %v3241 = vpack.c.b16 %v3121, %v3113
        %v3242 = vpack.c.b16 %v3130, %v3122
        %v3243 = vpack.c.b16 %v3131, %v3123
        %v3244 = vpack.c.b16 %v3132, %v3124
        %v3245 = vpack.c.b16 %v3133, %v3125
        %v3246 = vpack.c.b16 %v3134, %v3126
        %v3247 = vpack.c.b16 %v3135, %v3127
        %v3248 = vpack.c.b16 %v3136, %v3128
        %v3249 = vpack.c.b16 %v3137, %v3129
        %v3250 = vpack.c.b16 %v3146, %v3138
        %v3251 = vpack.c.b16 %v3147, %v3139
        %v3252 = vpack.c.b16 %v3148, %v3140
        %v3253 = vpack.c.b16 %v3149, %v3141
        %v3254 = vpack.c.b16 %v3150, %v3142
        %v3255 = vpack.c.b16 %v3151, %v3143
        %v3256 = vpack.c.b16 %v3152, %v3144
        %v3257 = vpack.c.b16 %v3153, %v3145
        %v3258 = vpack.c.b16 %v3162, %v3154
        %v3259 = vpack.c.b16 %v3163, %v3155
        %v3260 = vpack.c.b16 %v3164, %v3156
        %v3261 = vpack.c.b16 %v3165, %v3157
        %v3262 = vpack.c.b16 %v3166, %v3158
        %v3263 = vpack.c.b16 %v3167, %v3159
        %v3264 = vpack.c.b16 %v3168, %v3160
        %v3265 = vpack.c.b16 %v3169, %v3161
        %v3266 = vpack.c.b16 %v3178, %v3170
        %v3267 = vpack.c.b16 %v3179, %v3171
        %v3268 = vpack.c.b16 %v3180, %v3172
        %v3269 = vpack.c.b16 %v3181, %v3173
        %v3270 = vpack.c.b16 %v3182, %v3174
        %v3271 = vpack.c.b16 %v3183, %v3175
        %v3272 = vpack.c.b16 %v3184, %v3176
        %v3273 = vpack.c.b16 %v3185, %v3177
        %v3274 = vpack.c.b16 %v3194, %v3186
        %v3275 = vpack.c.b16 %v3195, %v3187
        %v3276 = vpack.c.b16 %v3196, %v3188
        %v3277 = vpack.c.b16 %v3197, %v3189
        %v3278 = vpack.c.b16 %v3198, %v3190
        %v3279 = vpack.c.b16 %v3199, %v3191
        %v3280 = vpack.c.b16 %v3200, %v3192
        %v3281 = vpack.c.b16 %v3201, %v3193
        %v3282 = vpack.c.b16 %v3210, %v3202
        %v3283 = vpack.c.b16 %v3211, %v3203
        %v3284 = vpack.c.b16 %v3212, %v3204
        %v3285 = vpack.c.b16 %v3213, %v3205
        %v3286 = vpack.c.b16 %v3214, %v3206
        %v3287 = vpack.c.b16 %v3215, %v3207
        %v3288 = vpack.c.b16 %v3216, %v3208
        %v3289 = vpack.c.b16 %v3217, %v3209
        %v3290 = vpack.c.b16 %v3226, %v3218
        %v3291 = vpack.c.b16 %v3227, %v3219
        %v3292 = vpack.c.b16 %v3228, %v3220
        %v3293 = vpack.c.b16 %v3229, %v3221
        %v3294 = vpack.c.b16 %v3230, %v3222
        %v3295 = vpack.c.b16 %v3231, %v3223
        %v3296 = vpack.c.b16 %v3232, %v3224
        %v3297 = vpack.c.b16 %v3233, %v3225
        %3362 = vmatprep.subr.bf16.mxu0 %v3235
        %3363 = vmatpush1.bf16.msra.mxu0 %v3234
        %3364 = vmatprep.subr.bf16.mxu0 %v3243
        %3365 = vmatpush1.bf16.msra.mxu0 %v3242
        %3366 = vmatprep.subr.bf16.mxu0 %v3251
        %3367 = vmatpush1.bf16.msra.mxu0 %v3250
        %3368 = vmatprep.subr.bf16.mxu0 %v3259
        %3369 = vmatpush1.bf16.msra.mxu0 %v3258
        %3370 = vmatprep.subr.bf16.mxu0 %v3267
        %3371 = vmatpush1.bf16.msra.mxu0 %v3266
        %3372 = vmatprep.subr.bf16.mxu0 %v3275
        %3373 = vmatpush1.bf16.msra.mxu0 %v3274
        %3374 = vmatprep.subr.bf16.mxu0 %v3283
        %3375 = vmatpush1.bf16.msra.mxu0 %v3282
        %3376 = vmatprep.subr.bf16.mxu0 %v3291
        %3377 = vmatpush1.bf16.msra.mxu0 %v3290
        %3378 = vmatprep.subr.bf16.mxu0 0
        %3379 = vmatpush1.bf16.msra.mxu0 0
        %3380 = vmatprep.subr.bf16.mxu0 0
        %3381 = vmatpush1.bf16.msra.mxu0 0
        %3382 = vmatprep.subr.bf16.mxu0 0
        %3383 = vmatpush1.bf16.msra.mxu0 0
        %3384 = vmatprep.subr.bf16.mxu0 0
        %3385 = vmatpush1.bf16.msra.mxu0 0
        %3386 = vmatprep.subr.bf16.mxu0 0
        %3387 = vmatpush1.bf16.msra.mxu0 0
        %3388 = vmatprep.subr.bf16.mxu0 0
        %3389 = vmatpush1.bf16.msra.mxu0 0
        %3390 = vmatprep.subr.bf16.mxu0 0
        %3391 = vmatpush1.bf16.msra.mxu0 0
        %3392 = vmatprep.subr.bf16.mxu0 0
        %3393 = vmatpush1.bf16.msra.mxu0 0
        %3394 = vmatprep.mubr.bf16.mxu0 0
        %3395 = vmatmul.mubr.bf16.gmra.mrb[0].mxu0 %v2904
        %v3396 = vpop.f32.mrb[0].mxu0
        %v3397 = vadd.f32 %v3005, %v3396
        %v3398 = vpop.f32.mrb[0].mxu0
        %v3399 = vadd.f32 %v3009, %v3398
        %v3400 = vpop.f32.mrb[0].mxu0
        %v3401 = vadd.f32 %v3005, %v3400
        %v3402 = vpop.f32.mrb[0].mxu0
        %v3403 = vadd.f32 %v3009, %v3402
        %3404 = vmatprep.mubr.bf16.mxu0 0
        %3405 = vmatmul.mubr.bf16.gmra.mrb[0].mxu0 %v2905
        %v3406 = vpop.f32.mrb[0].mxu0
        %v3407 = vadd.f32 %v3005, %v3406
        %v3408 = vpop.f32.mrb[0].mxu0
        %v3409 = vadd.f32 %v3009, %v3408
        %v3410 = vpop.f32.mrb[0].mxu0
        %v3411 = vadd.f32 %v3005, %v3410
        %v3412 = vpop.f32.mrb[0].mxu0
        %v3413 = vadd.f32 %v3009, %v3412
        %3414 = vmatprep.mubr.bf16.mxu0 0
        %3415 = vmatmul.mubr.bf16.gmra.mrb[0].mxu0 %v2906
        %v3416 = vpop.f32.mrb[0].mxu0
        %v3417 = vadd.f32 %v3005, %v3416
        %v3418 = vpop.f32.mrb[0].mxu0
        %v3419 = vadd.f32 %v3009, %v3418
        %v3420 = vpop.f32.mrb[0].mxu0
        %v3421 = vadd.f32 %v3005, %v3420
        %v3422 = vpop.f32.mrb[0].mxu0
        %v3423 = vadd.f32 %v3009, %v3422
        %3424 = vmatprep.mubr.bf16.mxu0 0
        %3425 = vmatmul.mubr.bf16.gmra.mrb[0].mxu0 %v2907
        %v3426 = vpop.f32.mrb[0].mxu0
        %v3427 = vadd.f32 %v3005, %v3426
        %v3428 = vpop.f32.mrb[0].mxu0
        %v3429 = vadd.f32 %v3009, %v3428
        %v3430 = vpop.f32.mrb[0].mxu0
        %v3431 = vadd.f32 %v3005, %v3430
        %v3432 = vpop.f32.mrb[0].mxu0
        %v3433 = vadd.f32 %v3009, %v3432
        %3434 = vmatprep.mubr.bf16.mxu0 0
        %3435 = vmatmul.mubr.bf16.gmra.mrb[0].mxu0 %v2908
        %v3436 = vpop.f32.mrb[0].mxu0
        %v3437 = vadd.f32 %v3005, %v3436
        %v3438 = vpop.f32.mrb[0].mxu0
        %v3439 = vadd.f32 %v3009, %v3438
        %v3440 = vpop.f32.mrb[0].mxu0
        %v3441 = vadd.f32 %v3005, %v3440
        %v3442 = vpop.f32.mrb[0].mxu0
        %v3443 = vadd.f32 %v3009, %v3442
        %3444 = vmatprep.mubr.bf16.mxu0 0
        %3445 = vmatmul.mubr.bf16.gmra.mrb[0].mxu0 %v2909
        %v3446 = vpop.f32.mrb[0].mxu0
        %v3447 = vadd.f32 %v3005, %v3446
        %v3448 = vpop.f32.mrb[0].mxu0
        %v3449 = vadd.f32 %v3009, %v3448
        %v3450 = vpop.f32.mrb[0].mxu0
        %v3451 = vadd.f32 %v3005, %v3450
        %v3452 = vpop.f32.mrb[0].mxu0
        %v3453 = vadd.f32 %v3009, %v3452
        %3454 = vmatprep.mubr.bf16.mxu0 0
        %3455 = vmatmul.mubr.bf16.gmra.mrb[0].mxu0 %v2910
        %v3456 = vpop.f32.mrb[0].mxu0
        %v3457 = vadd.f32 %v3005, %v3456
        %v3458 = vpop.f32.mrb[0].mxu0
        %v3459 = vadd.f32 %v3009, %v3458
        %v3460 = vpop.f32.mrb[0].mxu0
        %v3461 = vadd.f32 %v3005, %v3460
        %v3462 = vpop.f32.mrb[0].mxu0
        %v3463 = vadd.f32 %v3009, %v3462
        %3464 = vmatprep.mubr.bf16.mxu0 0
        %3465 = vmatmul.mubr.bf16.gmra.mrb[0].mxu0 %v2911
        %v3466 = vpop.f32.mrb[0].mxu0
        %v3467 = vadd.f32 %v3005, %v3466
        %v3468 = vpop.f32.mrb[0].mxu0
        %v3469 = vadd.f32 %v3009, %v3468
        %v3470 = vpop.f32.mrb[0].mxu0
        %v3471 = vadd.f32 %v3005, %v3470
        %v3472 = vpop.f32.mrb[0].mxu0
        %v3473 = vadd.f32 %v3009, %v3472
        %3474 = vmatprep.mubr.bf16.mxu0 0
        %3475 = vmatmul.mubr.bf16.gmra.mrb[0].mxu0 %v2912
        %v3476 = vpop.f32.mrb[0].mxu0
        %v3477 = vadd.f32 %v3005, %v3476
        %v3478 = vpop.f32.mrb[0].mxu0
        %v3479 = vadd.f32 %v3009, %v3478
        %v3480 = vpop.f32.mrb[0].mxu0
        %v3481 = vadd.f32 %v3005, %v3480
        %v3482 = vpop.f32.mrb[0].mxu0
        %v3483 = vadd.f32 %v3009, %v3482
        %3484 = vmatprep.mubr.bf16.mxu0 0
        %3485 = vmatmul.mubr.bf16.gmra.mrb[0].mxu0 %v2913
        %v3486 = vpop.f32.mrb[0].mxu0
        %v3487 = vadd.f32 %v3005, %v3486
        %v3488 = vpop.f32.mrb[0].mxu0
        %v3489 = vadd.f32 %v3009, %v3488
        %v3490 = vpop.f32.mrb[0].mxu0
        %v3491 = vadd.f32 %v3005, %v3490
        %v3492 = vpop.f32.mrb[0].mxu0
        %v3493 = vadd.f32 %v3009, %v3492
        %3494 = vmatprep.mubr.bf16.mxu0 0
        %3495 = vmatmul.mubr.bf16.gmra.mrb[0].mxu0 %v2914
        %v3496 = vpop.f32.mrb[0].mxu0
        %v3497 = vadd.f32 %v3005, %v3496
        %v3498 = vpop.f32.mrb[0].mxu0
        %v3499 = vadd.f32 %v3009, %v3498
        %v3500 = vpop.f32.mrb[0].mxu0
        %v3501 = vadd.f32 %v3005, %v3500
        %v3502 = vpop.f32.mrb[0].mxu0
        %v3503 = vadd.f32 %v3009, %v3502
        %3504 = vmatprep.mubr.bf16.mxu0 0
        %3505 = vmatmul.mubr.bf16.gmra.mrb[0].mxu0 %v2915
        %v3506 = vpop.f32.mrb[0].mxu0
        %v3507 = vadd.f32 %v3005, %v3506
        %v3508 = vpop.f32.mrb[0].mxu0
        %v3509 = vadd.f32 %v3009, %v3508
        %v3510 = vpop.f32.mrb[0].mxu0
        %v3511 = vadd.f32 %v3005, %v3510
        %v3512 = vpop.f32.mrb[0].mxu0
        %v3513 = vadd.f32 %v3009, %v3512
        %3514 = vmatprep.mubr.bf16.mxu0 0
        %3515 = vmatmul.mubr.bf16.gmra.mrb[0].mxu0 %v2916
        %v3516 = vpop.f32.mrb[0].mxu0
        %v3517 = vadd.f32 %v3005, %v3516
        %v3518 = vpop.f32.mrb[0].mxu0
        %v3519 = vadd.f32 %v3009, %v3518
        %v3520 = vpop.f32.mrb[0].mxu0
        %v3521 = vadd.f32 %v3005, %v3520
        %v3522 = vpop.f32.mrb[0].mxu0
        %v3523 = vadd.f32 %v3009, %v3522
        %3524 = vmatprep.mubr.bf16.mxu0 0
        %3525 = vmatmul.mubr.bf16.gmra.mrb[0].mxu0 %v2917
        %v3526 = vpop.f32.mrb[0].mxu0
        %v3527 = vadd.f32 %v3005, %v3526
        %v3528 = vpop.f32.mrb[0].mxu0
        %v3529 = vadd.f32 %v3009, %v3528
        %v3530 = vpop.f32.mrb[0].mxu0
        %v3531 = vadd.f32 %v3005, %v3530
        %v3532 = vpop.f32.mrb[0].mxu0
        %v3533 = vadd.f32 %v3009, %v3532
        %3534 = vmatprep.mubr.bf16.mxu0 0
        %3535 = vmatmul.mubr.bf16.gmra.mrb[0].mxu0 %v2918
        %v3536 = vpop.f32.mrb[0].mxu0
        %v3537 = vadd.f32 %v3005, %v3536
        %v3538 = vpop.f32.mrb[0].mxu0
        %v3539 = vadd.f32 %v3009, %v3538
        %v3540 = vpop.f32.mrb[0].mxu0
        %v3541 = vadd.f32 %v3005, %v3540
        %v3542 = vpop.f32.mrb[0].mxu0
        %v3543 = vadd.f32 %v3009, %v3542
        %3544 = vmatprep.mubr.bf16.mxu0 0
        %3545 = vmatmul.mubr.bf16.gmra.mrb[0].mxu0 %v2919
        %v3546 = vpop.f32.mrb[0].mxu0
        %v3547 = vadd.f32 %v3005, %v3546
        %v3548 = vpop.f32.mrb[0].mxu0
        %v3549 = vadd.f32 %v3009, %v3548
        %v3550 = vpop.f32.mrb[0].mxu0
        %v3551 = vadd.f32 %v3005, %v3550
        %v3552 = vpop.f32.mrb[0].mxu0
        %v3553 = vadd.f32 %v3009, %v3552
        %3554 = vmatprep.mubr.bf16.mxu0 0
        %3555 = vmatmul.mubr.bf16.gmra.mrb[0].mxu0 %v2920
        %v3556 = vpop.f32.mrb[0].mxu0
        %v3557 = vadd.f32 %v3005, %v3556
        %v3558 = vpop.f32.mrb[0].mxu0
        %v3559 = vadd.f32 %v3009, %v3558
        %v3560 = vpop.f32.mrb[0].mxu0
        %v3561 = vadd.f32 %v3005, %v3560
        %v3562 = vpop.f32.mrb[0].mxu0
        %v3563 = vadd.f32 %v3009, %v3562
        %3564 = vmatprep.mubr.bf16.mxu0 0
        %3565 = vmatmul.mubr.bf16.gmra.mrb[0].mxu0 %v2921
        %v3566 = vpop.f32.mrb[0].mxu0
        %v3567 = vadd.f32 %v3005, %v3566
        %v3568 = vpop.f32.mrb[0].mxu0
        %v3569 = vadd.f32 %v3009, %v3568
        %v3570 = vpop.f32.mrb[0].mxu0
        %v3571 = vadd.f32 %v3005, %v3570
        %v3572 = vpop.f32.mrb[0].mxu0
        %v3573 = vadd.f32 %v3009, %v3572
        %3574 = vmatprep.mubr.bf16.mxu0 0
        %3575 = vmatmul.mubr.bf16.gmra.mrb[0].mxu0 %v2922
        %v3576 = vpop.f32.mrb[0].mxu0
        %v3577 = vadd.f32 %v3005, %v3576
        %v3578 = vpop.f32.mrb[0].mxu0
        %v3579 = vadd.f32 %v3009, %v3578
        %v3580 = vpop.f32.mrb[0].mxu0
        %v3581 = vadd.f32 %v3005, %v3580
        %v3582 = vpop.f32.mrb[0].mxu0
        %v3583 = vadd.f32 %v3009, %v3582
        %3584 = vmatprep.mubr.bf16.mxu0 0
        %3585 = vmatmul.mubr.bf16.gmra.mrb[0].mxu0 %v2923
        %v3586 = vpop.f32.mrb[0].mxu0
        %v3587 = vadd.f32 %v3005, %v3586
        %v3588 = vpop.f32.mrb[0].mxu0
        %v3589 = vadd.f32 %v3009, %v3588
        %v3590 = vpop.f32.mrb[0].mxu0
        %v3591 = vadd.f32 %v3005, %v3590
        %v3592 = vpop.f32.mrb[0].mxu0
        %v3593 = vadd.f32 %v3009, %v3592
        %3594 = vmatprep.mubr.bf16.mxu0 0
        %3595 = vmatmul.mubr.bf16.gmra.mrb[0].mxu0 %v2924
        %v3596 = vpop.f32.mrb[0].mxu0
        %v3597 = vadd.f32 %v3005, %v3596
        %v3598 = vpop.f32.mrb[0].mxu0
        %v3599 = vadd.f32 %v3009, %v3598
        %v3600 = vpop.f32.mrb[0].mxu0
        %v3601 = vadd.f32 %v3005, %v3600
        %v3602 = vpop.f32.mrb[0].mxu0
        %v3603 = vadd.f32 %v3009, %v3602
        %3604 = vmatprep.mubr.bf16.mxu0 0
        %3605 = vmatmul.mubr.bf16.gmra.mrb[0].mxu0 %v2925
        %v3606 = vpop.f32.mrb[0].mxu0
        %v3607 = vadd.f32 %v3005, %v3606
        %v3608 = vpop.f32.mrb[0].mxu0
        %v3609 = vadd.f32 %v3009, %v3608
        %v3610 = vpop.f32.mrb[0].mxu0
        %v3611 = vadd.f32 %v3005, %v3610
        %v3612 = vpop.f32.mrb[0].mxu0
        %v3613 = vadd.f32 %v3009, %v3612
        %3614 = vmatprep.mubr.bf16.mxu0 0
        %3615 = vmatmul.mubr.bf16.gmra.mrb[0].mxu0 %v2926
        %v3616 = vpop.f32.mrb[0].mxu0
        %v3617 = vadd.f32 %v3005, %v3616
        %v3618 = vpop.f32.mrb[0].mxu0
        %v3619 = vadd.f32 %v3009, %v3618
        %v3620 = vpop.f32.mrb[0].mxu0
        %v3621 = vadd.f32 %v3005, %v3620
        %v3622 = vpop.f32.mrb[0].mxu0
        %v3623 = vadd.f32 %v3009, %v3622
        %3624 = vmatprep.mubr.bf16.mxu0 0
        %3625 = vmatmul.mubr.bf16.gmra.mrb[0].mxu0 %v2927
        %v3626 = vpop.f32.mrb[0].mxu0
        %v3627 = vadd.f32 %v3005, %v3626
        %v3628 = vpop.f32.mrb[0].mxu0
        %v3629 = vadd.f32 %v3009, %v3628
        %v3630 = vpop.f32.mrb[0].mxu0
        %v3631 = vadd.f32 %v3005, %v3630
        %v3632 = vpop.f32.mrb[0].mxu0
        %v3633 = vadd.f32 %v3009, %v3632
        %3634 = vmatprep.mubr.bf16.mxu0 0
        %3635 = vmatmul.mubr.bf16.gmra.mrb[0].mxu0 %v2928
        %v3636 = vpop.f32.mrb[0].mxu0
        %v3637 = vadd.f32 %v3005, %v3636
        %v3638 = vpop.f32.mrb[0].mxu0
        %v3639 = vadd.f32 %v3009, %v3638
        %v3640 = vpop.f32.mrb[0].mxu0
        %v3641 = vadd.f32 %v3005, %v3640
        %v3642 = vpop.f32.mrb[0].mxu0
        %v3643 = vadd.f32 %v3009, %v3642
        %3644 = vmatprep.mubr.bf16.mxu0 0
        %3645 = vmatmul.mubr.bf16.gmra.mrb[0].mxu0 %v2929
        %v3646 = vpop.f32.mrb[0].mxu0
        %v3647 = vadd.f32 %v3005, %v3646
        %v3648 = vpop.f32.mrb[0].mxu0
        %v3649 = vadd.f32 %v3009, %v3648
        %v3650 = vpop.f32.mrb[0].mxu0
        %v3651 = vadd.f32 %v3005, %v3650
        %v3652 = vpop.f32.mrb[0].mxu0
        %v3653 = vadd.f32 %v3009, %v3652
        %3654 = vmatprep.mubr.bf16.mxu0 0
        %3655 = vmatmul.mubr.bf16.gmra.mrb[0].mxu0 %v2930
        %v3656 = vpop.f32.mrb[0].mxu0
        %v3657 = vadd.f32 %v3005, %v3656
        %v3658 = vpop.f32.mrb[0].mxu0
        %v3659 = vadd.f32 %v3009, %v3658
        %v3660 = vpop.f32.mrb[0].mxu0
        %v3661 = vadd.f32 %v3005, %v3660
        %v3662 = vpop.f32.mrb[0].mxu0
        %v3663 = vadd.f32 %v3009, %v3662
        %3664 = vmatprep.mubr.bf16.mxu0 0
        %3665 = vmatmul.mubr.bf16.gmra.mrb[0].mxu0 %v2931
        %v3666 = vpop.f32.mrb[0].mxu0
        %v3667 = vadd.f32 %v3005, %v3666
        %v3668 = vpop.f32.mrb[0].mxu0
        %v3669 = vadd.f32 %v3009, %v3668
        %v3670 = vpop.f32.mrb[0].mxu0
        %v3671 = vadd.f32 %v3005, %v3670
        %v3672 = vpop.f32.mrb[0].mxu0
        %v3673 = vadd.f32 %v3009, %v3672
        %3674 = vmatprep.mubr.bf16.mxu0 0
        %3675 = vmatmul.mubr.bf16.gmra.mrb[0].mxu0 %v2932
        %v3676 = vpop.f32.mrb[0].mxu0
        %v3677 = vadd.f32 %v3005, %v3676
        %v3678 = vpop.f32.mrb[0].mxu0
        %v3679 = vadd.f32 %v3009, %v3678
        %v3680 = vpop.f32.mrb[0].mxu0
        %v3681 = vadd.f32 %v3005, %v3680
        %v3682 = vpop.f32.mrb[0].mxu0
        %v3683 = vadd.f32 %v3009, %v3682
        %3684 = vmatprep.mubr.bf16.mxu0 0
        %3685 = vmatmul.mubr.bf16.gmra.mrb[0].mxu0 %v2933
        %v3686 = vpop.f32.mrb[0].mxu0
        %v3687 = vadd.f32 %v3005, %v3686
        %v3688 = vpop.f32.mrb[0].mxu0
        %v3689 = vadd.f32 %v3009, %v3688
        %v3690 = vpop.f32.mrb[0].mxu0
        %v3691 = vadd.f32 %v3005, %v3690
        %v3692 = vpop.f32.mrb[0].mxu0
        %v3693 = vadd.f32 %v3009, %v3692
        %3694 = vmatprep.mubr.bf16.mxu0 0
        %3695 = vmatmul.mubr.bf16.gmra.mrb[0].mxu0 %v2934
        %v3696 = vpop.f32.mrb[0].mxu0
        %v3697 = vadd.f32 %v3005, %v3696
        %v3698 = vpop.f32.mrb[0].mxu0
        %v3699 = vadd.f32 %v3009, %v3698
        %v3700 = vpop.f32.mrb[0].mxu0
        %v3701 = vadd.f32 %v3005, %v3700
        %v3702 = vpop.f32.mrb[0].mxu0
        %v3703 = vadd.f32 %v3009, %v3702
        %3704 = vmatprep.mubr.bf16.mxu0 0
        %3705 = vmatmul.mubr.bf16.gmra.mrb[0].mxu0 %v2935
        %v3706 = vpop.f32.mrb[0].mxu0
        %v3707 = vadd.f32 %v3005, %v3706
        %v3708 = vpop.f32.mrb[0].mxu0
        %v3709 = vadd.f32 %v3009, %v3708
        %v3710 = vpop.f32.mrb[0].mxu0
        %v3711 = vadd.f32 %v3005, %v3710
        %v3712 = vpop.f32.mrb[0].mxu0
        %v3713 = vadd.f32 %v3009, %v3712
        %3714 = vdwg.mxu0
        %3715 = vmatprep.subr.bf16.mxu0 %v3237
        %3716 = vmatpush1.bf16.msra.mxu0 %v3236
        %3717 = vmatprep.subr.bf16.mxu0 %v3245
        %3718 = vmatpush1.bf16.msra.mxu0 %v3244
        %3719 = vmatprep.subr.bf16.mxu0 %v3253
        %3720 = vmatpush1.bf16.msra.mxu0 %v3252
        %3721 = vmatprep.subr.bf16.mxu0 %v3261
        %3722 = vmatpush1.bf16.msra.mxu0 %v3260
        %3723 = vmatprep.subr.bf16.mxu0 %v3269
        %3724 = vmatpush1.bf16.msra.mxu0 %v3268
        %3725 = vmatprep.subr.bf16.mxu0 %v3277
        %3726 = vmatpush1.bf16.msra.mxu0 %v3276
        %3727 = vmatprep.subr.bf16.mxu0 %v3285
        %3728 = vmatpush1.bf16.msra.mxu0 %v3284
        %3729 = vmatprep.subr.bf16.mxu0 %v3293
        %3730 = vmatpush1.bf16.msra.mxu0 %v3292
        %3731 = vmatprep.subr.bf16.mxu0 0
        %3732 = vmatpush1.bf16.msra.mxu0 0
        %3733 = vmatprep.subr.bf16.mxu0 0
        %3734 = vmatpush1.bf16.msra.mxu0 0
        %3735 = vmatprep.subr.bf16.mxu0 0
        %3736 = vmatpush1.bf16.msra.mxu0 0
        %3737 = vmatprep.subr.bf16.mxu0 0
        %3738 = vmatpush1.bf16.msra.mxu0 0
        %3739 = vmatprep.subr.bf16.mxu0 0
        %3740 = vmatpush1.bf16.msra.mxu0 0
        %3741 = vmatprep.subr.bf16.mxu0 0
        %3742 = vmatpush1.bf16.msra.mxu0 0
        %3743 = vmatprep.subr.bf16.mxu0 0
        %3744 = vmatpush1.bf16.msra.mxu0 0
        %3745 = vmatprep.subr.bf16.mxu0 0
        %3746 = vmatpush1.bf16.msra.mxu0 0
        %3747 = vmatprep.mubr.bf16.mxu0 0
        %3748 = vmatmul.mubr.bf16.gmra.mrb[0].mxu0 %v2904
        %v3749 = vpop.f32.mrb[0].mxu0
        %v3750 = vadd.f32 %v3013, %v3749
        %v3751 = vpop.f32.mrb[0].mxu0
        %v3752 = vadd.f32 %v3017, %v3751
        %v3753 = vpop.f32.mrb[0].mxu0
        %v3754 = vadd.f32 %v3013, %v3753
        %v3755 = vpop.f32.mrb[0].mxu0
        %v3756 = vadd.f32 %v3017, %v3755
        %3757 = vmatprep.mubr.bf16.mxu0 0
        %3758 = vmatmul.mubr.bf16.gmra.mrb[0].mxu0 %v2905
        %v3759 = vpop.f32.mrb[0].mxu0
        %v3760 = vadd.f32 %v3013, %v3759
        %v3761 = vpop.f32.mrb[0].mxu0
        %v3762 = vadd.f32 %v3017, %v3761
        %v3763 = vpop.f32.mrb[0].mxu0
        %v3764 = vadd.f32 %v3013, %v3763
        %v3765 = vpop.f32.mrb[0].mxu0
        %v3766 = vadd.f32 %v3017, %v3765
        %3767 = vmatprep.mubr.bf16.mxu0 0
        %3768 = vmatmul.mubr.bf16.gmra.mrb[0].mxu0 %v2906
        %v3769 = vpop.f32.mrb[0].mxu0
        %v3770 = vadd.f32 %v3013, %v3769
        %v3771 = vpop.f32.mrb[0].mxu0
        %v3772 = vadd.f32 %v3017, %v3771
        %v3773 = vpop.f32.mrb[0].mxu0
        %v3774 = vadd.f32 %v3013, %v3773
        %v3775 = vpop.f32.mrb[0].mxu0
        %v3776 = vadd.f32 %v3017, %v3775
        %3777 = vmatprep.mubr.bf16.mxu0 0
        %3778 = vmatmul.mubr.bf16.gmra.mrb[0].mxu0 %v2907
        %v3779 = vpop.f32.mrb[0].mxu0
        %v3780 = vadd.f32 %v3013, %v3779
        %v3781 = vpop.f32.mrb[0].mxu0
        %v3782 = vadd.f32 %v3017, %v3781
        %v3783 = vpop.f32.mrb[0].mxu0
        %v3784 = vadd.f32 %v3013, %v3783
        %v3785 = vpop.f32.mrb[0].mxu0
        %v3786 = vadd.f32 %v3017, %v3785
        %3787 = vmatprep.mubr.bf16.mxu0 0
        %3788 = vmatmul.mubr.bf16.gmra.mrb[0].mxu0 %v2908
        %v3789 = vpop.f32.mrb[0].mxu0
        %v3790 = vadd.f32 %v3013, %v3789
        %v3791 = vpop.f32.mrb[0].mxu0
        %v3792 = vadd.f32 %v3017, %v3791
        %v3793 = vpop.f32.mrb[0].mxu0
        %v3794 = vadd.f32 %v3013, %v3793
        %v3795 = vpop.f32.mrb[0].mxu0
        %v3796 = vadd.f32 %v3017, %v3795
        %3797 = vmatprep.mubr.bf16.mxu0 0
        %3798 = vmatmul.mubr.bf16.gmra.mrb[0].mxu0 %v2909
        %v3799 = vpop.f32.mrb[0].mxu0
        %v3800 = vadd.f32 %v3013, %v3799
        %v3801 = vpop.f32.mrb[0].mxu0
        %v3802 = vadd.f32 %v3017, %v3801
        %v3803 = vpop.f32.mrb[0].mxu0
        %v3804 = vadd.f32 %v3013, %v3803
        %v3805 = vpop.f32.mrb[0].mxu0
        %v3806 = vadd.f32 %v3017, %v3805
        %3807 = vmatprep.mubr.bf16.mxu0 0
        %3808 = vmatmul.mubr.bf16.gmra.mrb[0].mxu0 %v2910
        %v3809 = vpop.f32.mrb[0].mxu0
        %v3810 = vadd.f32 %v3013, %v3809
        %v3811 = vpop.f32.mrb[0].mxu0
        %v3812 = vadd.f32 %v3017, %v3811
        %v3813 = vpop.f32.mrb[0].mxu0
        %v3814 = vadd.f32 %v3013, %v3813
        %v3815 = vpop.f32.mrb[0].mxu0
        %v3816 = vadd.f32 %v3017, %v3815
        %3817 = vmatprep.mubr.bf16.mxu0 0
        %3818 = vmatmul.mubr.bf16.gmra.mrb[0].mxu0 %v2911
        %v3819 = vpop.f32.mrb[0].mxu0
        %v3820 = vadd.f32 %v3013, %v3819
        %v3821 = vpop.f32.mrb[0].mxu0
        %v3822 = vadd.f32 %v3017, %v3821
        %v3823 = vpop.f32.mrb[0].mxu0
        %v3824 = vadd.f32 %v3013, %v3823
        %v3825 = vpop.f32.mrb[0].mxu0
        %v3826 = vadd.f32 %v3017, %v3825
        %3827 = vmatprep.mubr.bf16.mxu0 0
        %3828 = vmatmul.mubr.bf16.gmra.mrb[0].mxu0 %v2912
        %v3829 = vpop.f32.mrb[0].mxu0
        %v3830 = vadd.f32 %v3013, %v3829
        %v3831 = vpop.f32.mrb[0].mxu0
        %v3832 = vadd.f32 %v3017, %v3831
        %v3833 = vpop.f32.mrb[0].mxu0
        %v3834 = vadd.f32 %v3013, %v3833
        %v3835 = vpop.f32.mrb[0].mxu0
        %v3836 = vadd.f32 %v3017, %v3835
        %3837 = vmatprep.mubr.bf16.mxu0 0
        %3838 = vmatmul.mubr.bf16.gmra.mrb[0].mxu0 %v2913
        %v3839 = vpop.f32.mrb[0].mxu0
        %v3840 = vadd.f32 %v3013, %v3839
        %v3841 = vpop.f32.mrb[0].mxu0
        %v3842 = vadd.f32 %v3017, %v3841
        %v3843 = vpop.f32.mrb[0].mxu0
        %v3844 = vadd.f32 %v3013, %v3843
        %v3845 = vpop.f32.mrb[0].mxu0
        %v3846 = vadd.f32 %v3017, %v3845
        %3847 = vmatprep.mubr.bf16.mxu0 0
        %3848 = vmatmul.mubr.bf16.gmra.mrb[0].mxu0 %v2914
        %v3849 = vpop.f32.mrb[0].mxu0
        %v3850 = vadd.f32 %v3013, %v3849
        %v3851 = vpop.f32.mrb[0].mxu0
        %v3852 = vadd.f32 %v3017, %v3851
        %v3853 = vpop.f32.mrb[0].mxu0
        %v3854 = vadd.f32 %v3013, %v3853
        %v3855 = vpop.f32.mrb[0].mxu0
        %v3856 = vadd.f32 %v3017, %v3855
        %3857 = vmatprep.mubr.bf16.mxu0 0
        %3858 = vmatmul.mubr.bf16.gmra.mrb[0].mxu0 %v2915
        %v3859 = vpop.f32.mrb[0].mxu0
        %v3860 = vadd.f32 %v3013, %v3859
        %v3861 = vpop.f32.mrb[0].mxu0
        %v3862 = vadd.f32 %v3017, %v3861
        %v3863 = vpop.f32.mrb[0].mxu0
        %v3864 = vadd.f32 %v3013, %v3863
        %v3865 = vpop.f32.mrb[0].mxu0
        %v3866 = vadd.f32 %v3017, %v3865
        %3867 = vmatprep.mubr.bf16.mxu0 0
        %3868 = vmatmul.mubr.bf16.gmra.mrb[0].mxu0 %v2916
        %v3869 = vpop.f32.mrb[0].mxu0
        %v3870 = vadd.f32 %v3013, %v3869
        %v3871 = vpop.f32.mrb[0].mxu0
        %v3872 = vadd.f32 %v3017, %v3871
        %v3873 = vpop.f32.mrb[0].mxu0
        %v3874 = vadd.f32 %v3013, %v3873
        %v3875 = vpop.f32.mrb[0].mxu0
        %v3876 = vadd.f32 %v3017, %v3875
        %3877 = vmatprep.mubr.bf16.mxu0 0
        %3878 = vmatmul.mubr.bf16.gmra.mrb[0].mxu0 %v2917
        %v3879 = vpop.f32.mrb[0].mxu0
        %v3880 = vadd.f32 %v3013, %v3879
        %v3881 = vpop.f32.mrb[0].mxu0
        %v3882 = vadd.f32 %v3017, %v3881
        %v3883 = vpop.f32.mrb[0].mxu0
        %v3884 = vadd.f32 %v3013, %v3883
        %v3885 = vpop.f32.mrb[0].mxu0
        %v3886 = vadd.f32 %v3017, %v3885
        %3887 = vmatprep.mubr.bf16.mxu0 0
        %3888 = vmatmul.mubr.bf16.gmra.mrb[0].mxu0 %v2918
        %v3889 = vpop.f32.mrb[0].mxu0
        %v3890 = vadd.f32 %v3013, %v3889
        %v3891 = vpop.f32.mrb[0].mxu0
        %v3892 = vadd.f32 %v3017, %v3891
        %v3893 = vpop.f32.mrb[0].mxu0
        %v3894 = vadd.f32 %v3013, %v3893
        %v3895 = vpop.f32.mrb[0].mxu0
        %v3896 = vadd.f32 %v3017, %v3895
        %3897 = vmatprep.mubr.bf16.mxu0 0
        %3898 = vmatmul.mubr.bf16.gmra.mrb[0].mxu0 %v2919
        %v3899 = vpop.f32.mrb[0].mxu0
        %v3900 = vadd.f32 %v3013, %v3899
        %v3901 = vpop.f32.mrb[0].mxu0
        %v3902 = vadd.f32 %v3017, %v3901
        %v3903 = vpop.f32.mrb[0].mxu0
        %v3904 = vadd.f32 %v3013, %v3903
        %v3905 = vpop.f32.mrb[0].mxu0
        %v3906 = vadd.f32 %v3017, %v3905
        %3907 = vmatprep.mubr.bf16.mxu0 0
        %3908 = vmatmul.mubr.bf16.gmra.mrb[0].mxu0 %v2920
        %v3909 = vpop.f32.mrb[0].mxu0
        %v3910 = vadd.f32 %v3013, %v3909
        %v3911 = vpop.f32.mrb[0].mxu0
        %v3912 = vadd.f32 %v3017, %v3911
        %v3913 = vpop.f32.mrb[0].mxu0
        %v3914 = vadd.f32 %v3013, %v3913
        %v3915 = vpop.f32.mrb[0].mxu0
        %v3916 = vadd.f32 %v3017, %v3915
        %3917 = vmatprep.mubr.bf16.mxu0 0
        %3918 = vmatmul.mubr.bf16.gmra.mrb[0].mxu0 %v2921
        %v3919 = vpop.f32.mrb[0].mxu0
        %v3920 = vadd.f32 %v3013, %v3919
        %v3921 = vpop.f32.mrb[0].mxu0
        %v3922 = vadd.f32 %v3017, %v3921
        %v3923 = vpop.f32.mrb[0].mxu0
        %v3924 = vadd.f32 %v3013, %v3923
        %v3925 = vpop.f32.mrb[0].mxu0
        %v3926 = vadd.f32 %v3017, %v3925
        %3927 = vmatprep.mubr.bf16.mxu0 0
        %3928 = vmatmul.mubr.bf16.gmra.mrb[0].mxu0 %v2922
        %v3929 = vpop.f32.mrb[0].mxu0
        %v3930 = vadd.f32 %v3013, %v3929
        %v3931 = vpop.f32.mrb[0].mxu0
        %v3932 = vadd.f32 %v3017, %v3931
        %v3933 = vpop.f32.mrb[0].mxu0
        %v3934 = vadd.f32 %v3013, %v3933
        %v3935 = vpop.f32.mrb[0].mxu0
        %v3936 = vadd.f32 %v3017, %v3935
        %3937 = vmatprep.mubr.bf16.mxu0 0
        %3938 = vmatmul.mubr.bf16.gmra.mrb[0].mxu0 %v2923
        %v3939 = vpop.f32.mrb[0].mxu0
        %v3940 = vadd.f32 %v3013, %v3939
        %v3941 = vpop.f32.mrb[0].mxu0
        %v3942 = vadd.f32 %v3017, %v3941
        %v3943 = vpop.f32.mrb[0].mxu0
        %v3944 = vadd.f32 %v3013, %v3943
        %v3945 = vpop.f32.mrb[0].mxu0
        %v3946 = vadd.f32 %v3017, %v3945
        %3947 = vmatprep.mubr.bf16.mxu0 0
        %3948 = vmatmul.mubr.bf16.gmra.mrb[0].mxu0 %v2924
        %v3949 = vpop.f32.mrb[0].mxu0
        %v3950 = vadd.f32 %v3013, %v3949
        %v3951 = vpop.f32.mrb[0].mxu0
        %v3952 = vadd.f32 %v3017, %v3951
        %v3953 = vpop.f32.mrb[0].mxu0
        %v3954 = vadd.f32 %v3013, %v3953
        %v3955 = vpop.f32.mrb[0].mxu0
        %v3956 = vadd.f32 %v3017, %v3955
        %3957 = vmatprep.mubr.bf16.mxu0 0
        %3958 = vmatmul.mubr.bf16.gmra.mrb[0].mxu0 %v2925
        %v3959 = vpop.f32.mrb[0].mxu0
        %v3960 = vadd.f32 %v3013, %v3959
        %v3961 = vpop.f32.mrb[0].mxu0
        %v3962 = vadd.f32 %v3017, %v3961
        %v3963 = vpop.f32.mrb[0].mxu0
        %v3964 = vadd.f32 %v3013, %v3963
        %v3965 = vpop.f32.mrb[0].mxu0
        %v3966 = vadd.f32 %v3017, %v3965
        %3967 = vmatprep.mubr.bf16.mxu0 0
        %3968 = vmatmul.mubr.bf16.gmra.mrb[0].mxu0 %v2926
        %v3969 = vpop.f32.mrb[0].mxu0
        %v3970 = vadd.f32 %v3013, %v3969
        %v3971 = vpop.f32.mrb[0].mxu0
        %v3972 = vadd.f32 %v3017, %v3971
        %v3973 = vpop.f32.mrb[0].mxu0
        %v3974 = vadd.f32 %v3013, %v3973
        %v3975 = vpop.f32.mrb[0].mxu0
        %v3976 = vadd.f32 %v3017, %v3975
        %3977 = vmatprep.mubr.bf16.mxu0 0
        %3978 = vmatmul.mubr.bf16.gmra.mrb[0].mxu0 %v2927
        %v3979 = vpop.f32.mrb[0].mxu0
        %v3980 = vadd.f32 %v3013, %v3979
        %v3981 = vpop.f32.mrb[0].mxu0
        %v3982 = vadd.f32 %v3017, %v3981
        %v3983 = vpop.f32.mrb[0].mxu0
        %v3984 = vadd.f32 %v3013, %v3983
        %v3985 = vpop.f32.mrb[0].mxu0
        %v3986 = vadd.f32 %v3017, %v3985
        %3987 = vmatprep.mubr.bf16.mxu0 0
        %3988 = vmatmul.mubr.bf16.gmra.mrb[0].mxu0 %v2928
        %v3989 = vpop.f32.mrb[0].mxu0
        %v3990 = vadd.f32 %v3013, %v3989
        %v3991 = vpop.f32.mrb[0].mxu0
        %v3992 = vadd.f32 %v3017, %v3991
        %v3993 = vpop.f32.mrb[0].mxu0
        %v3994 = vadd.f32 %v3013, %v3993
        %v3995 = vpop.f32.mrb[0].mxu0
        %v3996 = vadd.f32 %v3017, %v3995
        %3997 = vmatprep.mubr.bf16.mxu0 0
        %3998 = vmatmul.mubr.bf16.gmra.mrb[0].mxu0 %v2929
        %v3999 = vpop.f32.mrb[0].mxu0
        %v4000 = vadd.f32 %v3013, %v3999
        %v4001 = vpop.f32.mrb[0].mxu0
        %v4002 = vadd.f32 %v3017, %v4001
        %v4003 = vpop.f32.mrb[0].mxu0
        %v4004 = vadd.f32 %v3013, %v4003
        %v4005 = vpop.f32.mrb[0].mxu0
        %v4006 = vadd.f32 %v3017, %v4005
        %4007 = vmatprep.mubr.bf16.mxu0 0
        %4008 = vmatmul.mubr.bf16.gmra.mrb[0].mxu0 %v2930
        %v4009 = vpop.f32.mrb[0].mxu0
        %v4010 = vadd.f32 %v3013, %v4009
        %v4011 = vpop.f32.mrb[0].mxu0
        %v4012 = vadd.f32 %v3017, %v4011
        %v4013 = vpop.f32.mrb[0].mxu0
        %v4014 = vadd.f32 %v3013, %v4013
        %v4015 = vpop.f32.mrb[0].mxu0
        %v4016 = vadd.f32 %v3017, %v4015
        %4017 = vmatprep.mubr.bf16.mxu0 0
        %4018 = vmatmul.mubr.bf16.gmra.mrb[0].mxu0 %v2931
        %v4019 = vpop.f32.mrb[0].mxu0
        %v4020 = vadd.f32 %v3013, %v4019
        %v4021 = vpop.f32.mrb[0].mxu0
        %v4022 = vadd.f32 %v3017, %v4021
        %v4023 = vpop.f32.mrb[0].mxu0
        %v4024 = vadd.f32 %v3013, %v4023
        %v4025 = vpop.f32.mrb[0].mxu0
        %v4026 = vadd.f32 %v3017, %v4025
        %4027 = vmatprep.mubr.bf16.mxu0 0
        %4028 = vmatmul.mubr.bf16.gmra.mrb[0].mxu0 %v2932
        %v4029 = vpop.f32.mrb[0].mxu0
        %v4030 = vadd.f32 %v3013, %v4029
        %v4031 = vpop.f32.mrb[0].mxu0
        %v4032 = vadd.f32 %v3017, %v4031
        %v4033 = vpop.f32.mrb[0].mxu0
        %v4034 = vadd.f32 %v3013, %v4033
        %v4035 = vpop.f32.mrb[0].mxu0
        %v4036 = vadd.f32 %v3017, %v4035
        %4037 = vmatprep.mubr.bf16.mxu0 0
        %4038 = vmatmul.mubr.bf16.gmra.mrb[0].mxu0 %v2933
        %v4039 = vpop.f32.mrb[0].mxu0
        %v4040 = vadd.f32 %v3013, %v4039
        %v4041 = vpop.f32.mrb[0].mxu0
        %v4042 = vadd.f32 %v3017, %v4041
        %v4043 = vpop.f32.mrb[0].mxu0
        %v4044 = vadd.f32 %v3013, %v4043
        %v4045 = vpop.f32.mrb[0].mxu0
        %v4046 = vadd.f32 %v3017, %v4045
        %4047 = vmatprep.mubr.bf16.mxu0 0
        %4048 = vmatmul.mubr.bf16.gmra.mrb[0].mxu0 %v2934
        %v4049 = vpop.f32.mrb[0].mxu0
        %v4050 = vadd.f32 %v3013, %v4049
        %v4051 = vpop.f32.mrb[0].mxu0
        %v4052 = vadd.f32 %v3017, %v4051
        %v4053 = vpop.f32.mrb[0].mxu0
        %v4054 = vadd.f32 %v3013, %v4053
        %v4055 = vpop.f32.mrb[0].mxu0
        %v4056 = vadd.f32 %v3017, %v4055
        %4057 = vmatprep.mubr.bf16.mxu0 0
        %4058 = vmatmul.mubr.bf16.gmra.mrb[0].mxu0 %v2935
        %v4059 = vpop.f32.mrb[0].mxu0
        %v4060 = vadd.f32 %v3013, %v4059
        %v4061 = vpop.f32.mrb[0].mxu0
        %v4062 = vadd.f32 %v3017, %v4061
        %v4063 = vpop.f32.mrb[0].mxu0
        %v4064 = vadd.f32 %v3013, %v4063
        %v4065 = vpop.f32.mrb[0].mxu0
        %v4066 = vadd.f32 %v3017, %v4065
        %4067 = vdwg.mxu0
        %4068 = vmatprep.subr.bf16.mxu0 %v3239
        %4069 = vmatpush1.bf16.msra.mxu0 %v3238
        %4070 = vmatprep.subr.bf16.mxu0 %v3247
        %4071 = vmatpush1.bf16.msra.mxu0 %v3246
        %4072 = vmatprep.subr.bf16.mxu0 %v3255
        %4073 = vmatpush1.bf16.msra.mxu0 %v3254
        %4074 = vmatprep.subr.bf16.mxu0 %v3263
        %4075 = vmatpush1.bf16.msra.mxu0 %v3262
        %4076 = vmatprep.subr.bf16.mxu0 %v3271
        %4077 = vmatpush1.bf16.msra.mxu0 %v3270
        %4078 = vmatprep.subr.bf16.mxu0 %v3279
        %4079 = vmatpush1.bf16.msra.mxu0 %v3278
        %4080 = vmatprep.subr.bf16.mxu0 %v3287
        %4081 = vmatpush1.bf16.msra.mxu0 %v3286
        %4082 = vmatprep.subr.bf16.mxu0 %v3295
        %4083 = vmatpush1.bf16.msra.mxu0 %v3294
        %4084 = vmatprep.subr.bf16.mxu0 0
        %4085 = vmatpush1.bf16.msra.mxu0 0
        %4086 = vmatprep.subr.bf16.mxu0 0
        %4087 = vmatpush1.bf16.msra.mxu0 0
        %4088 = vmatprep.subr.bf16.mxu0 0
        %4089 = vmatpush1.bf16.msra.mxu0 0
        %4090 = vmatprep.subr.bf16.mxu0 0
        %4091 = vmatpush1.bf16.msra.mxu0 0
        %4092 = vmatprep.subr.bf16.mxu0 0
        %4093 = vmatpush1.bf16.msra.mxu0 0
        %4094 = vmatprep.subr.bf16.mxu0 0
        %4095 = vmatpush1.bf16.msra.mxu0 0
        %4096 = vmatprep.subr.bf16.mxu0 0
        %4097 = vmatpush1.bf16.msra.mxu0 0
        %4098 = vmatprep.subr.bf16.mxu0 0
        %4099 = vmatpush1.bf16.msra.mxu0 0
        %4100 = vmatprep.mubr.bf16.mxu0 0
        %4101 = vmatmul.mubr.bf16.gmra.mrb[0].mxu0 %v2904
        %v4102 = vpop.f32.mrb[0].mxu0
        %v4103 = vadd.f32 %v3021, %v4102
        %v4104 = vpop.f32.mrb[0].mxu0
        %v4105 = vadd.f32 %v3025, %v4104
        %v4106 = vpop.f32.mrb[0].mxu0
        %v4107 = vadd.f32 %v3021, %v4106
        %v4108 = vpop.f32.mrb[0].mxu0
        %v4109 = vadd.f32 %v3025, %v4108
        %4110 = vmatprep.mubr.bf16.mxu0 0
        %4111 = vmatmul.mubr.bf16.gmra.mrb[0].mxu0 %v2905
        %v4112 = vpop.f32.mrb[0].mxu0
        %v4113 = vadd.f32 %v3021, %v4112
        %v4114 = vpop.f32.mrb[0].mxu0
        %v4115 = vadd.f32 %v3025, %v4114
        %v4116 = vpop.f32.mrb[0].mxu0
        %v4117 = vadd.f32 %v3021, %v4116
        %v4118 = vpop.f32.mrb[0].mxu0
        %v4119 = vadd.f32 %v3025, %v4118
        %4120 = vmatprep.mubr.bf16.mxu0 0
        %4121 = vmatmul.mubr.bf16.gmra.mrb[0].mxu0 %v2906
        %v4122 = vpop.f32.mrb[0].mxu0
        %v4123 = vadd.f32 %v3021, %v4122
        %v4124 = vpop.f32.mrb[0].mxu0
        %v4125 = vadd.f32 %v3025, %v4124
        %v4126 = vpop.f32.mrb[0].mxu0
        %v4127 = vadd.f32 %v3021, %v4126
        %v4128 = vpop.f32.mrb[0].mxu0
        %v4129 = vadd.f32 %v3025, %v4128
        %4130 = vmatprep.mubr.bf16.mxu0 0
        %4131 = vmatmul.mubr.bf16.gmra.mrb[0].mxu0 %v2907
        %v4132 = vpop.f32.mrb[0].mxu0
        %v4133 = vadd.f32 %v3021, %v4132
        %v4134 = vpop.f32.mrb[0].mxu0
        %v4135 = vadd.f32 %v3025, %v4134
        %v4136 = vpop.f32.mrb[0].mxu0
        %v4137 = vadd.f32 %v3021, %v4136
        %v4138 = vpop.f32.mrb[0].mxu0
        %v4139 = vadd.f32 %v3025, %v4138
        %4140 = vmatprep.mubr.bf16.mxu0 0
        %4141 = vmatmul.mubr.bf16.gmra.mrb[0].mxu0 %v2908
        %v4142 = vpop.f32.mrb[0].mxu0
        %v4143 = vadd.f32 %v3021, %v4142
        %v4144 = vpop.f32.mrb[0].mxu0
        %v4145 = vadd.f32 %v3025, %v4144
        %v4146 = vpop.f32.mrb[0].mxu0
        %v4147 = vadd.f32 %v3021, %v4146
        %v4148 = vpop.f32.mrb[0].mxu0
        %v4149 = vadd.f32 %v3025, %v4148
        %4150 = vmatprep.mubr.bf16.mxu0 0
        %4151 = vmatmul.mubr.bf16.gmra.mrb[0].mxu0 %v2909
        %v4152 = vpop.f32.mrb[0].mxu0
        %v4153 = vadd.f32 %v3021, %v4152
        %v4154 = vpop.f32.mrb[0].mxu0
        %v4155 = vadd.f32 %v3025, %v4154
        %v4156 = vpop.f32.mrb[0].mxu0
        %v4157 = vadd.f32 %v3021, %v4156
        %v4158 = vpop.f32.mrb[0].mxu0
        %v4159 = vadd.f32 %v3025, %v4158
        %4160 = vmatprep.mubr.bf16.mxu0 0
        %4161 = vmatmul.mubr.bf16.gmra.mrb[0].mxu0 %v2910
        %v4162 = vpop.f32.mrb[0].mxu0
        %v4163 = vadd.f32 %v3021, %v4162
        %v4164 = vpop.f32.mrb[0].mxu0
        %v4165 = vadd.f32 %v3025, %v4164
        %v4166 = vpop.f32.mrb[0].mxu0
        %v4167 = vadd.f32 %v3021, %v4166
        %v4168 = vpop.f32.mrb[0].mxu0
        %v4169 = vadd.f32 %v3025, %v4168
        %4170 = vmatprep.mubr.bf16.mxu0 0
        %4171 = vmatmul.mubr.bf16.gmra.mrb[0].mxu0 %v2911
        %v4172 = vpop.f32.mrb[0].mxu0
        %v4173 = vadd.f32 %v3021, %v4172
        %v4174 = vpop.f32.mrb[0].mxu0
        %v4175 = vadd.f32 %v3025, %v4174
        %v4176 = vpop.f32.mrb[0].mxu0
        %v4177 = vadd.f32 %v3021, %v4176
        %v4178 = vpop.f32.mrb[0].mxu0
        %v4179 = vadd.f32 %v3025, %v4178
        %4180 = vmatprep.mubr.bf16.mxu0 0
        %4181 = vmatmul.mubr.bf16.gmra.mrb[0].mxu0 %v2912
        %v4182 = vpop.f32.mrb[0].mxu0
        %v4183 = vadd.f32 %v3021, %v4182
        %v4184 = vpop.f32.mrb[0].mxu0
        %v4185 = vadd.f32 %v3025, %v4184
        %v4186 = vpop.f32.mrb[0].mxu0
        %v4187 = vadd.f32 %v3021, %v4186
        %v4188 = vpop.f32.mrb[0].mxu0
        %v4189 = vadd.f32 %v3025, %v4188
        %4190 = vmatprep.mubr.bf16.mxu0 0
        %4191 = vmatmul.mubr.bf16.gmra.mrb[0].mxu0 %v2913
        %v4192 = vpop.f32.mrb[0].mxu0
        %v4193 = vadd.f32 %v3021, %v4192
        %v4194 = vpop.f32.mrb[0].mxu0
        %v4195 = vadd.f32 %v3025, %v4194
        %v4196 = vpop.f32.mrb[0].mxu0
        %v4197 = vadd.f32 %v3021, %v4196
        %v4198 = vpop.f32.mrb[0].mxu0
        %v4199 = vadd.f32 %v3025, %v4198
        %4200 = vmatprep.mubr.bf16.mxu0 0
        %4201 = vmatmul.mubr.bf16.gmra.mrb[0].mxu0 %v2914
        %v4202 = vpop.f32.mrb[0].mxu0
        %v4203 = vadd.f32 %v3021, %v4202
        %v4204 = vpop.f32.mrb[0].mxu0
        %v4205 = vadd.f32 %v3025, %v4204
        %v4206 = vpop.f32.mrb[0].mxu0
        %v4207 = vadd.f32 %v3021, %v4206
        %v4208 = vpop.f32.mrb[0].mxu0
        %v4209 = vadd.f32 %v3025, %v4208
        %4210 = vmatprep.mubr.bf16.mxu0 0
        %4211 = vmatmul.mubr.bf16.gmra.mrb[0].mxu0 %v2915
        %v4212 = vpop.f32.mrb[0].mxu0
        %v4213 = vadd.f32 %v3021, %v4212
        %v4214 = vpop.f32.mrb[0].mxu0
        %v4215 = vadd.f32 %v3025, %v4214
        %v4216 = vpop.f32.mrb[0].mxu0
        %v4217 = vadd.f32 %v3021, %v4216
        %v4218 = vpop.f32.mrb[0].mxu0
        %v4219 = vadd.f32 %v3025, %v4218
        %4220 = vmatprep.mubr.bf16.mxu0 0
        %4221 = vmatmul.mubr.bf16.gmra.mrb[0].mxu0 %v2916
        %v4222 = vpop.f32.mrb[0].mxu0
        %v4223 = vadd.f32 %v3021, %v4222
        %v4224 = vpop.f32.mrb[0].mxu0
        %v4225 = vadd.f32 %v3025, %v4224
        %v4226 = vpop.f32.mrb[0].mxu0
        %v4227 = vadd.f32 %v3021, %v4226
        %v4228 = vpop.f32.mrb[0].mxu0
        %v4229 = vadd.f32 %v3025, %v4228
        %4230 = vmatprep.mubr.bf16.mxu0 0
        %4231 = vmatmul.mubr.bf16.gmra.mrb[0].mxu0 %v2917
        %v4232 = vpop.f32.mrb[0].mxu0
        %v4233 = vadd.f32 %v3021, %v4232
        %v4234 = vpop.f32.mrb[0].mxu0
        %v4235 = vadd.f32 %v3025, %v4234
        %v4236 = vpop.f32.mrb[0].mxu0
        %v4237 = vadd.f32 %v3021, %v4236
        %v4238 = vpop.f32.mrb[0].mxu0
        %v4239 = vadd.f32 %v3025, %v4238
        %4240 = vmatprep.mubr.bf16.mxu0 0
        %4241 = vmatmul.mubr.bf16.gmra.mrb[0].mxu0 %v2918
        %v4242 = vpop.f32.mrb[0].mxu0
        %v4243 = vadd.f32 %v3021, %v4242
        %v4244 = vpop.f32.mrb[0].mxu0
        %v4245 = vadd.f32 %v3025, %v4244
        %v4246 = vpop.f32.mrb[0].mxu0
        %v4247 = vadd.f32 %v3021, %v4246
        %v4248 = vpop.f32.mrb[0].mxu0
        %v4249 = vadd.f32 %v3025, %v4248
        %4250 = vmatprep.mubr.bf16.mxu0 0
        %4251 = vmatmul.mubr.bf16.gmra.mrb[0].mxu0 %v2919
        %v4252 = vpop.f32.mrb[0].mxu0
        %v4253 = vadd.f32 %v3021, %v4252
        %v4254 = vpop.f32.mrb[0].mxu0
        %v4255 = vadd.f32 %v3025, %v4254
        %v4256 = vpop.f32.mrb[0].mxu0
        %v4257 = vadd.f32 %v3021, %v4256
        %v4258 = vpop.f32.mrb[0].mxu0
        %v4259 = vadd.f32 %v3025, %v4258
        %4260 = vmatprep.mubr.bf16.mxu0 0
        %4261 = vmatmul.mubr.bf16.gmra.mrb[0].mxu0 %v2920
        %v4262 = vpop.f32.mrb[0].mxu0
        %v4263 = vadd.f32 %v3021, %v4262
        %v4264 = vpop.f32.mrb[0].mxu0
        %v4265 = vadd.f32 %v3025, %v4264
        %v4266 = vpop.f32.mrb[0].mxu0
        %v4267 = vadd.f32 %v3021, %v4266
        %v4268 = vpop.f32.mrb[0].mxu0
        %v4269 = vadd.f32 %v3025, %v4268
        %4270 = vmatprep.mubr.bf16.mxu0 0
        %4271 = vmatmul.mubr.bf16.gmra.mrb[0].mxu0 %v2921
        %v4272 = vpop.f32.mrb[0].mxu0
        %v4273 = vadd.f32 %v3021, %v4272
        %v4274 = vpop.f32.mrb[0].mxu0
        %v4275 = vadd.f32 %v3025, %v4274
        %v4276 = vpop.f32.mrb[0].mxu0
        %v4277 = vadd.f32 %v3021, %v4276
        %v4278 = vpop.f32.mrb[0].mxu0
        %v4279 = vadd.f32 %v3025, %v4278
        %4280 = vmatprep.mubr.bf16.mxu0 0
        %4281 = vmatmul.mubr.bf16.gmra.mrb[0].mxu0 %v2922
        %v4282 = vpop.f32.mrb[0].mxu0
        %v4283 = vadd.f32 %v3021, %v4282
        %v4284 = vpop.f32.mrb[0].mxu0
        %v4285 = vadd.f32 %v3025, %v4284
        %v4286 = vpop.f32.mrb[0].mxu0
        %v4287 = vadd.f32 %v3021, %v4286
        %v4288 = vpop.f32.mrb[0].mxu0
        %v4289 = vadd.f32 %v3025, %v4288
        %4290 = vmatprep.mubr.bf16.mxu0 0
        %4291 = vmatmul.mubr.bf16.gmra.mrb[0].mxu0 %v2923
        %v4292 = vpop.f32.mrb[0].mxu0
        %v4293 = vadd.f32 %v3021, %v4292
        %v4294 = vpop.f32.mrb[0].mxu0
        %v4295 = vadd.f32 %v3025, %v4294
        %v4296 = vpop.f32.mrb[0].mxu0
        %v4297 = vadd.f32 %v3021, %v4296
        %v4298 = vpop.f32.mrb[0].mxu0
        %v4299 = vadd.f32 %v3025, %v4298
        %4300 = vmatprep.mubr.bf16.mxu0 0
        %4301 = vmatmul.mubr.bf16.gmra.mrb[0].mxu0 %v2924
        %v4302 = vpop.f32.mrb[0].mxu0
        %v4303 = vadd.f32 %v3021, %v4302
        %v4304 = vpop.f32.mrb[0].mxu0
        %v4305 = vadd.f32 %v3025, %v4304
        %v4306 = vpop.f32.mrb[0].mxu0
        %v4307 = vadd.f32 %v3021, %v4306
        %v4308 = vpop.f32.mrb[0].mxu0
        %v4309 = vadd.f32 %v3025, %v4308
        %4310 = vmatprep.mubr.bf16.mxu0 0
        %4311 = vmatmul.mubr.bf16.gmra.mrb[0].mxu0 %v2925
        %v4312 = vpop.f32.mrb[0].mxu0
        %v4313 = vadd.f32 %v3021, %v4312
        %v4314 = vpop.f32.mrb[0].mxu0
        %v4315 = vadd.f32 %v3025, %v4314
        %v4316 = vpop.f32.mrb[0].mxu0
        %v4317 = vadd.f32 %v3021, %v4316
        %v4318 = vpop.f32.mrb[0].mxu0
        %v4319 = vadd.f32 %v3025, %v4318
        %4320 = vmatprep.mubr.bf16.mxu0 0
        %4321 = vmatmul.mubr.bf16.gmra.mrb[0].mxu0 %v2926
        %v4322 = vpop.f32.mrb[0].mxu0
        %v4323 = vadd.f32 %v3021, %v4322
        %v4324 = vpop.f32.mrb[0].mxu0
        %v4325 = vadd.f32 %v3025, %v4324
        %v4326 = vpop.f32.mrb[0].mxu0
        %v4327 = vadd.f32 %v3021, %v4326
        %v4328 = vpop.f32.mrb[0].mxu0
        %v4329 = vadd.f32 %v3025, %v4328
        %4330 = vmatprep.mubr.bf16.mxu0 0
        %4331 = vmatmul.mubr.bf16.gmra.mrb[0].mxu0 %v2927
        %v4332 = vpop.f32.mrb[0].mxu0
        %v4333 = vadd.f32 %v3021, %v4332
        %v4334 = vpop.f32.mrb[0].mxu0
        %v4335 = vadd.f32 %v3025, %v4334
        %v4336 = vpop.f32.mrb[0].mxu0
        %v4337 = vadd.f32 %v3021, %v4336
        %v4338 = vpop.f32.mrb[0].mxu0
        %v4339 = vadd.f32 %v3025, %v4338
        %4340 = vmatprep.mubr.bf16.mxu0 0
        %4341 = vmatmul.mubr.bf16.gmra.mrb[0].mxu0 %v2928
        %v4342 = vpop.f32.mrb[0].mxu0
        %v4343 = vadd.f32 %v3021, %v4342
        %v4344 = vpop.f32.mrb[0].mxu0
        %v4345 = vadd.f32 %v3025, %v4344
        %v4346 = vpop.f32.mrb[0].mxu0
        %v4347 = vadd.f32 %v3021, %v4346
        %v4348 = vpop.f32.mrb[0].mxu0
        %v4349 = vadd.f32 %v3025, %v4348
        %4350 = vmatprep.mubr.bf16.mxu0 0
        %4351 = vmatmul.mubr.bf16.gmra.mrb[0].mxu0 %v2929
        %v4352 = vpop.f32.mrb[0].mxu0
        %v4353 = vadd.f32 %v3021, %v4352
        %v4354 = vpop.f32.mrb[0].mxu0
        %v4355 = vadd.f32 %v3025, %v4354
        %v4356 = vpop.f32.mrb[0].mxu0
        %v4357 = vadd.f32 %v3021, %v4356
        %v4358 = vpop.f32.mrb[0].mxu0
        %v4359 = vadd.f32 %v3025, %v4358
        %4360 = vmatprep.mubr.bf16.mxu0 0
        %4361 = vmatmul.mubr.bf16.gmra.mrb[0].mxu0 %v2930
        %v4362 = vpop.f32.mrb[0].mxu0
        %v4363 = vadd.f32 %v3021, %v4362
        %v4364 = vpop.f32.mrb[0].mxu0
        %v4365 = vadd.f32 %v3025, %v4364
        %v4366 = vpop.f32.mrb[0].mxu0
        %v4367 = vadd.f32 %v3021, %v4366
        %v4368 = vpop.f32.mrb[0].mxu0
        %v4369 = vadd.f32 %v3025, %v4368
        %4370 = vmatprep.mubr.bf16.mxu0 0
        %4371 = vmatmul.mubr.bf16.gmra.mrb[0].mxu0 %v2931
        %v4372 = vpop.f32.mrb[0].mxu0
        %v4373 = vadd.f32 %v3021, %v4372
        %v4374 = vpop.f32.mrb[0].mxu0
        %v4375 = vadd.f32 %v3025, %v4374
        %v4376 = vpop.f32.mrb[0].mxu0
        %v4377 = vadd.f32 %v3021, %v4376
        %v4378 = vpop.f32.mrb[0].mxu0
        %v4379 = vadd.f32 %v3025, %v4378
        %4380 = vmatprep.mubr.bf16.mxu0 0
        %4381 = vmatmul.mubr.bf16.gmra.mrb[0].mxu0 %v2932
        %v4382 = vpop.f32.mrb[0].mxu0
        %v4383 = vadd.f32 %v3021, %v4382
        %v4384 = vpop.f32.mrb[0].mxu0
        %v4385 = vadd.f32 %v3025, %v4384
        %v4386 = vpop.f32.mrb[0].mxu0
        %v4387 = vadd.f32 %v3021, %v4386
        %v4388 = vpop.f32.mrb[0].mxu0
        %v4389 = vadd.f32 %v3025, %v4388
        %4390 = vmatprep.mubr.bf16.mxu0 0
        %4391 = vmatmul.mubr.bf16.gmra.mrb[0].mxu0 %v2933
        %v4392 = vpop.f32.mrb[0].mxu0
        %v4393 = vadd.f32 %v3021, %v4392
        %v4394 = vpop.f32.mrb[0].mxu0
        %v4395 = vadd.f32 %v3025, %v4394
        %v4396 = vpop.f32.mrb[0].mxu0
        %v4397 = vadd.f32 %v3021, %v4396
        %v4398 = vpop.f32.mrb[0].mxu0
        %v4399 = vadd.f32 %v3025, %v4398
        %4400 = vmatprep.mubr.bf16.mxu0 0
        %4401 = vmatmul.mubr.bf16.gmra.mrb[0].mxu0 %v2934
        %v4402 = vpop.f32.mrb[0].mxu0
        %v4403 = vadd.f32 %v3021, %v4402
        %v4404 = vpop.f32.mrb[0].mxu0
        %v4405 = vadd.f32 %v3025, %v4404
        %v4406 = vpop.f32.mrb[0].mxu0
        %v4407 = vadd.f32 %v3021, %v4406
        %v4408 = vpop.f32.mrb[0].mxu0
        %v4409 = vadd.f32 %v3025, %v4408
        %4410 = vmatprep.mubr.bf16.mxu0 0
        %4411 = vmatmul.mubr.bf16.gmra.mrb[0].mxu0 %v2935
        %v4412 = vpop.f32.mrb[0].mxu0
        %v4413 = vadd.f32 %v3021, %v4412
        %v4414 = vpop.f32.mrb[0].mxu0
        %v4415 = vadd.f32 %v3025, %v4414
        %v4416 = vpop.f32.mrb[0].mxu0
        %v4417 = vadd.f32 %v3021, %v4416
        %v4418 = vpop.f32.mrb[0].mxu0
        %v4419 = vadd.f32 %v3025, %v4418
        %4420 = vdwg.mxu0
        %4421 = vmatprep.subr.bf16.mxu0 %v3241
        %4422 = vmatpush1.bf16.msra.mxu0 %v3240
        %4423 = vmatprep.subr.bf16.mxu0 %v3249
        %4424 = vmatpush1.bf16.msra.mxu0 %v3248
        %4425 = vmatprep.subr.bf16.mxu0 %v3257
        %4426 = vmatpush1.bf16.msra.mxu0 %v3256
        %4427 = vmatprep.subr.bf16.mxu0 %v3265
        %4428 = vmatpush1.bf16.msra.mxu0 %v3264
        %4429 = vmatprep.subr.bf16.mxu0 %v3273
        %4430 = vmatpush1.bf16.msra.mxu0 %v3272
        %4431 = vmatprep.subr.bf16.mxu0 %v3281
        %4432 = vmatpush1.bf16.msra.mxu0 %v3280
        %4433 = vmatprep.subr.bf16.mxu0 %v3289
        %4434 = vmatpush1.bf16.msra.mxu0 %v3288
        %4435 = vmatprep.subr.bf16.mxu0 %v3297
        %4436 = vmatpush1.bf16.msra.mxu0 %v3296
        %4437 = vmatprep.subr.bf16.mxu0 0
        %4438 = vmatpush1.bf16.msra.mxu0 0
        %4439 = vmatprep.subr.bf16.mxu0 0
        %4440 = vmatpush1.bf16.msra.mxu0 0
        %4441 = vmatprep.subr.bf16.mxu0 0
        %4442 = vmatpush1.bf16.msra.mxu0 0
        %4443 = vmatprep.subr.bf16.mxu0 0
        %4444 = vmatpush1.bf16.msra.mxu0 0
        %4445 = vmatprep.subr.bf16.mxu0 0
        %4446 = vmatpush1.bf16.msra.mxu0 0
        %4447 = vmatprep.subr.bf16.mxu0 0
        %4448 = vmatpush1.bf16.msra.mxu0 0
        %4449 = vmatprep.subr.bf16.mxu0 0
        %4450 = vmatpush1.bf16.msra.mxu0 0
        %4451 = vmatprep.subr.bf16.mxu0 0
        %4452 = vmatpush1.bf16.msra.mxu0 0
        %4453 = vmatprep.mubr.bf16.mxu0 0
        %4454 = vmatmul.mubr.bf16.gmra.mrb[0].mxu0 %v2904
        %v4455 = vpop.f32.mrb[0].mxu0
        %v4456 = vadd.f32 %v3029, %v4455
        %v4457 = vpop.f32.mrb[0].mxu0
        %v4458 = vadd.f32 %v3033, %v4457
        %v4459 = vpop.f32.mrb[0].mxu0
        %v4460 = vadd.f32 %v3029, %v4459
        %v4461 = vpop.f32.mrb[0].mxu0
        %v4462 = vadd.f32 %v3033, %v4461
        %4463 = vmatprep.mubr.bf16.mxu0 0
        %4464 = vmatmul.mubr.bf16.gmra.mrb[0].mxu0 %v2905
        %v4465 = vpop.f32.mrb[0].mxu0
        %v4466 = vadd.f32 %v3029, %v4465
        %v4467 = vpop.f32.mrb[0].mxu0
        %v4468 = vadd.f32 %v3033, %v4467
        %v4469 = vpop.f32.mrb[0].mxu0
        %v4470 = vadd.f32 %v3029, %v4469
        %v4471 = vpop.f32.mrb[0].mxu0
        %v4472 = vadd.f32 %v3033, %v4471
        %4473 = vmatprep.mubr.bf16.mxu0 0
        %4474 = vmatmul.mubr.bf16.gmra.mrb[0].mxu0 %v2906
        %v4475 = vpop.f32.mrb[0].mxu0
        %v4476 = vadd.f32 %v3029, %v4475
        %v4477 = vpop.f32.mrb[0].mxu0
        %v4478 = vadd.f32 %v3033, %v4477
        %v4479 = vpop.f32.mrb[0].mxu0
        %v4480 = vadd.f32 %v3029, %v4479
        %v4481 = vpop.f32.mrb[0].mxu0
        %v4482 = vadd.f32 %v3033, %v4481
        %4483 = vmatprep.mubr.bf16.mxu0 0
        %4484 = vmatmul.mubr.bf16.gmra.mrb[0].mxu0 %v2907
        %v4485 = vpop.f32.mrb[0].mxu0
        %v4486 = vadd.f32 %v3029, %v4485
        %v4487 = vpop.f32.mrb[0].mxu0
        %v4488 = vadd.f32 %v3033, %v4487
        %v4489 = vpop.f32.mrb[0].mxu0
        %v4490 = vadd.f32 %v3029, %v4489
        %v4491 = vpop.f32.mrb[0].mxu0
        %v4492 = vadd.f32 %v3033, %v4491
        %4493 = vmatprep.mubr.bf16.mxu0 0
        %4494 = vmatmul.mubr.bf16.gmra.mrb[0].mxu0 %v2908
        %v4495 = vpop.f32.mrb[0].mxu0
        %v4496 = vadd.f32 %v3029, %v4495
        %v4497 = vpop.f32.mrb[0].mxu0
        %v4498 = vadd.f32 %v3033, %v4497
        %v4499 = vpop.f32.mrb[0].mxu0
        %v4500 = vadd.f32 %v3029, %v4499
        %v4501 = vpop.f32.mrb[0].mxu0
        %v4502 = vadd.f32 %v3033, %v4501
        %4503 = vmatprep.mubr.bf16.mxu0 0
        %4504 = vmatmul.mubr.bf16.gmra.mrb[0].mxu0 %v2909
        %v4505 = vpop.f32.mrb[0].mxu0
        %v4506 = vadd.f32 %v3029, %v4505
        %v4507 = vpop.f32.mrb[0].mxu0
        %v4508 = vadd.f32 %v3033, %v4507
        %v4509 = vpop.f32.mrb[0].mxu0
        %v4510 = vadd.f32 %v3029, %v4509
        %v4511 = vpop.f32.mrb[0].mxu0
        %v4512 = vadd.f32 %v3033, %v4511
        %4513 = vmatprep.mubr.bf16.mxu0 0
        %4514 = vmatmul.mubr.bf16.gmra.mrb[0].mxu0 %v2910
        %v4515 = vpop.f32.mrb[0].mxu0
        %v4516 = vadd.f32 %v3029, %v4515
        %v4517 = vpop.f32.mrb[0].mxu0
        %v4518 = vadd.f32 %v3033, %v4517
        %v4519 = vpop.f32.mrb[0].mxu0
        %v4520 = vadd.f32 %v3029, %v4519
        %v4521 = vpop.f32.mrb[0].mxu0
        %v4522 = vadd.f32 %v3033, %v4521
        %4523 = vmatprep.mubr.bf16.mxu0 0
        %4524 = vmatmul.mubr.bf16.gmra.mrb[0].mxu0 %v2911
        %v4525 = vpop.f32.mrb[0].mxu0
        %v4526 = vadd.f32 %v3029, %v4525
        %v4527 = vpop.f32.mrb[0].mxu0
        %v4528 = vadd.f32 %v3033, %v4527
        %v4529 = vpop.f32.mrb[0].mxu0
        %v4530 = vadd.f32 %v3029, %v4529
        %v4531 = vpop.f32.mrb[0].mxu0
        %v4532 = vadd.f32 %v3033, %v4531
        %4533 = vmatprep.mubr.bf16.mxu0 0
        %4534 = vmatmul.mubr.bf16.gmra.mrb[0].mxu0 %v2912
        %v4535 = vpop.f32.mrb[0].mxu0
        %v4536 = vadd.f32 %v3029, %v4535
        %v4537 = vpop.f32.mrb[0].mxu0
        %v4538 = vadd.f32 %v3033, %v4537
        %v4539 = vpop.f32.mrb[0].mxu0
        %v4540 = vadd.f32 %v3029, %v4539
        %v4541 = vpop.f32.mrb[0].mxu0
        %v4542 = vadd.f32 %v3033, %v4541
        %4543 = vmatprep.mubr.bf16.mxu0 0
        %4544 = vmatmul.mubr.bf16.gmra.mrb[0].mxu0 %v2913
        %v4545 = vpop.f32.mrb[0].mxu0
        %v4546 = vadd.f32 %v3029, %v4545
        %v4547 = vpop.f32.mrb[0].mxu0
        %v4548 = vadd.f32 %v3033, %v4547
        %v4549 = vpop.f32.mrb[0].mxu0
        %v4550 = vadd.f32 %v3029, %v4549
        %v4551 = vpop.f32.mrb[0].mxu0
        %v4552 = vadd.f32 %v3033, %v4551
        %4553 = vmatprep.mubr.bf16.mxu0 0
        %4554 = vmatmul.mubr.bf16.gmra.mrb[0].mxu0 %v2914
        %v4555 = vpop.f32.mrb[0].mxu0
        %v4556 = vadd.f32 %v3029, %v4555
        %v4557 = vpop.f32.mrb[0].mxu0
        %v4558 = vadd.f32 %v3033, %v4557
        %v4559 = vpop.f32.mrb[0].mxu0
        %v4560 = vadd.f32 %v3029, %v4559
        %v4561 = vpop.f32.mrb[0].mxu0
        %v4562 = vadd.f32 %v3033, %v4561
        %4563 = vmatprep.mubr.bf16.mxu0 0
        %4564 = vmatmul.mubr.bf16.gmra.mrb[0].mxu0 %v2915
        %v4565 = vpop.f32.mrb[0].mxu0
        %v4566 = vadd.f32 %v3029, %v4565
        %v4567 = vpop.f32.mrb[0].mxu0
        %v4568 = vadd.f32 %v3033, %v4567
        %v4569 = vpop.f32.mrb[0].mxu0
        %v4570 = vadd.f32 %v3029, %v4569
        %v4571 = vpop.f32.mrb[0].mxu0
        %v4572 = vadd.f32 %v3033, %v4571
        %4573 = vmatprep.mubr.bf16.mxu0 0
        %4574 = vmatmul.mubr.bf16.gmra.mrb[0].mxu0 %v2916
        %v4575 = vpop.f32.mrb[0].mxu0
        %v4576 = vadd.f32 %v3029, %v4575
        %v4577 = vpop.f32.mrb[0].mxu0
        %v4578 = vadd.f32 %v3033, %v4577
        %v4579 = vpop.f32.mrb[0].mxu0
        %v4580 = vadd.f32 %v3029, %v4579
        %v4581 = vpop.f32.mrb[0].mxu0
        %v4582 = vadd.f32 %v3033, %v4581
        %4583 = vmatprep.mubr.bf16.mxu0 0
        %4584 = vmatmul.mubr.bf16.gmra.mrb[0].mxu0 %v2917
        %v4585 = vpop.f32.mrb[0].mxu0
        %v4586 = vadd.f32 %v3029, %v4585
        %v4587 = vpop.f32.mrb[0].mxu0
        %v4588 = vadd.f32 %v3033, %v4587
        %v4589 = vpop.f32.mrb[0].mxu0
        %v4590 = vadd.f32 %v3029, %v4589
        %v4591 = vpop.f32.mrb[0].mxu0
        %v4592 = vadd.f32 %v3033, %v4591
        %4593 = vmatprep.mubr.bf16.mxu0 0
        %4594 = vmatmul.mubr.bf16.gmra.mrb[0].mxu0 %v2918
        %v4595 = vpop.f32.mrb[0].mxu0
        %v4596 = vadd.f32 %v3029, %v4595
        %v4597 = vpop.f32.mrb[0].mxu0
        %v4598 = vadd.f32 %v3033, %v4597
        %v4599 = vpop.f32.mrb[0].mxu0
        %v4600 = vadd.f32 %v3029, %v4599
        %v4601 = vpop.f32.mrb[0].mxu0
        %v4602 = vadd.f32 %v3033, %v4601
        %4603 = vmatprep.mubr.bf16.mxu0 0
        %4604 = vmatmul.mubr.bf16.gmra.mrb[0].mxu0 %v2919
        %v4605 = vpop.f32.mrb[0].mxu0
        %v4606 = vadd.f32 %v3029, %v4605
        %v4607 = vpop.f32.mrb[0].mxu0
        %v4608 = vadd.f32 %v3033, %v4607
        %v4609 = vpop.f32.mrb[0].mxu0
        %v4610 = vadd.f32 %v3029, %v4609
        %v4611 = vpop.f32.mrb[0].mxu0
        %v4612 = vadd.f32 %v3033, %v4611
        %4613 = vmatprep.mubr.bf16.mxu0 0
        %4614 = vmatmul.mubr.bf16.gmra.mrb[0].mxu0 %v2920
        %v4615 = vpop.f32.mrb[0].mxu0
        %v4616 = vadd.f32 %v3029, %v4615
        %v4617 = vpop.f32.mrb[0].mxu0
        %v4618 = vadd.f32 %v3033, %v4617
        %v4619 = vpop.f32.mrb[0].mxu0
        %v4620 = vadd.f32 %v3029, %v4619
        %v4621 = vpop.f32.mrb[0].mxu0
        %v4622 = vadd.f32 %v3033, %v4621
        %4623 = vmatprep.mubr.bf16.mxu0 0
        %4624 = vmatmul.mubr.bf16.gmra.mrb[0].mxu0 %v2921
        %v4625 = vpop.f32.mrb[0].mxu0
        %v4626 = vadd.f32 %v3029, %v4625
        %v4627 = vpop.f32.mrb[0].mxu0
        %v4628 = vadd.f32 %v3033, %v4627
        %v4629 = vpop.f32.mrb[0].mxu0
        %v4630 = vadd.f32 %v3029, %v4629
        %v4631 = vpop.f32.mrb[0].mxu0
        %v4632 = vadd.f32 %v3033, %v4631
        %4633 = vmatprep.mubr.bf16.mxu0 0
        %4634 = vmatmul.mubr.bf16.gmra.mrb[0].mxu0 %v2922
        %v4635 = vpop.f32.mrb[0].mxu0
        %v4636 = vadd.f32 %v3029, %v4635
        %v4637 = vpop.f32.mrb[0].mxu0
        %v4638 = vadd.f32 %v3033, %v4637
        %v4639 = vpop.f32.mrb[0].mxu0
        %v4640 = vadd.f32 %v3029, %v4639
        %v4641 = vpop.f32.mrb[0].mxu0
        %v4642 = vadd.f32 %v3033, %v4641
        %4643 = vmatprep.mubr.bf16.mxu0 0
        %4644 = vmatmul.mubr.bf16.gmra.mrb[0].mxu0 %v2923
        %v4645 = vpop.f32.mrb[0].mxu0
        %v4646 = vadd.f32 %v3029, %v4645
        %v4647 = vpop.f32.mrb[0].mxu0
        %v4648 = vadd.f32 %v3033, %v4647
        %v4649 = vpop.f32.mrb[0].mxu0
        %v4650 = vadd.f32 %v3029, %v4649
        %v4651 = vpop.f32.mrb[0].mxu0
        %v4652 = vadd.f32 %v3033, %v4651
        %4653 = vmatprep.mubr.bf16.mxu0 0
        %4654 = vmatmul.mubr.bf16.gmra.mrb[0].mxu0 %v2924
        %v4655 = vpop.f32.mrb[0].mxu0
        %v4656 = vadd.f32 %v3029, %v4655
        %v4657 = vpop.f32.mrb[0].mxu0
        %v4658 = vadd.f32 %v3033, %v4657
        %v4659 = vpop.f32.mrb[0].mxu0
        %v4660 = vadd.f32 %v3029, %v4659
        %v4661 = vpop.f32.mrb[0].mxu0
        %v4662 = vadd.f32 %v3033, %v4661
        %4663 = vmatprep.mubr.bf16.mxu0 0
        %4664 = vmatmul.mubr.bf16.gmra.mrb[0].mxu0 %v2925
        %v4665 = vpop.f32.mrb[0].mxu0
        %v4666 = vadd.f32 %v3029, %v4665
        %v4667 = vpop.f32.mrb[0].mxu0
        %v4668 = vadd.f32 %v3033, %v4667
        %v4669 = vpop.f32.mrb[0].mxu0
        %v4670 = vadd.f32 %v3029, %v4669
        %v4671 = vpop.f32.mrb[0].mxu0
        %v4672 = vadd.f32 %v3033, %v4671
        %4673 = vmatprep.mubr.bf16.mxu0 0
        %4674 = vmatmul.mubr.bf16.gmra.mrb[0].mxu0 %v2926
        %v4675 = vpop.f32.mrb[0].mxu0
        %v4676 = vadd.f32 %v3029, %v4675
        %v4677 = vpop.f32.mrb[0].mxu0
        %v4678 = vadd.f32 %v3033, %v4677
        %v4679 = vpop.f32.mrb[0].mxu0
        %v4680 = vadd.f32 %v3029, %v4679
        %v4681 = vpop.f32.mrb[0].mxu0
        %v4682 = vadd.f32 %v3033, %v4681
        %4683 = vmatprep.mubr.bf16.mxu0 0
        %4684 = vmatmul.mubr.bf16.gmra.mrb[0].mxu0 %v2927
        %v4685 = vpop.f32.mrb[0].mxu0
        %v4686 = vadd.f32 %v3029, %v4685
        %v4687 = vpop.f32.mrb[0].mxu0
        %v4688 = vadd.f32 %v3033, %v4687
        %v4689 = vpop.f32.mrb[0].mxu0
        %v4690 = vadd.f32 %v3029, %v4689
        %v4691 = vpop.f32.mrb[0].mxu0
        %v4692 = vadd.f32 %v3033, %v4691
        %4693 = vmatprep.mubr.bf16.mxu0 0
        %4694 = vmatmul.mubr.bf16.gmra.mrb[0].mxu0 %v2928
        %v4695 = vpop.f32.mrb[0].mxu0
        %v4696 = vadd.f32 %v3029, %v4695
        %v4697 = vpop.f32.mrb[0].mxu0
        %v4698 = vadd.f32 %v3033, %v4697
        %v4699 = vpop.f32.mrb[0].mxu0
        %v4700 = vadd.f32 %v3029, %v4699
        %v4701 = vpop.f32.mrb[0].mxu0
        %v4702 = vadd.f32 %v3033, %v4701
        %4703 = vmatprep.mubr.bf16.mxu0 0
        %4704 = vmatmul.mubr.bf16.gmra.mrb[0].mxu0 %v2929
        %v4705 = vpop.f32.mrb[0].mxu0
        %v4706 = vadd.f32 %v3029, %v4705
        %v4707 = vpop.f32.mrb[0].mxu0
        %v4708 = vadd.f32 %v3033, %v4707
        %v4709 = vpop.f32.mrb[0].mxu0
        %v4710 = vadd.f32 %v3029, %v4709
        %v4711 = vpop.f32.mrb[0].mxu0
        %v4712 = vadd.f32 %v3033, %v4711
        %4713 = vmatprep.mubr.bf16.mxu0 0
        %4714 = vmatmul.mubr.bf16.gmra.mrb[0].mxu0 %v2930
        %v4715 = vpop.f32.mrb[0].mxu0
        %v4716 = vadd.f32 %v3029, %v4715
        %v4717 = vpop.f32.mrb[0].mxu0
        %v4718 = vadd.f32 %v3033, %v4717
        %v4719 = vpop.f32.mrb[0].mxu0
        %v4720 = vadd.f32 %v3029, %v4719
        %v4721 = vpop.f32.mrb[0].mxu0
        %v4722 = vadd.f32 %v3033, %v4721
        %4723 = vmatprep.mubr.bf16.mxu0 0
        %4724 = vmatmul.mubr.bf16.gmra.mrb[0].mxu0 %v2931
        %v4725 = vpop.f32.mrb[0].mxu0
        %v4726 = vadd.f32 %v3029, %v4725
        %v4727 = vpop.f32.mrb[0].mxu0
        %v4728 = vadd.f32 %v3033, %v4727
        %v4729 = vpop.f32.mrb[0].mxu0
        %v4730 = vadd.f32 %v3029, %v4729
        %v4731 = vpop.f32.mrb[0].mxu0
        %v4732 = vadd.f32 %v3033, %v4731
        %4733 = vmatprep.mubr.bf16.mxu0 0
        %4734 = vmatmul.mubr.bf16.gmra.mrb[0].mxu0 %v2932
        %v4735 = vpop.f32.mrb[0].mxu0
        %v4736 = vadd.f32 %v3029, %v4735
        %v4737 = vpop.f32.mrb[0].mxu0
        %v4738 = vadd.f32 %v3033, %v4737
        %v4739 = vpop.f32.mrb[0].mxu0
        %v4740 = vadd.f32 %v3029, %v4739
        %v4741 = vpop.f32.mrb[0].mxu0
        %v4742 = vadd.f32 %v3033, %v4741
        %4743 = vmatprep.mubr.bf16.mxu0 0
        %4744 = vmatmul.mubr.bf16.gmra.mrb[0].mxu0 %v2933
        %v4745 = vpop.f32.mrb[0].mxu0
        %v4746 = vadd.f32 %v3029, %v4745
        %v4747 = vpop.f32.mrb[0].mxu0
        %v4748 = vadd.f32 %v3033, %v4747
        %v4749 = vpop.f32.mrb[0].mxu0
        %v4750 = vadd.f32 %v3029, %v4749
        %v4751 = vpop.f32.mrb[0].mxu0
        %v4752 = vadd.f32 %v3033, %v4751
        %4753 = vmatprep.mubr.bf16.mxu0 0
        %4754 = vmatmul.mubr.bf16.gmra.mrb[0].mxu0 %v2934
        %v4755 = vpop.f32.mrb[0].mxu0
        %v4756 = vadd.f32 %v3029, %v4755
        %v4757 = vpop.f32.mrb[0].mxu0
        %v4758 = vadd.f32 %v3033, %v4757
        %v4759 = vpop.f32.mrb[0].mxu0
        %v4760 = vadd.f32 %v3029, %v4759
        %v4761 = vpop.f32.mrb[0].mxu0
        %v4762 = vadd.f32 %v3033, %v4761
        %4763 = vmatprep.mubr.bf16.mxu0 0
        %4764 = vmatmul.mubr.bf16.gmra.mrb[0].mxu0 %v2935
        %v4765 = vpop.f32.mrb[0].mxu0
        %v4766 = vadd.f32 %v3029, %v4765
        %v4767 = vpop.f32.mrb[0].mxu0
        %v4768 = vadd.f32 %v3033, %v4767
        %v4769 = vpop.f32.mrb[0].mxu0
        %v4770 = vadd.f32 %v3029, %v4769
        %v4771 = vpop.f32.mrb[0].mxu0
        %v4772 = vadd.f32 %v3033, %v4771
        %4773 = vdwg.mxu0
        %v4774 = vmax.f32 %v3397, 0.0
        %v4775 = vmax.f32 %v3399, 0.0
        %v4776 = vmax.f32 %v3750, 0.0
        %v4777 = vmax.f32 %v3752, 0.0
        %v4778 = vmax.f32 %v4103, 0.0
        %v4779 = vmax.f32 %v4105, 0.0
        %v4780 = vmax.f32 %v4456, 0.0
        %v4781 = vmax.f32 %v4458, 0.0
        %v4782 = vmax.f32 %v3401, 0.0
        %v4783 = vmax.f32 %v3403, 0.0
        %v4784 = vmax.f32 %v3754, 0.0
        %v4785 = vmax.f32 %v3756, 0.0
        %v4786 = vmax.f32 %v4107, 0.0
        %v4787 = vmax.f32 %v4109, 0.0
        %v4788 = vmax.f32 %v4460, 0.0
        %v4789 = vmax.f32 %v4462, 0.0
        %v4790 = vmax.f32 %v3407, 0.0
        %v4791 = vmax.f32 %v3409, 0.0
        %v4792 = vmax.f32 %v3760, 0.0
        %v4793 = vmax.f32 %v3762, 0.0
        %v4794 = vmax.f32 %v4113, 0.0
        %v4795 = vmax.f32 %v4115, 0.0
        %v4796 = vmax.f32 %v4466, 0.0
        %v4797 = vmax.f32 %v4468, 0.0
        %v4798 = vmax.f32 %v3411, 0.0
        %v4799 = vmax.f32 %v3413, 0.0
        %v4800 = vmax.f32 %v3764, 0.0
        %v4801 = vmax.f32 %v3766, 0.0
        %v4802 = vmax.f32 %v4117, 0.0
        %v4803 = vmax.f32 %v4119, 0.0
        %v4804 = vmax.f32 %v4470, 0.0
        %v4805 = vmax.f32 %v4472, 0.0
        %v4806 = vmax.f32 %v3417, 0.0
        %v4807 = vmax.f32 %v3419, 0.0
        %v4808 = vmax.f32 %v3770, 0.0
        %v4809 = vmax.f32 %v3772, 0.0
        %v4810 = vmax.f32 %v4123, 0.0
        %v4811 = vmax.f32 %v4125, 0.0
        %v4812 = vmax.f32 %v4476, 0.0
        %v4813 = vmax.f32 %v4478, 0.0
        %v4814 = vmax.f32 %v3421, 0.0
        %v4815 = vmax.f32 %v3423, 0.0
        %v4816 = vmax.f32 %v3774, 0.0
        %v4817 = vmax.f32 %v3776, 0.0
        %v4818 = vmax.f32 %v4127, 0.0
        %v4819 = vmax.f32 %v4129, 0.0
        %v4820 = vmax.f32 %v4480, 0.0
        %v4821 = vmax.f32 %v4482, 0.0
        %v4822 = vmax.f32 %v3427, 0.0
        %v4823 = vmax.f32 %v3429, 0.0
        %v4824 = vmax.f32 %v3780, 0.0
        %v4825 = vmax.f32 %v3782, 0.0
        %v4826 = vmax.f32 %v4133, 0.0
        %v4827 = vmax.f32 %v4135, 0.0
        %v4828 = vmax.f32 %v4486, 0.0
        %v4829 = vmax.f32 %v4488, 0.0
        %v4830 = vmax.f32 %v3431, 0.0
        %v4831 = vmax.f32 %v3433, 0.0
        %v4832 = vmax.f32 %v3784, 0.0
        %v4833 = vmax.f32 %v3786, 0.0
        %v4834 = vmax.f32 %v4137, 0.0
        %v4835 = vmax.f32 %v4139, 0.0
        %v4836 = vmax.f32 %v4490, 0.0
        %v4837 = vmax.f32 %v4492, 0.0
        %v4838 = vmax.f32 %v3437, 0.0
        %v4839 = vmax.f32 %v3439, 0.0
        %v4840 = vmax.f32 %v3790, 0.0
        %v4841 = vmax.f32 %v3792, 0.0
        %v4842 = vmax.f32 %v4143, 0.0
        %v4843 = vmax.f32 %v4145, 0.0
        %v4844 = vmax.f32 %v4496, 0.0
        %v4845 = vmax.f32 %v4498, 0.0
        %v4846 = vmax.f32 %v3441, 0.0
        %v4847 = vmax.f32 %v3443, 0.0
        %v4848 = vmax.f32 %v3794, 0.0
        %v4849 = vmax.f32 %v3796, 0.0
        %v4850 = vmax.f32 %v4147, 0.0
        %v4851 = vmax.f32 %v4149, 0.0
        %v4852 = vmax.f32 %v4500, 0.0
        %v4853 = vmax.f32 %v4502, 0.0
        %v4854 = vmax.f32 %v3447, 0.0
        %v4855 = vmax.f32 %v3449, 0.0
        %v4856 = vmax.f32 %v3800, 0.0
        %v4857 = vmax.f32 %v3802, 0.0
        %v4858 = vmax.f32 %v4153, 0.0
        %v4859 = vmax.f32 %v4155, 0.0
        %v4860 = vmax.f32 %v4506, 0.0
        %v4861 = vmax.f32 %v4508, 0.0
        %v4862 = vmax.f32 %v3451, 0.0
        %v4863 = vmax.f32 %v3453, 0.0
        %v4864 = vmax.f32 %v3804, 0.0
        %v4865 = vmax.f32 %v3806, 0.0
        %v4866 = vmax.f32 %v4157, 0.0
        %v4867 = vmax.f32 %v4159, 0.0
        %v4868 = vmax.f32 %v4510, 0.0
        %v4869 = vmax.f32 %v4512, 0.0
        %v4870 = vmax.f32 %v3457, 0.0
        %v4871 = vmax.f32 %v3459, 0.0
        %v4872 = vmax.f32 %v3810, 0.0
        %v4873 = vmax.f32 %v3812, 0.0
        %v4874 = vmax.f32 %v4163, 0.0
        %v4875 = vmax.f32 %v4165, 0.0
        %v4876 = vmax.f32 %v4516, 0.0
        %v4877 = vmax.f32 %v4518, 0.0
        %v4878 = vmax.f32 %v3461, 0.0
        %v4879 = vmax.f32 %v3463, 0.0
        %v4880 = vmax.f32 %v3814, 0.0
        %v4881 = vmax.f32 %v3816, 0.0
        %v4882 = vmax.f32 %v4167, 0.0
        %v4883 = vmax.f32 %v4169, 0.0
        %v4884 = vmax.f32 %v4520, 0.0
        %v4885 = vmax.f32 %v4522, 0.0
        %v4886 = vmax.f32 %v3467, 0.0
        %v4887 = vmax.f32 %v3469, 0.0
        %v4888 = vmax.f32 %v3820, 0.0
        %v4889 = vmax.f32 %v3822, 0.0
        %v4890 = vmax.f32 %v4173, 0.0
        %v4891 = vmax.f32 %v4175, 0.0
        %v4892 = vmax.f32 %v4526, 0.0
        %v4893 = vmax.f32 %v4528, 0.0
        %v4894 = vmax.f32 %v3471, 0.0
        %v4895 = vmax.f32 %v3473, 0.0
        %v4896 = vmax.f32 %v3824, 0.0
        %v4897 = vmax.f32 %v3826, 0.0
        %v4898 = vmax.f32 %v4177, 0.0
        %v4899 = vmax.f32 %v4179, 0.0
        %v4900 = vmax.f32 %v4530, 0.0
        %v4901 = vmax.f32 %v4532, 0.0
        %v4902 = vmax.f32 %v3477, 0.0
        %v4903 = vmax.f32 %v3479, 0.0
        %v4904 = vmax.f32 %v3830, 0.0
        %v4905 = vmax.f32 %v3832, 0.0
        %v4906 = vmax.f32 %v4183, 0.0
        %v4907 = vmax.f32 %v4185, 0.0
        %v4908 = vmax.f32 %v4536, 0.0
        %v4909 = vmax.f32 %v4538, 0.0
        %v4910 = vmax.f32 %v3481, 0.0
        %v4911 = vmax.f32 %v3483, 0.0
        %v4912 = vmax.f32 %v3834, 0.0
        %v4913 = vmax.f32 %v3836, 0.0
        %v4914 = vmax.f32 %v4187, 0.0
        %v4915 = vmax.f32 %v4189, 0.0
        %v4916 = vmax.f32 %v4540, 0.0
        %v4917 = vmax.f32 %v4542, 0.0
        %v4918 = vmax.f32 %v3487, 0.0
        %v4919 = vmax.f32 %v3489, 0.0
        %v4920 = vmax.f32 %v3840, 0.0
        %v4921 = vmax.f32 %v3842, 0.0
        %v4922 = vmax.f32 %v4193, 0.0
        %v4923 = vmax.f32 %v4195, 0.0
        %v4924 = vmax.f32 %v4546, 0.0
        %v4925 = vmax.f32 %v4548, 0.0
        %v4926 = vmax.f32 %v3491, 0.0
        %v4927 = vmax.f32 %v3493, 0.0
        %v4928 = vmax.f32 %v3844, 0.0
        %v4929 = vmax.f32 %v3846, 0.0
        %v4930 = vmax.f32 %v4197, 0.0
        %v4931 = vmax.f32 %v4199, 0.0
        %v4932 = vmax.f32 %v4550, 0.0
        %v4933 = vmax.f32 %v4552, 0.0
        %v4934 = vmax.f32 %v3497, 0.0
        %v4935 = vmax.f32 %v3499, 0.0
        %v4936 = vmax.f32 %v3850, 0.0
        %v4937 = vmax.f32 %v3852, 0.0
        %v4938 = vmax.f32 %v4203, 0.0
        %v4939 = vmax.f32 %v4205, 0.0
        %v4940 = vmax.f32 %v4556, 0.0
        %v4941 = vmax.f32 %v4558, 0.0
        %v4942 = vmax.f32 %v3501, 0.0
        %v4943 = vmax.f32 %v3503, 0.0
        %v4944 = vmax.f32 %v3854, 0.0
        %v4945 = vmax.f32 %v3856, 0.0
        %v4946 = vmax.f32 %v4207, 0.0
        %v4947 = vmax.f32 %v4209, 0.0
        %v4948 = vmax.f32 %v4560, 0.0
        %v4949 = vmax.f32 %v4562, 0.0
        %v4950 = vmax.f32 %v3507, 0.0
        %v4951 = vmax.f32 %v3509, 0.0
        %v4952 = vmax.f32 %v3860, 0.0
        %v4953 = vmax.f32 %v3862, 0.0
        %v4954 = vmax.f32 %v4213, 0.0
        %v4955 = vmax.f32 %v4215, 0.0
        %v4956 = vmax.f32 %v4566, 0.0
        %v4957 = vmax.f32 %v4568, 0.0
        %v4958 = vmax.f32 %v3511, 0.0
        %v4959 = vmax.f32 %v3513, 0.0
        %v4960 = vmax.f32 %v3864, 0.0
        %v4961 = vmax.f32 %v3866, 0.0
        %v4962 = vmax.f32 %v4217, 0.0
        %v4963 = vmax.f32 %v4219, 0.0
        %v4964 = vmax.f32 %v4570, 0.0
        %v4965 = vmax.f32 %v4572, 0.0
        %v4966 = vmax.f32 %v3517, 0.0
        %v4967 = vmax.f32 %v3519, 0.0
        %v4968 = vmax.f32 %v3870, 0.0
        %v4969 = vmax.f32 %v3872, 0.0
        %v4970 = vmax.f32 %v4223, 0.0
        %v4971 = vmax.f32 %v4225, 0.0
        %v4972 = vmax.f32 %v4576, 0.0
        %v4973 = vmax.f32 %v4578, 0.0
        %v4974 = vmax.f32 %v3521, 0.0
        %v4975 = vmax.f32 %v3523, 0.0
        %v4976 = vmax.f32 %v3874, 0.0
        %v4977 = vmax.f32 %v3876, 0.0
        %v4978 = vmax.f32 %v4227, 0.0
        %v4979 = vmax.f32 %v4229, 0.0
        %v4980 = vmax.f32 %v4580, 0.0
        %v4981 = vmax.f32 %v4582, 0.0
        %v4982 = vmax.f32 %v3527, 0.0
        %v4983 = vmax.f32 %v3529, 0.0
        %v4984 = vmax.f32 %v3880, 0.0
        %v4985 = vmax.f32 %v3882, 0.0
        %v4986 = vmax.f32 %v4233, 0.0
        %v4987 = vmax.f32 %v4235, 0.0
        %v4988 = vmax.f32 %v4586, 0.0
        %v4989 = vmax.f32 %v4588, 0.0
        %v4990 = vmax.f32 %v3531, 0.0
        %v4991 = vmax.f32 %v3533, 0.0
        %v4992 = vmax.f32 %v3884, 0.0
        %v4993 = vmax.f32 %v3886, 0.0
        %v4994 = vmax.f32 %v4237, 0.0
        %v4995 = vmax.f32 %v4239, 0.0
        %v4996 = vmax.f32 %v4590, 0.0
        %v4997 = vmax.f32 %v4592, 0.0
        %v4998 = vmax.f32 %v3537, 0.0
        %v4999 = vmax.f32 %v3539, 0.0
        %v5000 = vmax.f32 %v3890, 0.0
        %v5001 = vmax.f32 %v3892, 0.0
        %v5002 = vmax.f32 %v4243, 0.0
        %v5003 = vmax.f32 %v4245, 0.0
        %v5004 = vmax.f32 %v4596, 0.0
        %v5005 = vmax.f32 %v4598, 0.0
        %v5006 = vmax.f32 %v3541, 0.0
        %v5007 = vmax.f32 %v3543, 0.0
        %v5008 = vmax.f32 %v3894, 0.0
        %v5009 = vmax.f32 %v3896, 0.0
        %v5010 = vmax.f32 %v4247, 0.0
        %v5011 = vmax.f32 %v4249, 0.0
        %v5012 = vmax.f32 %v4600, 0.0
        %v5013 = vmax.f32 %v4602, 0.0
        %v5014 = vmax.f32 %v3547, 0.0
        %v5015 = vmax.f32 %v3549, 0.0
        %v5016 = vmax.f32 %v3900, 0.0
        %v5017 = vmax.f32 %v3902, 0.0
        %v5018 = vmax.f32 %v4253, 0.0
        %v5019 = vmax.f32 %v4255, 0.0
        %v5020 = vmax.f32 %v4606, 0.0
        %v5021 = vmax.f32 %v4608, 0.0
        %v5022 = vmax.f32 %v3551, 0.0
        %v5023 = vmax.f32 %v3553, 0.0
        %v5024 = vmax.f32 %v3904, 0.0
        %v5025 = vmax.f32 %v3906, 0.0
        %v5026 = vmax.f32 %v4257, 0.0
        %v5027 = vmax.f32 %v4259, 0.0
        %v5028 = vmax.f32 %v4610, 0.0
        %v5029 = vmax.f32 %v4612, 0.0
        %v5030 = vmax.f32 %v3557, 0.0
        %v5031 = vmax.f32 %v3559, 0.0
        %v5032 = vmax.f32 %v3910, 0.0
        %v5033 = vmax.f32 %v3912, 0.0
        %v5034 = vmax.f32 %v4263, 0.0
        %v5035 = vmax.f32 %v4265, 0.0
        %v5036 = vmax.f32 %v4616, 0.0
        %v5037 = vmax.f32 %v4618, 0.0
        %v5038 = vmax.f32 %v3561, 0.0
        %v5039 = vmax.f32 %v3563, 0.0
        %v5040 = vmax.f32 %v3914, 0.0
        %v5041 = vmax.f32 %v3916, 0.0
        %v5042 = vmax.f32 %v4267, 0.0
        %v5043 = vmax.f32 %v4269, 0.0
        %v5044 = vmax.f32 %v4620, 0.0
        %v5045 = vmax.f32 %v4622, 0.0
        %v5046 = vmax.f32 %v3567, 0.0
        %v5047 = vmax.f32 %v3569, 0.0
        %v5048 = vmax.f32 %v3920, 0.0
        %v5049 = vmax.f32 %v3922, 0.0
        %v5050 = vmax.f32 %v4273, 0.0
        %v5051 = vmax.f32 %v4275, 0.0
        %v5052 = vmax.f32 %v4626, 0.0
        %v5053 = vmax.f32 %v4628, 0.0
        %v5054 = vmax.f32 %v3571, 0.0
        %v5055 = vmax.f32 %v3573, 0.0
        %v5056 = vmax.f32 %v3924, 0.0
        %v5057 = vmax.f32 %v3926, 0.0
        %v5058 = vmax.f32 %v4277, 0.0
        %v5059 = vmax.f32 %v4279, 0.0
        %v5060 = vmax.f32 %v4630, 0.0
        %v5061 = vmax.f32 %v4632, 0.0
        %v5062 = vmax.f32 %v3577, 0.0
        %v5063 = vmax.f32 %v3579, 0.0
        %v5064 = vmax.f32 %v3930, 0.0
        %v5065 = vmax.f32 %v3932, 0.0
        %v5066 = vmax.f32 %v4283, 0.0
        %v5067 = vmax.f32 %v4285, 0.0
        %v5068 = vmax.f32 %v4636, 0.0
        %v5069 = vmax.f32 %v4638, 0.0
        %v5070 = vmax.f32 %v3581, 0.0
        %v5071 = vmax.f32 %v3583, 0.0
        %v5072 = vmax.f32 %v3934, 0.0
        %v5073 = vmax.f32 %v3936, 0.0
        %v5074 = vmax.f32 %v4287, 0.0
        %v5075 = vmax.f32 %v4289, 0.0
        %v5076 = vmax.f32 %v4640, 0.0
        %v5077 = vmax.f32 %v4642, 0.0
        %v5078 = vmax.f32 %v3587, 0.0
        %v5079 = vmax.f32 %v3589, 0.0
        %v5080 = vmax.f32 %v3940, 0.0
        %v5081 = vmax.f32 %v3942, 0.0
        %v5082 = vmax.f32 %v4293, 0.0
        %v5083 = vmax.f32 %v4295, 0.0
        %v5084 = vmax.f32 %v4646, 0.0
        %v5085 = vmax.f32 %v4648, 0.0
        %v5086 = vmax.f32 %v3591, 0.0
        %v5087 = vmax.f32 %v3593, 0.0
        %v5088 = vmax.f32 %v3944, 0.0
        %v5089 = vmax.f32 %v3946, 0.0
        %v5090 = vmax.f32 %v4297, 0.0
        %v5091 = vmax.f32 %v4299, 0.0
        %v5092 = vmax.f32 %v4650, 0.0
        %v5093 = vmax.f32 %v4652, 0.0
        %v5094 = vmax.f32 %v3597, 0.0
        %v5095 = vmax.f32 %v3599, 0.0
        %v5096 = vmax.f32 %v3950, 0.0
        %v5097 = vmax.f32 %v3952, 0.0
        %v5098 = vmax.f32 %v4303, 0.0
        %v5099 = vmax.f32 %v4305, 0.0
        %v5100 = vmax.f32 %v4656, 0.0
        %v5101 = vmax.f32 %v4658, 0.0
        %v5102 = vmax.f32 %v3601, 0.0
        %v5103 = vmax.f32 %v3603, 0.0
        %v5104 = vmax.f32 %v3954, 0.0
        %v5105 = vmax.f32 %v3956, 0.0
        %v5106 = vmax.f32 %v4307, 0.0
        %v5107 = vmax.f32 %v4309, 0.0
        %v5108 = vmax.f32 %v4660, 0.0
        %v5109 = vmax.f32 %v4662, 0.0
        %v5110 = vmax.f32 %v3607, 0.0
        %v5111 = vmax.f32 %v3609, 0.0
        %v5112 = vmax.f32 %v3960, 0.0
        %v5113 = vmax.f32 %v3962, 0.0
        %v5114 = vmax.f32 %v4313, 0.0
        %v5115 = vmax.f32 %v4315, 0.0
        %v5116 = vmax.f32 %v4666, 0.0
        %v5117 = vmax.f32 %v4668, 0.0
        %v5118 = vmax.f32 %v3611, 0.0
        %v5119 = vmax.f32 %v3613, 0.0
        %v5120 = vmax.f32 %v3964, 0.0
        %v5121 = vmax.f32 %v3966, 0.0
        %v5122 = vmax.f32 %v4317, 0.0
        %v5123 = vmax.f32 %v4319, 0.0
        %v5124 = vmax.f32 %v4670, 0.0
        %v5125 = vmax.f32 %v4672, 0.0
        %v5126 = vmax.f32 %v3617, 0.0
        %v5127 = vmax.f32 %v3619, 0.0
        %v5128 = vmax.f32 %v3970, 0.0
        %v5129 = vmax.f32 %v3972, 0.0
        %v5130 = vmax.f32 %v4323, 0.0
        %v5131 = vmax.f32 %v4325, 0.0
        %v5132 = vmax.f32 %v4676, 0.0
        %v5133 = vmax.f32 %v4678, 0.0
        %v5134 = vmax.f32 %v3621, 0.0
        %v5135 = vmax.f32 %v3623, 0.0
        %v5136 = vmax.f32 %v3974, 0.0
        %v5137 = vmax.f32 %v3976, 0.0
        %v5138 = vmax.f32 %v4327, 0.0
        %v5139 = vmax.f32 %v4329, 0.0
        %v5140 = vmax.f32 %v4680, 0.0
        %v5141 = vmax.f32 %v4682, 0.0
        %v5142 = vmax.f32 %v3627, 0.0
        %v5143 = vmax.f32 %v3629, 0.0
        %v5144 = vmax.f32 %v3980, 0.0
        %v5145 = vmax.f32 %v3982, 0.0
        %v5146 = vmax.f32 %v4333, 0.0
        %v5147 = vmax.f32 %v4335, 0.0
        %v5148 = vmax.f32 %v4686, 0.0
        %v5149 = vmax.f32 %v4688, 0.0
        %v5150 = vmax.f32 %v3631, 0.0
        %v5151 = vmax.f32 %v3633, 0.0
        %v5152 = vmax.f32 %v3984, 0.0
        %v5153 = vmax.f32 %v3986, 0.0
        %v5154 = vmax.f32 %v4337, 0.0
        %v5155 = vmax.f32 %v4339, 0.0
        %v5156 = vmax.f32 %v4690, 0.0
        %v5157 = vmax.f32 %v4692, 0.0
        %v5158 = vmax.f32 %v3637, 0.0
        %v5159 = vmax.f32 %v3639, 0.0
        %v5160 = vmax.f32 %v3990, 0.0
        %v5161 = vmax.f32 %v3992, 0.0
        %v5162 = vmax.f32 %v4343, 0.0
        %v5163 = vmax.f32 %v4345, 0.0
        %v5164 = vmax.f32 %v4696, 0.0
        %v5165 = vmax.f32 %v4698, 0.0
        %v5166 = vmax.f32 %v3641, 0.0
        %v5167 = vmax.f32 %v3643, 0.0
        %v5168 = vmax.f32 %v3994, 0.0
        %v5169 = vmax.f32 %v3996, 0.0
        %v5170 = vmax.f32 %v4347, 0.0
        %v5171 = vmax.f32 %v4349, 0.0
        %v5172 = vmax.f32 %v4700, 0.0
        %v5173 = vmax.f32 %v4702, 0.0
        %v5174 = vmax.f32 %v3647, 0.0
        %v5175 = vmax.f32 %v3649, 0.0
        %v5176 = vmax.f32 %v4000, 0.0
        %v5177 = vmax.f32 %v4002, 0.0
        %v5178 = vmax.f32 %v4353, 0.0
        %v5179 = vmax.f32 %v4355, 0.0
        %v5180 = vmax.f32 %v4706, 0.0
        %v5181 = vmax.f32 %v4708, 0.0
        %v5182 = vmax.f32 %v3651, 0.0
        %v5183 = vmax.f32 %v3653, 0.0
        %v5184 = vmax.f32 %v4004, 0.0
        %v5185 = vmax.f32 %v4006, 0.0
        %v5186 = vmax.f32 %v4357, 0.0
        %v5187 = vmax.f32 %v4359, 0.0
        %v5188 = vmax.f32 %v4710, 0.0
        %v5189 = vmax.f32 %v4712, 0.0
        %v5190 = vmax.f32 %v3657, 0.0
        %v5191 = vmax.f32 %v3659, 0.0
        %v5192 = vmax.f32 %v4010, 0.0
        %v5193 = vmax.f32 %v4012, 0.0
        %v5194 = vmax.f32 %v4363, 0.0
        %v5195 = vmax.f32 %v4365, 0.0
        %v5196 = vmax.f32 %v4716, 0.0
        %v5197 = vmax.f32 %v4718, 0.0
        %v5198 = vmax.f32 %v3661, 0.0
        %v5199 = vmax.f32 %v3663, 0.0
        %v5200 = vmax.f32 %v4014, 0.0
        %v5201 = vmax.f32 %v4016, 0.0
        %v5202 = vmax.f32 %v4367, 0.0
        %v5203 = vmax.f32 %v4369, 0.0
        %v5204 = vmax.f32 %v4720, 0.0
        %v5205 = vmax.f32 %v4722, 0.0
        %v5206 = vmax.f32 %v3667, 0.0
        %v5207 = vmax.f32 %v3669, 0.0
        %v5208 = vmax.f32 %v4020, 0.0
        %v5209 = vmax.f32 %v4022, 0.0
        %v5210 = vmax.f32 %v4373, 0.0
        %v5211 = vmax.f32 %v4375, 0.0
        %v5212 = vmax.f32 %v4726, 0.0
        %v5213 = vmax.f32 %v4728, 0.0
        %v5214 = vmax.f32 %v3671, 0.0
        %v5215 = vmax.f32 %v3673, 0.0
        %v5216 = vmax.f32 %v4024, 0.0
        %v5217 = vmax.f32 %v4026, 0.0
        %v5218 = vmax.f32 %v4377, 0.0
        %v5219 = vmax.f32 %v4379, 0.0
        %v5220 = vmax.f32 %v4730, 0.0
        %v5221 = vmax.f32 %v4732, 0.0
        %v5222 = vmax.f32 %v3677, 0.0
        %v5223 = vmax.f32 %v3679, 0.0
        %v5224 = vmax.f32 %v4030, 0.0
        %v5225 = vmax.f32 %v4032, 0.0
        %v5226 = vmax.f32 %v4383, 0.0
        %v5227 = vmax.f32 %v4385, 0.0
        %v5228 = vmax.f32 %v4736, 0.0
        %v5229 = vmax.f32 %v4738, 0.0
        %v5230 = vmax.f32 %v3681, 0.0
        %v5231 = vmax.f32 %v3683, 0.0
        %v5232 = vmax.f32 %v4034, 0.0
        %v5233 = vmax.f32 %v4036, 0.0
        %v5234 = vmax.f32 %v4387, 0.0
        %v5235 = vmax.f32 %v4389, 0.0
        %v5236 = vmax.f32 %v4740, 0.0
        %v5237 = vmax.f32 %v4742, 0.0
        %v5238 = vmax.f32 %v3687, 0.0
        %v5239 = vmax.f32 %v3689, 0.0
        %v5240 = vmax.f32 %v4040, 0.0
        %v5241 = vmax.f32 %v4042, 0.0
        %v5242 = vmax.f32 %v4393, 0.0
        %v5243 = vmax.f32 %v4395, 0.0
        %v5244 = vmax.f32 %v4746, 0.0
        %v5245 = vmax.f32 %v4748, 0.0
        %v5246 = vmax.f32 %v3691, 0.0
        %v5247 = vmax.f32 %v3693, 0.0
        %v5248 = vmax.f32 %v4044, 0.0
        %v5249 = vmax.f32 %v4046, 0.0
        %v5250 = vmax.f32 %v4397, 0.0
        %v5251 = vmax.f32 %v4399, 0.0
        %v5252 = vmax.f32 %v4750, 0.0
        %v5253 = vmax.f32 %v4752, 0.0
        %v5254 = vmax.f32 %v3697, 0.0
        %v5255 = vmax.f32 %v3699, 0.0
        %v5256 = vmax.f32 %v4050, 0.0
        %v5257 = vmax.f32 %v4052, 0.0
        %v5258 = vmax.f32 %v4403, 0.0
        %v5259 = vmax.f32 %v4405, 0.0
        %v5260 = vmax.f32 %v4756, 0.0
        %v5261 = vmax.f32 %v4758, 0.0
        %v5262 = vmax.f32 %v3701, 0.0
        %v5263 = vmax.f32 %v3703, 0.0
        %v5264 = vmax.f32 %v4054, 0.0
        %v5265 = vmax.f32 %v4056, 0.0
        %v5266 = vmax.f32 %v4407, 0.0
        %v5267 = vmax.f32 %v4409, 0.0
        %v5268 = vmax.f32 %v4760, 0.0
        %v5269 = vmax.f32 %v4762, 0.0
        %v5270 = vmax.f32 %v3707, 0.0
        %v5271 = vmax.f32 %v3709, 0.0
        %v5272 = vmax.f32 %v4060, 0.0
        %v5273 = vmax.f32 %v4062, 0.0
        %v5274 = vmax.f32 %v4413, 0.0
        %v5275 = vmax.f32 %v4415, 0.0
        %v5276 = vmax.f32 %v4766, 0.0
        %v5277 = vmax.f32 %v4768, 0.0
        %v5278 = vmax.f32 %v3711, 0.0
        %v5279 = vmax.f32 %v3713, 0.0
        %v5280 = vmax.f32 %v4064, 0.0
        %v5281 = vmax.f32 %v4066, 0.0
        %v5282 = vmax.f32 %v4417, 0.0
        %v5283 = vmax.f32 %v4419, 0.0
        %v5284 = vmax.f32 %v4770, 0.0
        %v5285 = vmax.f32 %v4772, 0.0
        %v5286 = vpack.c.bf16 %v4782, %v4774
        %v5287 = vpack.c.bf16 %v4783, %v4775
        %v5288 = vpack.c.bf16 %v4784, %v4776
        %v5289 = vpack.c.bf16 %v4785, %v4777
        %v5290 = vpack.c.bf16 %v4786, %v4778
        %v5291 = vpack.c.bf16 %v4787, %v4779
        %v5292 = vpack.c.bf16 %v4788, %v4780
        %v5293 = vpack.c.bf16 %v4789, %v4781
        %v5294 = vpack.c.bf16 %v4798, %v4790
        %v5295 = vpack.c.bf16 %v4799, %v4791
        %v5296 = vpack.c.bf16 %v4800, %v4792
        %v5297 = vpack.c.bf16 %v4801, %v4793
        %v5298 = vpack.c.bf16 %v4802, %v4794
        %v5299 = vpack.c.bf16 %v4803, %v4795
        %v5300 = vpack.c.bf16 %v4804, %v4796
        %v5301 = vpack.c.bf16 %v4805, %v4797
        %v5302 = vpack.c.bf16 %v4814, %v4806
        %v5303 = vpack.c.bf16 %v4815, %v4807
        %v5304 = vpack.c.bf16 %v4816, %v4808
        %v5305 = vpack.c.bf16 %v4817, %v4809
        %v5306 = vpack.c.bf16 %v4818, %v4810
        %v5307 = vpack.c.bf16 %v4819, %v4811
        %v5308 = vpack.c.bf16 %v4820, %v4812
        %v5309 = vpack.c.bf16 %v4821, %v4813
        %v5310 = vpack.c.bf16 %v4830, %v4822
        %v5311 = vpack.c.bf16 %v4831, %v4823
        %v5312 = vpack.c.bf16 %v4832, %v4824
        %v5313 = vpack.c.bf16 %v4833, %v4825
        %v5314 = vpack.c.bf16 %v4834, %v4826
        %v5315 = vpack.c.bf16 %v4835, %v4827
        %v5316 = vpack.c.bf16 %v4836, %v4828
        %v5317 = vpack.c.bf16 %v4837, %v4829
        %v5318 = vpack.c.bf16 %v4846, %v4838
        %v5319 = vpack.c.bf16 %v4847, %v4839
        %v5320 = vpack.c.bf16 %v4848, %v4840
        %v5321 = vpack.c.bf16 %v4849, %v4841
        %v5322 = vpack.c.bf16 %v4850, %v4842
        %v5323 = vpack.c.bf16 %v4851, %v4843
        %v5324 = vpack.c.bf16 %v4852, %v4844
        %v5325 = vpack.c.bf16 %v4853, %v4845
        %v5326 = vpack.c.bf16 %v4862, %v4854
        %v5327 = vpack.c.bf16 %v4863, %v4855
        %v5328 = vpack.c.bf16 %v4864, %v4856
        %v5329 = vpack.c.bf16 %v4865, %v4857
        %v5330 = vpack.c.bf16 %v4866, %v4858
        %v5331 = vpack.c.bf16 %v4867, %v4859
        %v5332 = vpack.c.bf16 %v4868, %v4860
        %v5333 = vpack.c.bf16 %v4869, %v4861
        %v5334 = vpack.c.bf16 %v4878, %v4870
        %v5335 = vpack.c.bf16 %v4879, %v4871
        %v5336 = vpack.c.bf16 %v4880, %v4872
        %v5337 = vpack.c.bf16 %v4881, %v4873
        %v5338 = vpack.c.bf16 %v4882, %v4874
        %v5339 = vpack.c.bf16 %v4883, %v4875
        %v5340 = vpack.c.bf16 %v4884, %v4876
        %v5341 = vpack.c.bf16 %v4885, %v4877
        %v5342 = vpack.c.bf16 %v4894, %v4886
        %v5343 = vpack.c.bf16 %v4895, %v4887
        %v5344 = vpack.c.bf16 %v4896, %v4888
        %v5345 = vpack.c.bf16 %v4897, %v4889
        %v5346 = vpack.c.bf16 %v4898, %v4890
        %v5347 = vpack.c.bf16 %v4899, %v4891
        %v5348 = vpack.c.bf16 %v4900, %v4892
        %v5349 = vpack.c.bf16 %v4901, %v4893
        %v5350 = vpack.c.bf16 %v4910, %v4902
        %v5351 = vpack.c.bf16 %v4911, %v4903
        %v5352 = vpack.c.bf16 %v4912, %v4904
        %v5353 = vpack.c.bf16 %v4913, %v4905
        %v5354 = vpack.c.bf16 %v4914, %v4906
        %v5355 = vpack.c.bf16 %v4915, %v4907
        %v5356 = vpack.c.bf16 %v4916, %v4908
        %v5357 = vpack.c.bf16 %v4917, %v4909
        %v5358 = vpack.c.bf16 %v4926, %v4918
        %v5359 = vpack.c.bf16 %v4927, %v4919
        %v5360 = vpack.c.bf16 %v4928, %v4920
        %v5361 = vpack.c.bf16 %v4929, %v4921
        %v5362 = vpack.c.bf16 %v4930, %v4922
        %v5363 = vpack.c.bf16 %v4931, %v4923
        %v5364 = vpack.c.bf16 %v4932, %v4924
        %v5365 = vpack.c.bf16 %v4933, %v4925
        %v5366 = vpack.c.bf16 %v4942, %v4934
        %v5367 = vpack.c.bf16 %v4943, %v4935
        %v5368 = vpack.c.bf16 %v4944, %v4936
        %v5369 = vpack.c.bf16 %v4945, %v4937
        %v5370 = vpack.c.bf16 %v4946, %v4938
        %v5371 = vpack.c.bf16 %v4947, %v4939
        %v5372 = vpack.c.bf16 %v4948, %v4940
        %v5373 = vpack.c.bf16 %v4949, %v4941
        %v5374 = vpack.c.bf16 %v4958, %v4950
        %v5375 = vpack.c.bf16 %v4959, %v4951
        %v5376 = vpack.c.bf16 %v4960, %v4952
        %v5377 = vpack.c.bf16 %v4961, %v4953
        %v5378 = vpack.c.bf16 %v4962, %v4954
        %v5379 = vpack.c.bf16 %v4963, %v4955
        %v5380 = vpack.c.bf16 %v4964, %v4956
        %v5381 = vpack.c.bf16 %v4965, %v4957
        %v5382 = vpack.c.bf16 %v4974, %v4966
        %v5383 = vpack.c.bf16 %v4975, %v4967
        %v5384 = vpack.c.bf16 %v4976, %v4968
        %v5385 = vpack.c.bf16 %v4977, %v4969
        %v5386 = vpack.c.bf16 %v4978, %v4970
        %v5387 = vpack.c.bf16 %v4979, %v4971
        %v5388 = vpack.c.bf16 %v4980, %v4972
        %v5389 = vpack.c.bf16 %v4981, %v4973
        %v5390 = vpack.c.bf16 %v4990, %v4982
        %v5391 = vpack.c.bf16 %v4991, %v4983
        %v5392 = vpack.c.bf16 %v4992, %v4984
        %v5393 = vpack.c.bf16 %v4993, %v4985
        %v5394 = vpack.c.bf16 %v4994, %v4986
        %v5395 = vpack.c.bf16 %v4995, %v4987
        %v5396 = vpack.c.bf16 %v4996, %v4988
        %v5397 = vpack.c.bf16 %v4997, %v4989
        %v5398 = vpack.c.bf16 %v5006, %v4998
        %v5399 = vpack.c.bf16 %v5007, %v4999
        %v5400 = vpack.c.bf16 %v5008, %v5000
        %v5401 = vpack.c.bf16 %v5009, %v5001
        %v5402 = vpack.c.bf16 %v5010, %v5002
        %v5403 = vpack.c.bf16 %v5011, %v5003
        %v5404 = vpack.c.bf16 %v5012, %v5004
        %v5405 = vpack.c.bf16 %v5013, %v5005
        %v5406 = vpack.c.bf16 %v5022, %v5014
        %v5407 = vpack.c.bf16 %v5023, %v5015
        %v5408 = vpack.c.bf16 %v5024, %v5016
        %v5409 = vpack.c.bf16 %v5025, %v5017
        %v5410 = vpack.c.bf16 %v5026, %v5018
        %v5411 = vpack.c.bf16 %v5027, %v5019
        %v5412 = vpack.c.bf16 %v5028, %v5020
        %v5413 = vpack.c.bf16 %v5029, %v5021
        %v5414 = vpack.c.bf16 %v5038, %v5030
        %v5415 = vpack.c.bf16 %v5039, %v5031
        %v5416 = vpack.c.bf16 %v5040, %v5032
        %v5417 = vpack.c.bf16 %v5041, %v5033
        %v5418 = vpack.c.bf16 %v5042, %v5034
        %v5419 = vpack.c.bf16 %v5043, %v5035
        %v5420 = vpack.c.bf16 %v5044, %v5036
        %v5421 = vpack.c.bf16 %v5045, %v5037
        %v5422 = vpack.c.bf16 %v5054, %v5046
        %v5423 = vpack.c.bf16 %v5055, %v5047
        %v5424 = vpack.c.bf16 %v5056, %v5048
        %v5425 = vpack.c.bf16 %v5057, %v5049
        %v5426 = vpack.c.bf16 %v5058, %v5050
        %v5427 = vpack.c.bf16 %v5059, %v5051
        %v5428 = vpack.c.bf16 %v5060, %v5052
        %v5429 = vpack.c.bf16 %v5061, %v5053
        %v5430 = vpack.c.bf16 %v5070, %v5062
        %v5431 = vpack.c.bf16 %v5071, %v5063
        %v5432 = vpack.c.bf16 %v5072, %v5064
        %v5433 = vpack.c.bf16 %v5073, %v5065
        %v5434 = vpack.c.bf16 %v5074, %v5066
        %v5435 = vpack.c.bf16 %v5075, %v5067
        %v5436 = vpack.c.bf16 %v5076, %v5068
        %v5437 = vpack.c.bf16 %v5077, %v5069
        %v5438 = vpack.c.bf16 %v5086, %v5078
        %v5439 = vpack.c.bf16 %v5087, %v5079
        %v5440 = vpack.c.bf16 %v5088, %v5080
        %v5441 = vpack.c.bf16 %v5089, %v5081
        %v5442 = vpack.c.bf16 %v5090, %v5082
        %v5443 = vpack.c.bf16 %v5091, %v5083
        %v5444 = vpack.c.bf16 %v5092, %v5084
        %v5445 = vpack.c.bf16 %v5093, %v5085
        %v5446 = vpack.c.bf16 %v5102, %v5094
        %v5447 = vpack.c.bf16 %v5103, %v5095
        %v5448 = vpack.c.bf16 %v5104, %v5096
        %v5449 = vpack.c.bf16 %v5105, %v5097
        %v5450 = vpack.c.bf16 %v5106, %v5098
        %v5451 = vpack.c.bf16 %v5107, %v5099
        %v5452 = vpack.c.bf16 %v5108, %v5100
        %v5453 = vpack.c.bf16 %v5109, %v5101
        %v5454 = vpack.c.bf16 %v5118, %v5110
        %v5455 = vpack.c.bf16 %v5119, %v5111
        %v5456 = vpack.c.bf16 %v5120, %v5112
        %v5457 = vpack.c.bf16 %v5121, %v5113
        %v5458 = vpack.c.bf16 %v5122, %v5114
        %v5459 = vpack.c.bf16 %v5123, %v5115
        %v5460 = vpack.c.bf16 %v5124, %v5116
        %v5461 = vpack.c.bf16 %v5125, %v5117
        %v5462 = vpack.c.bf16 %v5134, %v5126
        %v5463 = vpack.c.bf16 %v5135, %v5127
        %v5464 = vpack.c.bf16 %v5136, %v5128
        %v5465 = vpack.c.bf16 %v5137, %v5129
        %v5466 = vpack.c.bf16 %v5138, %v5130
        %v5467 = vpack.c.bf16 %v5139, %v5131
        %v5468 = vpack.c.bf16 %v5140, %v5132
        %v5469 = vpack.c.bf16 %v5141, %v5133
        %v5470 = vpack.c.bf16 %v5150, %v5142
        %v5471 = vpack.c.bf16 %v5151, %v5143
        %v5472 = vpack.c.bf16 %v5152, %v5144
        %v5473 = vpack.c.bf16 %v5153, %v5145
        %v5474 = vpack.c.bf16 %v5154, %v5146
        %v5475 = vpack.c.bf16 %v5155, %v5147
        %v5476 = vpack.c.bf16 %v5156, %v5148
        %v5477 = vpack.c.bf16 %v5157, %v5149
        %v5478 = vpack.c.bf16 %v5166, %v5158
        %v5479 = vpack.c.bf16 %v5167, %v5159
        %v5480 = vpack.c.bf16 %v5168, %v5160
        %v5481 = vpack.c.bf16 %v5169, %v5161
        %v5482 = vpack.c.bf16 %v5170, %v5162
        %v5483 = vpack.c.bf16 %v5171, %v5163
        %v5484 = vpack.c.bf16 %v5172, %v5164
        %v5485 = vpack.c.bf16 %v5173, %v5165
        %v5486 = vpack.c.bf16 %v5182, %v5174
        %v5487 = vpack.c.bf16 %v5183, %v5175
        %v5488 = vpack.c.bf16 %v5184, %v5176
        %v5489 = vpack.c.bf16 %v5185, %v5177
        %v5490 = vpack.c.bf16 %v5186, %v5178
        %v5491 = vpack.c.bf16 %v5187, %v5179
        %v5492 = vpack.c.bf16 %v5188, %v5180
        %v5493 = vpack.c.bf16 %v5189, %v5181
        %v5494 = vpack.c.bf16 %v5198, %v5190
        %v5495 = vpack.c.bf16 %v5199, %v5191
        %v5496 = vpack.c.bf16 %v5200, %v5192
        %v5497 = vpack.c.bf16 %v5201, %v5193
        %v5498 = vpack.c.bf16 %v5202, %v5194
        %v5499 = vpack.c.bf16 %v5203, %v5195
        %v5500 = vpack.c.bf16 %v5204, %v5196
        %v5501 = vpack.c.bf16 %v5205, %v5197
        %v5502 = vpack.c.bf16 %v5214, %v5206
        %v5503 = vpack.c.bf16 %v5215, %v5207
        %v5504 = vpack.c.bf16 %v5216, %v5208
        %v5505 = vpack.c.bf16 %v5217, %v5209
        %v5506 = vpack.c.bf16 %v5218, %v5210
        %v5507 = vpack.c.bf16 %v5219, %v5211
        %v5508 = vpack.c.bf16 %v5220, %v5212
        %v5509 = vpack.c.bf16 %v5221, %v5213
        %v5510 = vpack.c.bf16 %v5230, %v5222
        %v5511 = vpack.c.bf16 %v5231, %v5223
        %v5512 = vpack.c.bf16 %v5232, %v5224
        %v5513 = vpack.c.bf16 %v5233, %v5225
        %v5514 = vpack.c.bf16 %v5234, %v5226
        %v5515 = vpack.c.bf16 %v5235, %v5227
        %v5516 = vpack.c.bf16 %v5236, %v5228
        %v5517 = vpack.c.bf16 %v5237, %v5229
        %v5518 = vpack.c.bf16 %v5246, %v5238
        %v5519 = vpack.c.bf16 %v5247, %v5239
        %v5520 = vpack.c.bf16 %v5248, %v5240
        %v5521 = vpack.c.bf16 %v5249, %v5241
        %v5522 = vpack.c.bf16 %v5250, %v5242
        %v5523 = vpack.c.bf16 %v5251, %v5243
        %v5524 = vpack.c.bf16 %v5252, %v5244
        %v5525 = vpack.c.bf16 %v5253, %v5245
        %v5526 = vpack.c.bf16 %v5262, %v5254
        %v5527 = vpack.c.bf16 %v5263, %v5255
        %v5528 = vpack.c.bf16 %v5264, %v5256
        %v5529 = vpack.c.bf16 %v5265, %v5257
        %v5530 = vpack.c.bf16 %v5266, %v5258
        %v5531 = vpack.c.bf16 %v5267, %v5259
        %v5532 = vpack.c.bf16 %v5268, %v5260
        %v5533 = vpack.c.bf16 %v5269, %v5261
        %v5534 = vpack.c.bf16 %v5278, %v5270
        %v5535 = vpack.c.bf16 %v5279, %v5271
        %v5536 = vpack.c.bf16 %v5280, %v5272
        %v5537 = vpack.c.bf16 %v5281, %v5273
        %v5538 = vpack.c.bf16 %v5282, %v5274
        %v5539 = vpack.c.bf16 %v5283, %v5275
        %v5540 = vpack.c.bf16 %v5284, %v5276
        %v5541 = vpack.c.bf16 %v5285, %v5277
        %v5542 = vld [vmem:[#allocation8] sm:$0xff]
        %v5543 = vld [vmem:[#allocation8 + $0x8] sm:$0xff]
        %v5544 = vld [vmem:[#allocation8 + $0x10] sm:$0xff]
        %v5545 = vld [vmem:[#allocation8 + $0x18] sm:$0xff]
        %v5546 = vld [vmem:[#allocation8 + $0x20] sm:$0xff]
        %v5547 = vld [vmem:[#allocation8 + $0x28] sm:$0xff]
        %v5548 = vld [vmem:[#allocation8 + $0x30] sm:$0xff]
        %v5549 = vld [vmem:[#allocation8 + $0x38] sm:$0xff]
        %v5550 = vld [vmem:[#allocation8 + $0x40] sm:$0xff]
        %v5551 = vld [vmem:[#allocation8 + $0x48] sm:$0xff]
        %v5552 = vld [vmem:[#allocation8 + $0x50] sm:$0xff]
        %v5553 = vld [vmem:[#allocation8 + $0x58] sm:$0xff]
        %v5554 = vld [vmem:[#allocation8 + $0x60] sm:$0xff]
        %v5555 = vld [vmem:[#allocation8 + $0x68] sm:$0xff]
        %v5556 = vld [vmem:[#allocation8 + $0x70] sm:$0xff]
        %v5557 = vld [vmem:[#allocation8 + $0x78] sm:$0xff]
        %v5558 = vld [vmem:[#allocation8 + $0x80] sm:$0xff]
        %v5559 = vld [vmem:[#allocation8 + $0x88] sm:$0xff]
        %v5560 = vld [vmem:[#allocation8 + $0x90] sm:$0xff]
        %v5561 = vld [vmem:[#allocation8 + $0x98] sm:$0xff]
        %v5562 = vld [vmem:[#allocation8 + $0xa0] sm:$0xff]
        %v5563 = vld [vmem:[#allocation8 + $0xa8] sm:$0xff]
        %v5564 = vld [vmem:[#allocation8 + $0xb0] sm:$0xff]
        %v5565 = vld [vmem:[#allocation8 + $0xb8] sm:$0xff]
        %v5566 = vld [vmem:[#allocation8 + $0xc0] sm:$0xff]
        %v5567 = vld [vmem:[#allocation8 + $0xc8] sm:$0xff]
        %v5568 = vld [vmem:[#allocation8 + $0xd0] sm:$0xff]
        %v5569 = vld [vmem:[#allocation8 + $0xd8] sm:$0xff]
        %v5570 = vld [vmem:[#allocation8 + $0xe0] sm:$0xff]
        %v5571 = vld [vmem:[#allocation8 + $0xe8] sm:$0xff]
        %v5572 = vld [vmem:[#allocation8 + $0xf0] sm:$0xff]
        %v5573 = vld [vmem:[#allocation8 + $0xf8] sm:$0xff]
        %v5574 = vld [vmem:[#allocation8 + $0x100] sm:$0xff]
        %v5575 = vld [vmem:[#allocation8 + $0x108] sm:$0xff]
        %v5576 = vld [vmem:[#allocation8 + $0x110] sm:$0xff]
        %v5577 = vld [vmem:[#allocation8 + $0x118] sm:$0xff]
        %v5578 = vld [vmem:[#allocation8 + $0x120] sm:$0xff]
        %v5579 = vld [vmem:[#allocation8 + $0x128] sm:$0xff]
        %v5580 = vld [vmem:[#allocation8 + $0x130] sm:$0xff]
        %v5581 = vld [vmem:[#allocation8 + $0x138] sm:$0xff]
        %v5582 = vld [vmem:[#allocation8 + $0x140] sm:$0xff]
        %v5583 = vld [vmem:[#allocation8 + $0x148] sm:$0xff]
        %v5584 = vld [vmem:[#allocation8 + $0x150] sm:$0xff]
        %v5585 = vld [vmem:[#allocation8 + $0x158] sm:$0xff]
        %v5586 = vld [vmem:[#allocation8 + $0x160] sm:$0xff]
        %v5587 = vld [vmem:[#allocation8 + $0x168] sm:$0xff]
        %v5588 = vld [vmem:[#allocation8 + $0x170] sm:$0xff]
        %v5589 = vld [vmem:[#allocation8 + $0x178] sm:$0xff]
        %v5590 = vld [vmem:[#allocation8 + $0x180] sm:$0xff]
        %v5591 = vld [vmem:[#allocation8 + $0x188] sm:$0xff]
        %v5592 = vld [vmem:[#allocation8 + $0x190] sm:$0xff]
        %v5593 = vld [vmem:[#allocation8 + $0x198] sm:$0xff]
        %v5594 = vld [vmem:[#allocation8 + $0x1a0] sm:$0xff]
        %v5595 = vld [vmem:[#allocation8 + $0x1a8] sm:$0xff]
        %v5596 = vld [vmem:[#allocation8 + $0x1b0] sm:$0xff]
        %v5597 = vld [vmem:[#allocation8 + $0x1b8] sm:$0xff]
        %v5598 = vld [vmem:[#allocation8 + $0x1c0] sm:$0xff]
        %v5599 = vld [vmem:[#allocation8 + $0x1c8] sm:$0xff]
        %v5600 = vld [vmem:[#allocation8 + $0x1d0] sm:$0xff]
        %v5601 = vld [vmem:[#allocation8 + $0x1d8] sm:$0xff]
        %v5602 = vld [vmem:[#allocation8 + $0x1e0] sm:$0xff]
        %v5603 = vld [vmem:[#allocation8 + $0x1e8] sm:$0xff]
        %v5604 = vld [vmem:[#allocation8 + $0x1f0] sm:$0xff]
        %v5605 = vld [vmem:[#allocation8 + $0x1f8] sm:$0xff]
        %v5606 = vld [vmem:[#allocation8 + $0x200] sm:$0xff]
        %v5607 = vld [vmem:[#allocation8 + $0x208] sm:$0xff]
        %v5608 = vld [vmem:[#allocation8 + $0x210] sm:$0xff]
        %v5609 = vld [vmem:[#allocation8 + $0x218] sm:$0xff]
        %v5610 = vld [vmem:[#allocation8 + $0x220] sm:$0xff]
        %v5611 = vld [vmem:[#allocation8 + $0x228] sm:$0xff]
        %v5612 = vld [vmem:[#allocation8 + $0x230] sm:$0xff]
        %v5613 = vld [vmem:[#allocation8 + $0x238] sm:$0xff]
        %v5614 = vld [vmem:[#allocation8 + $0x240] sm:$0xff]
        %v5615 = vld [vmem:[#allocation8 + $0x248] sm:$0xff]
        %v5616 = vld [vmem:[#allocation8 + $0x250] sm:$0xff]
        %v5617 = vld [vmem:[#allocation8 + $0x258] sm:$0xff]
        %v5618 = vld [vmem:[#allocation8 + $0x260] sm:$0xff]
        %v5619 = vld [vmem:[#allocation8 + $0x268] sm:$0xff]
        %v5620 = vld [vmem:[#allocation8 + $0x270] sm:$0xff]
        %v5621 = vld [vmem:[#allocation8 + $0x278] sm:$0xff]
        %v5622 = vld [vmem:[#allocation8 + $0x280] sm:$0xff]
        %v5623 = vld [vmem:[#allocation8 + $0x288] sm:$0xff]
        %v5624 = vld [vmem:[#allocation8 + $0x290] sm:$0xff]
        %v5625 = vld [vmem:[#allocation8 + $0x298] sm:$0xff]
        %v5626 = vld [vmem:[#allocation8 + $0x2a0] sm:$0xff]
        %v5627 = vld [vmem:[#allocation8 + $0x2a8] sm:$0xff]
        %v5628 = vld [vmem:[#allocation8 + $0x2b0] sm:$0xff]
        %v5629 = vld [vmem:[#allocation8 + $0x2b8] sm:$0xff]
        %v5630 = vld [vmem:[#allocation8 + $0x2c0] sm:$0xff]
        %v5631 = vld [vmem:[#allocation8 + $0x2c8] sm:$0xff]
        %v5632 = vld [vmem:[#allocation8 + $0x2d0] sm:$0xff]
        %v5633 = vld [vmem:[#allocation8 + $0x2d8] sm:$0xff]
        %v5634 = vld [vmem:[#allocation8 + $0x2e0] sm:$0xff]
        %v5635 = vld [vmem:[#allocation8 + $0x2e8] sm:$0xff]
        %v5636 = vld [vmem:[#allocation8 + $0x2f0] sm:$0xff]
        %v5637 = vld [vmem:[#allocation8 + $0x2f8] sm:$0xff]
        %v5638 = vld [vmem:[#allocation8 + $0x300] sm:$0xff]
        %v5639 = vld [vmem:[#allocation8 + $0x308] sm:$0xff]
        %v5640 = vld [vmem:[#allocation8 + $0x310] sm:$0xff]
        %v5641 = vld [vmem:[#allocation8 + $0x318] sm:$0xff]
        %v5642 = vld [vmem:[#allocation8 + $0x320] sm:$0xff]
        %v5643 = vld [vmem:[#allocation8 + $0x328] sm:$0xff]
        %v5644 = vld [vmem:[#allocation8 + $0x330] sm:$0xff]
        %v5645 = vld [vmem:[#allocation8 + $0x338] sm:$0xff]
        %v5646 = vld [vmem:[#allocation8 + $0x340] sm:$0xff]
        %v5647 = vld [vmem:[#allocation8 + $0x348] sm:$0xff]
        %v5648 = vld [vmem:[#allocation8 + $0x350] sm:$0xff]
        %v5649 = vld [vmem:[#allocation8 + $0x358] sm:$0xff]
        %v5650 = vld [vmem:[#allocation8 + $0x360] sm:$0xff]
        %v5651 = vld [vmem:[#allocation8 + $0x368] sm:$0xff]
        %v5652 = vld [vmem:[#allocation8 + $0x370] sm:$0xff]
        %v5653 = vld [vmem:[#allocation8 + $0x378] sm:$0xff]
        %v5654 = vld [vmem:[#allocation8 + $0x380] sm:$0xff]
        %v5655 = vld [vmem:[#allocation8 + $0x388] sm:$0xff]
        %v5656 = vld [vmem:[#allocation8 + $0x390] sm:$0xff]
        %v5657 = vld [vmem:[#allocation8 + $0x398] sm:$0xff]
        %v5658 = vld [vmem:[#allocation8 + $0x3a0] sm:$0xff]
        %v5659 = vld [vmem:[#allocation8 + $0x3a8] sm:$0xff]
        %v5660 = vld [vmem:[#allocation8 + $0x3b0] sm:$0xff]
        %v5661 = vld [vmem:[#allocation8 + $0x3b8] sm:$0xff]
        %v5662 = vld [vmem:[#allocation8 + $0x3c0] sm:$0xff]
        %v5663 = vld [vmem:[#allocation8 + $0x3c8] sm:$0xff]
        %v5664 = vld [vmem:[#allocation8 + $0x3d0] sm:$0xff]
        %v5665 = vld [vmem:[#allocation8 + $0x3d8] sm:$0xff]
        %v5666 = vld [vmem:[#allocation8 + $0x3e0] sm:$0xff]
        %v5667 = vld [vmem:[#allocation8 + $0x3e8] sm:$0xff]
        %v5668 = vld [vmem:[#allocation8 + $0x3f0] sm:$0xff]
        %v5669 = vld [vmem:[#allocation8 + $0x3f8] sm:$0xff]
        %v5670 = vld [vmem:[#allocation8 + $0x400] sm:$0xff]
        %v5671 = vld [vmem:[#allocation8 + $0x408] sm:$0xff]
        %v5672 = vld [vmem:[#allocation8 + $0x410] sm:$0xff]
        %v5673 = vld [vmem:[#allocation8 + $0x418] sm:$0xff]
        %v5674 = vld [vmem:[#allocation8 + $0x420] sm:$0xff]
        %v5675 = vld [vmem:[#allocation8 + $0x428] sm:$0xff]
        %v5676 = vld [vmem:[#allocation8 + $0x430] sm:$0xff]
        %v5677 = vld [vmem:[#allocation8 + $0x438] sm:$0xff]
        %v5678 = vld [vmem:[#allocation8 + $0x440] sm:$0xff]
        %v5679 = vld [vmem:[#allocation8 + $0x448] sm:$0xff]
        %v5680 = vld [vmem:[#allocation8 + $0x450] sm:$0xff]
        %v5681 = vld [vmem:[#allocation8 + $0x458] sm:$0xff]
        %v5682 = vld [vmem:[#allocation8 + $0x460] sm:$0xff]
        %v5683 = vld [vmem:[#allocation8 + $0x468] sm:$0xff]
        %v5684 = vld [vmem:[#allocation8 + $0x470] sm:$0xff]
        %v5685 = vld [vmem:[#allocation8 + $0x478] sm:$0xff]
        %v5686 = vld [vmem:[#allocation8 + $0x480] sm:$0xff]
        %v5687 = vld [vmem:[#allocation8 + $0x488] sm:$0xff]
        %v5688 = vld [vmem:[#allocation8 + $0x490] sm:$0xff]
        %v5689 = vld [vmem:[#allocation8 + $0x498] sm:$0xff]
        %v5690 = vld [vmem:[#allocation8 + $0x4a0] sm:$0xff]
        %v5691 = vld [vmem:[#allocation8 + $0x4a8] sm:$0xff]
        %v5692 = vld [vmem:[#allocation8 + $0x4b0] sm:$0xff]
        %v5693 = vld [vmem:[#allocation8 + $0x4b8] sm:$0xff]
        %v5694 = vld [vmem:[#allocation8 + $0x4c0] sm:$0xff]
        %v5695 = vld [vmem:[#allocation8 + $0x4c8] sm:$0xff]
        %v5696 = vld [vmem:[#allocation8 + $0x4d0] sm:$0xff]
        %v5697 = vld [vmem:[#allocation8 + $0x4d8] sm:$0xff]
        %v5698 = vld [vmem:[#allocation8 + $0x4e0] sm:$0xff]
        %v5699 = vld [vmem:[#allocation8 + $0x4e8] sm:$0xff]
        %v5700 = vld [vmem:[#allocation8 + $0x4f0] sm:$0xff]
        %v5701 = vld [vmem:[#allocation8 + $0x4f8] sm:$0xff]
        %v5702 = vld [vmem:[#allocation8 + $0x500] sm:$0xff]
        %v5703 = vld [vmem:[#allocation8 + $0x508] sm:$0xff]
        %v5704 = vld [vmem:[#allocation8 + $0x510] sm:$0xff]
        %v5705 = vld [vmem:[#allocation8 + $0x518] sm:$0xff]
        %v5706 = vld [vmem:[#allocation8 + $0x520] sm:$0xff]
        %v5707 = vld [vmem:[#allocation8 + $0x528] sm:$0xff]
        %v5708 = vld [vmem:[#allocation8 + $0x530] sm:$0xff]
        %v5709 = vld [vmem:[#allocation8 + $0x538] sm:$0xff]
        %v5710 = vld [vmem:[#allocation8 + $0x540] sm:$0xff]
        %v5711 = vld [vmem:[#allocation8 + $0x548] sm:$0xff]
        %v5712 = vld [vmem:[#allocation8 + $0x550] sm:$0xff]
        %v5713 = vld [vmem:[#allocation8 + $0x558] sm:$0xff]
        %v5714 = vld [vmem:[#allocation8 + $0x560] sm:$0xff]
        %v5715 = vld [vmem:[#allocation8 + $0x568] sm:$0xff]
        %v5716 = vld [vmem:[#allocation8 + $0x570] sm:$0xff]
        %v5717 = vld [vmem:[#allocation8 + $0x578] sm:$0xff]
        %v5718 = vld [vmem:[#allocation8 + $0x580] sm:$0xff]
        %v5719 = vld [vmem:[#allocation8 + $0x588] sm:$0xff]
        %v5720 = vld [vmem:[#allocation8 + $0x590] sm:$0xff]
        %v5721 = vld [vmem:[#allocation8 + $0x598] sm:$0xff]
        %v5722 = vld [vmem:[#allocation8 + $0x5a0] sm:$0xff]
        %v5723 = vld [vmem:[#allocation8 + $0x5a8] sm:$0xff]
        %v5724 = vld [vmem:[#allocation8 + $0x5b0] sm:$0xff]
        %v5725 = vld [vmem:[#allocation8 + $0x5b8] sm:$0xff]
        %v5726 = vld [vmem:[#allocation8 + $0x5c0] sm:$0xff]
        %v5727 = vld [vmem:[#allocation8 + $0x5c8] sm:$0xff]
        %v5728 = vld [vmem:[#allocation8 + $0x5d0] sm:$0xff]
        %v5729 = vld [vmem:[#allocation8 + $0x5d8] sm:$0xff]
        %v5730 = vld [vmem:[#allocation8 + $0x5e0] sm:$0xff]
        %v5731 = vld [vmem:[#allocation8 + $0x5e8] sm:$0xff]
        %v5732 = vld [vmem:[#allocation8 + $0x5f0] sm:$0xff]
        %v5733 = vld [vmem:[#allocation8 + $0x5f8] sm:$0xff]
        %v5734 = vld [vmem:[#allocation8 + $0x600] sm:$0xff]
        %v5735 = vld [vmem:[#allocation8 + $0x608] sm:$0xff]
        %v5736 = vld [vmem:[#allocation8 + $0x610] sm:$0xff]
        %v5737 = vld [vmem:[#allocation8 + $0x618] sm:$0xff]
        %v5738 = vld [vmem:[#allocation8 + $0x620] sm:$0xff]
        %v5739 = vld [vmem:[#allocation8 + $0x628] sm:$0xff]
        %v5740 = vld [vmem:[#allocation8 + $0x630] sm:$0xff]
        %v5741 = vld [vmem:[#allocation8 + $0x638] sm:$0xff]
        %v5742 = vld [vmem:[#allocation8 + $0x640] sm:$0xff]
        %v5743 = vld [vmem:[#allocation8 + $0x648] sm:$0xff]
        %v5744 = vld [vmem:[#allocation8 + $0x650] sm:$0xff]
        %v5745 = vld [vmem:[#allocation8 + $0x658] sm:$0xff]
        %v5746 = vld [vmem:[#allocation8 + $0x660] sm:$0xff]
        %v5747 = vld [vmem:[#allocation8 + $0x668] sm:$0xff]
        %v5748 = vld [vmem:[#allocation8 + $0x670] sm:$0xff]
        %v5749 = vld [vmem:[#allocation8 + $0x678] sm:$0xff]
        %v5750 = vld [vmem:[#allocation8 + $0x680] sm:$0xff]
        %v5751 = vld [vmem:[#allocation8 + $0x688] sm:$0xff]
        %v5752 = vld [vmem:[#allocation8 + $0x690] sm:$0xff]
        %v5753 = vld [vmem:[#allocation8 + $0x698] sm:$0xff]
        %v5754 = vld [vmem:[#allocation8 + $0x6a0] sm:$0xff]
        %v5755 = vld [vmem:[#allocation8 + $0x6a8] sm:$0xff]
        %v5756 = vld [vmem:[#allocation8 + $0x6b0] sm:$0xff]
        %v5757 = vld [vmem:[#allocation8 + $0x6b8] sm:$0xff]
        %v5758 = vld [vmem:[#allocation8 + $0x6c0] sm:$0xff]
        %v5759 = vld [vmem:[#allocation8 + $0x6c8] sm:$0xff]
        %v5760 = vld [vmem:[#allocation8 + $0x6d0] sm:$0xff]
        %v5761 = vld [vmem:[#allocation8 + $0x6d8] sm:$0xff]
        %v5762 = vld [vmem:[#allocation8 + $0x6e0] sm:$0xff]
        %v5763 = vld [vmem:[#allocation8 + $0x6e8] sm:$0xff]
        %v5764 = vld [vmem:[#allocation8 + $0x6f0] sm:$0xff]
        %v5765 = vld [vmem:[#allocation8 + $0x6f8] sm:$0xff]
        %v5766 = vld [vmem:[#allocation8 + $0x700] sm:$0xff]
        %v5767 = vld [vmem:[#allocation8 + $0x708] sm:$0xff]
        %v5768 = vld [vmem:[#allocation8 + $0x710] sm:$0xff]
        %v5769 = vld [vmem:[#allocation8 + $0x718] sm:$0xff]
        %v5770 = vld [vmem:[#allocation8 + $0x720] sm:$0xff]
        %v5771 = vld [vmem:[#allocation8 + $0x728] sm:$0xff]
        %v5772 = vld [vmem:[#allocation8 + $0x730] sm:$0xff]
        %v5773 = vld [vmem:[#allocation8 + $0x738] sm:$0xff]
        %v5774 = vld [vmem:[#allocation8 + $0x740] sm:$0xff]
        %v5775 = vld [vmem:[#allocation8 + $0x748] sm:$0xff]
        %v5776 = vld [vmem:[#allocation8 + $0x750] sm:$0xff]
        %v5777 = vld [vmem:[#allocation8 + $0x758] sm:$0xff]
        %v5778 = vld [vmem:[#allocation8 + $0x760] sm:$0xff]
        %v5779 = vld [vmem:[#allocation8 + $0x768] sm:$0xff]
        %v5780 = vld [vmem:[#allocation8 + $0x770] sm:$0xff]
        %v5781 = vld [vmem:[#allocation8 + $0x778] sm:$0xff]
        %v5782 = vld [vmem:[#allocation8 + $0x780] sm:$0xff]
        %v5783 = vld [vmem:[#allocation8 + $0x788] sm:$0xff]
        %v5784 = vld [vmem:[#allocation8 + $0x790] sm:$0xff]
        %v5785 = vld [vmem:[#allocation8 + $0x798] sm:$0xff]
        %v5786 = vld [vmem:[#allocation8 + $0x7a0] sm:$0xff]
        %v5787 = vld [vmem:[#allocation8 + $0x7a8] sm:$0xff]
        %v5788 = vld [vmem:[#allocation8 + $0x7b0] sm:$0xff]
        %v5789 = vld [vmem:[#allocation8 + $0x7b8] sm:$0xff]
        %v5790 = vld [vmem:[#allocation8 + $0x7c0] sm:$0xff]
        %v5791 = vld [vmem:[#allocation8 + $0x7c8] sm:$0xff]
        %v5792 = vld [vmem:[#allocation8 + $0x7d0] sm:$0xff]
        %v5793 = vld [vmem:[#allocation8 + $0x7d8] sm:$0xff]
        %v5794 = vld [vmem:[#allocation8 + $0x7e0] sm:$0xff]
        %v5795 = vld [vmem:[#allocation8 + $0x7e8] sm:$0xff]
        %v5796 = vld [vmem:[#allocation8 + $0x7f0] sm:$0xff]
        %v5797 = vld [vmem:[#allocation8 + $0x7f8] sm:$0xff]
        %v5798 = vld [vmem:[%s11] sm:$0xf]
        %v5800 = vlaneseq
        %v5801 = vshrl.u32 %v5800, 7
        %v5802 = vsub.s32 0, %v5801
        %v5803 = vrot.slane %v5798, %v5802
        %v5804 = vlaneseq
        %v5805 = vshrl.u32 %v5804, 7
        %v5806 = vsub.s32 1, %v5805
        %v5807 = vrot.slane %v5798, %v5806
        %v5808 = vlaneseq
        %v5809 = vshrl.u32 %v5808, 7
        %v5810 = vsub.s32 2, %v5809
        %v5811 = vrot.slane %v5798, %v5810
        %v5812 = vlaneseq
        %v5813 = vshrl.u32 %v5812, 7
        %v5814 = vsub.s32 3, %v5813
        %v5815 = vrot.slane %v5798, %v5814
        %v6076 = vunpack.c.l.b16 %v5542
        %v6077 = vunpack.c.h.b16 %v5542
        %v6078 = vunpack.c.l.b16 %v5543
        %v6079 = vunpack.c.h.b16 %v5543
        %v6080 = vunpack.c.l.b16 %v5544
        %v6081 = vunpack.c.h.b16 %v5544
        %v6082 = vunpack.c.l.b16 %v5545
        %v6083 = vunpack.c.h.b16 %v5545
        %v6084 = vunpack.c.l.b16 %v5546
        %v6085 = vunpack.c.h.b16 %v5546
        %v6086 = vunpack.c.l.b16 %v5547
        %v6087 = vunpack.c.h.b16 %v5547
        %v6088 = vunpack.c.l.b16 %v5548
        %v6089 = vunpack.c.h.b16 %v5548
        %v6090 = vunpack.c.l.b16 %v5549
        %v6091 = vunpack.c.h.b16 %v5549
        %v6092 = vunpack.c.l.b16 %v5550
        %v6093 = vunpack.c.h.b16 %v5550
        %v6094 = vunpack.c.l.b16 %v5551
        %v6095 = vunpack.c.h.b16 %v5551
        %v6096 = vunpack.c.l.b16 %v5552
        %v6097 = vunpack.c.h.b16 %v5552
        %v6098 = vunpack.c.l.b16 %v5553
        %v6099 = vunpack.c.h.b16 %v5553
        %v6100 = vunpack.c.l.b16 %v5554
        %v6101 = vunpack.c.h.b16 %v5554
        %v6102 = vunpack.c.l.b16 %v5555
        %v6103 = vunpack.c.h.b16 %v5555
        %v6104 = vunpack.c.l.b16 %v5556
        %v6105 = vunpack.c.h.b16 %v5556
        %v6106 = vunpack.c.l.b16 %v5557
        %v6107 = vunpack.c.h.b16 %v5557
        %v6108 = vunpack.c.l.b16 %v5558
        %v6109 = vunpack.c.h.b16 %v5558
        %v6110 = vunpack.c.l.b16 %v5559
        %v6111 = vunpack.c.h.b16 %v5559
        %v6112 = vunpack.c.l.b16 %v5560
        %v6113 = vunpack.c.h.b16 %v5560
        %v6114 = vunpack.c.l.b16 %v5561
        %v6115 = vunpack.c.h.b16 %v5561
        %v6116 = vunpack.c.l.b16 %v5562
        %v6117 = vunpack.c.h.b16 %v5562
        %v6118 = vunpack.c.l.b16 %v5563
        %v6119 = vunpack.c.h.b16 %v5563
        %v6120 = vunpack.c.l.b16 %v5564
        %v6121 = vunpack.c.h.b16 %v5564
        %v6122 = vunpack.c.l.b16 %v5565
        %v6123 = vunpack.c.h.b16 %v5565
        %v6124 = vunpack.c.l.b16 %v5566
        %v6125 = vunpack.c.h.b16 %v5566
        %v6126 = vunpack.c.l.b16 %v5567
        %v6127 = vunpack.c.h.b16 %v5567
        %v6128 = vunpack.c.l.b16 %v5568
        %v6129 = vunpack.c.h.b16 %v5568
        %v6130 = vunpack.c.l.b16 %v5569
        %v6131 = vunpack.c.h.b16 %v5569
        %v6132 = vunpack.c.l.b16 %v5570
        %v6133 = vunpack.c.h.b16 %v5570
        %v6134 = vunpack.c.l.b16 %v5571
        %v6135 = vunpack.c.h.b16 %v5571
        %v6136 = vunpack.c.l.b16 %v5572
        %v6137 = vunpack.c.h.b16 %v5572
        %v6138 = vunpack.c.l.b16 %v5573
        %v6139 = vunpack.c.h.b16 %v5573
        %v6140 = vunpack.c.l.b16 %v5574
        %v6141 = vunpack.c.h.b16 %v5574
        %v6142 = vunpack.c.l.b16 %v5575
        %v6143 = vunpack.c.h.b16 %v5575
        %v6144 = vunpack.c.l.b16 %v5576
        %v6145 = vunpack.c.h.b16 %v5576
        %v6146 = vunpack.c.l.b16 %v5577
        %v6147 = vunpack.c.h.b16 %v5577
        %v6148 = vunpack.c.l.b16 %v5578
        %v6149 = vunpack.c.h.b16 %v5578
        %v6150 = vunpack.c.l.b16 %v5579
        %v6151 = vunpack.c.h.b16 %v5579
        %v6152 = vunpack.c.l.b16 %v5580
        %v6153 = vunpack.c.h.b16 %v5580
        %v6154 = vunpack.c.l.b16 %v5581
        %v6155 = vunpack.c.h.b16 %v5581
        %v6156 = vunpack.c.l.b16 %v5582
        %v6157 = vunpack.c.h.b16 %v5582
        %v6158 = vunpack.c.l.b16 %v5583
        %v6159 = vunpack.c.h.b16 %v5583
        %v6160 = vunpack.c.l.b16 %v5584
        %v6161 = vunpack.c.h.b16 %v5584
        %v6162 = vunpack.c.l.b16 %v5585
        %v6163 = vunpack.c.h.b16 %v5585
        %v6164 = vunpack.c.l.b16 %v5586
        %v6165 = vunpack.c.h.b16 %v5586
        %v6166 = vunpack.c.l.b16 %v5587
        %v6167 = vunpack.c.h.b16 %v5587
        %v6168 = vunpack.c.l.b16 %v5588
        %v6169 = vunpack.c.h.b16 %v5588
        %v6170 = vunpack.c.l.b16 %v5589
        %v6171 = vunpack.c.h.b16 %v5589
        %v6172 = vunpack.c.l.b16 %v5590
        %v6173 = vunpack.c.h.b16 %v5590
        %v6174 = vunpack.c.l.b16 %v5591
        %v6175 = vunpack.c.h.b16 %v5591
        %v6176 = vunpack.c.l.b16 %v5592
        %v6177 = vunpack.c.h.b16 %v5592
        %v6178 = vunpack.c.l.b16 %v5593
        %v6179 = vunpack.c.h.b16 %v5593
        %v6180 = vunpack.c.l.b16 %v5594
        %v6181 = vunpack.c.h.b16 %v5594
        %v6182 = vunpack.c.l.b16 %v5595
        %v6183 = vunpack.c.h.b16 %v5595
        %v6184 = vunpack.c.l.b16 %v5596
        %v6185 = vunpack.c.h.b16 %v5596
        %v6186 = vunpack.c.l.b16 %v5597
        %v6187 = vunpack.c.h.b16 %v5597
        %v6188 = vunpack.c.l.b16 %v5598
        %v6189 = vunpack.c.h.b16 %v5598
        %v6190 = vunpack.c.l.b16 %v5599
        %v6191 = vunpack.c.h.b16 %v5599
        %v6192 = vunpack.c.l.b16 %v5600
        %v6193 = vunpack.c.h.b16 %v5600
        %v6194 = vunpack.c.l.b16 %v5601
        %v6195 = vunpack.c.h.b16 %v5601
        %v6196 = vunpack.c.l.b16 %v5602
        %v6197 = vunpack.c.h.b16 %v5602
        %v6198 = vunpack.c.l.b16 %v5603
        %v6199 = vunpack.c.h.b16 %v5603
        %v6200 = vunpack.c.l.b16 %v5604
        %v6201 = vunpack.c.h.b16 %v5604
        %v6202 = vunpack.c.l.b16 %v5605
        %v6203 = vunpack.c.h.b16 %v5605
        %v6204 = vunpack.c.l.b16 %v5606
        %v6205 = vunpack.c.h.b16 %v5606
        %v6206 = vunpack.c.l.b16 %v5607
        %v6207 = vunpack.c.h.b16 %v5607
        %v6208 = vunpack.c.l.b16 %v5608
        %v6209 = vunpack.c.h.b16 %v5608
        %v6210 = vunpack.c.l.b16 %v5609
        %v6211 = vunpack.c.h.b16 %v5609
        %v6212 = vunpack.c.l.b16 %v5610
        %v6213 = vunpack.c.h.b16 %v5610
        %v6214 = vunpack.c.l.b16 %v5611
        %v6215 = vunpack.c.h.b16 %v5611
        %v6216 = vunpack.c.l.b16 %v5612
        %v6217 = vunpack.c.h.b16 %v5612
        %v6218 = vunpack.c.l.b16 %v5613
        %v6219 = vunpack.c.h.b16 %v5613
        %v6220 = vunpack.c.l.b16 %v5614
        %v6221 = vunpack.c.h.b16 %v5614
        %v6222 = vunpack.c.l.b16 %v5615
        %v6223 = vunpack.c.h.b16 %v5615
        %v6224 = vunpack.c.l.b16 %v5616
        %v6225 = vunpack.c.h.b16 %v5616
        %v6226 = vunpack.c.l.b16 %v5617
        %v6227 = vunpack.c.h.b16 %v5617
        %v6228 = vunpack.c.l.b16 %v5618
        %v6229 = vunpack.c.h.b16 %v5618
        %v6230 = vunpack.c.l.b16 %v5619
        %v6231 = vunpack.c.h.b16 %v5619
        %v6232 = vunpack.c.l.b16 %v5620
        %v6233 = vunpack.c.h.b16 %v5620
        %v6234 = vunpack.c.l.b16 %v5621
        %v6235 = vunpack.c.h.b16 %v5621
        %v6236 = vunpack.c.l.b16 %v5622
        %v6237 = vunpack.c.h.b16 %v5622
        %v6238 = vunpack.c.l.b16 %v5623
        %v6239 = vunpack.c.h.b16 %v5623
        %v6240 = vunpack.c.l.b16 %v5624
        %v6241 = vunpack.c.h.b16 %v5624
        %v6242 = vunpack.c.l.b16 %v5625
        %v6243 = vunpack.c.h.b16 %v5625
        %v6244 = vunpack.c.l.b16 %v5626
        %v6245 = vunpack.c.h.b16 %v5626
        %v6246 = vunpack.c.l.b16 %v5627
        %v6247 = vunpack.c.h.b16 %v5627
        %v6248 = vunpack.c.l.b16 %v5628
        %v6249 = vunpack.c.h.b16 %v5628
        %v6250 = vunpack.c.l.b16 %v5629
        %v6251 = vunpack.c.h.b16 %v5629
        %v6252 = vunpack.c.l.b16 %v5630
        %v6253 = vunpack.c.h.b16 %v5630
        %v6254 = vunpack.c.l.b16 %v5631
        %v6255 = vunpack.c.h.b16 %v5631
        %v6256 = vunpack.c.l.b16 %v5632
        %v6257 = vunpack.c.h.b16 %v5632
        %v6258 = vunpack.c.l.b16 %v5633
        %v6259 = vunpack.c.h.b16 %v5633
        %v6260 = vunpack.c.l.b16 %v5634
        %v6261 = vunpack.c.h.b16 %v5634
        %v6262 = vunpack.c.l.b16 %v5635
        %v6263 = vunpack.c.h.b16 %v5635
        %v6264 = vunpack.c.l.b16 %v5636
        %v6265 = vunpack.c.h.b16 %v5636
        %v6266 = vunpack.c.l.b16 %v5637
        %v6267 = vunpack.c.h.b16 %v5637
        %v6268 = vunpack.c.l.b16 %v5638
        %v6269 = vunpack.c.h.b16 %v5638
        %v6270 = vunpack.c.l.b16 %v5639
        %v6271 = vunpack.c.h.b16 %v5639
        %v6272 = vunpack.c.l.b16 %v5640
        %v6273 = vunpack.c.h.b16 %v5640
        %v6274 = vunpack.c.l.b16 %v5641
        %v6275 = vunpack.c.h.b16 %v5641
        %v6276 = vunpack.c.l.b16 %v5642
        %v6277 = vunpack.c.h.b16 %v5642
        %v6278 = vunpack.c.l.b16 %v5643
        %v6279 = vunpack.c.h.b16 %v5643
        %v6280 = vunpack.c.l.b16 %v5644
        %v6281 = vunpack.c.h.b16 %v5644
        %v6282 = vunpack.c.l.b16 %v5645
        %v6283 = vunpack.c.h.b16 %v5645
        %v6284 = vunpack.c.l.b16 %v5646
        %v6285 = vunpack.c.h.b16 %v5646
        %v6286 = vunpack.c.l.b16 %v5647
        %v6287 = vunpack.c.h.b16 %v5647
        %v6288 = vunpack.c.l.b16 %v5648
        %v6289 = vunpack.c.h.b16 %v5648
        %v6290 = vunpack.c.l.b16 %v5649
        %v6291 = vunpack.c.h.b16 %v5649
        %v6292 = vunpack.c.l.b16 %v5650
        %v6293 = vunpack.c.h.b16 %v5650
        %v6294 = vunpack.c.l.b16 %v5651
        %v6295 = vunpack.c.h.b16 %v5651
        %v6296 = vunpack.c.l.b16 %v5652
        %v6297 = vunpack.c.h.b16 %v5652
        %v6298 = vunpack.c.l.b16 %v5653
        %v6299 = vunpack.c.h.b16 %v5653
        %v6300 = vunpack.c.l.b16 %v5654
        %v6301 = vunpack.c.h.b16 %v5654
        %v6302 = vunpack.c.l.b16 %v5655
        %v6303 = vunpack.c.h.b16 %v5655
        %v6304 = vunpack.c.l.b16 %v5656
        %v6305 = vunpack.c.h.b16 %v5656
        %v6306 = vunpack.c.l.b16 %v5657
        %v6307 = vunpack.c.h.b16 %v5657
        %v6308 = vunpack.c.l.b16 %v5658
        %v6309 = vunpack.c.h.b16 %v5658
        %v6310 = vunpack.c.l.b16 %v5659
        %v6311 = vunpack.c.h.b16 %v5659
        %v6312 = vunpack.c.l.b16 %v5660
        %v6313 = vunpack.c.h.b16 %v5660
        %v6314 = vunpack.c.l.b16 %v5661
        %v6315 = vunpack.c.h.b16 %v5661
        %v6316 = vunpack.c.l.b16 %v5662
        %v6317 = vunpack.c.h.b16 %v5662
        %v6318 = vunpack.c.l.b16 %v5663
        %v6319 = vunpack.c.h.b16 %v5663
        %v6320 = vunpack.c.l.b16 %v5664
        %v6321 = vunpack.c.h.b16 %v5664
        %v6322 = vunpack.c.l.b16 %v5665
        %v6323 = vunpack.c.h.b16 %v5665
        %v6324 = vunpack.c.l.b16 %v5666
        %v6325 = vunpack.c.h.b16 %v5666
        %v6326 = vunpack.c.l.b16 %v5667
        %v6327 = vunpack.c.h.b16 %v5667
        %v6328 = vunpack.c.l.b16 %v5668
        %v6329 = vunpack.c.h.b16 %v5668
        %v6330 = vunpack.c.l.b16 %v5669
        %v6331 = vunpack.c.h.b16 %v5669
        %v6332 = vunpack.c.l.b16 %v5670
        %v6333 = vunpack.c.h.b16 %v5670
        %v6334 = vunpack.c.l.b16 %v5671
        %v6335 = vunpack.c.h.b16 %v5671
        %v6336 = vunpack.c.l.b16 %v5672
        %v6337 = vunpack.c.h.b16 %v5672
        %v6338 = vunpack.c.l.b16 %v5673
        %v6339 = vunpack.c.h.b16 %v5673
        %v6340 = vunpack.c.l.b16 %v5674
        %v6341 = vunpack.c.h.b16 %v5674
        %v6342 = vunpack.c.l.b16 %v5675
        %v6343 = vunpack.c.h.b16 %v5675
        %v6344 = vunpack.c.l.b16 %v5676
        %v6345 = vunpack.c.h.b16 %v5676
        %v6346 = vunpack.c.l.b16 %v5677
        %v6347 = vunpack.c.h.b16 %v5677
        %v6348 = vunpack.c.l.b16 %v5678
        %v6349 = vunpack.c.h.b16 %v5678
        %v6350 = vunpack.c.l.b16 %v5679
        %v6351 = vunpack.c.h.b16 %v5679
        %v6352 = vunpack.c.l.b16 %v5680
        %v6353 = vunpack.c.h.b16 %v5680
        %v6354 = vunpack.c.l.b16 %v5681
        %v6355 = vunpack.c.h.b16 %v5681
        %v6356 = vunpack.c.l.b16 %v5682
        %v6357 = vunpack.c.h.b16 %v5682
        %v6358 = vunpack.c.l.b16 %v5683
        %v6359 = vunpack.c.h.b16 %v5683
        %v6360 = vunpack.c.l.b16 %v5684
        %v6361 = vunpack.c.h.b16 %v5684
        %v6362 = vunpack.c.l.b16 %v5685
        %v6363 = vunpack.c.h.b16 %v5685
        %v6364 = vunpack.c.l.b16 %v5686
        %v6365 = vunpack.c.h.b16 %v5686
        %v6366 = vunpack.c.l.b16 %v5687
        %v6367 = vunpack.c.h.b16 %v5687
        %v6368 = vunpack.c.l.b16 %v5688
        %v6369 = vunpack.c.h.b16 %v5688
        %v6370 = vunpack.c.l.b16 %v5689
        %v6371 = vunpack.c.h.b16 %v5689
        %v6372 = vunpack.c.l.b16 %v5690
        %v6373 = vunpack.c.h.b16 %v5690
        %v6374 = vunpack.c.l.b16 %v5691
        %v6375 = vunpack.c.h.b16 %v5691
        %v6376 = vunpack.c.l.b16 %v5692
        %v6377 = vunpack.c.h.b16 %v5692
        %v6378 = vunpack.c.l.b16 %v5693
        %v6379 = vunpack.c.h.b16 %v5693
        %v6380 = vunpack.c.l.b16 %v5694
        %v6381 = vunpack.c.h.b16 %v5694
        %v6382 = vunpack.c.l.b16 %v5695
        %v6383 = vunpack.c.h.b16 %v5695
        %v6384 = vunpack.c.l.b16 %v5696
        %v6385 = vunpack.c.h.b16 %v5696
        %v6386 = vunpack.c.l.b16 %v5697
        %v6387 = vunpack.c.h.b16 %v5697
        %v6388 = vunpack.c.l.b16 %v5698
        %v6389 = vunpack.c.h.b16 %v5698
        %v6390 = vunpack.c.l.b16 %v5699
        %v6391 = vunpack.c.h.b16 %v5699
        %v6392 = vunpack.c.l.b16 %v5700
        %v6393 = vunpack.c.h.b16 %v5700
        %v6394 = vunpack.c.l.b16 %v5701
        %v6395 = vunpack.c.h.b16 %v5701
        %v6396 = vunpack.c.l.b16 %v5702
        %v6397 = vunpack.c.h.b16 %v5702
        %v6398 = vunpack.c.l.b16 %v5703
        %v6399 = vunpack.c.h.b16 %v5703
        %v6400 = vunpack.c.l.b16 %v5704
        %v6401 = vunpack.c.h.b16 %v5704
        %v6402 = vunpack.c.l.b16 %v5705
        %v6403 = vunpack.c.h.b16 %v5705
        %v6404 = vunpack.c.l.b16 %v5706
        %v6405 = vunpack.c.h.b16 %v5706
        %v6406 = vunpack.c.l.b16 %v5707
        %v6407 = vunpack.c.h.b16 %v5707
        %v6408 = vunpack.c.l.b16 %v5708
        %v6409 = vunpack.c.h.b16 %v5708
        %v6410 = vunpack.c.l.b16 %v5709
        %v6411 = vunpack.c.h.b16 %v5709
        %v6412 = vunpack.c.l.b16 %v5710
        %v6413 = vunpack.c.h.b16 %v5710
        %v6414 = vunpack.c.l.b16 %v5711
        %v6415 = vunpack.c.h.b16 %v5711
        %v6416 = vunpack.c.l.b16 %v5712
        %v6417 = vunpack.c.h.b16 %v5712
        %v6418 = vunpack.c.l.b16 %v5713
        %v6419 = vunpack.c.h.b16 %v5713
        %v6420 = vunpack.c.l.b16 %v5714
        %v6421 = vunpack.c.h.b16 %v5714
        %v6422 = vunpack.c.l.b16 %v5715
        %v6423 = vunpack.c.h.b16 %v5715
        %v6424 = vunpack.c.l.b16 %v5716
        %v6425 = vunpack.c.h.b16 %v5716
        %v6426 = vunpack.c.l.b16 %v5717
        %v6427 = vunpack.c.h.b16 %v5717
        %v6428 = vunpack.c.l.b16 %v5718
        %v6429 = vunpack.c.h.b16 %v5718
        %v6430 = vunpack.c.l.b16 %v5719
        %v6431 = vunpack.c.h.b16 %v5719
        %v6432 = vunpack.c.l.b16 %v5720
        %v6433 = vunpack.c.h.b16 %v5720
        %v6434 = vunpack.c.l.b16 %v5721
        %v6435 = vunpack.c.h.b16 %v5721
        %v6436 = vunpack.c.l.b16 %v5722
        %v6437 = vunpack.c.h.b16 %v5722
        %v6438 = vunpack.c.l.b16 %v5723
        %v6439 = vunpack.c.h.b16 %v5723
        %v6440 = vunpack.c.l.b16 %v5724
        %v6441 = vunpack.c.h.b16 %v5724
        %v6442 = vunpack.c.l.b16 %v5725
        %v6443 = vunpack.c.h.b16 %v5725
        %v6444 = vunpack.c.l.b16 %v5726
        %v6445 = vunpack.c.h.b16 %v5726
        %v6446 = vunpack.c.l.b16 %v5727
        %v6447 = vunpack.c.h.b16 %v5727
        %v6448 = vunpack.c.l.b16 %v5728
        %v6449 = vunpack.c.h.b16 %v5728
        %v6450 = vunpack.c.l.b16 %v5729
        %v6451 = vunpack.c.h.b16 %v5729
        %v6452 = vunpack.c.l.b16 %v5730
        %v6453 = vunpack.c.h.b16 %v5730
        %v6454 = vunpack.c.l.b16 %v5731
        %v6455 = vunpack.c.h.b16 %v5731
        %v6456 = vunpack.c.l.b16 %v5732
        %v6457 = vunpack.c.h.b16 %v5732
        %v6458 = vunpack.c.l.b16 %v5733
        %v6459 = vunpack.c.h.b16 %v5733
        %v6460 = vunpack.c.l.b16 %v5734
        %v6461 = vunpack.c.h.b16 %v5734
        %v6462 = vunpack.c.l.b16 %v5735
        %v6463 = vunpack.c.h.b16 %v5735
        %v6464 = vunpack.c.l.b16 %v5736
        %v6465 = vunpack.c.h.b16 %v5736
        %v6466 = vunpack.c.l.b16 %v5737
        %v6467 = vunpack.c.h.b16 %v5737
        %v6468 = vunpack.c.l.b16 %v5738
        %v6469 = vunpack.c.h.b16 %v5738
        %v6470 = vunpack.c.l.b16 %v5739
        %v6471 = vunpack.c.h.b16 %v5739
        %v6472 = vunpack.c.l.b16 %v5740
        %v6473 = vunpack.c.h.b16 %v5740
        %v6474 = vunpack.c.l.b16 %v5741
        %v6475 = vunpack.c.h.b16 %v5741
        %v6476 = vunpack.c.l.b16 %v5742
        %v6477 = vunpack.c.h.b16 %v5742
        %v6478 = vunpack.c.l.b16 %v5743
        %v6479 = vunpack.c.h.b16 %v5743
        %v6480 = vunpack.c.l.b16 %v5744
        %v6481 = vunpack.c.h.b16 %v5744
        %v6482 = vunpack.c.l.b16 %v5745
        %v6483 = vunpack.c.h.b16 %v5745
        %v6484 = vunpack.c.l.b16 %v5746
        %v6485 = vunpack.c.h.b16 %v5746
        %v6486 = vunpack.c.l.b16 %v5747
        %v6487 = vunpack.c.h.b16 %v5747
        %v6488 = vunpack.c.l.b16 %v5748
        %v6489 = vunpack.c.h.b16 %v5748
        %v6490 = vunpack.c.l.b16 %v5749
        %v6491 = vunpack.c.h.b16 %v5749
        %v6492 = vunpack.c.l.b16 %v5750
        %v6493 = vunpack.c.h.b16 %v5750
        %v6494 = vunpack.c.l.b16 %v5751
        %v6495 = vunpack.c.h.b16 %v5751
        %v6496 = vunpack.c.l.b16 %v5752
        %v6497 = vunpack.c.h.b16 %v5752
        %v6498 = vunpack.c.l.b16 %v5753
        %v6499 = vunpack.c.h.b16 %v5753
        %v6500 = vunpack.c.l.b16 %v5754
        %v6501 = vunpack.c.h.b16 %v5754
        %v6502 = vunpack.c.l.b16 %v5755
        %v6503 = vunpack.c.h.b16 %v5755
        %v6504 = vunpack.c.l.b16 %v5756
        %v6505 = vunpack.c.h.b16 %v5756
        %v6506 = vunpack.c.l.b16 %v5757
        %v6507 = vunpack.c.h.b16 %v5757
        %v6508 = vunpack.c.l.b16 %v5758
        %v6509 = vunpack.c.h.b16 %v5758
        %v6510 = vunpack.c.l.b16 %v5759
        %v6511 = vunpack.c.h.b16 %v5759
        %v6512 = vunpack.c.l.b16 %v5760
        %v6513 = vunpack.c.h.b16 %v5760
        %v6514 = vunpack.c.l.b16 %v5761
        %v6515 = vunpack.c.h.b16 %v5761
        %v6516 = vunpack.c.l.b16 %v5762
        %v6517 = vunpack.c.h.b16 %v5762
        %v6518 = vunpack.c.l.b16 %v5763
        %v6519 = vunpack.c.h.b16 %v5763
        %v6520 = vunpack.c.l.b16 %v5764
        %v6521 = vunpack.c.h.b16 %v5764
        %v6522 = vunpack.c.l.b16 %v5765
        %v6523 = vunpack.c.h.b16 %v5765
        %v6524 = vunpack.c.l.b16 %v5766
        %v6525 = vunpack.c.h.b16 %v5766
        %v6526 = vunpack.c.l.b16 %v5767
        %v6527 = vunpack.c.h.b16 %v5767
        %v6528 = vunpack.c.l.b16 %v5768
        %v6529 = vunpack.c.h.b16 %v5768
        %v6530 = vunpack.c.l.b16 %v5769
        %v6531 = vunpack.c.h.b16 %v5769
        %v6532 = vunpack.c.l.b16 %v5770
        %v6533 = vunpack.c.h.b16 %v5770
        %v6534 = vunpack.c.l.b16 %v5771
        %v6535 = vunpack.c.h.b16 %v5771
        %v6536 = vunpack.c.l.b16 %v5772
        %v6537 = vunpack.c.h.b16 %v5772
        %v6538 = vunpack.c.l.b16 %v5773
        %v6539 = vunpack.c.h.b16 %v5773
        %v6540 = vunpack.c.l.b16 %v5774
        %v6541 = vunpack.c.h.b16 %v5774
        %v6542 = vunpack.c.l.b16 %v5775
        %v6543 = vunpack.c.h.b16 %v5775
        %v6544 = vunpack.c.l.b16 %v5776
        %v6545 = vunpack.c.h.b16 %v5776
        %v6546 = vunpack.c.l.b16 %v5777
        %v6547 = vunpack.c.h.b16 %v5777
        %v6548 = vunpack.c.l.b16 %v5778
        %v6549 = vunpack.c.h.b16 %v5778
        %v6550 = vunpack.c.l.b16 %v5779
        %v6551 = vunpack.c.h.b16 %v5779
        %v6552 = vunpack.c.l.b16 %v5780
        %v6553 = vunpack.c.h.b16 %v5780
        %v6554 = vunpack.c.l.b16 %v5781
        %v6555 = vunpack.c.h.b16 %v5781
        %v6556 = vunpack.c.l.b16 %v5782
        %v6557 = vunpack.c.h.b16 %v5782
        %v6558 = vunpack.c.l.b16 %v5783
        %v6559 = vunpack.c.h.b16 %v5783
        %v6560 = vunpack.c.l.b16 %v5784
        %v6561 = vunpack.c.h.b16 %v5784
        %v6562 = vunpack.c.l.b16 %v5785
        %v6563 = vunpack.c.h.b16 %v5785
        %v6564 = vunpack.c.l.b16 %v5786
        %v6565 = vunpack.c.h.b16 %v5786
        %v6566 = vunpack.c.l.b16 %v5787
        %v6567 = vunpack.c.h.b16 %v5787
        %v6568 = vunpack.c.l.b16 %v5788
        %v6569 = vunpack.c.h.b16 %v5788
        %v6570 = vunpack.c.l.b16 %v5789
        %v6571 = vunpack.c.h.b16 %v5789
        %v6572 = vunpack.c.l.b16 %v5790
        %v6573 = vunpack.c.h.b16 %v5790
        %v6574 = vunpack.c.l.b16 %v5791
        %v6575 = vunpack.c.h.b16 %v5791
        %v6576 = vunpack.c.l.b16 %v5792
        %v6577 = vunpack.c.h.b16 %v5792
        %v6578 = vunpack.c.l.b16 %v5793
        %v6579 = vunpack.c.h.b16 %v5793
        %v6580 = vunpack.c.l.b16 %v5794
        %v6581 = vunpack.c.h.b16 %v5794
        %v6582 = vunpack.c.l.b16 %v5795
        %v6583 = vunpack.c.h.b16 %v5795
        %v6584 = vunpack.c.l.b16 %v5796
        %v6585 = vunpack.c.h.b16 %v5796
        %v6586 = vunpack.c.l.b16 %v5797
        %v6587 = vunpack.c.h.b16 %v5797
        %v6588 = vpack.c.b16 %v6080, %v6076
        %v6589 = vpack.c.b16 %v6081, %v6077
        %v6590 = vpack.c.b16 %v6082, %v6078
        %v6591 = vpack.c.b16 %v6083, %v6079
        %v6592 = vpack.c.b16 %v6088, %v6084
        %v6593 = vpack.c.b16 %v6089, %v6085
        %v6594 = vpack.c.b16 %v6090, %v6086
        %v6595 = vpack.c.b16 %v6091, %v6087
        %v6596 = vpack.c.b16 %v6096, %v6092
        %v6597 = vpack.c.b16 %v6097, %v6093
        %v6598 = vpack.c.b16 %v6098, %v6094
        %v6599 = vpack.c.b16 %v6099, %v6095
        %v6600 = vpack.c.b16 %v6104, %v6100
        %v6601 = vpack.c.b16 %v6105, %v6101
        %v6602 = vpack.c.b16 %v6106, %v6102
        %v6603 = vpack.c.b16 %v6107, %v6103
        %v6604 = vpack.c.b16 %v6112, %v6108
        %v6605 = vpack.c.b16 %v6113, %v6109
        %v6606 = vpack.c.b16 %v6114, %v6110
        %v6607 = vpack.c.b16 %v6115, %v6111
        %v6608 = vpack.c.b16 %v6120, %v6116
        %v6609 = vpack.c.b16 %v6121, %v6117
        %v6610 = vpack.c.b16 %v6122, %v6118
        %v6611 = vpack.c.b16 %v6123, %v6119
        %v6612 = vpack.c.b16 %v6128, %v6124
        %v6613 = vpack.c.b16 %v6129, %v6125
        %v6614 = vpack.c.b16 %v6130, %v6126
        %v6615 = vpack.c.b16 %v6131, %v6127
        %v6616 = vpack.c.b16 %v6136, %v6132
        %v6617 = vpack.c.b16 %v6137, %v6133
        %v6618 = vpack.c.b16 %v6138, %v6134
        %v6619 = vpack.c.b16 %v6139, %v6135
        %v6620 = vpack.c.b16 %v6144, %v6140
        %v6621 = vpack.c.b16 %v6145, %v6141
        %v6622 = vpack.c.b16 %v6146, %v6142
        %v6623 = vpack.c.b16 %v6147, %v6143
        %v6624 = vpack.c.b16 %v6152, %v6148
        %v6625 = vpack.c.b16 %v6153, %v6149
        %v6626 = vpack.c.b16 %v6154, %v6150
        %v6627 = vpack.c.b16 %v6155, %v6151
        %v6628 = vpack.c.b16 %v6160, %v6156
        %v6629 = vpack.c.b16 %v6161, %v6157
        %v6630 = vpack.c.b16 %v6162, %v6158
        %v6631 = vpack.c.b16 %v6163, %v6159
        %v6632 = vpack.c.b16 %v6168, %v6164
        %v6633 = vpack.c.b16 %v6169, %v6165
        %v6634 = vpack.c.b16 %v6170, %v6166
        %v6635 = vpack.c.b16 %v6171, %v6167
        %v6636 = vpack.c.b16 %v6176, %v6172
        %v6637 = vpack.c.b16 %v6177, %v6173
        %v6638 = vpack.c.b16 %v6178, %v6174
        %v6639 = vpack.c.b16 %v6179, %v6175
        %v6640 = vpack.c.b16 %v6184, %v6180
        %v6641 = vpack.c.b16 %v6185, %v6181
        %v6642 = vpack.c.b16 %v6186, %v6182
        %v6643 = vpack.c.b16 %v6187, %v6183
        %v6644 = vpack.c.b16 %v6192, %v6188
        %v6645 = vpack.c.b16 %v6193, %v6189
        %v6646 = vpack.c.b16 %v6194, %v6190
        %v6647 = vpack.c.b16 %v6195, %v6191
        %v6648 = vpack.c.b16 %v6200, %v6196
        %v6649 = vpack.c.b16 %v6201, %v6197
        %v6650 = vpack.c.b16 %v6202, %v6198
        %v6651 = vpack.c.b16 %v6203, %v6199
        %v6652 = vpack.c.b16 %v6208, %v6204
        %v6653 = vpack.c.b16 %v6209, %v6205
        %v6654 = vpack.c.b16 %v6210, %v6206
        %v6655 = vpack.c.b16 %v6211, %v6207
        %v6656 = vpack.c.b16 %v6216, %v6212
        %v6657 = vpack.c.b16 %v6217, %v6213
        %v6658 = vpack.c.b16 %v6218, %v6214
        %v6659 = vpack.c.b16 %v6219, %v6215
        %v6660 = vpack.c.b16 %v6224, %v6220
        %v6661 = vpack.c.b16 %v6225, %v6221
        %v6662 = vpack.c.b16 %v6226, %v6222
        %v6663 = vpack.c.b16 %v6227, %v6223
        %v6664 = vpack.c.b16 %v6232, %v6228
        %v6665 = vpack.c.b16 %v6233, %v6229
        %v6666 = vpack.c.b16 %v6234, %v6230
        %v6667 = vpack.c.b16 %v6235, %v6231
        %v6668 = vpack.c.b16 %v6240, %v6236
        %v6669 = vpack.c.b16 %v6241, %v6237
        %v6670 = vpack.c.b16 %v6242, %v6238
        %v6671 = vpack.c.b16 %v6243, %v6239
        %v6672 = vpack.c.b16 %v6248, %v6244
        %v6673 = vpack.c.b16 %v6249, %v6245
        %v6674 = vpack.c.b16 %v6250, %v6246
        %v6675 = vpack.c.b16 %v6251, %v6247
        %v6676 = vpack.c.b16 %v6256, %v6252
        %v6677 = vpack.c.b16 %v6257, %v6253
        %v6678 = vpack.c.b16 %v6258, %v6254
        %v6679 = vpack.c.b16 %v6259, %v6255
        %v6680 = vpack.c.b16 %v6264, %v6260
        %v6681 = vpack.c.b16 %v6265, %v6261
        %v6682 = vpack.c.b16 %v6266, %v6262
        %v6683 = vpack.c.b16 %v6267, %v6263
        %v6684 = vpack.c.b16 %v6272, %v6268
        %v6685 = vpack.c.b16 %v6273, %v6269
        %v6686 = vpack.c.b16 %v6274, %v6270
        %v6687 = vpack.c.b16 %v6275, %v6271
        %v6688 = vpack.c.b16 %v6280, %v6276
        %v6689 = vpack.c.b16 %v6281, %v6277
        %v6690 = vpack.c.b16 %v6282, %v6278
        %v6691 = vpack.c.b16 %v6283, %v6279
        %v6692 = vpack.c.b16 %v6288, %v6284
        %v6693 = vpack.c.b16 %v6289, %v6285
        %v6694 = vpack.c.b16 %v6290, %v6286
        %v6695 = vpack.c.b16 %v6291, %v6287
        %v6696 = vpack.c.b16 %v6296, %v6292
        %v6697 = vpack.c.b16 %v6297, %v6293
        %v6698 = vpack.c.b16 %v6298, %v6294
        %v6699 = vpack.c.b16 %v6299, %v6295
        %v6700 = vpack.c.b16 %v6304, %v6300
        %v6701 = vpack.c.b16 %v6305, %v6301
        %v6702 = vpack.c.b16 %v6306, %v6302
        %v6703 = vpack.c.b16 %v6307, %v6303
        %v6704 = vpack.c.b16 %v6312, %v6308
        %v6705 = vpack.c.b16 %v6313, %v6309
        %v6706 = vpack.c.b16 %v6314, %v6310
        %v6707 = vpack.c.b16 %v6315, %v6311
        %v6708 = vpack.c.b16 %v6320, %v6316
        %v6709 = vpack.c.b16 %v6321, %v6317
        %v6710 = vpack.c.b16 %v6322, %v6318
        %v6711 = vpack.c.b16 %v6323, %v6319
        %v6712 = vpack.c.b16 %v6328, %v6324
        %v6713 = vpack.c.b16 %v6329, %v6325
        %v6714 = vpack.c.b16 %v6330, %v6326
        %v6715 = vpack.c.b16 %v6331, %v6327
        %v6716 = vpack.c.b16 %v6336, %v6332
        %v6717 = vpack.c.b16 %v6337, %v6333
        %v6718 = vpack.c.b16 %v6338, %v6334
        %v6719 = vpack.c.b16 %v6339, %v6335
        %v6720 = vpack.c.b16 %v6344, %v6340
        %v6721 = vpack.c.b16 %v6345, %v6341
        %v6722 = vpack.c.b16 %v6346, %v6342
        %v6723 = vpack.c.b16 %v6347, %v6343
        %v6724 = vpack.c.b16 %v6352, %v6348
        %v6725 = vpack.c.b16 %v6353, %v6349
        %v6726 = vpack.c.b16 %v6354, %v6350
        %v6727 = vpack.c.b16 %v6355, %v6351
        %v6728 = vpack.c.b16 %v6360, %v6356
        %v6729 = vpack.c.b16 %v6361, %v6357
        %v6730 = vpack.c.b16 %v6362, %v6358
        %v6731 = vpack.c.b16 %v6363, %v6359
        %v6732 = vpack.c.b16 %v6368, %v6364
        %v6733 = vpack.c.b16 %v6369, %v6365
        %v6734 = vpack.c.b16 %v6370, %v6366
        %v6735 = vpack.c.b16 %v6371, %v6367
        %v6736 = vpack.c.b16 %v6376, %v6372
        %v6737 = vpack.c.b16 %v6377, %v6373
        %v6738 = vpack.c.b16 %v6378, %v6374
        %v6739 = vpack.c.b16 %v6379, %v6375
        %v6740 = vpack.c.b16 %v6384, %v6380
        %v6741 = vpack.c.b16 %v6385, %v6381
        %v6742 = vpack.c.b16 %v6386, %v6382
        %v6743 = vpack.c.b16 %v6387, %v6383
        %v6744 = vpack.c.b16 %v6392, %v6388
        %v6745 = vpack.c.b16 %v6393, %v6389
        %v6746 = vpack.c.b16 %v6394, %v6390
        %v6747 = vpack.c.b16 %v6395, %v6391
        %v6748 = vpack.c.b16 %v6400, %v6396
        %v6749 = vpack.c.b16 %v6401, %v6397
        %v6750 = vpack.c.b16 %v6402, %v6398
        %v6751 = vpack.c.b16 %v6403, %v6399
        %v6752 = vpack.c.b16 %v6408, %v6404
        %v6753 = vpack.c.b16 %v6409, %v6405
        %v6754 = vpack.c.b16 %v6410, %v6406
        %v6755 = vpack.c.b16 %v6411, %v6407
        %v6756 = vpack.c.b16 %v6416, %v6412
        %v6757 = vpack.c.b16 %v6417, %v6413
        %v6758 = vpack.c.b16 %v6418, %v6414
        %v6759 = vpack.c.b16 %v6419, %v6415
        %v6760 = vpack.c.b16 %v6424, %v6420
        %v6761 = vpack.c.b16 %v6425, %v6421
        %v6762 = vpack.c.b16 %v6426, %v6422
        %v6763 = vpack.c.b16 %v6427, %v6423
        %v6764 = vpack.c.b16 %v6432, %v6428
        %v6765 = vpack.c.b16 %v6433, %v6429
        %v6766 = vpack.c.b16 %v6434, %v6430
        %v6767 = vpack.c.b16 %v6435, %v6431
        %v6768 = vpack.c.b16 %v6440, %v6436
        %v6769 = vpack.c.b16 %v6441, %v6437
        %v6770 = vpack.c.b16 %v6442, %v6438
        %v6771 = vpack.c.b16 %v6443, %v6439
        %v6772 = vpack.c.b16 %v6448, %v6444
        %v6773 = vpack.c.b16 %v6449, %v6445
        %v6774 = vpack.c.b16 %v6450, %v6446
        %v6775 = vpack.c.b16 %v6451, %v6447
        %v6776 = vpack.c.b16 %v6456, %v6452
        %v6777 = vpack.c.b16 %v6457, %v6453
        %v6778 = vpack.c.b16 %v6458, %v6454
        %v6779 = vpack.c.b16 %v6459, %v6455
        %v6780 = vpack.c.b16 %v6464, %v6460
        %v6781 = vpack.c.b16 %v6465, %v6461
        %v6782 = vpack.c.b16 %v6466, %v6462
        %v6783 = vpack.c.b16 %v6467, %v6463
        %v6784 = vpack.c.b16 %v6472, %v6468
        %v6785 = vpack.c.b16 %v6473, %v6469
        %v6786 = vpack.c.b16 %v6474, %v6470
        %v6787 = vpack.c.b16 %v6475, %v6471
        %v6788 = vpack.c.b16 %v6480, %v6476
        %v6789 = vpack.c.b16 %v6481, %v6477
        %v6790 = vpack.c.b16 %v6482, %v6478
        %v6791 = vpack.c.b16 %v6483, %v6479
        %v6792 = vpack.c.b16 %v6488, %v6484
        %v6793 = vpack.c.b16 %v6489, %v6485
        %v6794 = vpack.c.b16 %v6490, %v6486
        %v6795 = vpack.c.b16 %v6491, %v6487
        %v6796 = vpack.c.b16 %v6496, %v6492
        %v6797 = vpack.c.b16 %v6497, %v6493
        %v6798 = vpack.c.b16 %v6498, %v6494
        %v6799 = vpack.c.b16 %v6499, %v6495
        %v6800 = vpack.c.b16 %v6504, %v6500
        %v6801 = vpack.c.b16 %v6505, %v6501
        %v6802 = vpack.c.b16 %v6506, %v6502
        %v6803 = vpack.c.b16 %v6507, %v6503
        %v6804 = vpack.c.b16 %v6512, %v6508
        %v6805 = vpack.c.b16 %v6513, %v6509
        %v6806 = vpack.c.b16 %v6514, %v6510
        %v6807 = vpack.c.b16 %v6515, %v6511
        %v6808 = vpack.c.b16 %v6520, %v6516
        %v6809 = vpack.c.b16 %v6521, %v6517
        %v6810 = vpack.c.b16 %v6522, %v6518
        %v6811 = vpack.c.b16 %v6523, %v6519
        %v6812 = vpack.c.b16 %v6528, %v6524
        %v6813 = vpack.c.b16 %v6529, %v6525
        %v6814 = vpack.c.b16 %v6530, %v6526
        %v6815 = vpack.c.b16 %v6531, %v6527
        %v6816 = vpack.c.b16 %v6536, %v6532
        %v6817 = vpack.c.b16 %v6537, %v6533
        %v6818 = vpack.c.b16 %v6538, %v6534
        %v6819 = vpack.c.b16 %v6539, %v6535
        %v6820 = vpack.c.b16 %v6544, %v6540
        %v6821 = vpack.c.b16 %v6545, %v6541
        %v6822 = vpack.c.b16 %v6546, %v6542
        %v6823 = vpack.c.b16 %v6547, %v6543
        %v6824 = vpack.c.b16 %v6552, %v6548
        %v6825 = vpack.c.b16 %v6553, %v6549
        %v6826 = vpack.c.b16 %v6554, %v6550
        %v6827 = vpack.c.b16 %v6555, %v6551
        %v6828 = vpack.c.b16 %v6560, %v6556
        %v6829 = vpack.c.b16 %v6561, %v6557
        %v6830 = vpack.c.b16 %v6562, %v6558
        %v6831 = vpack.c.b16 %v6563, %v6559
        %v6832 = vpack.c.b16 %v6568, %v6564
        %v6833 = vpack.c.b16 %v6569, %v6565
        %v6834 = vpack.c.b16 %v6570, %v6566
        %v6835 = vpack.c.b16 %v6571, %v6567
        %v6836 = vpack.c.b16 %v6576, %v6572
        %v6837 = vpack.c.b16 %v6577, %v6573
        %v6838 = vpack.c.b16 %v6578, %v6574
        %v6839 = vpack.c.b16 %v6579, %v6575
        %v6840 = vpack.c.b16 %v6584, %v6580
        %v6841 = vpack.c.b16 %v6585, %v6581
        %v6842 = vpack.c.b16 %v6586, %v6582
        %v6843 = vpack.c.b16 %v6587, %v6583
        %7100 = vmatprep.subr.bf16.mxu0 %v6589
        %7101 = vmatpush1.bf16.msra.mxu0 %v6588
        %7102 = vmatprep.subr.bf16.mxu0 %v6593
        %7103 = vmatpush1.bf16.msra.mxu0 %v6592
        %7104 = vmatprep.subr.bf16.mxu0 %v6597
        %7105 = vmatpush1.bf16.msra.mxu0 %v6596
        %7106 = vmatprep.subr.bf16.mxu0 %v6601
        %7107 = vmatpush1.bf16.msra.mxu0 %v6600
        %7108 = vmatprep.subr.bf16.mxu0 %v6605
        %7109 = vmatpush1.bf16.msra.mxu0 %v6604
        %7110 = vmatprep.subr.bf16.mxu0 %v6609
        %7111 = vmatpush1.bf16.msra.mxu0 %v6608
        %7112 = vmatprep.subr.bf16.mxu0 %v6613
        %7113 = vmatpush1.bf16.msra.mxu0 %v6612
        %7114 = vmatprep.subr.bf16.mxu0 %v6617
        %7115 = vmatpush1.bf16.msra.mxu0 %v6616
        %7116 = vmatprep.subr.bf16.mxu0 %v6621
        %7117 = vmatpush1.bf16.msra.mxu0 %v6620
        %7118 = vmatprep.subr.bf16.mxu0 %v6625
        %7119 = vmatpush1.bf16.msra.mxu0 %v6624
        %7120 = vmatprep.subr.bf16.mxu0 %v6629
        %7121 = vmatpush1.bf16.msra.mxu0 %v6628
        %7122 = vmatprep.subr.bf16.mxu0 %v6633
        %7123 = vmatpush1.bf16.msra.mxu0 %v6632
        %7124 = vmatprep.subr.bf16.mxu0 %v6637
        %7125 = vmatpush1.bf16.msra.mxu0 %v6636
        %7126 = vmatprep.subr.bf16.mxu0 %v6641
        %7127 = vmatpush1.bf16.msra.mxu0 %v6640
        %7128 = vmatprep.subr.bf16.mxu0 %v6645
        %7129 = vmatpush1.bf16.msra.mxu0 %v6644
        %7130 = vmatprep.subr.bf16.mxu0 %v6649
        %7131 = vmatpush1.bf16.msra.mxu0 %v6648
        %7132 = vmatprep.mubr.bf16.mxu0 %v5287
        %7133 = vmatmul.mubr.bf16.gmra.mrb[0].mxu0 %v5286
        %v7134 = vpop.f32.mrb[0].mxu0
        %v7135 = vadd.f32 %v5803, %v7134
        %v7136 = vpop.f32.mrb[0].mxu0
        %v7137 = vadd.f32 %v5807, %v7136
        %v7138 = vpop.f32.mrb[0].mxu0
        %v7139 = vadd.f32 %v5803, %v7138
        %v7140 = vpop.f32.mrb[0].mxu0
        %v7141 = vadd.f32 %v5807, %v7140
        %7142 = vmatprep.mubr.bf16.mxu0 %v5295
        %7143 = vmatmul.mubr.bf16.gmra.mrb[0].mxu0 %v5294
        %v7144 = vpop.f32.mrb[0].mxu0
        %v7145 = vadd.f32 %v5803, %v7144
        %v7146 = vpop.f32.mrb[0].mxu0
        %v7147 = vadd.f32 %v5807, %v7146
        %v7148 = vpop.f32.mrb[0].mxu0
        %v7149 = vadd.f32 %v5803, %v7148
        %v7150 = vpop.f32.mrb[0].mxu0
        %v7151 = vadd.f32 %v5807, %v7150
        %7152 = vmatprep.mubr.bf16.mxu0 %v5303
        %7153 = vmatmul.mubr.bf16.gmra.mrb[0].mxu0 %v5302
        %v7154 = vpop.f32.mrb[0].mxu0
        %v7155 = vadd.f32 %v5803, %v7154
        %v7156 = vpop.f32.mrb[0].mxu0
        %v7157 = vadd.f32 %v5807, %v7156
        %v7158 = vpop.f32.mrb[0].mxu0
        %v7159 = vadd.f32 %v5803, %v7158
        %v7160 = vpop.f32.mrb[0].mxu0
        %v7161 = vadd.f32 %v5807, %v7160
        %7162 = vmatprep.mubr.bf16.mxu0 %v5311
        %7163 = vmatmul.mubr.bf16.gmra.mrb[0].mxu0 %v5310
        %v7164 = vpop.f32.mrb[0].mxu0
        %v7165 = vadd.f32 %v5803, %v7164
        %v7166 = vpop.f32.mrb[0].mxu0
        %v7167 = vadd.f32 %v5807, %v7166
        %v7168 = vpop.f32.mrb[0].mxu0
        %v7169 = vadd.f32 %v5803, %v7168
        %v7170 = vpop.f32.mrb[0].mxu0
        %v7171 = vadd.f32 %v5807, %v7170
        %7172 = vmatprep.mubr.bf16.mxu0 %v5319
        %7173 = vmatmul.mubr.bf16.gmra.mrb[0].mxu0 %v5318
        %v7174 = vpop.f32.mrb[0].mxu0
        %v7175 = vadd.f32 %v5803, %v7174
        %v7176 = vpop.f32.mrb[0].mxu0
        %v7177 = vadd.f32 %v5807, %v7176
        %v7178 = vpop.f32.mrb[0].mxu0
        %v7179 = vadd.f32 %v5803, %v7178
        %v7180 = vpop.f32.mrb[0].mxu0
        %v7181 = vadd.f32 %v5807, %v7180
        %7182 = vmatprep.mubr.bf16.mxu0 %v5327
        %7183 = vmatmul.mubr.bf16.gmra.mrb[0].mxu0 %v5326
        %v7184 = vpop.f32.mrb[0].mxu0
        %v7185 = vadd.f32 %v5803, %v7184
        %v7186 = vpop.f32.mrb[0].mxu0
        %v7187 = vadd.f32 %v5807, %v7186
        %v7188 = vpop.f32.mrb[0].mxu0
        %v7189 = vadd.f32 %v5803, %v7188
        %v7190 = vpop.f32.mrb[0].mxu0
        %v7191 = vadd.f32 %v5807, %v7190
        %7192 = vmatprep.mubr.bf16.mxu0 %v5335
        %7193 = vmatmul.mubr.bf16.gmra.mrb[0].mxu0 %v5334
        %v7194 = vpop.f32.mrb[0].mxu0
        %v7195 = vadd.f32 %v5803, %v7194
        %v7196 = vpop.f32.mrb[0].mxu0
        %v7197 = vadd.f32 %v5807, %v7196
        %v7198 = vpop.f32.mrb[0].mxu0
        %v7199 = vadd.f32 %v5803, %v7198
        %v7200 = vpop.f32.mrb[0].mxu0
        %v7201 = vadd.f32 %v5807, %v7200
        %7202 = vmatprep.mubr.bf16.mxu0 %v5343
        %7203 = vmatmul.mubr.bf16.gmra.mrb[0].mxu0 %v5342
        %v7204 = vpop.f32.mrb[0].mxu0
        %v7205 = vadd.f32 %v5803, %v7204
        %v7206 = vpop.f32.mrb[0].mxu0
        %v7207 = vadd.f32 %v5807, %v7206
        %v7208 = vpop.f32.mrb[0].mxu0
        %v7209 = vadd.f32 %v5803, %v7208
        %v7210 = vpop.f32.mrb[0].mxu0
        %v7211 = vadd.f32 %v5807, %v7210
        %7212 = vmatprep.mubr.bf16.mxu0 %v5351
        %7213 = vmatmul.mubr.bf16.gmra.mrb[0].mxu0 %v5350
        %v7214 = vpop.f32.mrb[0].mxu0
        %v7215 = vadd.f32 %v5803, %v7214
        %v7216 = vpop.f32.mrb[0].mxu0
        %v7217 = vadd.f32 %v5807, %v7216
        %v7218 = vpop.f32.mrb[0].mxu0
        %v7219 = vadd.f32 %v5803, %v7218
        %v7220 = vpop.f32.mrb[0].mxu0
        %v7221 = vadd.f32 %v5807, %v7220
        %7222 = vmatprep.mubr.bf16.mxu0 %v5359
        %7223 = vmatmul.mubr.bf16.gmra.mrb[0].mxu0 %v5358
        %v7224 = vpop.f32.mrb[0].mxu0
        %v7225 = vadd.f32 %v5803, %v7224
        %v7226 = vpop.f32.mrb[0].mxu0
        %v7227 = vadd.f32 %v5807, %v7226
        %v7228 = vpop.f32.mrb[0].mxu0
        %v7229 = vadd.f32 %v5803, %v7228
        %v7230 = vpop.f32.mrb[0].mxu0
        %v7231 = vadd.f32 %v5807, %v7230
        %7232 = vmatprep.mubr.bf16.mxu0 %v5367
        %7233 = vmatmul.mubr.bf16.gmra.mrb[0].mxu0 %v5366
        %v7234 = vpop.f32.mrb[0].mxu0
        %v7235 = vadd.f32 %v5803, %v7234
        %v7236 = vpop.f32.mrb[0].mxu0
        %v7237 = vadd.f32 %v5807, %v7236
        %v7238 = vpop.f32.mrb[0].mxu0
        %v7239 = vadd.f32 %v5803, %v7238
        %v7240 = vpop.f32.mrb[0].mxu0
        %v7241 = vadd.f32 %v5807, %v7240
        %7242 = vmatprep.mubr.bf16.mxu0 %v5375
        %7243 = vmatmul.mubr.bf16.gmra.mrb[0].mxu0 %v5374
        %v7244 = vpop.f32.mrb[0].mxu0
        %v7245 = vadd.f32 %v5803, %v7244
        %v7246 = vpop.f32.mrb[0].mxu0
        %v7247 = vadd.f32 %v5807, %v7246
        %v7248 = vpop.f32.mrb[0].mxu0
        %v7249 = vadd.f32 %v5803, %v7248
        %v7250 = vpop.f32.mrb[0].mxu0
        %v7251 = vadd.f32 %v5807, %v7250
        %7252 = vmatprep.mubr.bf16.mxu0 %v5383
        %7253 = vmatmul.mubr.bf16.gmra.mrb[0].mxu0 %v5382
        %v7254 = vpop.f32.mrb[0].mxu0
        %v7255 = vadd.f32 %v5803, %v7254
        %v7256 = vpop.f32.mrb[0].mxu0
        %v7257 = vadd.f32 %v5807, %v7256
        %v7258 = vpop.f32.mrb[0].mxu0
        %v7259 = vadd.f32 %v5803, %v7258
        %v7260 = vpop.f32.mrb[0].mxu0
        %v7261 = vadd.f32 %v5807, %v7260
        %7262 = vmatprep.mubr.bf16.mxu0 %v5391
        %7263 = vmatmul.mubr.bf16.gmra.mrb[0].mxu0 %v5390
        %v7264 = vpop.f32.mrb[0].mxu0
        %v7265 = vadd.f32 %v5803, %v7264
        %v7266 = vpop.f32.mrb[0].mxu0
        %v7267 = vadd.f32 %v5807, %v7266
        %v7268 = vpop.f32.mrb[0].mxu0
        %v7269 = vadd.f32 %v5803, %v7268
        %v7270 = vpop.f32.mrb[0].mxu0
        %v7271 = vadd.f32 %v5807, %v7270
        %7272 = vmatprep.mubr.bf16.mxu0 %v5399
        %7273 = vmatmul.mubr.bf16.gmra.mrb[0].mxu0 %v5398
        %v7274 = vpop.f32.mrb[0].mxu0
        %v7275 = vadd.f32 %v5803, %v7274
        %v7276 = vpop.f32.mrb[0].mxu0
        %v7277 = vadd.f32 %v5807, %v7276
        %v7278 = vpop.f32.mrb[0].mxu0
        %v7279 = vadd.f32 %v5803, %v7278
        %v7280 = vpop.f32.mrb[0].mxu0
        %v7281 = vadd.f32 %v5807, %v7280
        %7282 = vmatprep.mubr.bf16.mxu0 %v5407
        %7283 = vmatmul.mubr.bf16.gmra.mrb[0].mxu0 %v5406
        %v7284 = vpop.f32.mrb[0].mxu0
        %v7285 = vadd.f32 %v5803, %v7284
        %v7286 = vpop.f32.mrb[0].mxu0
        %v7287 = vadd.f32 %v5807, %v7286
        %v7288 = vpop.f32.mrb[0].mxu0
        %v7289 = vadd.f32 %v5803, %v7288
        %v7290 = vpop.f32.mrb[0].mxu0
        %v7291 = vadd.f32 %v5807, %v7290
        %7292 = vmatprep.mubr.bf16.mxu0 %v5415
        %7293 = vmatmul.mubr.bf16.gmra.mrb[0].mxu0 %v5414
        %v7294 = vpop.f32.mrb[0].mxu0
        %v7295 = vadd.f32 %v5803, %v7294
        %v7296 = vpop.f32.mrb[0].mxu0
        %v7297 = vadd.f32 %v5807, %v7296
        %v7298 = vpop.f32.mrb[0].mxu0
        %v7299 = vadd.f32 %v5803, %v7298
        %v7300 = vpop.f32.mrb[0].mxu0
        %v7301 = vadd.f32 %v5807, %v7300
        %7302 = vmatprep.mubr.bf16.mxu0 %v5423
        %7303 = vmatmul.mubr.bf16.gmra.mrb[0].mxu0 %v5422
        %v7304 = vpop.f32.mrb[0].mxu0
        %v7305 = vadd.f32 %v5803, %v7304
        %v7306 = vpop.f32.mrb[0].mxu0
        %v7307 = vadd.f32 %v5807, %v7306
        %v7308 = vpop.f32.mrb[0].mxu0
        %v7309 = vadd.f32 %v5803, %v7308
        %v7310 = vpop.f32.mrb[0].mxu0
        %v7311 = vadd.f32 %v5807, %v7310
        %7312 = vmatprep.mubr.bf16.mxu0 %v5431
        %7313 = vmatmul.mubr.bf16.gmra.mrb[0].mxu0 %v5430
        %v7314 = vpop.f32.mrb[0].mxu0
        %v7315 = vadd.f32 %v5803, %v7314
        %v7316 = vpop.f32.mrb[0].mxu0
        %v7317 = vadd.f32 %v5807, %v7316
        %v7318 = vpop.f32.mrb[0].mxu0
        %v7319 = vadd.f32 %v5803, %v7318
        %v7320 = vpop.f32.mrb[0].mxu0
        %v7321 = vadd.f32 %v5807, %v7320
        %7322 = vmatprep.mubr.bf16.mxu0 %v5439
        %7323 = vmatmul.mubr.bf16.gmra.mrb[0].mxu0 %v5438
        %v7324 = vpop.f32.mrb[0].mxu0
        %v7325 = vadd.f32 %v5803, %v7324
        %v7326 = vpop.f32.mrb[0].mxu0
        %v7327 = vadd.f32 %v5807, %v7326
        %v7328 = vpop.f32.mrb[0].mxu0
        %v7329 = vadd.f32 %v5803, %v7328
        %v7330 = vpop.f32.mrb[0].mxu0
        %v7331 = vadd.f32 %v5807, %v7330
        %7332 = vmatprep.mubr.bf16.mxu0 %v5447
        %7333 = vmatmul.mubr.bf16.gmra.mrb[0].mxu0 %v5446
        %v7334 = vpop.f32.mrb[0].mxu0
        %v7335 = vadd.f32 %v5803, %v7334
        %v7336 = vpop.f32.mrb[0].mxu0
        %v7337 = vadd.f32 %v5807, %v7336
        %v7338 = vpop.f32.mrb[0].mxu0
        %v7339 = vadd.f32 %v5803, %v7338
        %v7340 = vpop.f32.mrb[0].mxu0
        %v7341 = vadd.f32 %v5807, %v7340
        %7342 = vmatprep.mubr.bf16.mxu0 %v5455
        %7343 = vmatmul.mubr.bf16.gmra.mrb[0].mxu0 %v5454
        %v7344 = vpop.f32.mrb[0].mxu0
        %v7345 = vadd.f32 %v5803, %v7344
        %v7346 = vpop.f32.mrb[0].mxu0
        %v7347 = vadd.f32 %v5807, %v7346
        %v7348 = vpop.f32.mrb[0].mxu0
        %v7349 = vadd.f32 %v5803, %v7348
        %v7350 = vpop.f32.mrb[0].mxu0
        %v7351 = vadd.f32 %v5807, %v7350
        %7352 = vmatprep.mubr.bf16.mxu0 %v5463
        %7353 = vmatmul.mubr.bf16.gmra.mrb[0].mxu0 %v5462
        %v7354 = vpop.f32.mrb[0].mxu0
        %v7355 = vadd.f32 %v5803, %v7354
        %v7356 = vpop.f32.mrb[0].mxu0
        %v7357 = vadd.f32 %v5807, %v7356
        %v7358 = vpop.f32.mrb[0].mxu0
        %v7359 = vadd.f32 %v5803, %v7358
        %v7360 = vpop.f32.mrb[0].mxu0
        %v7361 = vadd.f32 %v5807, %v7360
        %7362 = vmatprep.mubr.bf16.mxu0 %v5471
        %7363 = vmatmul.mubr.bf16.gmra.mrb[0].mxu0 %v5470
        %v7364 = vpop.f32.mrb[0].mxu0
        %v7365 = vadd.f32 %v5803, %v7364
        %v7366 = vpop.f32.mrb[0].mxu0
        %v7367 = vadd.f32 %v5807, %v7366
        %v7368 = vpop.f32.mrb[0].mxu0
        %v7369 = vadd.f32 %v5803, %v7368
        %v7370 = vpop.f32.mrb[0].mxu0
        %v7371 = vadd.f32 %v5807, %v7370
        %7372 = vmatprep.mubr.bf16.mxu0 %v5479
        %7373 = vmatmul.mubr.bf16.gmra.mrb[0].mxu0 %v5478
        %v7374 = vpop.f32.mrb[0].mxu0
        %v7375 = vadd.f32 %v5803, %v7374
        %v7376 = vpop.f32.mrb[0].mxu0
        %v7377 = vadd.f32 %v5807, %v7376
        %v7378 = vpop.f32.mrb[0].mxu0
        %v7379 = vadd.f32 %v5803, %v7378
        %v7380 = vpop.f32.mrb[0].mxu0
        %v7381 = vadd.f32 %v5807, %v7380
        %7382 = vmatprep.mubr.bf16.mxu0 %v5487
        %7383 = vmatmul.mubr.bf16.gmra.mrb[0].mxu0 %v5486
        %v7384 = vpop.f32.mrb[0].mxu0
        %v7385 = vadd.f32 %v5803, %v7384
        %v7386 = vpop.f32.mrb[0].mxu0
        %v7387 = vadd.f32 %v5807, %v7386
        %v7388 = vpop.f32.mrb[0].mxu0
        %v7389 = vadd.f32 %v5803, %v7388
        %v7390 = vpop.f32.mrb[0].mxu0
        %v7391 = vadd.f32 %v5807, %v7390
        %7392 = vmatprep.mubr.bf16.mxu0 %v5495
        %7393 = vmatmul.mubr.bf16.gmra.mrb[0].mxu0 %v5494
        %v7394 = vpop.f32.mrb[0].mxu0
        %v7395 = vadd.f32 %v5803, %v7394
        %v7396 = vpop.f32.mrb[0].mxu0
        %v7397 = vadd.f32 %v5807, %v7396
        %v7398 = vpop.f32.mrb[0].mxu0
        %v7399 = vadd.f32 %v5803, %v7398
        %v7400 = vpop.f32.mrb[0].mxu0
        %v7401 = vadd.f32 %v5807, %v7400
        %7402 = vmatprep.mubr.bf16.mxu0 %v5503
        %7403 = vmatmul.mubr.bf16.gmra.mrb[0].mxu0 %v5502
        %v7404 = vpop.f32.mrb[0].mxu0
        %v7405 = vadd.f32 %v5803, %v7404
        %v7406 = vpop.f32.mrb[0].mxu0
        %v7407 = vadd.f32 %v5807, %v7406
        %v7408 = vpop.f32.mrb[0].mxu0
        %v7409 = vadd.f32 %v5803, %v7408
        %v7410 = vpop.f32.mrb[0].mxu0
        %v7411 = vadd.f32 %v5807, %v7410
        %7412 = vmatprep.mubr.bf16.mxu0 %v5511
        %7413 = vmatmul.mubr.bf16.gmra.mrb[0].mxu0 %v5510
        %v7414 = vpop.f32.mrb[0].mxu0
        %v7415 = vadd.f32 %v5803, %v7414
        %v7416 = vpop.f32.mrb[0].mxu0
        %v7417 = vadd.f32 %v5807, %v7416
        %v7418 = vpop.f32.mrb[0].mxu0
        %v7419 = vadd.f32 %v5803, %v7418
        %v7420 = vpop.f32.mrb[0].mxu0
        %v7421 = vadd.f32 %v5807, %v7420
        %7422 = vmatprep.mubr.bf16.mxu0 %v5519
        %7423 = vmatmul.mubr.bf16.gmra.mrb[0].mxu0 %v5518
        %v7424 = vpop.f32.mrb[0].mxu0
        %v7425 = vadd.f32 %v5803, %v7424
        %v7426 = vpop.f32.mrb[0].mxu0
        %v7427 = vadd.f32 %v5807, %v7426
        %v7428 = vpop.f32.mrb[0].mxu0
        %v7429 = vadd.f32 %v5803, %v7428
        %v7430 = vpop.f32.mrb[0].mxu0
        %v7431 = vadd.f32 %v5807, %v7430
        %7432 = vmatprep.mubr.bf16.mxu0 %v5527
        %7433 = vmatmul.mubr.bf16.gmra.mrb[0].mxu0 %v5526
        %v7434 = vpop.f32.mrb[0].mxu0
        %v7435 = vadd.f32 %v5803, %v7434
        %v7436 = vpop.f32.mrb[0].mxu0
        %v7437 = vadd.f32 %v5807, %v7436
        %v7438 = vpop.f32.mrb[0].mxu0
        %v7439 = vadd.f32 %v5803, %v7438
        %v7440 = vpop.f32.mrb[0].mxu0
        %v7441 = vadd.f32 %v5807, %v7440
        %7442 = vmatprep.mubr.bf16.mxu0 %v5535
        %7443 = vmatmul.mubr.bf16.gmra.mrb[0].mxu0 %v5534
        %v7444 = vpop.f32.mrb[0].mxu0
        %v7445 = vadd.f32 %v5803, %v7444
        %v7446 = vpop.f32.mrb[0].mxu0
        %v7447 = vadd.f32 %v5807, %v7446
        %v7448 = vpop.f32.mrb[0].mxu0
        %v7449 = vadd.f32 %v5803, %v7448
        %v7450 = vpop.f32.mrb[0].mxu0
        %v7451 = vadd.f32 %v5807, %v7450
        %7452 = vdwg.mxu0
        %7453 = vmatprep.subr.bf16.mxu0 %v6653
        %7454 = vmatpush1.bf16.msra.mxu0 %v6652
        %7455 = vmatprep.subr.bf16.mxu0 %v6657
        %7456 = vmatpush1.bf16.msra.mxu0 %v6656
        %7457 = vmatprep.subr.bf16.mxu0 %v6661
        %7458 = vmatpush1.bf16.msra.mxu0 %v6660
        %7459 = vmatprep.subr.bf16.mxu0 %v6665
        %7460 = vmatpush1.bf16.msra.mxu0 %v6664
        %7461 = vmatprep.subr.bf16.mxu0 %v6669
        %7462 = vmatpush1.bf16.msra.mxu0 %v6668
        %7463 = vmatprep.subr.bf16.mxu0 %v6673
        %7464 = vmatpush1.bf16.msra.mxu0 %v6672
        %7465 = vmatprep.subr.bf16.mxu0 %v6677
        %7466 = vmatpush1.bf16.msra.mxu0 %v6676
        %7467 = vmatprep.subr.bf16.mxu0 %v6681
        %7468 = vmatpush1.bf16.msra.mxu0 %v6680
        %7469 = vmatprep.subr.bf16.mxu0 %v6685
        %7470 = vmatpush1.bf16.msra.mxu0 %v6684
        %7471 = vmatprep.subr.bf16.mxu0 %v6689
        %7472 = vmatpush1.bf16.msra.mxu0 %v6688
        %7473 = vmatprep.subr.bf16.mxu0 %v6693
        %7474 = vmatpush1.bf16.msra.mxu0 %v6692
        %7475 = vmatprep.subr.bf16.mxu0 %v6697
        %7476 = vmatpush1.bf16.msra.mxu0 %v6696
        %7477 = vmatprep.subr.bf16.mxu0 %v6701
        %7478 = vmatpush1.bf16.msra.mxu0 %v6700
        %7479 = vmatprep.subr.bf16.mxu0 %v6705
        %7480 = vmatpush1.bf16.msra.mxu0 %v6704
        %7481 = vmatprep.subr.bf16.mxu0 %v6709
        %7482 = vmatpush1.bf16.msra.mxu0 %v6708
        %7483 = vmatprep.subr.bf16.mxu0 %v6713
        %7484 = vmatpush1.bf16.msra.mxu0 %v6712
        %7485 = vmatprep.mubr.bf16.mxu0 %v5289
        %7486 = vmatmul.mubr.bf16.gmra.mrb[0].mxu0 %v5288
        %v7487 = vpop.f32.mrb[0].mxu0
        %v7488 = vadd.f32 %v7135, %v7487
        %v7489 = vpop.f32.mrb[0].mxu0
        %v7490 = vadd.f32 %v7137, %v7489
        %v7491 = vpop.f32.mrb[0].mxu0
        %v7492 = vadd.f32 %v7139, %v7491
        %v7493 = vpop.f32.mrb[0].mxu0
        %v7494 = vadd.f32 %v7141, %v7493
        %7495 = vmatprep.mubr.bf16.mxu0 %v5297
        %7496 = vmatmul.mubr.bf16.gmra.mrb[0].mxu0 %v5296
        %v7497 = vpop.f32.mrb[0].mxu0
        %v7498 = vadd.f32 %v7145, %v7497
        %v7499 = vpop.f32.mrb[0].mxu0
        %v7500 = vadd.f32 %v7147, %v7499
        %v7501 = vpop.f32.mrb[0].mxu0
        %v7502 = vadd.f32 %v7149, %v7501
        %v7503 = vpop.f32.mrb[0].mxu0
        %v7504 = vadd.f32 %v7151, %v7503
        %7505 = vmatprep.mubr.bf16.mxu0 %v5305
        %7506 = vmatmul.mubr.bf16.gmra.mrb[0].mxu0 %v5304
        %v7507 = vpop.f32.mrb[0].mxu0
        %v7508 = vadd.f32 %v7155, %v7507
        %v7509 = vpop.f32.mrb[0].mxu0
        %v7510 = vadd.f32 %v7157, %v7509
        %v7511 = vpop.f32.mrb[0].mxu0
        %v7512 = vadd.f32 %v7159, %v7511
        %v7513 = vpop.f32.mrb[0].mxu0
        %v7514 = vadd.f32 %v7161, %v7513
        %7515 = vmatprep.mubr.bf16.mxu0 %v5313
        %7516 = vmatmul.mubr.bf16.gmra.mrb[0].mxu0 %v5312
        %v7517 = vpop.f32.mrb[0].mxu0
        %v7518 = vadd.f32 %v7165, %v7517
        %v7519 = vpop.f32.mrb[0].mxu0
        %v7520 = vadd.f32 %v7167, %v7519
        %v7521 = vpop.f32.mrb[0].mxu0
        %v7522 = vadd.f32 %v7169, %v7521
        %v7523 = vpop.f32.mrb[0].mxu0
        %v7524 = vadd.f32 %v7171, %v7523
        %7525 = vmatprep.mubr.bf16.mxu0 %v5321
        %7526 = vmatmul.mubr.bf16.gmra.mrb[0].mxu0 %v5320
        %v7527 = vpop.f32.mrb[0].mxu0
        %v7528 = vadd.f32 %v7175, %v7527
        %v7529 = vpop.f32.mrb[0].mxu0
        %v7530 = vadd.f32 %v7177, %v7529
        %v7531 = vpop.f32.mrb[0].mxu0
        %v7532 = vadd.f32 %v7179, %v7531
        %v7533 = vpop.f32.mrb[0].mxu0
        %v7534 = vadd.f32 %v7181, %v7533
        %7535 = vmatprep.mubr.bf16.mxu0 %v5329
        %7536 = vmatmul.mubr.bf16.gmra.mrb[0].mxu0 %v5328
        %v7537 = vpop.f32.mrb[0].mxu0
        %v7538 = vadd.f32 %v7185, %v7537
        %v7539 = vpop.f32.mrb[0].mxu0
        %v7540 = vadd.f32 %v7187, %v7539
        %v7541 = vpop.f32.mrb[0].mxu0
        %v7542 = vadd.f32 %v7189, %v7541
        %v7543 = vpop.f32.mrb[0].mxu0
        %v7544 = vadd.f32 %v7191, %v7543
        %7545 = vmatprep.mubr.bf16.mxu0 %v5337
        %7546 = vmatmul.mubr.bf16.gmra.mrb[0].mxu0 %v5336
        %v7547 = vpop.f32.mrb[0].mxu0
        %v7548 = vadd.f32 %v7195, %v7547
        %v7549 = vpop.f32.mrb[0].mxu0
        %v7550 = vadd.f32 %v7197, %v7549
        %v7551 = vpop.f32.mrb[0].mxu0
        %v7552 = vadd.f32 %v7199, %v7551
        %v7553 = vpop.f32.mrb[0].mxu0
        %v7554 = vadd.f32 %v7201, %v7553
        %7555 = vmatprep.mubr.bf16.mxu0 %v5345
        %7556 = vmatmul.mubr.bf16.gmra.mrb[0].mxu0 %v5344
        %v7557 = vpop.f32.mrb[0].mxu0
        %v7558 = vadd.f32 %v7205, %v7557
        %v7559 = vpop.f32.mrb[0].mxu0
        %v7560 = vadd.f32 %v7207, %v7559
        %v7561 = vpop.f32.mrb[0].mxu0
        %v7562 = vadd.f32 %v7209, %v7561
        %v7563 = vpop.f32.mrb[0].mxu0
        %v7564 = vadd.f32 %v7211, %v7563
        %7565 = vmatprep.mubr.bf16.mxu0 %v5353
        %7566 = vmatmul.mubr.bf16.gmra.mrb[0].mxu0 %v5352
        %v7567 = vpop.f32.mrb[0].mxu0
        %v7568 = vadd.f32 %v7215, %v7567
        %v7569 = vpop.f32.mrb[0].mxu0
        %v7570 = vadd.f32 %v7217, %v7569
        %v7571 = vpop.f32.mrb[0].mxu0
        %v7572 = vadd.f32 %v7219, %v7571
        %v7573 = vpop.f32.mrb[0].mxu0
        %v7574 = vadd.f32 %v7221, %v7573
        %7575 = vmatprep.mubr.bf16.mxu0 %v5361
        %7576 = vmatmul.mubr.bf16.gmra.mrb[0].mxu0 %v5360
        %v7577 = vpop.f32.mrb[0].mxu0
        %v7578 = vadd.f32 %v7225, %v7577
        %v7579 = vpop.f32.mrb[0].mxu0
        %v7580 = vadd.f32 %v7227, %v7579
        %v7581 = vpop.f32.mrb[0].mxu0
        %v7582 = vadd.f32 %v7229, %v7581
        %v7583 = vpop.f32.mrb[0].mxu0
        %v7584 = vadd.f32 %v7231, %v7583
        %7585 = vmatprep.mubr.bf16.mxu0 %v5369
        %7586 = vmatmul.mubr.bf16.gmra.mrb[0].mxu0 %v5368
        %v7587 = vpop.f32.mrb[0].mxu0
        %v7588 = vadd.f32 %v7235, %v7587
        %v7589 = vpop.f32.mrb[0].mxu0
        %v7590 = vadd.f32 %v7237, %v7589
        %v7591 = vpop.f32.mrb[0].mxu0
        %v7592 = vadd.f32 %v7239, %v7591
        %v7593 = vpop.f32.mrb[0].mxu0
        %v7594 = vadd.f32 %v7241, %v7593
        %7595 = vmatprep.mubr.bf16.mxu0 %v5377
        %7596 = vmatmul.mubr.bf16.gmra.mrb[0].mxu0 %v5376
        %v7597 = vpop.f32.mrb[0].mxu0
        %v7598 = vadd.f32 %v7245, %v7597
        %v7599 = vpop.f32.mrb[0].mxu0
        %v7600 = vadd.f32 %v7247, %v7599
        %v7601 = vpop.f32.mrb[0].mxu0
        %v7602 = vadd.f32 %v7249, %v7601
        %v7603 = vpop.f32.mrb[0].mxu0
        %v7604 = vadd.f32 %v7251, %v7603
        %7605 = vmatprep.mubr.bf16.mxu0 %v5385
        %7606 = vmatmul.mubr.bf16.gmra.mrb[0].mxu0 %v5384
        %v7607 = vpop.f32.mrb[0].mxu0
        %v7608 = vadd.f32 %v7255, %v7607
        %v7609 = vpop.f32.mrb[0].mxu0
        %v7610 = vadd.f32 %v7257, %v7609
        %v7611 = vpop.f32.mrb[0].mxu0
        %v7612 = vadd.f32 %v7259, %v7611
        %v7613 = vpop.f32.mrb[0].mxu0
        %v7614 = vadd.f32 %v7261, %v7613
        %7615 = vmatprep.mubr.bf16.mxu0 %v5393
        %7616 = vmatmul.mubr.bf16.gmra.mrb[0].mxu0 %v5392
        %v7617 = vpop.f32.mrb[0].mxu0
        %v7618 = vadd.f32 %v7265, %v7617
        %v7619 = vpop.f32.mrb[0].mxu0
        %v7620 = vadd.f32 %v7267, %v7619
        %v7621 = vpop.f32.mrb[0].mxu0
        %v7622 = vadd.f32 %v7269, %v7621
        %v7623 = vpop.f32.mrb[0].mxu0
        %v7624 = vadd.f32 %v7271, %v7623
        %7625 = vmatprep.mubr.bf16.mxu0 %v5401
        %7626 = vmatmul.mubr.bf16.gmra.mrb[0].mxu0 %v5400
        %v7627 = vpop.f32.mrb[0].mxu0
        %v7628 = vadd.f32 %v7275, %v7627
        %v7629 = vpop.f32.mrb[0].mxu0
        %v7630 = vadd.f32 %v7277, %v7629
        %v7631 = vpop.f32.mrb[0].mxu0
        %v7632 = vadd.f32 %v7279, %v7631
        %v7633 = vpop.f32.mrb[0].mxu0
        %v7634 = vadd.f32 %v7281, %v7633
        %7635 = vmatprep.mubr.bf16.mxu0 %v5409
        %7636 = vmatmul.mubr.bf16.gmra.mrb[0].mxu0 %v5408
        %v7637 = vpop.f32.mrb[0].mxu0
        %v7638 = vadd.f32 %v7285, %v7637
        %v7639 = vpop.f32.mrb[0].mxu0
        %v7640 = vadd.f32 %v7287, %v7639
        %v7641 = vpop.f32.mrb[0].mxu0
        %v7642 = vadd.f32 %v7289, %v7641
        %v7643 = vpop.f32.mrb[0].mxu0
        %v7644 = vadd.f32 %v7291, %v7643
        %7645 = vmatprep.mubr.bf16.mxu0 %v5417
        %7646 = vmatmul.mubr.bf16.gmra.mrb[0].mxu0 %v5416
        %v7647 = vpop.f32.mrb[0].mxu0
        %v7648 = vadd.f32 %v7295, %v7647
        %v7649 = vpop.f32.mrb[0].mxu0
        %v7650 = vadd.f32 %v7297, %v7649
        %v7651 = vpop.f32.mrb[0].mxu0
        %v7652 = vadd.f32 %v7299, %v7651
        %v7653 = vpop.f32.mrb[0].mxu0
        %v7654 = vadd.f32 %v7301, %v7653
        %7655 = vmatprep.mubr.bf16.mxu0 %v5425
        %7656 = vmatmul.mubr.bf16.gmra.mrb[0].mxu0 %v5424
        %v7657 = vpop.f32.mrb[0].mxu0
        %v7658 = vadd.f32 %v7305, %v7657
        %v7659 = vpop.f32.mrb[0].mxu0
        %v7660 = vadd.f32 %v7307, %v7659
        %v7661 = vpop.f32.mrb[0].mxu0
        %v7662 = vadd.f32 %v7309, %v7661
        %v7663 = vpop.f32.mrb[0].mxu0
        %v7664 = vadd.f32 %v7311, %v7663
        %7665 = vmatprep.mubr.bf16.mxu0 %v5433
        %7666 = vmatmul.mubr.bf16.gmra.mrb[0].mxu0 %v5432
        %v7667 = vpop.f32.mrb[0].mxu0
        %v7668 = vadd.f32 %v7315, %v7667
        %v7669 = vpop.f32.mrb[0].mxu0
        %v7670 = vadd.f32 %v7317, %v7669
        %v7671 = vpop.f32.mrb[0].mxu0
        %v7672 = vadd.f32 %v7319, %v7671
        %v7673 = vpop.f32.mrb[0].mxu0
        %v7674 = vadd.f32 %v7321, %v7673
        %7675 = vmatprep.mubr.bf16.mxu0 %v5441
        %7676 = vmatmul.mubr.bf16.gmra.mrb[0].mxu0 %v5440
        %v7677 = vpop.f32.mrb[0].mxu0
        %v7678 = vadd.f32 %v7325, %v7677
        %v7679 = vpop.f32.mrb[0].mxu0
        %v7680 = vadd.f32 %v7327, %v7679
        %v7681 = vpop.f32.mrb[0].mxu0
        %v7682 = vadd.f32 %v7329, %v7681
        %v7683 = vpop.f32.mrb[0].mxu0
        %v7684 = vadd.f32 %v7331, %v7683
        %7685 = vmatprep.mubr.bf16.mxu0 %v5449
        %7686 = vmatmul.mubr.bf16.gmra.mrb[0].mxu0 %v5448
        %v7687 = vpop.f32.mrb[0].mxu0
        %v7688 = vadd.f32 %v7335, %v7687
        %v7689 = vpop.f32.mrb[0].mxu0
        %v7690 = vadd.f32 %v7337, %v7689
        %v7691 = vpop.f32.mrb[0].mxu0
        %v7692 = vadd.f32 %v7339, %v7691
        %v7693 = vpop.f32.mrb[0].mxu0
        %v7694 = vadd.f32 %v7341, %v7693
        %7695 = vmatprep.mubr.bf16.mxu0 %v5457
        %7696 = vmatmul.mubr.bf16.gmra.mrb[0].mxu0 %v5456
        %v7697 = vpop.f32.mrb[0].mxu0
        %v7698 = vadd.f32 %v7345, %v7697
        %v7699 = vpop.f32.mrb[0].mxu0
        %v7700 = vadd.f32 %v7347, %v7699
        %v7701 = vpop.f32.mrb[0].mxu0
        %v7702 = vadd.f32 %v7349, %v7701
        %v7703 = vpop.f32.mrb[0].mxu0
        %v7704 = vadd.f32 %v7351, %v7703
        %7705 = vmatprep.mubr.bf16.mxu0 %v5465
        %7706 = vmatmul.mubr.bf16.gmra.mrb[0].mxu0 %v5464
        %v7707 = vpop.f32.mrb[0].mxu0
        %v7708 = vadd.f32 %v7355, %v7707
        %v7709 = vpop.f32.mrb[0].mxu0
        %v7710 = vadd.f32 %v7357, %v7709
        %v7711 = vpop.f32.mrb[0].mxu0
        %v7712 = vadd.f32 %v7359, %v7711
        %v7713 = vpop.f32.mrb[0].mxu0
        %v7714 = vadd.f32 %v7361, %v7713
        %7715 = vmatprep.mubr.bf16.mxu0 %v5473
        %7716 = vmatmul.mubr.bf16.gmra.mrb[0].mxu0 %v5472
        %v7717 = vpop.f32.mrb[0].mxu0
        %v7718 = vadd.f32 %v7365, %v7717
        %v7719 = vpop.f32.mrb[0].mxu0
        %v7720 = vadd.f32 %v7367, %v7719
        %v7721 = vpop.f32.mrb[0].mxu0
        %v7722 = vadd.f32 %v7369, %v7721
        %v7723 = vpop.f32.mrb[0].mxu0
        %v7724 = vadd.f32 %v7371, %v7723
        %7725 = vmatprep.mubr.bf16.mxu0 %v5481
        %7726 = vmatmul.mubr.bf16.gmra.mrb[0].mxu0 %v5480
        %v7727 = vpop.f32.mrb[0].mxu0
        %v7728 = vadd.f32 %v7375, %v7727
        %v7729 = vpop.f32.mrb[0].mxu0
        %v7730 = vadd.f32 %v7377, %v7729
        %v7731 = vpop.f32.mrb[0].mxu0
        %v7732 = vadd.f32 %v7379, %v7731
        %v7733 = vpop.f32.mrb[0].mxu0
        %v7734 = vadd.f32 %v7381, %v7733
        %7735 = vmatprep.mubr.bf16.mxu0 %v5489
        %7736 = vmatmul.mubr.bf16.gmra.mrb[0].mxu0 %v5488
        %v7737 = vpop.f32.mrb[0].mxu0
        %v7738 = vadd.f32 %v7385, %v7737
        %v7739 = vpop.f32.mrb[0].mxu0
        %v7740 = vadd.f32 %v7387, %v7739
        %v7741 = vpop.f32.mrb[0].mxu0
        %v7742 = vadd.f32 %v7389, %v7741
        %v7743 = vpop.f32.mrb[0].mxu0
        %v7744 = vadd.f32 %v7391, %v7743
        %7745 = vmatprep.mubr.bf16.mxu0 %v5497
        %7746 = vmatmul.mubr.bf16.gmra.mrb[0].mxu0 %v5496
        %v7747 = vpop.f32.mrb[0].mxu0
        %v7748 = vadd.f32 %v7395, %v7747
        %v7749 = vpop.f32.mrb[0].mxu0
        %v7750 = vadd.f32 %v7397, %v7749
        %v7751 = vpop.f32.mrb[0].mxu0
        %v7752 = vadd.f32 %v7399, %v7751
        %v7753 = vpop.f32.mrb[0].mxu0
        %v7754 = vadd.f32 %v7401, %v7753
        %7755 = vmatprep.mubr.bf16.mxu0 %v5505
        %7756 = vmatmul.mubr.bf16.gmra.mrb[0].mxu0 %v5504
        %v7757 = vpop.f32.mrb[0].mxu0
        %v7758 = vadd.f32 %v7405, %v7757
        %v7759 = vpop.f32.mrb[0].mxu0
        %v7760 = vadd.f32 %v7407, %v7759
        %v7761 = vpop.f32.mrb[0].mxu0
        %v7762 = vadd.f32 %v7409, %v7761
        %v7763 = vpop.f32.mrb[0].mxu0
        %v7764 = vadd.f32 %v7411, %v7763
        %7765 = vmatprep.mubr.bf16.mxu0 %v5513
        %7766 = vmatmul.mubr.bf16.gmra.mrb[0].mxu0 %v5512
        %v7767 = vpop.f32.mrb[0].mxu0
        %v7768 = vadd.f32 %v7415, %v7767
        %v7769 = vpop.f32.mrb[0].mxu0
        %v7770 = vadd.f32 %v7417, %v7769
        %v7771 = vpop.f32.mrb[0].mxu0
        %v7772 = vadd.f32 %v7419, %v7771
        %v7773 = vpop.f32.mrb[0].mxu0
        %v7774 = vadd.f32 %v7421, %v7773
        %7775 = vmatprep.mubr.bf16.mxu0 %v5521
        %7776 = vmatmul.mubr.bf16.gmra.mrb[0].mxu0 %v5520
        %v7777 = vpop.f32.mrb[0].mxu0
        %v7778 = vadd.f32 %v7425, %v7777
        %v7779 = vpop.f32.mrb[0].mxu0
        %v7780 = vadd.f32 %v7427, %v7779
        %v7781 = vpop.f32.mrb[0].mxu0
        %v7782 = vadd.f32 %v7429, %v7781
        %v7783 = vpop.f32.mrb[0].mxu0
        %v7784 = vadd.f32 %v7431, %v7783
        %7785 = vmatprep.mubr.bf16.mxu0 %v5529
        %7786 = vmatmul.mubr.bf16.gmra.mrb[0].mxu0 %v5528
        %v7787 = vpop.f32.mrb[0].mxu0
        %v7788 = vadd.f32 %v7435, %v7787
        %v7789 = vpop.f32.mrb[0].mxu0
        %v7790 = vadd.f32 %v7437, %v7789
        %v7791 = vpop.f32.mrb[0].mxu0
        %v7792 = vadd.f32 %v7439, %v7791
        %v7793 = vpop.f32.mrb[0].mxu0
        %v7794 = vadd.f32 %v7441, %v7793
        %7795 = vmatprep.mubr.bf16.mxu0 %v5537
        %7796 = vmatmul.mubr.bf16.gmra.mrb[0].mxu0 %v5536
        %v7797 = vpop.f32.mrb[0].mxu0
        %v7798 = vadd.f32 %v7445, %v7797
        %v7799 = vpop.f32.mrb[0].mxu0
        %v7800 = vadd.f32 %v7447, %v7799
        %v7801 = vpop.f32.mrb[0].mxu0
        %v7802 = vadd.f32 %v7449, %v7801
        %v7803 = vpop.f32.mrb[0].mxu0
        %v7804 = vadd.f32 %v7451, %v7803
        %7805 = vdwg.mxu0
        %7806 = vmatprep.subr.bf16.mxu0 %v6717
        %7807 = vmatpush1.bf16.msra.mxu0 %v6716
        %7808 = vmatprep.subr.bf16.mxu0 %v6721
        %7809 = vmatpush1.bf16.msra.mxu0 %v6720
        %7810 = vmatprep.subr.bf16.mxu0 %v6725
        %7811 = vmatpush1.bf16.msra.mxu0 %v6724
        %7812 = vmatprep.subr.bf16.mxu0 %v6729
        %7813 = vmatpush1.bf16.msra.mxu0 %v6728
        %7814 = vmatprep.subr.bf16.mxu0 %v6733
        %7815 = vmatpush1.bf16.msra.mxu0 %v6732
        %7816 = vmatprep.subr.bf16.mxu0 %v6737
        %7817 = vmatpush1.bf16.msra.mxu0 %v6736
        %7818 = vmatprep.subr.bf16.mxu0 %v6741
        %7819 = vmatpush1.bf16.msra.mxu0 %v6740
        %7820 = vmatprep.subr.bf16.mxu0 %v6745
        %7821 = vmatpush1.bf16.msra.mxu0 %v6744
        %7822 = vmatprep.subr.bf16.mxu0 %v6749
        %7823 = vmatpush1.bf16.msra.mxu0 %v6748
        %7824 = vmatprep.subr.bf16.mxu0 %v6753
        %7825 = vmatpush1.bf16.msra.mxu0 %v6752
        %7826 = vmatprep.subr.bf16.mxu0 %v6757
        %7827 = vmatpush1.bf16.msra.mxu0 %v6756
        %7828 = vmatprep.subr.bf16.mxu0 %v6761
        %7829 = vmatpush1.bf16.msra.mxu0 %v6760
        %7830 = vmatprep.subr.bf16.mxu0 %v6765
        %7831 = vmatpush1.bf16.msra.mxu0 %v6764
        %7832 = vmatprep.subr.bf16.mxu0 %v6769
        %7833 = vmatpush1.bf16.msra.mxu0 %v6768
        %7834 = vmatprep.subr.bf16.mxu0 %v6773
        %7835 = vmatpush1.bf16.msra.mxu0 %v6772
        %7836 = vmatprep.subr.bf16.mxu0 %v6777
        %7837 = vmatpush1.bf16.msra.mxu0 %v6776
        %7838 = vmatprep.mubr.bf16.mxu0 %v5291
        %7839 = vmatmul.mubr.bf16.gmra.mrb[0].mxu0 %v5290
        %v7840 = vpop.f32.mrb[0].mxu0
        %v7841 = vadd.f32 %v7488, %v7840
        %v7842 = vpop.f32.mrb[0].mxu0
        %v7843 = vadd.f32 %v7490, %v7842
        %v7844 = vpop.f32.mrb[0].mxu0
        %v7845 = vadd.f32 %v7492, %v7844
        %v7846 = vpop.f32.mrb[0].mxu0
        %v7847 = vadd.f32 %v7494, %v7846
        %7848 = vmatprep.mubr.bf16.mxu0 %v5299
        %7849 = vmatmul.mubr.bf16.gmra.mrb[0].mxu0 %v5298
        %v7850 = vpop.f32.mrb[0].mxu0
        %v7851 = vadd.f32 %v7498, %v7850
        %v7852 = vpop.f32.mrb[0].mxu0
        %v7853 = vadd.f32 %v7500, %v7852
        %v7854 = vpop.f32.mrb[0].mxu0
        %v7855 = vadd.f32 %v7502, %v7854
        %v7856 = vpop.f32.mrb[0].mxu0
        %v7857 = vadd.f32 %v7504, %v7856
        %7858 = vmatprep.mubr.bf16.mxu0 %v5307
        %7859 = vmatmul.mubr.bf16.gmra.mrb[0].mxu0 %v5306
        %v7860 = vpop.f32.mrb[0].mxu0
        %v7861 = vadd.f32 %v7508, %v7860
        %v7862 = vpop.f32.mrb[0].mxu0
        %v7863 = vadd.f32 %v7510, %v7862
        %v7864 = vpop.f32.mrb[0].mxu0
        %v7865 = vadd.f32 %v7512, %v7864
        %v7866 = vpop.f32.mrb[0].mxu0
        %v7867 = vadd.f32 %v7514, %v7866
        %7868 = vmatprep.mubr.bf16.mxu0 %v5315
        %7869 = vmatmul.mubr.bf16.gmra.mrb[0].mxu0 %v5314
        %v7870 = vpop.f32.mrb[0].mxu0
        %v7871 = vadd.f32 %v7518, %v7870
        %v7872 = vpop.f32.mrb[0].mxu0
        %v7873 = vadd.f32 %v7520, %v7872
        %v7874 = vpop.f32.mrb[0].mxu0
        %v7875 = vadd.f32 %v7522, %v7874
        %v7876 = vpop.f32.mrb[0].mxu0
        %v7877 = vadd.f32 %v7524, %v7876
        %7878 = vmatprep.mubr.bf16.mxu0 %v5323
        %7879 = vmatmul.mubr.bf16.gmra.mrb[0].mxu0 %v5322
        %v7880 = vpop.f32.mrb[0].mxu0
        %v7881 = vadd.f32 %v7528, %v7880
        %v7882 = vpop.f32.mrb[0].mxu0
        %v7883 = vadd.f32 %v7530, %v7882
        %v7884 = vpop.f32.mrb[0].mxu0
        %v7885 = vadd.f32 %v7532, %v7884
        %v7886 = vpop.f32.mrb[0].mxu0
        %v7887 = vadd.f32 %v7534, %v7886
        %7888 = vmatprep.mubr.bf16.mxu0 %v5331
        %7889 = vmatmul.mubr.bf16.gmra.mrb[0].mxu0 %v5330
        %v7890 = vpop.f32.mrb[0].mxu0
        %v7891 = vadd.f32 %v7538, %v7890
        %v7892 = vpop.f32.mrb[0].mxu0
        %v7893 = vadd.f32 %v7540, %v7892
        %v7894 = vpop.f32.mrb[0].mxu0
        %v7895 = vadd.f32 %v7542, %v7894
        %v7896 = vpop.f32.mrb[0].mxu0
        %v7897 = vadd.f32 %v7544, %v7896
        %7898 = vmatprep.mubr.bf16.mxu0 %v5339
        %7899 = vmatmul.mubr.bf16.gmra.mrb[0].mxu0 %v5338
        %v7900 = vpop.f32.mrb[0].mxu0
        %v7901 = vadd.f32 %v7548, %v7900
        %v7902 = vpop.f32.mrb[0].mxu0
        %v7903 = vadd.f32 %v7550, %v7902
        %v7904 = vpop.f32.mrb[0].mxu0
        %v7905 = vadd.f32 %v7552, %v7904
        %v7906 = vpop.f32.mrb[0].mxu0
        %v7907 = vadd.f32 %v7554, %v7906
        %7908 = vmatprep.mubr.bf16.mxu0 %v5347
        %7909 = vmatmul.mubr.bf16.gmra.mrb[0].mxu0 %v5346
        %v7910 = vpop.f32.mrb[0].mxu0
        %v7911 = vadd.f32 %v7558, %v7910
        %v7912 = vpop.f32.mrb[0].mxu0
        %v7913 = vadd.f32 %v7560, %v7912
        %v7914 = vpop.f32.mrb[0].mxu0
        %v7915 = vadd.f32 %v7562, %v7914
        %v7916 = vpop.f32.mrb[0].mxu0
        %v7917 = vadd.f32 %v7564, %v7916
        %7918 = vmatprep.mubr.bf16.mxu0 %v5355
        %7919 = vmatmul.mubr.bf16.gmra.mrb[0].mxu0 %v5354
        %v7920 = vpop.f32.mrb[0].mxu0
        %v7921 = vadd.f32 %v7568, %v7920
        %v7922 = vpop.f32.mrb[0].mxu0
        %v7923 = vadd.f32 %v7570, %v7922
        %v7924 = vpop.f32.mrb[0].mxu0
        %v7925 = vadd.f32 %v7572, %v7924
        %v7926 = vpop.f32.mrb[0].mxu0
        %v7927 = vadd.f32 %v7574, %v7926
        %7928 = vmatprep.mubr.bf16.mxu0 %v5363
        %7929 = vmatmul.mubr.bf16.gmra.mrb[0].mxu0 %v5362
        %v7930 = vpop.f32.mrb[0].mxu0
        %v7931 = vadd.f32 %v7578, %v7930
        %v7932 = vpop.f32.mrb[0].mxu0
        %v7933 = vadd.f32 %v7580, %v7932
        %v7934 = vpop.f32.mrb[0].mxu0
        %v7935 = vadd.f32 %v7582, %v7934
        %v7936 = vpop.f32.mrb[0].mxu0
        %v7937 = vadd.f32 %v7584, %v7936
        %7938 = vmatprep.mubr.bf16.mxu0 %v5371
        %7939 = vmatmul.mubr.bf16.gmra.mrb[0].mxu0 %v5370
        %v7940 = vpop.f32.mrb[0].mxu0
        %v7941 = vadd.f32 %v7588, %v7940
        %v7942 = vpop.f32.mrb[0].mxu0
        %v7943 = vadd.f32 %v7590, %v7942
        %v7944 = vpop.f32.mrb[0].mxu0
        %v7945 = vadd.f32 %v7592, %v7944
        %v7946 = vpop.f32.mrb[0].mxu0
        %v7947 = vadd.f32 %v7594, %v7946
        %7948 = vmatprep.mubr.bf16.mxu0 %v5379
        %7949 = vmatmul.mubr.bf16.gmra.mrb[0].mxu0 %v5378
        %v7950 = vpop.f32.mrb[0].mxu0
        %v7951 = vadd.f32 %v7598, %v7950
        %v7952 = vpop.f32.mrb[0].mxu0
        %v7953 = vadd.f32 %v7600, %v7952
        %v7954 = vpop.f32.mrb[0].mxu0
        %v7955 = vadd.f32 %v7602, %v7954
        %v7956 = vpop.f32.mrb[0].mxu0
        %v7957 = vadd.f32 %v7604, %v7956
        %7958 = vmatprep.mubr.bf16.mxu0 %v5387
        %7959 = vmatmul.mubr.bf16.gmra.mrb[0].mxu0 %v5386
        %v7960 = vpop.f32.mrb[0].mxu0
        %v7961 = vadd.f32 %v7608, %v7960
        %v7962 = vpop.f32.mrb[0].mxu0
        %v7963 = vadd.f32 %v7610, %v7962
        %v7964 = vpop.f32.mrb[0].mxu0
        %v7965 = vadd.f32 %v7612, %v7964
        %v7966 = vpop.f32.mrb[0].mxu0
        %v7967 = vadd.f32 %v7614, %v7966
        %7968 = vmatprep.mubr.bf16.mxu0 %v5395
        %7969 = vmatmul.mubr.bf16.gmra.mrb[0].mxu0 %v5394
        %v7970 = vpop.f32.mrb[0].mxu0
        %v7971 = vadd.f32 %v7618, %v7970
        %v7972 = vpop.f32.mrb[0].mxu0
        %v7973 = vadd.f32 %v7620, %v7972
        %v7974 = vpop.f32.mrb[0].mxu0
        %v7975 = vadd.f32 %v7622, %v7974
        %v7976 = vpop.f32.mrb[0].mxu0
        %v7977 = vadd.f32 %v7624, %v7976
        %7978 = vmatprep.mubr.bf16.mxu0 %v5403
        %7979 = vmatmul.mubr.bf16.gmra.mrb[0].mxu0 %v5402
        %v7980 = vpop.f32.mrb[0].mxu0
        %v7981 = vadd.f32 %v7628, %v7980
        %v7982 = vpop.f32.mrb[0].mxu0
        %v7983 = vadd.f32 %v7630, %v7982
        %v7984 = vpop.f32.mrb[0].mxu0
        %v7985 = vadd.f32 %v7632, %v7984
        %v7986 = vpop.f32.mrb[0].mxu0
        %v7987 = vadd.f32 %v7634, %v7986
        %7988 = vmatprep.mubr.bf16.mxu0 %v5411
        %7989 = vmatmul.mubr.bf16.gmra.mrb[0].mxu0 %v5410
        %v7990 = vpop.f32.mrb[0].mxu0
        %v7991 = vadd.f32 %v7638, %v7990
        %v7992 = vpop.f32.mrb[0].mxu0
        %v7993 = vadd.f32 %v7640, %v7992
        %v7994 = vpop.f32.mrb[0].mxu0
        %v7995 = vadd.f32 %v7642, %v7994
        %v7996 = vpop.f32.mrb[0].mxu0
        %v7997 = vadd.f32 %v7644, %v7996
        %7998 = vmatprep.mubr.bf16.mxu0 %v5419
        %7999 = vmatmul.mubr.bf16.gmra.mrb[0].mxu0 %v5418
        %v8000 = vpop.f32.mrb[0].mxu0
        %v8001 = vadd.f32 %v7648, %v8000
        %v8002 = vpop.f32.mrb[0].mxu0
        %v8003 = vadd.f32 %v7650, %v8002
        %v8004 = vpop.f32.mrb[0].mxu0
        %v8005 = vadd.f32 %v7652, %v8004
        %v8006 = vpop.f32.mrb[0].mxu0
        %v8007 = vadd.f32 %v7654, %v8006
        %8008 = vmatprep.mubr.bf16.mxu0 %v5427
        %8009 = vmatmul.mubr.bf16.gmra.mrb[0].mxu0 %v5426
        %v8010 = vpop.f32.mrb[0].mxu0
        %v8011 = vadd.f32 %v7658, %v8010
        %v8012 = vpop.f32.mrb[0].mxu0
        %v8013 = vadd.f32 %v7660, %v8012
        %v8014 = vpop.f32.mrb[0].mxu0
        %v8015 = vadd.f32 %v7662, %v8014
        %v8016 = vpop.f32.mrb[0].mxu0
        %v8017 = vadd.f32 %v7664, %v8016
        %8018 = vmatprep.mubr.bf16.mxu0 %v5435
        %8019 = vmatmul.mubr.bf16.gmra.mrb[0].mxu0 %v5434
        %v8020 = vpop.f32.mrb[0].mxu0
        %v8021 = vadd.f32 %v7668, %v8020
        %v8022 = vpop.f32.mrb[0].mxu0
        %v8023 = vadd.f32 %v7670, %v8022
        %v8024 = vpop.f32.mrb[0].mxu0
        %v8025 = vadd.f32 %v7672, %v8024
        %v8026 = vpop.f32.mrb[0].mxu0
        %v8027 = vadd.f32 %v7674, %v8026
        %8028 = vmatprep.mubr.bf16.mxu0 %v5443
        %8029 = vmatmul.mubr.bf16.gmra.mrb[0].mxu0 %v5442
        %v8030 = vpop.f32.mrb[0].mxu0
        %v8031 = vadd.f32 %v7678, %v8030
        %v8032 = vpop.f32.mrb[0].mxu0
        %v8033 = vadd.f32 %v7680, %v8032
        %v8034 = vpop.f32.mrb[0].mxu0
        %v8035 = vadd.f32 %v7682, %v8034
        %v8036 = vpop.f32.mrb[0].mxu0
        %v8037 = vadd.f32 %v7684, %v8036
        %8038 = vmatprep.mubr.bf16.mxu0 %v5451
        %8039 = vmatmul.mubr.bf16.gmra.mrb[0].mxu0 %v5450
        %v8040 = vpop.f32.mrb[0].mxu0
        %v8041 = vadd.f32 %v7688, %v8040
        %v8042 = vpop.f32.mrb[0].mxu0
        %v8043 = vadd.f32 %v7690, %v8042
        %v8044 = vpop.f32.mrb[0].mxu0
        %v8045 = vadd.f32 %v7692, %v8044
        %v8046 = vpop.f32.mrb[0].mxu0
        %v8047 = vadd.f32 %v7694, %v8046
        %8048 = vmatprep.mubr.bf16.mxu0 %v5459
        %8049 = vmatmul.mubr.bf16.gmra.mrb[0].mxu0 %v5458
        %v8050 = vpop.f32.mrb[0].mxu0
        %v8051 = vadd.f32 %v7698, %v8050
        %v8052 = vpop.f32.mrb[0].mxu0
        %v8053 = vadd.f32 %v7700, %v8052
        %v8054 = vpop.f32.mrb[0].mxu0
        %v8055 = vadd.f32 %v7702, %v8054
        %v8056 = vpop.f32.mrb[0].mxu0
        %v8057 = vadd.f32 %v7704, %v8056
        %8058 = vmatprep.mubr.bf16.mxu0 %v5467
        %8059 = vmatmul.mubr.bf16.gmra.mrb[0].mxu0 %v5466
        %v8060 = vpop.f32.mrb[0].mxu0
        %v8061 = vadd.f32 %v7708, %v8060
        %v8062 = vpop.f32.mrb[0].mxu0
        %v8063 = vadd.f32 %v7710, %v8062
        %v8064 = vpop.f32.mrb[0].mxu0
        %v8065 = vadd.f32 %v7712, %v8064
        %v8066 = vpop.f32.mrb[0].mxu0
        %v8067 = vadd.f32 %v7714, %v8066
        %8068 = vmatprep.mubr.bf16.mxu0 %v5475
        %8069 = vmatmul.mubr.bf16.gmra.mrb[0].mxu0 %v5474
        %v8070 = vpop.f32.mrb[0].mxu0
        %v8071 = vadd.f32 %v7718, %v8070
        %v8072 = vpop.f32.mrb[0].mxu0
        %v8073 = vadd.f32 %v7720, %v8072
        %v8074 = vpop.f32.mrb[0].mxu0
        %v8075 = vadd.f32 %v7722, %v8074
        %v8076 = vpop.f32.mrb[0].mxu0
        %v8077 = vadd.f32 %v7724, %v8076
        %8078 = vmatprep.mubr.bf16.mxu0 %v5483
        %8079 = vmatmul.mubr.bf16.gmra.mrb[0].mxu0 %v5482
        %v8080 = vpop.f32.mrb[0].mxu0
        %v8081 = vadd.f32 %v7728, %v8080
        %v8082 = vpop.f32.mrb[0].mxu0
        %v8083 = vadd.f32 %v7730, %v8082
        %v8084 = vpop.f32.mrb[0].mxu0
        %v8085 = vadd.f32 %v7732, %v8084
        %v8086 = vpop.f32.mrb[0].mxu0
        %v8087 = vadd.f32 %v7734, %v8086
        %8088 = vmatprep.mubr.bf16.mxu0 %v5491
        %8089 = vmatmul.mubr.bf16.gmra.mrb[0].mxu0 %v5490
        %v8090 = vpop.f32.mrb[0].mxu0
        %v8091 = vadd.f32 %v7738, %v8090
        %v8092 = vpop.f32.mrb[0].mxu0
        %v8093 = vadd.f32 %v7740, %v8092
        %v8094 = vpop.f32.mrb[0].mxu0
        %v8095 = vadd.f32 %v7742, %v8094
        %v8096 = vpop.f32.mrb[0].mxu0
        %v8097 = vadd.f32 %v7744, %v8096
        %8098 = vmatprep.mubr.bf16.mxu0 %v5499
        %8099 = vmatmul.mubr.bf16.gmra.mrb[0].mxu0 %v5498
        %v8100 = vpop.f32.mrb[0].mxu0
        %v8101 = vadd.f32 %v7748, %v8100
        %v8102 = vpop.f32.mrb[0].mxu0
        %v8103 = vadd.f32 %v7750, %v8102
        %v8104 = vpop.f32.mrb[0].mxu0
        %v8105 = vadd.f32 %v7752, %v8104
        %v8106 = vpop.f32.mrb[0].mxu0
        %v8107 = vadd.f32 %v7754, %v8106
        %8108 = vmatprep.mubr.bf16.mxu0 %v5507
        %8109 = vmatmul.mubr.bf16.gmra.mrb[0].mxu0 %v5506
        %v8110 = vpop.f32.mrb[0].mxu0
        %v8111 = vadd.f32 %v7758, %v8110
        %v8112 = vpop.f32.mrb[0].mxu0
        %v8113 = vadd.f32 %v7760, %v8112
        %v8114 = vpop.f32.mrb[0].mxu0
        %v8115 = vadd.f32 %v7762, %v8114
        %v8116 = vpop.f32.mrb[0].mxu0
        %v8117 = vadd.f32 %v7764, %v8116
        %8118 = vmatprep.mubr.bf16.mxu0 %v5515
        %8119 = vmatmul.mubr.bf16.gmra.mrb[0].mxu0 %v5514
        %v8120 = vpop.f32.mrb[0].mxu0
        %v8121 = vadd.f32 %v7768, %v8120
        %v8122 = vpop.f32.mrb[0].mxu0
        %v8123 = vadd.f32 %v7770, %v8122
        %v8124 = vpop.f32.mrb[0].mxu0
        %v8125 = vadd.f32 %v7772, %v8124
        %v8126 = vpop.f32.mrb[0].mxu0
        %v8127 = vadd.f32 %v7774, %v8126
        %8128 = vmatprep.mubr.bf16.mxu0 %v5523
        %8129 = vmatmul.mubr.bf16.gmra.mrb[0].mxu0 %v5522
        %v8130 = vpop.f32.mrb[0].mxu0
        %v8131 = vadd.f32 %v7778, %v8130
        %v8132 = vpop.f32.mrb[0].mxu0
        %v8133 = vadd.f32 %v7780, %v8132
        %v8134 = vpop.f32.mrb[0].mxu0
        %v8135 = vadd.f32 %v7782, %v8134
        %v8136 = vpop.f32.mrb[0].mxu0
        %v8137 = vadd.f32 %v7784, %v8136
        %8138 = vmatprep.mubr.bf16.mxu0 %v5531
        %8139 = vmatmul.mubr.bf16.gmra.mrb[0].mxu0 %v5530
        %v8140 = vpop.f32.mrb[0].mxu0
        %v8141 = vadd.f32 %v7788, %v8140
        %v8142 = vpop.f32.mrb[0].mxu0
        %v8143 = vadd.f32 %v7790, %v8142
        %v8144 = vpop.f32.mrb[0].mxu0
        %v8145 = vadd.f32 %v7792, %v8144
        %v8146 = vpop.f32.mrb[0].mxu0
        %v8147 = vadd.f32 %v7794, %v8146
        %8148 = vmatprep.mubr.bf16.mxu0 %v5539
        %8149 = vmatmul.mubr.bf16.gmra.mrb[0].mxu0 %v5538
        %v8150 = vpop.f32.mrb[0].mxu0
        %v8151 = vadd.f32 %v7798, %v8150
        %v8152 = vpop.f32.mrb[0].mxu0
        %v8153 = vadd.f32 %v7800, %v8152
        %v8154 = vpop.f32.mrb[0].mxu0
        %v8155 = vadd.f32 %v7802, %v8154
        %v8156 = vpop.f32.mrb[0].mxu0
        %v8157 = vadd.f32 %v7804, %v8156
        %8158 = vdwg.mxu0
        %8159 = vmatprep.subr.bf16.mxu0 %v6781
        %8160 = vmatpush1.bf16.msra.mxu0 %v6780
        %8161 = vmatprep.subr.bf16.mxu0 %v6785
        %8162 = vmatpush1.bf16.msra.mxu0 %v6784
        %8163 = vmatprep.subr.bf16.mxu0 %v6789
        %8164 = vmatpush1.bf16.msra.mxu0 %v6788
        %8165 = vmatprep.subr.bf16.mxu0 %v6793
        %8166 = vmatpush1.bf16.msra.mxu0 %v6792
        %8167 = vmatprep.subr.bf16.mxu0 %v6797
        %8168 = vmatpush1.bf16.msra.mxu0 %v6796
        %8169 = vmatprep.subr.bf16.mxu0 %v6801
        %8170 = vmatpush1.bf16.msra.mxu0 %v6800
        %8171 = vmatprep.subr.bf16.mxu0 %v6805
        %8172 = vmatpush1.bf16.msra.mxu0 %v6804
        %8173 = vmatprep.subr.bf16.mxu0 %v6809
        %8174 = vmatpush1.bf16.msra.mxu0 %v6808
        %8175 = vmatprep.subr.bf16.mxu0 %v6813
        %8176 = vmatpush1.bf16.msra.mxu0 %v6812
        %8177 = vmatprep.subr.bf16.mxu0 %v6817
        %8178 = vmatpush1.bf16.msra.mxu0 %v6816
        %8179 = vmatprep.subr.bf16.mxu0 %v6821
        %8180 = vmatpush1.bf16.msra.mxu0 %v6820
        %8181 = vmatprep.subr.bf16.mxu0 %v6825
        %8182 = vmatpush1.bf16.msra.mxu0 %v6824
        %8183 = vmatprep.subr.bf16.mxu0 %v6829
        %8184 = vmatpush1.bf16.msra.mxu0 %v6828
        %8185 = vmatprep.subr.bf16.mxu0 %v6833
        %8186 = vmatpush1.bf16.msra.mxu0 %v6832
        %8187 = vmatprep.subr.bf16.mxu0 %v6837
        %8188 = vmatpush1.bf16.msra.mxu0 %v6836
        %8189 = vmatprep.subr.bf16.mxu0 %v6841
        %8190 = vmatpush1.bf16.msra.mxu0 %v6840
        %8191 = vmatprep.mubr.bf16.mxu0 %v5293
        %8192 = vmatmul.mubr.bf16.gmra.mrb[0].mxu0 %v5292
        %v8193 = vpop.f32.mrb[0].mxu0
        %v8194 = vadd.f32 %v7841, %v8193
        %v8195 = vpop.f32.mrb[0].mxu0
        %v8196 = vadd.f32 %v7843, %v8195
        %v8197 = vpop.f32.mrb[0].mxu0
        %v8198 = vadd.f32 %v7845, %v8197
        %v8199 = vpop.f32.mrb[0].mxu0
        %v8200 = vadd.f32 %v7847, %v8199
        %8201 = vmatprep.mubr.bf16.mxu0 %v5301
        %8202 = vmatmul.mubr.bf16.gmra.mrb[0].mxu0 %v5300
        %v8203 = vpop.f32.mrb[0].mxu0
        %v8204 = vadd.f32 %v7851, %v8203
        %v8205 = vpop.f32.mrb[0].mxu0
        %v8206 = vadd.f32 %v7853, %v8205
        %v8207 = vpop.f32.mrb[0].mxu0
        %v8208 = vadd.f32 %v7855, %v8207
        %v8209 = vpop.f32.mrb[0].mxu0
        %v8210 = vadd.f32 %v7857, %v8209
        %8211 = vmatprep.mubr.bf16.mxu0 %v5309
        %8212 = vmatmul.mubr.bf16.gmra.mrb[0].mxu0 %v5308
        %v8213 = vpop.f32.mrb[0].mxu0
        %v8214 = vadd.f32 %v7861, %v8213
        %v8215 = vpop.f32.mrb[0].mxu0
        %v8216 = vadd.f32 %v7863, %v8215
        %v8217 = vpop.f32.mrb[0].mxu0
        %v8218 = vadd.f32 %v7865, %v8217
        %v8219 = vpop.f32.mrb[0].mxu0
        %v8220 = vadd.f32 %v7867, %v8219
        %8221 = vmatprep.mubr.bf16.mxu0 %v5317
        %8222 = vmatmul.mubr.bf16.gmra.mrb[0].mxu0 %v5316
        %v8223 = vpop.f32.mrb[0].mxu0
        %v8224 = vadd.f32 %v7871, %v8223
        %v8225 = vpop.f32.mrb[0].mxu0
        %v8226 = vadd.f32 %v7873, %v8225
        %v8227 = vpop.f32.mrb[0].mxu0
        %v8228 = vadd.f32 %v7875, %v8227
        %v8229 = vpop.f32.mrb[0].mxu0
        %v8230 = vadd.f32 %v7877, %v8229
        %8231 = vmatprep.mubr.bf16.mxu0 %v5325
        %8232 = vmatmul.mubr.bf16.gmra.mrb[0].mxu0 %v5324
        %v8233 = vpop.f32.mrb[0].mxu0
        %v8234 = vadd.f32 %v7881, %v8233
        %v8235 = vpop.f32.mrb[0].mxu0
        %v8236 = vadd.f32 %v7883, %v8235
        %v8237 = vpop.f32.mrb[0].mxu0
        %v8238 = vadd.f32 %v7885, %v8237
        %v8239 = vpop.f32.mrb[0].mxu0
        %v8240 = vadd.f32 %v7887, %v8239
        %8241 = vmatprep.mubr.bf16.mxu0 %v5333
        %8242 = vmatmul.mubr.bf16.gmra.mrb[0].mxu0 %v5332
        %v8243 = vpop.f32.mrb[0].mxu0
        %v8244 = vadd.f32 %v7891, %v8243
        %v8245 = vpop.f32.mrb[0].mxu0
        %v8246 = vadd.f32 %v7893, %v8245
        %v8247 = vpop.f32.mrb[0].mxu0
        %v8248 = vadd.f32 %v7895, %v8247
        %v8249 = vpop.f32.mrb[0].mxu0
        %v8250 = vadd.f32 %v7897, %v8249
        %8251 = vmatprep.mubr.bf16.mxu0 %v5341
        %8252 = vmatmul.mubr.bf16.gmra.mrb[0].mxu0 %v5340
        %v8253 = vpop.f32.mrb[0].mxu0
        %v8254 = vadd.f32 %v7901, %v8253
        %v8255 = vpop.f32.mrb[0].mxu0
        %v8256 = vadd.f32 %v7903, %v8255
        %v8257 = vpop.f32.mrb[0].mxu0
        %v8258 = vadd.f32 %v7905, %v8257
        %v8259 = vpop.f32.mrb[0].mxu0
        %v8260 = vadd.f32 %v7907, %v8259
        %8261 = vmatprep.mubr.bf16.mxu0 %v5349
        %8262 = vmatmul.mubr.bf16.gmra.mrb[0].mxu0 %v5348
        %v8263 = vpop.f32.mrb[0].mxu0
        %v8264 = vadd.f32 %v7911, %v8263
        %v8265 = vpop.f32.mrb[0].mxu0
        %v8266 = vadd.f32 %v7913, %v8265
        %v8267 = vpop.f32.mrb[0].mxu0
        %v8268 = vadd.f32 %v7915, %v8267
        %v8269 = vpop.f32.mrb[0].mxu0
        %v8270 = vadd.f32 %v7917, %v8269
        %8271 = vmatprep.mubr.bf16.mxu0 %v5357
        %8272 = vmatmul.mubr.bf16.gmra.mrb[0].mxu0 %v5356
        %v8273 = vpop.f32.mrb[0].mxu0
        %v8274 = vadd.f32 %v7921, %v8273
        %v8275 = vpop.f32.mrb[0].mxu0
        %v8276 = vadd.f32 %v7923, %v8275
        %v8277 = vpop.f32.mrb[0].mxu0
        %v8278 = vadd.f32 %v7925, %v8277
        %v8279 = vpop.f32.mrb[0].mxu0
        %v8280 = vadd.f32 %v7927, %v8279
        %8281 = vmatprep.mubr.bf16.mxu0 %v5365
        %8282 = vmatmul.mubr.bf16.gmra.mrb[0].mxu0 %v5364
        %v8283 = vpop.f32.mrb[0].mxu0
        %v8284 = vadd.f32 %v7931, %v8283
        %v8285 = vpop.f32.mrb[0].mxu0
        %v8286 = vadd.f32 %v7933, %v8285
        %v8287 = vpop.f32.mrb[0].mxu0
        %v8288 = vadd.f32 %v7935, %v8287
        %v8289 = vpop.f32.mrb[0].mxu0
        %v8290 = vadd.f32 %v7937, %v8289
        %8291 = vmatprep.mubr.bf16.mxu0 %v5373
        %8292 = vmatmul.mubr.bf16.gmra.mrb[0].mxu0 %v5372
        %v8293 = vpop.f32.mrb[0].mxu0
        %v8294 = vadd.f32 %v7941, %v8293
        %v8295 = vpop.f32.mrb[0].mxu0
        %v8296 = vadd.f32 %v7943, %v8295
        %v8297 = vpop.f32.mrb[0].mxu0
        %v8298 = vadd.f32 %v7945, %v8297
        %v8299 = vpop.f32.mrb[0].mxu0
        %v8300 = vadd.f32 %v7947, %v8299
        %8301 = vmatprep.mubr.bf16.mxu0 %v5381
        %8302 = vmatmul.mubr.bf16.gmra.mrb[0].mxu0 %v5380
        %v8303 = vpop.f32.mrb[0].mxu0
        %v8304 = vadd.f32 %v7951, %v8303
        %v8305 = vpop.f32.mrb[0].mxu0
        %v8306 = vadd.f32 %v7953, %v8305
        %v8307 = vpop.f32.mrb[0].mxu0
        %v8308 = vadd.f32 %v7955, %v8307
        %v8309 = vpop.f32.mrb[0].mxu0
        %v8310 = vadd.f32 %v7957, %v8309
        %8311 = vmatprep.mubr.bf16.mxu0 %v5389
        %8312 = vmatmul.mubr.bf16.gmra.mrb[0].mxu0 %v5388
        %v8313 = vpop.f32.mrb[0].mxu0
        %v8314 = vadd.f32 %v7961, %v8313
        %v8315 = vpop.f32.mrb[0].mxu0
        %v8316 = vadd.f32 %v7963, %v8315
        %v8317 = vpop.f32.mrb[0].mxu0
        %v8318 = vadd.f32 %v7965, %v8317
        %v8319 = vpop.f32.mrb[0].mxu0
        %v8320 = vadd.f32 %v7967, %v8319
        %8321 = vmatprep.mubr.bf16.mxu0 %v5397
        %8322 = vmatmul.mubr.bf16.gmra.mrb[0].mxu0 %v5396
        %v8323 = vpop.f32.mrb[0].mxu0
        %v8324 = vadd.f32 %v7971, %v8323
        %v8325 = vpop.f32.mrb[0].mxu0
        %v8326 = vadd.f32 %v7973, %v8325
        %v8327 = vpop.f32.mrb[0].mxu0
        %v8328 = vadd.f32 %v7975, %v8327
        %v8329 = vpop.f32.mrb[0].mxu0
        %v8330 = vadd.f32 %v7977, %v8329
        %8331 = vmatprep.mubr.bf16.mxu0 %v5405
        %8332 = vmatmul.mubr.bf16.gmra.mrb[0].mxu0 %v5404
        %v8333 = vpop.f32.mrb[0].mxu0
        %v8334 = vadd.f32 %v7981, %v8333
        %v8335 = vpop.f32.mrb[0].mxu0
        %v8336 = vadd.f32 %v7983, %v8335
        %v8337 = vpop.f32.mrb[0].mxu0
        %v8338 = vadd.f32 %v7985, %v8337
        %v8339 = vpop.f32.mrb[0].mxu0
        %v8340 = vadd.f32 %v7987, %v8339
        %8341 = vmatprep.mubr.bf16.mxu0 %v5413
        %8342 = vmatmul.mubr.bf16.gmra.mrb[0].mxu0 %v5412
        %v8343 = vpop.f32.mrb[0].mxu0
        %v8344 = vadd.f32 %v7991, %v8343
        %v8345 = vpop.f32.mrb[0].mxu0
        %v8346 = vadd.f32 %v7993, %v8345
        %v8347 = vpop.f32.mrb[0].mxu0
        %v8348 = vadd.f32 %v7995, %v8347
        %v8349 = vpop.f32.mrb[0].mxu0
        %v8350 = vadd.f32 %v7997, %v8349
        %8351 = vmatprep.mubr.bf16.mxu0 %v5421
        %8352 = vmatmul.mubr.bf16.gmra.mrb[0].mxu0 %v5420
        %v8353 = vpop.f32.mrb[0].mxu0
        %v8354 = vadd.f32 %v8001, %v8353
        %v8355 = vpop.f32.mrb[0].mxu0
        %v8356 = vadd.f32 %v8003, %v8355
        %v8357 = vpop.f32.mrb[0].mxu0
        %v8358 = vadd.f32 %v8005, %v8357
        %v8359 = vpop.f32.mrb[0].mxu0
        %v8360 = vadd.f32 %v8007, %v8359
        %8361 = vmatprep.mubr.bf16.mxu0 %v5429
        %8362 = vmatmul.mubr.bf16.gmra.mrb[0].mxu0 %v5428
        %v8363 = vpop.f32.mrb[0].mxu0
        %v8364 = vadd.f32 %v8011, %v8363
        %v8365 = vpop.f32.mrb[0].mxu0
        %v8366 = vadd.f32 %v8013, %v8365
        %v8367 = vpop.f32.mrb[0].mxu0
        %v8368 = vadd.f32 %v8015, %v8367
        %v8369 = vpop.f32.mrb[0].mxu0
        %v8370 = vadd.f32 %v8017, %v8369
        %8371 = vmatprep.mubr.bf16.mxu0 %v5437
        %8372 = vmatmul.mubr.bf16.gmra.mrb[0].mxu0 %v5436
        %v8373 = vpop.f32.mrb[0].mxu0
        %v8374 = vadd.f32 %v8021, %v8373
        %v8375 = vpop.f32.mrb[0].mxu0
        %v8376 = vadd.f32 %v8023, %v8375
        %v8377 = vpop.f32.mrb[0].mxu0
        %v8378 = vadd.f32 %v8025, %v8377
        %v8379 = vpop.f32.mrb[0].mxu0
        %v8380 = vadd.f32 %v8027, %v8379
        %8381 = vmatprep.mubr.bf16.mxu0 %v5445
        %8382 = vmatmul.mubr.bf16.gmra.mrb[0].mxu0 %v5444
        %v8383 = vpop.f32.mrb[0].mxu0
        %v8384 = vadd.f32 %v8031, %v8383
        %v8385 = vpop.f32.mrb[0].mxu0
        %v8386 = vadd.f32 %v8033, %v8385
        %v8387 = vpop.f32.mrb[0].mxu0
        %v8388 = vadd.f32 %v8035, %v8387
        %v8389 = vpop.f32.mrb[0].mxu0
        %v8390 = vadd.f32 %v8037, %v8389
        %8391 = vmatprep.mubr.bf16.mxu0 %v5453
        %8392 = vmatmul.mubr.bf16.gmra.mrb[0].mxu0 %v5452
        %v8393 = vpop.f32.mrb[0].mxu0
        %v8394 = vadd.f32 %v8041, %v8393
        %v8395 = vpop.f32.mrb[0].mxu0
        %v8396 = vadd.f32 %v8043, %v8395
        %v8397 = vpop.f32.mrb[0].mxu0
        %v8398 = vadd.f32 %v8045, %v8397
        %v8399 = vpop.f32.mrb[0].mxu0
        %v8400 = vadd.f32 %v8047, %v8399
        %8401 = vmatprep.mubr.bf16.mxu0 %v5461
        %8402 = vmatmul.mubr.bf16.gmra.mrb[0].mxu0 %v5460
        %v8403 = vpop.f32.mrb[0].mxu0
        %v8404 = vadd.f32 %v8051, %v8403
        %v8405 = vpop.f32.mrb[0].mxu0
        %v8406 = vadd.f32 %v8053, %v8405
        %v8407 = vpop.f32.mrb[0].mxu0
        %v8408 = vadd.f32 %v8055, %v8407
        %v8409 = vpop.f32.mrb[0].mxu0
        %v8410 = vadd.f32 %v8057, %v8409
        %8411 = vmatprep.mubr.bf16.mxu0 %v5469
        %8412 = vmatmul.mubr.bf16.gmra.mrb[0].mxu0 %v5468
        %v8413 = vpop.f32.mrb[0].mxu0
        %v8414 = vadd.f32 %v8061, %v8413
        %v8415 = vpop.f32.mrb[0].mxu0
        %v8416 = vadd.f32 %v8063, %v8415
        %v8417 = vpop.f32.mrb[0].mxu0
        %v8418 = vadd.f32 %v8065, %v8417
        %v8419 = vpop.f32.mrb[0].mxu0
        %v8420 = vadd.f32 %v8067, %v8419
        %8421 = vmatprep.mubr.bf16.mxu0 %v5477
        %8422 = vmatmul.mubr.bf16.gmra.mrb[0].mxu0 %v5476
        %v8423 = vpop.f32.mrb[0].mxu0
        %v8424 = vadd.f32 %v8071, %v8423
        %v8425 = vpop.f32.mrb[0].mxu0
        %v8426 = vadd.f32 %v8073, %v8425
        %v8427 = vpop.f32.mrb[0].mxu0
        %v8428 = vadd.f32 %v8075, %v8427
        %v8429 = vpop.f32.mrb[0].mxu0
        %v8430 = vadd.f32 %v8077, %v8429
        %8431 = vmatprep.mubr.bf16.mxu0 %v5485
        %8432 = vmatmul.mubr.bf16.gmra.mrb[0].mxu0 %v5484
        %v8433 = vpop.f32.mrb[0].mxu0
        %v8434 = vadd.f32 %v8081, %v8433
        %v8435 = vpop.f32.mrb[0].mxu0
        %v8436 = vadd.f32 %v8083, %v8435
        %v8437 = vpop.f32.mrb[0].mxu0
        %v8438 = vadd.f32 %v8085, %v8437
        %v8439 = vpop.f32.mrb[0].mxu0
        %v8440 = vadd.f32 %v8087, %v8439
        %8441 = vmatprep.mubr.bf16.mxu0 %v5493
        %8442 = vmatmul.mubr.bf16.gmra.mrb[0].mxu0 %v5492
        %v8443 = vpop.f32.mrb[0].mxu0
        %v8444 = vadd.f32 %v8091, %v8443
        %v8445 = vpop.f32.mrb[0].mxu0
        %v8446 = vadd.f32 %v8093, %v8445
        %v8447 = vpop.f32.mrb[0].mxu0
        %v8448 = vadd.f32 %v8095, %v8447
        %v8449 = vpop.f32.mrb[0].mxu0
        %v8450 = vadd.f32 %v8097, %v8449
        %8451 = vmatprep.mubr.bf16.mxu0 %v5501
        %8452 = vmatmul.mubr.bf16.gmra.mrb[0].mxu0 %v5500
        %v8453 = vpop.f32.mrb[0].mxu0
        %v8454 = vadd.f32 %v8101, %v8453
        %v8455 = vpop.f32.mrb[0].mxu0
        %v8456 = vadd.f32 %v8103, %v8455
        %v8457 = vpop.f32.mrb[0].mxu0
        %v8458 = vadd.f32 %v8105, %v8457
        %v8459 = vpop.f32.mrb[0].mxu0
        %v8460 = vadd.f32 %v8107, %v8459
        %8461 = vmatprep.mubr.bf16.mxu0 %v5509
        %8462 = vmatmul.mubr.bf16.gmra.mrb[0].mxu0 %v5508
        %v8463 = vpop.f32.mrb[0].mxu0
        %v8464 = vadd.f32 %v8111, %v8463
        %v8465 = vpop.f32.mrb[0].mxu0
        %v8466 = vadd.f32 %v8113, %v8465
        %v8467 = vpop.f32.mrb[0].mxu0
        %v8468 = vadd.f32 %v8115, %v8467
        %v8469 = vpop.f32.mrb[0].mxu0
        %v8470 = vadd.f32 %v8117, %v8469
        %8471 = vmatprep.mubr.bf16.mxu0 %v5517
        %8472 = vmatmul.mubr.bf16.gmra.mrb[0].mxu0 %v5516
        %v8473 = vpop.f32.mrb[0].mxu0
        %v8474 = vadd.f32 %v8121, %v8473
        %v8475 = vpop.f32.mrb[0].mxu0
        %v8476 = vadd.f32 %v8123, %v8475
        %v8477 = vpop.f32.mrb[0].mxu0
        %v8478 = vadd.f32 %v8125, %v8477
        %v8479 = vpop.f32.mrb[0].mxu0
        %v8480 = vadd.f32 %v8127, %v8479
        %8481 = vmatprep.mubr.bf16.mxu0 %v5525
        %8482 = vmatmul.mubr.bf16.gmra.mrb[0].mxu0 %v5524
        %v8483 = vpop.f32.mrb[0].mxu0
        %v8484 = vadd.f32 %v8131, %v8483
        %v8485 = vpop.f32.mrb[0].mxu0
        %v8486 = vadd.f32 %v8133, %v8485
        %v8487 = vpop.f32.mrb[0].mxu0
        %v8488 = vadd.f32 %v8135, %v8487
        %v8489 = vpop.f32.mrb[0].mxu0
        %v8490 = vadd.f32 %v8137, %v8489
        %8491 = vmatprep.mubr.bf16.mxu0 %v5533
        %8492 = vmatmul.mubr.bf16.gmra.mrb[0].mxu0 %v5532
        %v8493 = vpop.f32.mrb[0].mxu0
        %v8494 = vadd.f32 %v8141, %v8493
        %v8495 = vpop.f32.mrb[0].mxu0
        %v8496 = vadd.f32 %v8143, %v8495
        %v8497 = vpop.f32.mrb[0].mxu0
        %v8498 = vadd.f32 %v8145, %v8497
        %v8499 = vpop.f32.mrb[0].mxu0
        %v8500 = vadd.f32 %v8147, %v8499
        %8501 = vmatprep.mubr.bf16.mxu0 %v5541
        %8502 = vmatmul.mubr.bf16.gmra.mrb[0].mxu0 %v5540
        %v8503 = vpop.f32.mrb[0].mxu0
        %v8504 = vadd.f32 %v8151, %v8503
        %v8505 = vpop.f32.mrb[0].mxu0
        %v8506 = vadd.f32 %v8153, %v8505
        %v8507 = vpop.f32.mrb[0].mxu0
        %v8508 = vadd.f32 %v8155, %v8507
        %v8509 = vpop.f32.mrb[0].mxu0
        %v8510 = vadd.f32 %v8157, %v8509
        %8511 = vdwg.mxu0
        %8512 = vmatprep.subr.bf16.mxu0 %v6591
        %8513 = vmatpush1.bf16.msra.mxu0 %v6590
        %8514 = vmatprep.subr.bf16.mxu0 %v6595
        %8515 = vmatpush1.bf16.msra.mxu0 %v6594
        %8516 = vmatprep.subr.bf16.mxu0 %v6599
        %8517 = vmatpush1.bf16.msra.mxu0 %v6598
        %8518 = vmatprep.subr.bf16.mxu0 %v6603
        %8519 = vmatpush1.bf16.msra.mxu0 %v6602
        %8520 = vmatprep.subr.bf16.mxu0 %v6607
        %8521 = vmatpush1.bf16.msra.mxu0 %v6606
        %8522 = vmatprep.subr.bf16.mxu0 %v6611
        %8523 = vmatpush1.bf16.msra.mxu0 %v6610
        %8524 = vmatprep.subr.bf16.mxu0 %v6615
        %8525 = vmatpush1.bf16.msra.mxu0 %v6614
        %8526 = vmatprep.subr.bf16.mxu0 %v6619
        %8527 = vmatpush1.bf16.msra.mxu0 %v6618
        %8528 = vmatprep.subr.bf16.mxu0 %v6623
        %8529 = vmatpush1.bf16.msra.mxu0 %v6622
        %8530 = vmatprep.subr.bf16.mxu0 %v6627
        %8531 = vmatpush1.bf16.msra.mxu0 %v6626
        %8532 = vmatprep.subr.bf16.mxu0 %v6631
        %8533 = vmatpush1.bf16.msra.mxu0 %v6630
        %8534 = vmatprep.subr.bf16.mxu0 %v6635
        %8535 = vmatpush1.bf16.msra.mxu0 %v6634
        %8536 = vmatprep.subr.bf16.mxu0 %v6639
        %8537 = vmatpush1.bf16.msra.mxu0 %v6638
        %8538 = vmatprep.subr.bf16.mxu0 %v6643
        %8539 = vmatpush1.bf16.msra.mxu0 %v6642
        %8540 = vmatprep.subr.bf16.mxu0 %v6647
        %8541 = vmatpush1.bf16.msra.mxu0 %v6646
        %8542 = vmatprep.subr.bf16.mxu0 %v6651
        %8543 = vmatpush1.bf16.msra.mxu0 %v6650
        %8544 = vmatprep.mubr.bf16.mxu0 %v5287
        %8545 = vmatmul.mubr.bf16.gmra.mrb[0].mxu0 %v5286
        %v8546 = vpop.f32.mrb[0].mxu0
        %v8547 = vadd.f32 %v5811, %v8546
        %v8548 = vpop.f32.mrb[0].mxu0
        %v8549 = vadd.f32 %v5815, %v8548
        %v8550 = vpop.f32.mrb[0].mxu0
        %v8551 = vadd.f32 %v5811, %v8550
        %v8552 = vpop.f32.mrb[0].mxu0
        %v8553 = vadd.f32 %v5815, %v8552
        %8554 = vmatprep.mubr.bf16.mxu0 %v5295
        %8555 = vmatmul.mubr.bf16.gmra.mrb[0].mxu0 %v5294
        %v8556 = vpop.f32.mrb[0].mxu0
        %v8557 = vadd.f32 %v5811, %v8556
        %v8558 = vpop.f32.mrb[0].mxu0
        %v8559 = vadd.f32 %v5815, %v8558
        %v8560 = vpop.f32.mrb[0].mxu0
        %v8561 = vadd.f32 %v5811, %v8560
        %v8562 = vpop.f32.mrb[0].mxu0
        %v8563 = vadd.f32 %v5815, %v8562
        %8564 = vmatprep.mubr.bf16.mxu0 %v5303
        %8565 = vmatmul.mubr.bf16.gmra.mrb[0].mxu0 %v5302
        %v8566 = vpop.f32.mrb[0].mxu0
        %v8567 = vadd.f32 %v5811, %v8566
        %v8568 = vpop.f32.mrb[0].mxu0
        %v8569 = vadd.f32 %v5815, %v8568
        %v8570 = vpop.f32.mrb[0].mxu0
        %v8571 = vadd.f32 %v5811, %v8570
        %v8572 = vpop.f32.mrb[0].mxu0
        %v8573 = vadd.f32 %v5815, %v8572
        %8574 = vmatprep.mubr.bf16.mxu0 %v5311
        %8575 = vmatmul.mubr.bf16.gmra.mrb[0].mxu0 %v5310
        %v8576 = vpop.f32.mrb[0].mxu0
        %v8577 = vadd.f32 %v5811, %v8576
        %v8578 = vpop.f32.mrb[0].mxu0
        %v8579 = vadd.f32 %v5815, %v8578
        %v8580 = vpop.f32.mrb[0].mxu0
        %v8581 = vadd.f32 %v5811, %v8580
        %v8582 = vpop.f32.mrb[0].mxu0
        %v8583 = vadd.f32 %v5815, %v8582
        %8584 = vmatprep.mubr.bf16.mxu0 %v5319
        %8585 = vmatmul.mubr.bf16.gmra.mrb[0].mxu0 %v5318
        %v8586 = vpop.f32.mrb[0].mxu0
        %v8587 = vadd.f32 %v5811, %v8586
        %v8588 = vpop.f32.mrb[0].mxu0
        %v8589 = vadd.f32 %v5815, %v8588
        %v8590 = vpop.f32.mrb[0].mxu0
        %v8591 = vadd.f32 %v5811, %v8590
        %v8592 = vpop.f32.mrb[0].mxu0
        %v8593 = vadd.f32 %v5815, %v8592
        %8594 = vmatprep.mubr.bf16.mxu0 %v5327
        %8595 = vmatmul.mubr.bf16.gmra.mrb[0].mxu0 %v5326
        %v8596 = vpop.f32.mrb[0].mxu0
        %v8597 = vadd.f32 %v5811, %v8596
        %v8598 = vpop.f32.mrb[0].mxu0
        %v8599 = vadd.f32 %v5815, %v8598
        %v8600 = vpop.f32.mrb[0].mxu0
        %v8601 = vadd.f32 %v5811, %v8600
        %v8602 = vpop.f32.mrb[0].mxu0
        %v8603 = vadd.f32 %v5815, %v8602
        %8604 = vmatprep.mubr.bf16.mxu0 %v5335
        %8605 = vmatmul.mubr.bf16.gmra.mrb[0].mxu0 %v5334
        %v8606 = vpop.f32.mrb[0].mxu0
        %v8607 = vadd.f32 %v5811, %v8606
        %v8608 = vpop.f32.mrb[0].mxu0
        %v8609 = vadd.f32 %v5815, %v8608
        %v8610 = vpop.f32.mrb[0].mxu0
        %v8611 = vadd.f32 %v5811, %v8610
        %v8612 = vpop.f32.mrb[0].mxu0
        %v8613 = vadd.f32 %v5815, %v8612
        %8614 = vmatprep.mubr.bf16.mxu0 %v5343
        %8615 = vmatmul.mubr.bf16.gmra.mrb[0].mxu0 %v5342
        %v8616 = vpop.f32.mrb[0].mxu0
        %v8617 = vadd.f32 %v5811, %v8616
        %v8618 = vpop.f32.mrb[0].mxu0
        %v8619 = vadd.f32 %v5815, %v8618
        %v8620 = vpop.f32.mrb[0].mxu0
        %v8621 = vadd.f32 %v5811, %v8620
        %v8622 = vpop.f32.mrb[0].mxu0
        %v8623 = vadd.f32 %v5815, %v8622
        %8624 = vmatprep.mubr.bf16.mxu0 %v5351
        %8625 = vmatmul.mubr.bf16.gmra.mrb[0].mxu0 %v5350
        %v8626 = vpop.f32.mrb[0].mxu0
        %v8627 = vadd.f32 %v5811, %v8626
        %v8628 = vpop.f32.mrb[0].mxu0
        %v8629 = vadd.f32 %v5815, %v8628
        %v8630 = vpop.f32.mrb[0].mxu0
        %v8631 = vadd.f32 %v5811, %v8630
        %v8632 = vpop.f32.mrb[0].mxu0
        %v8633 = vadd.f32 %v5815, %v8632
        %8634 = vmatprep.mubr.bf16.mxu0 %v5359
        %8635 = vmatmul.mubr.bf16.gmra.mrb[0].mxu0 %v5358
        %v8636 = vpop.f32.mrb[0].mxu0
        %v8637 = vadd.f32 %v5811, %v8636
        %v8638 = vpop.f32.mrb[0].mxu0
        %v8639 = vadd.f32 %v5815, %v8638
        %v8640 = vpop.f32.mrb[0].mxu0
        %v8641 = vadd.f32 %v5811, %v8640
        %v8642 = vpop.f32.mrb[0].mxu0
        %v8643 = vadd.f32 %v5815, %v8642
        %8644 = vmatprep.mubr.bf16.mxu0 %v5367
        %8645 = vmatmul.mubr.bf16.gmra.mrb[0].mxu0 %v5366
        %v8646 = vpop.f32.mrb[0].mxu0
        %v8647 = vadd.f32 %v5811, %v8646
        %v8648 = vpop.f32.mrb[0].mxu0
        %v8649 = vadd.f32 %v5815, %v8648
        %v8650 = vpop.f32.mrb[0].mxu0
        %v8651 = vadd.f32 %v5811, %v8650
        %v8652 = vpop.f32.mrb[0].mxu0
        %v8653 = vadd.f32 %v5815, %v8652
        %8654 = vmatprep.mubr.bf16.mxu0 %v5375
        %8655 = vmatmul.mubr.bf16.gmra.mrb[0].mxu0 %v5374
        %v8656 = vpop.f32.mrb[0].mxu0
        %v8657 = vadd.f32 %v5811, %v8656
        %v8658 = vpop.f32.mrb[0].mxu0
        %v8659 = vadd.f32 %v5815, %v8658
        %v8660 = vpop.f32.mrb[0].mxu0
        %v8661 = vadd.f32 %v5811, %v8660
        %v8662 = vpop.f32.mrb[0].mxu0
        %v8663 = vadd.f32 %v5815, %v8662
        %8664 = vmatprep.mubr.bf16.mxu0 %v5383
        %8665 = vmatmul.mubr.bf16.gmra.mrb[0].mxu0 %v5382
        %v8666 = vpop.f32.mrb[0].mxu0
        %v8667 = vadd.f32 %v5811, %v8666
        %v8668 = vpop.f32.mrb[0].mxu0
        %v8669 = vadd.f32 %v5815, %v8668
        %v8670 = vpop.f32.mrb[0].mxu0
        %v8671 = vadd.f32 %v5811, %v8670
        %v8672 = vpop.f32.mrb[0].mxu0
        %v8673 = vadd.f32 %v5815, %v8672
        %8674 = vmatprep.mubr.bf16.mxu0 %v5391
        %8675 = vmatmul.mubr.bf16.gmra.mrb[0].mxu0 %v5390
        %v8676 = vpop.f32.mrb[0].mxu0
        %v8677 = vadd.f32 %v5811, %v8676
        %v8678 = vpop.f32.mrb[0].mxu0
        %v8679 = vadd.f32 %v5815, %v8678
        %v8680 = vpop.f32.mrb[0].mxu0
        %v8681 = vadd.f32 %v5811, %v8680
        %v8682 = vpop.f32.mrb[0].mxu0
        %v8683 = vadd.f32 %v5815, %v8682
        %8684 = vmatprep.mubr.bf16.mxu0 %v5399
        %8685 = vmatmul.mubr.bf16.gmra.mrb[0].mxu0 %v5398
        %v8686 = vpop.f32.mrb[0].mxu0
        %v8687 = vadd.f32 %v5811, %v8686
        %v8688 = vpop.f32.mrb[0].mxu0
        %v8689 = vadd.f32 %v5815, %v8688
        %v8690 = vpop.f32.mrb[0].mxu0
        %v8691 = vadd.f32 %v5811, %v8690
        %v8692 = vpop.f32.mrb[0].mxu0
        %v8693 = vadd.f32 %v5815, %v8692
        %8694 = vmatprep.mubr.bf16.mxu0 %v5407
        %8695 = vmatmul.mubr.bf16.gmra.mrb[0].mxu0 %v5406
        %v8696 = vpop.f32.mrb[0].mxu0
        %v8697 = vadd.f32 %v5811, %v8696
        %v8698 = vpop.f32.mrb[0].mxu0
        %v8699 = vadd.f32 %v5815, %v8698
        %v8700 = vpop.f32.mrb[0].mxu0
        %v8701 = vadd.f32 %v5811, %v8700
        %v8702 = vpop.f32.mrb[0].mxu0
        %v8703 = vadd.f32 %v5815, %v8702
        %8704 = vmatprep.mubr.bf16.mxu0 %v5415
        %8705 = vmatmul.mubr.bf16.gmra.mrb[0].mxu0 %v5414
        %v8706 = vpop.f32.mrb[0].mxu0
        %v8707 = vadd.f32 %v5811, %v8706
        %v8708 = vpop.f32.mrb[0].mxu0
        %v8709 = vadd.f32 %v5815, %v8708
        %v8710 = vpop.f32.mrb[0].mxu0
        %v8711 = vadd.f32 %v5811, %v8710
        %v8712 = vpop.f32.mrb[0].mxu0
        %v8713 = vadd.f32 %v5815, %v8712
        %8714 = vmatprep.mubr.bf16.mxu0 %v5423
        %8715 = vmatmul.mubr.bf16.gmra.mrb[0].mxu0 %v5422
        %v8716 = vpop.f32.mrb[0].mxu0
        %v8717 = vadd.f32 %v5811, %v8716
        %v8718 = vpop.f32.mrb[0].mxu0
        %v8719 = vadd.f32 %v5815, %v8718
        %v8720 = vpop.f32.mrb[0].mxu0
        %v8721 = vadd.f32 %v5811, %v8720
        %v8722 = vpop.f32.mrb[0].mxu0
        %v8723 = vadd.f32 %v5815, %v8722
        %8724 = vmatprep.mubr.bf16.mxu0 %v5431
        %8725 = vmatmul.mubr.bf16.gmra.mrb[0].mxu0 %v5430
        %v8726 = vpop.f32.mrb[0].mxu0
        %v8727 = vadd.f32 %v5811, %v8726
        %v8728 = vpop.f32.mrb[0].mxu0
        %v8729 = vadd.f32 %v5815, %v8728
        %v8730 = vpop.f32.mrb[0].mxu0
        %v8731 = vadd.f32 %v5811, %v8730
        %v8732 = vpop.f32.mrb[0].mxu0
        %v8733 = vadd.f32 %v5815, %v8732
        %8734 = vmatprep.mubr.bf16.mxu0 %v5439
        %8735 = vmatmul.mubr.bf16.gmra.mrb[0].mxu0 %v5438
        %v8736 = vpop.f32.mrb[0].mxu0
        %v8737 = vadd.f32 %v5811, %v8736
        %v8738 = vpop.f32.mrb[0].mxu0
        %v8739 = vadd.f32 %v5815, %v8738
        %v8740 = vpop.f32.mrb[0].mxu0
        %v8741 = vadd.f32 %v5811, %v8740
        %v8742 = vpop.f32.mrb[0].mxu0
        %v8743 = vadd.f32 %v5815, %v8742
        %8744 = vmatprep.mubr.bf16.mxu0 %v5447
        %8745 = vmatmul.mubr.bf16.gmra.mrb[0].mxu0 %v5446
        %v8746 = vpop.f32.mrb[0].mxu0
        %v8747 = vadd.f32 %v5811, %v8746
        %v8748 = vpop.f32.mrb[0].mxu0
        %v8749 = vadd.f32 %v5815, %v8748
        %v8750 = vpop.f32.mrb[0].mxu0
        %v8751 = vadd.f32 %v5811, %v8750
        %v8752 = vpop.f32.mrb[0].mxu0
        %v8753 = vadd.f32 %v5815, %v8752
        %8754 = vmatprep.mubr.bf16.mxu0 %v5455
        %8755 = vmatmul.mubr.bf16.gmra.mrb[0].mxu0 %v5454
        %v8756 = vpop.f32.mrb[0].mxu0
        %v8757 = vadd.f32 %v5811, %v8756
        %v8758 = vpop.f32.mrb[0].mxu0
        %v8759 = vadd.f32 %v5815, %v8758
        %v8760 = vpop.f32.mrb[0].mxu0
        %v8761 = vadd.f32 %v5811, %v8760
        %v8762 = vpop.f32.mrb[0].mxu0
        %v8763 = vadd.f32 %v5815, %v8762
        %8764 = vmatprep.mubr.bf16.mxu0 %v5463
        %8765 = vmatmul.mubr.bf16.gmra.mrb[0].mxu0 %v5462
        %v8766 = vpop.f32.mrb[0].mxu0
        %v8767 = vadd.f32 %v5811, %v8766
        %v8768 = vpop.f32.mrb[0].mxu0
        %v8769 = vadd.f32 %v5815, %v8768
        %v8770 = vpop.f32.mrb[0].mxu0
        %v8771 = vadd.f32 %v5811, %v8770
        %v8772 = vpop.f32.mrb[0].mxu0
        %v8773 = vadd.f32 %v5815, %v8772
        %8774 = vmatprep.mubr.bf16.mxu0 %v5471
        %8775 = vmatmul.mubr.bf16.gmra.mrb[0].mxu0 %v5470
        %v8776 = vpop.f32.mrb[0].mxu0
        %v8777 = vadd.f32 %v5811, %v8776
        %v8778 = vpop.f32.mrb[0].mxu0
        %v8779 = vadd.f32 %v5815, %v8778
        %v8780 = vpop.f32.mrb[0].mxu0
        %v8781 = vadd.f32 %v5811, %v8780
        %v8782 = vpop.f32.mrb[0].mxu0
        %v8783 = vadd.f32 %v5815, %v8782
        %8784 = vmatprep.mubr.bf16.mxu0 %v5479
        %8785 = vmatmul.mubr.bf16.gmra.mrb[0].mxu0 %v5478
        %v8786 = vpop.f32.mrb[0].mxu0
        %v8787 = vadd.f32 %v5811, %v8786
        %v8788 = vpop.f32.mrb[0].mxu0
        %v8789 = vadd.f32 %v5815, %v8788
        %v8790 = vpop.f32.mrb[0].mxu0
        %v8791 = vadd.f32 %v5811, %v8790
        %v8792 = vpop.f32.mrb[0].mxu0
        %v8793 = vadd.f32 %v5815, %v8792
        %8794 = vmatprep.mubr.bf16.mxu0 %v5487
        %8795 = vmatmul.mubr.bf16.gmra.mrb[0].mxu0 %v5486
        %v8796 = vpop.f32.mrb[0].mxu0
        %v8797 = vadd.f32 %v5811, %v8796
        %v8798 = vpop.f32.mrb[0].mxu0
        %v8799 = vadd.f32 %v5815, %v8798
        %v8800 = vpop.f32.mrb[0].mxu0
        %v8801 = vadd.f32 %v5811, %v8800
        %v8802 = vpop.f32.mrb[0].mxu0
        %v8803 = vadd.f32 %v5815, %v8802
        %8804 = vmatprep.mubr.bf16.mxu0 %v5495
        %8805 = vmatmul.mubr.bf16.gmra.mrb[0].mxu0 %v5494
        %v8806 = vpop.f32.mrb[0].mxu0
        %v8807 = vadd.f32 %v5811, %v8806
        %v8808 = vpop.f32.mrb[0].mxu0
        %v8809 = vadd.f32 %v5815, %v8808
        %v8810 = vpop.f32.mrb[0].mxu0
        %v8811 = vadd.f32 %v5811, %v8810
        %v8812 = vpop.f32.mrb[0].mxu0
        %v8813 = vadd.f32 %v5815, %v8812
        %8814 = vmatprep.mubr.bf16.mxu0 %v5503
        %8815 = vmatmul.mubr.bf16.gmra.mrb[0].mxu0 %v5502
        %v8816 = vpop.f32.mrb[0].mxu0
        %v8817 = vadd.f32 %v5811, %v8816
        %v8818 = vpop.f32.mrb[0].mxu0
        %v8819 = vadd.f32 %v5815, %v8818
        %v8820 = vpop.f32.mrb[0].mxu0
        %v8821 = vadd.f32 %v5811, %v8820
        %v8822 = vpop.f32.mrb[0].mxu0
        %v8823 = vadd.f32 %v5815, %v8822
        %8824 = vmatprep.mubr.bf16.mxu0 %v5511
        %8825 = vmatmul.mubr.bf16.gmra.mrb[0].mxu0 %v5510
        %v8826 = vpop.f32.mrb[0].mxu0
        %v8827 = vadd.f32 %v5811, %v8826
        %v8828 = vpop.f32.mrb[0].mxu0
        %v8829 = vadd.f32 %v5815, %v8828
        %v8830 = vpop.f32.mrb[0].mxu0
        %v8831 = vadd.f32 %v5811, %v8830
        %v8832 = vpop.f32.mrb[0].mxu0
        %v8833 = vadd.f32 %v5815, %v8832
        %8834 = vmatprep.mubr.bf16.mxu0 %v5519
        %8835 = vmatmul.mubr.bf16.gmra.mrb[0].mxu0 %v5518
        %v8836 = vpop.f32.mrb[0].mxu0
        %v8837 = vadd.f32 %v5811, %v8836
        %v8838 = vpop.f32.mrb[0].mxu0
        %v8839 = vadd.f32 %v5815, %v8838
        %v8840 = vpop.f32.mrb[0].mxu0
        %v8841 = vadd.f32 %v5811, %v8840
        %v8842 = vpop.f32.mrb[0].mxu0
        %v8843 = vadd.f32 %v5815, %v8842
        %8844 = vmatprep.mubr.bf16.mxu0 %v5527
        %8845 = vmatmul.mubr.bf16.gmra.mrb[0].mxu0 %v5526
        %v8846 = vpop.f32.mrb[0].mxu0
        %v8847 = vadd.f32 %v5811, %v8846
        %v8848 = vpop.f32.mrb[0].mxu0
        %v8849 = vadd.f32 %v5815, %v8848
        %v8850 = vpop.f32.mrb[0].mxu0
        %v8851 = vadd.f32 %v5811, %v8850
        %v8852 = vpop.f32.mrb[0].mxu0
        %v8853 = vadd.f32 %v5815, %v8852
        %8854 = vmatprep.mubr.bf16.mxu0 %v5535
        %8855 = vmatmul.mubr.bf16.gmra.mrb[0].mxu0 %v5534
        %v8856 = vpop.f32.mrb[0].mxu0
        %v8857 = vadd.f32 %v5811, %v8856
        %v8858 = vpop.f32.mrb[0].mxu0
        %v8859 = vadd.f32 %v5815, %v8858
        %v8860 = vpop.f32.mrb[0].mxu0
        %v8861 = vadd.f32 %v5811, %v8860
        %v8862 = vpop.f32.mrb[0].mxu0
        %v8863 = vadd.f32 %v5815, %v8862
        %8864 = vdwg.mxu0
        %8865 = vmatprep.subr.bf16.mxu0 %v6655
        %8866 = vmatpush1.bf16.msra.mxu0 %v6654
        %8867 = vmatprep.subr.bf16.mxu0 %v6659
        %8868 = vmatpush1.bf16.msra.mxu0 %v6658
        %8869 = vmatprep.subr.bf16.mxu0 %v6663
        %8870 = vmatpush1.bf16.msra.mxu0 %v6662
        %8871 = vmatprep.subr.bf16.mxu0 %v6667
        %8872 = vmatpush1.bf16.msra.mxu0 %v6666
        %8873 = vmatprep.subr.bf16.mxu0 %v6671
        %8874 = vmatpush1.bf16.msra.mxu0 %v6670
        %8875 = vmatprep.subr.bf16.mxu0 %v6675
        %8876 = vmatpush1.bf16.msra.mxu0 %v6674
        %8877 = vmatprep.subr.bf16.mxu0 %v6679
        %8878 = vmatpush1.bf16.msra.mxu0 %v6678
        %8879 = vmatprep.subr.bf16.mxu0 %v6683
        %8880 = vmatpush1.bf16.msra.mxu0 %v6682
        %8881 = vmatprep.subr.bf16.mxu0 %v6687
        %8882 = vmatpush1.bf16.msra.mxu0 %v6686
        %8883 = vmatprep.subr.bf16.mxu0 %v6691
        %8884 = vmatpush1.bf16.msra.mxu0 %v6690
        %8885 = vmatprep.subr.bf16.mxu0 %v6695
        %8886 = vmatpush1.bf16.msra.mxu0 %v6694
        %8887 = vmatprep.subr.bf16.mxu0 %v6699
        %8888 = vmatpush1.bf16.msra.mxu0 %v6698
        %8889 = vmatprep.subr.bf16.mxu0 %v6703
        %8890 = vmatpush1.bf16.msra.mxu0 %v6702
        %8891 = vmatprep.subr.bf16.mxu0 %v6707
        %8892 = vmatpush1.bf16.msra.mxu0 %v6706
        %8893 = vmatprep.subr.bf16.mxu0 %v6711
        %8894 = vmatpush1.bf16.msra.mxu0 %v6710
        %8895 = vmatprep.subr.bf16.mxu0 %v6715
        %8896 = vmatpush1.bf16.msra.mxu0 %v6714
        %8897 = vmatprep.mubr.bf16.mxu0 %v5289
        %8898 = vmatmul.mubr.bf16.gmra.mrb[0].mxu0 %v5288
        %v8899 = vpop.f32.mrb[0].mxu0
        %v8900 = vadd.f32 %v8547, %v8899
        %v8901 = vpop.f32.mrb[0].mxu0
        %v8902 = vadd.f32 %v8549, %v8901
        %v8903 = vpop.f32.mrb[0].mxu0
        %v8904 = vadd.f32 %v8551, %v8903
        %v8905 = vpop.f32.mrb[0].mxu0
        %v8906 = vadd.f32 %v8553, %v8905
        %8907 = vmatprep.mubr.bf16.mxu0 %v5297
        %8908 = vmatmul.mubr.bf16.gmra.mrb[0].mxu0 %v5296
        %v8909 = vpop.f32.mrb[0].mxu0
        %v8910 = vadd.f32 %v8557, %v8909
        %v8911 = vpop.f32.mrb[0].mxu0
        %v8912 = vadd.f32 %v8559, %v8911
        %v8913 = vpop.f32.mrb[0].mxu0
        %v8914 = vadd.f32 %v8561, %v8913
        %v8915 = vpop.f32.mrb[0].mxu0
        %v8916 = vadd.f32 %v8563, %v8915
        %8917 = vmatprep.mubr.bf16.mxu0 %v5305
        %8918 = vmatmul.mubr.bf16.gmra.mrb[0].mxu0 %v5304
        %v8919 = vpop.f32.mrb[0].mxu0
        %v8920 = vadd.f32 %v8567, %v8919
        %v8921 = vpop.f32.mrb[0].mxu0
        %v8922 = vadd.f32 %v8569, %v8921
        %v8923 = vpop.f32.mrb[0].mxu0
        %v8924 = vadd.f32 %v8571, %v8923
        %v8925 = vpop.f32.mrb[0].mxu0
        %v8926 = vadd.f32 %v8573, %v8925
        %8927 = vmatprep.mubr.bf16.mxu0 %v5313
        %8928 = vmatmul.mubr.bf16.gmra.mrb[0].mxu0 %v5312
        %v8929 = vpop.f32.mrb[0].mxu0
        %v8930 = vadd.f32 %v8577, %v8929
        %v8931 = vpop.f32.mrb[0].mxu0
        %v8932 = vadd.f32 %v8579, %v8931
        %v8933 = vpop.f32.mrb[0].mxu0
        %v8934 = vadd.f32 %v8581, %v8933
        %v8935 = vpop.f32.mrb[0].mxu0
        %v8936 = vadd.f32 %v8583, %v8935
        %8937 = vmatprep.mubr.bf16.mxu0 %v5321
        %8938 = vmatmul.mubr.bf16.gmra.mrb[0].mxu0 %v5320
        %v8939 = vpop.f32.mrb[0].mxu0
        %v8940 = vadd.f32 %v8587, %v8939
        %v8941 = vpop.f32.mrb[0].mxu0
        %v8942 = vadd.f32 %v8589, %v8941
        %v8943 = vpop.f32.mrb[0].mxu0
        %v8944 = vadd.f32 %v8591, %v8943
        %v8945 = vpop.f32.mrb[0].mxu0
        %v8946 = vadd.f32 %v8593, %v8945
        %8947 = vmatprep.mubr.bf16.mxu0 %v5329
        %8948 = vmatmul.mubr.bf16.gmra.mrb[0].mxu0 %v5328
        %v8949 = vpop.f32.mrb[0].mxu0
        %v8950 = vadd.f32 %v8597, %v8949
        %v8951 = vpop.f32.mrb[0].mxu0
        %v8952 = vadd.f32 %v8599, %v8951
        %v8953 = vpop.f32.mrb[0].mxu0
        %v8954 = vadd.f32 %v8601, %v8953
        %v8955 = vpop.f32.mrb[0].mxu0
        %v8956 = vadd.f32 %v8603, %v8955
        %8957 = vmatprep.mubr.bf16.mxu0 %v5337
        %8958 = vmatmul.mubr.bf16.gmra.mrb[0].mxu0 %v5336
        %v8959 = vpop.f32.mrb[0].mxu0
        %v8960 = vadd.f32 %v8607, %v8959
        %v8961 = vpop.f32.mrb[0].mxu0
        %v8962 = vadd.f32 %v8609, %v8961
        %v8963 = vpop.f32.mrb[0].mxu0
        %v8964 = vadd.f32 %v8611, %v8963
        %v8965 = vpop.f32.mrb[0].mxu0
        %v8966 = vadd.f32 %v8613, %v8965
        %8967 = vmatprep.mubr.bf16.mxu0 %v5345
        %8968 = vmatmul.mubr.bf16.gmra.mrb[0].mxu0 %v5344
        %v8969 = vpop.f32.mrb[0].mxu0
        %v8970 = vadd.f32 %v8617, %v8969
        %v8971 = vpop.f32.mrb[0].mxu0
        %v8972 = vadd.f32 %v8619, %v8971
        %v8973 = vpop.f32.mrb[0].mxu0
        %v8974 = vadd.f32 %v8621, %v8973
        %v8975 = vpop.f32.mrb[0].mxu0
        %v8976 = vadd.f32 %v8623, %v8975
        %8977 = vmatprep.mubr.bf16.mxu0 %v5353
        %8978 = vmatmul.mubr.bf16.gmra.mrb[0].mxu0 %v5352
        %v8979 = vpop.f32.mrb[0].mxu0
        %v8980 = vadd.f32 %v8627, %v8979
        %v8981 = vpop.f32.mrb[0].mxu0
        %v8982 = vadd.f32 %v8629, %v8981
        %v8983 = vpop.f32.mrb[0].mxu0
        %v8984 = vadd.f32 %v8631, %v8983
        %v8985 = vpop.f32.mrb[0].mxu0
        %v8986 = vadd.f32 %v8633, %v8985
        %8987 = vmatprep.mubr.bf16.mxu0 %v5361
        %8988 = vmatmul.mubr.bf16.gmra.mrb[0].mxu0 %v5360
        %v8989 = vpop.f32.mrb[0].mxu0
        %v8990 = vadd.f32 %v8637, %v8989
        %v8991 = vpop.f32.mrb[0].mxu0
        %v8992 = vadd.f32 %v8639, %v8991
        %v8993 = vpop.f32.mrb[0].mxu0
        %v8994 = vadd.f32 %v8641, %v8993
        %v8995 = vpop.f32.mrb[0].mxu0
        %v8996 = vadd.f32 %v8643, %v8995
        %8997 = vmatprep.mubr.bf16.mxu0 %v5369
        %8998 = vmatmul.mubr.bf16.gmra.mrb[0].mxu0 %v5368
        %v8999 = vpop.f32.mrb[0].mxu0
        %v9000 = vadd.f32 %v8647, %v8999
        %v9001 = vpop.f32.mrb[0].mxu0
        %v9002 = vadd.f32 %v8649, %v9001
        %v9003 = vpop.f32.mrb[0].mxu0
        %v9004 = vadd.f32 %v8651, %v9003
        %v9005 = vpop.f32.mrb[0].mxu0
        %v9006 = vadd.f32 %v8653, %v9005
        %9007 = vmatprep.mubr.bf16.mxu0 %v5377
        %9008 = vmatmul.mubr.bf16.gmra.mrb[0].mxu0 %v5376
        %v9009 = vpop.f32.mrb[0].mxu0
        %v9010 = vadd.f32 %v8657, %v9009
        %v9011 = vpop.f32.mrb[0].mxu0
        %v9012 = vadd.f32 %v8659, %v9011
        %v9013 = vpop.f32.mrb[0].mxu0
        %v9014 = vadd.f32 %v8661, %v9013
        %v9015 = vpop.f32.mrb[0].mxu0
        %v9016 = vadd.f32 %v8663, %v9015
        %9017 = vmatprep.mubr.bf16.mxu0 %v5385
        %9018 = vmatmul.mubr.bf16.gmra.mrb[0].mxu0 %v5384
        %v9019 = vpop.f32.mrb[0].mxu0
        %v9020 = vadd.f32 %v8667, %v9019
        %v9021 = vpop.f32.mrb[0].mxu0
        %v9022 = vadd.f32 %v8669, %v9021
        %v9023 = vpop.f32.mrb[0].mxu0
        %v9024 = vadd.f32 %v8671, %v9023
        %v9025 = vpop.f32.mrb[0].mxu0
        %v9026 = vadd.f32 %v8673, %v9025
        %9027 = vmatprep.mubr.bf16.mxu0 %v5393
        %9028 = vmatmul.mubr.bf16.gmra.mrb[0].mxu0 %v5392
        %v9029 = vpop.f32.mrb[0].mxu0
        %v9030 = vadd.f32 %v8677, %v9029
        %v9031 = vpop.f32.mrb[0].mxu0
        %v9032 = vadd.f32 %v8679, %v9031
        %v9033 = vpop.f32.mrb[0].mxu0
        %v9034 = vadd.f32 %v8681, %v9033
        %v9035 = vpop.f32.mrb[0].mxu0
        %v9036 = vadd.f32 %v8683, %v9035
        %9037 = vmatprep.mubr.bf16.mxu0 %v5401
        %9038 = vmatmul.mubr.bf16.gmra.mrb[0].mxu0 %v5400
        %v9039 = vpop.f32.mrb[0].mxu0
        %v9040 = vadd.f32 %v8687, %v9039
        %v9041 = vpop.f32.mrb[0].mxu0
        %v9042 = vadd.f32 %v8689, %v9041
        %v9043 = vpop.f32.mrb[0].mxu0
        %v9044 = vadd.f32 %v8691, %v9043
        %v9045 = vpop.f32.mrb[0].mxu0
        %v9046 = vadd.f32 %v8693, %v9045
        %9047 = vmatprep.mubr.bf16.mxu0 %v5409
        %9048 = vmatmul.mubr.bf16.gmra.mrb[0].mxu0 %v5408
        %v9049 = vpop.f32.mrb[0].mxu0
        %v9050 = vadd.f32 %v8697, %v9049
        %v9051 = vpop.f32.mrb[0].mxu0
        %v9052 = vadd.f32 %v8699, %v9051
        %v9053 = vpop.f32.mrb[0].mxu0
        %v9054 = vadd.f32 %v8701, %v9053
        %v9055 = vpop.f32.mrb[0].mxu0
        %v9056 = vadd.f32 %v8703, %v9055
        %9057 = vmatprep.mubr.bf16.mxu0 %v5417
        %9058 = vmatmul.mubr.bf16.gmra.mrb[0].mxu0 %v5416
        %v9059 = vpop.f32.mrb[0].mxu0
        %v9060 = vadd.f32 %v8707, %v9059
        %v9061 = vpop.f32.mrb[0].mxu0
        %v9062 = vadd.f32 %v8709, %v9061
        %v9063 = vpop.f32.mrb[0].mxu0
        %v9064 = vadd.f32 %v8711, %v9063
        %v9065 = vpop.f32.mrb[0].mxu0
        %v9066 = vadd.f32 %v8713, %v9065
        %9067 = vmatprep.mubr.bf16.mxu0 %v5425
        %9068 = vmatmul.mubr.bf16.gmra.mrb[0].mxu0 %v5424
        %v9069 = vpop.f32.mrb[0].mxu0
        %v9070 = vadd.f32 %v8717, %v9069
        %v9071 = vpop.f32.mrb[0].mxu0
        %v9072 = vadd.f32 %v8719, %v9071
        %v9073 = vpop.f32.mrb[0].mxu0
        %v9074 = vadd.f32 %v8721, %v9073
        %v9075 = vpop.f32.mrb[0].mxu0
        %v9076 = vadd.f32 %v8723, %v9075
        %9077 = vmatprep.mubr.bf16.mxu0 %v5433
        %9078 = vmatmul.mubr.bf16.gmra.mrb[0].mxu0 %v5432
        %v9079 = vpop.f32.mrb[0].mxu0
        %v9080 = vadd.f32 %v8727, %v9079
        %v9081 = vpop.f32.mrb[0].mxu0
        %v9082 = vadd.f32 %v8729, %v9081
        %v9083 = vpop.f32.mrb[0].mxu0
        %v9084 = vadd.f32 %v8731, %v9083
        %v9085 = vpop.f32.mrb[0].mxu0
        %v9086 = vadd.f32 %v8733, %v9085
        %9087 = vmatprep.mubr.bf16.mxu0 %v5441
        %9088 = vmatmul.mubr.bf16.gmra.mrb[0].mxu0 %v5440
        %v9089 = vpop.f32.mrb[0].mxu0
        %v9090 = vadd.f32 %v8737, %v9089
        %v9091 = vpop.f32.mrb[0].mxu0
        %v9092 = vadd.f32 %v8739, %v9091
        %v9093 = vpop.f32.mrb[0].mxu0
        %v9094 = vadd.f32 %v8741, %v9093
        %v9095 = vpop.f32.mrb[0].mxu0
        %v9096 = vadd.f32 %v8743, %v9095
        %9097 = vmatprep.mubr.bf16.mxu0 %v5449
        %9098 = vmatmul.mubr.bf16.gmra.mrb[0].mxu0 %v5448
        %v9099 = vpop.f32.mrb[0].mxu0
        %v9100 = vadd.f32 %v8747, %v9099
        %v9101 = vpop.f32.mrb[0].mxu0
        %v9102 = vadd.f32 %v8749, %v9101
        %v9103 = vpop.f32.mrb[0].mxu0
        %v9104 = vadd.f32 %v8751, %v9103
        %v9105 = vpop.f32.mrb[0].mxu0
        %v9106 = vadd.f32 %v8753, %v9105
        %9107 = vmatprep.mubr.bf16.mxu0 %v5457
        %9108 = vmatmul.mubr.bf16.gmra.mrb[0].mxu0 %v5456
        %v9109 = vpop.f32.mrb[0].mxu0
        %v9110 = vadd.f32 %v8757, %v9109
        %v9111 = vpop.f32.mrb[0].mxu0
        %v9112 = vadd.f32 %v8759, %v9111
        %v9113 = vpop.f32.mrb[0].mxu0
        %v9114 = vadd.f32 %v8761, %v9113
        %v9115 = vpop.f32.mrb[0].mxu0
        %v9116 = vadd.f32 %v8763, %v9115
        %9117 = vmatprep.mubr.bf16.mxu0 %v5465
        %9118 = vmatmul.mubr.bf16.gmra.mrb[0].mxu0 %v5464
        %v9119 = vpop.f32.mrb[0].mxu0
        %v9120 = vadd.f32 %v8767, %v9119
        %v9121 = vpop.f32.mrb[0].mxu0
        %v9122 = vadd.f32 %v8769, %v9121
        %v9123 = vpop.f32.mrb[0].mxu0
        %v9124 = vadd.f32 %v8771, %v9123
        %v9125 = vpop.f32.mrb[0].mxu0
        %v9126 = vadd.f32 %v8773, %v9125
        %9127 = vmatprep.mubr.bf16.mxu0 %v5473
        %9128 = vmatmul.mubr.bf16.gmra.mrb[0].mxu0 %v5472
        %v9129 = vpop.f32.mrb[0].mxu0
        %v9130 = vadd.f32 %v8777, %v9129
        %v9131 = vpop.f32.mrb[0].mxu0
        %v9132 = vadd.f32 %v8779, %v9131
        %v9133 = vpop.f32.mrb[0].mxu0
        %v9134 = vadd.f32 %v8781, %v9133
        %v9135 = vpop.f32.mrb[0].mxu0
        %v9136 = vadd.f32 %v8783, %v9135
        %9137 = vmatprep.mubr.bf16.mxu0 %v5481
        %9138 = vmatmul.mubr.bf16.gmra.mrb[0].mxu0 %v5480
        %v9139 = vpop.f32.mrb[0].mxu0
        %v9140 = vadd.f32 %v8787, %v9139
        %v9141 = vpop.f32.mrb[0].mxu0
        %v9142 = vadd.f32 %v8789, %v9141
        %v9143 = vpop.f32.mrb[0].mxu0
        %v9144 = vadd.f32 %v8791, %v9143
        %v9145 = vpop.f32.mrb[0].mxu0
        %v9146 = vadd.f32 %v8793, %v9145
        %9147 = vmatprep.mubr.bf16.mxu0 %v5489
        %9148 = vmatmul.mubr.bf16.gmra.mrb[0].mxu0 %v5488
        %v9149 = vpop.f32.mrb[0].mxu0
        %v9150 = vadd.f32 %v8797, %v9149
        %v9151 = vpop.f32.mrb[0].mxu0
        %v9152 = vadd.f32 %v8799, %v9151
        %v9153 = vpop.f32.mrb[0].mxu0
        %v9154 = vadd.f32 %v8801, %v9153
        %v9155 = vpop.f32.mrb[0].mxu0
        %v9156 = vadd.f32 %v8803, %v9155
        %9157 = vmatprep.mubr.bf16.mxu0 %v5497
        %9158 = vmatmul.mubr.bf16.gmra.mrb[0].mxu0 %v5496
        %v9159 = vpop.f32.mrb[0].mxu0
        %v9160 = vadd.f32 %v8807, %v9159
        %v9161 = vpop.f32.mrb[0].mxu0
        %v9162 = vadd.f32 %v8809, %v9161
        %v9163 = vpop.f32.mrb[0].mxu0
        %v9164 = vadd.f32 %v8811, %v9163
        %v9165 = vpop.f32.mrb[0].mxu0
        %v9166 = vadd.f32 %v8813, %v9165
        %9167 = vmatprep.mubr.bf16.mxu0 %v5505
        %9168 = vmatmul.mubr.bf16.gmra.mrb[0].mxu0 %v5504
        %v9169 = vpop.f32.mrb[0].mxu0
        %v9170 = vadd.f32 %v8817, %v9169
        %v9171 = vpop.f32.mrb[0].mxu0
        %v9172 = vadd.f32 %v8819, %v9171
        %v9173 = vpop.f32.mrb[0].mxu0
        %v9174 = vadd.f32 %v8821, %v9173
        %v9175 = vpop.f32.mrb[0].mxu0
        %v9176 = vadd.f32 %v8823, %v9175
        %9177 = vmatprep.mubr.bf16.mxu0 %v5513
        %9178 = vmatmul.mubr.bf16.gmra.mrb[0].mxu0 %v5512
        %v9179 = vpop.f32.mrb[0].mxu0
        %v9180 = vadd.f32 %v8827, %v9179
        %v9181 = vpop.f32.mrb[0].mxu0
        %v9182 = vadd.f32 %v8829, %v9181
        %v9183 = vpop.f32.mrb[0].mxu0
        %v9184 = vadd.f32 %v8831, %v9183
        %v9185 = vpop.f32.mrb[0].mxu0
        %v9186 = vadd.f32 %v8833, %v9185
        %9187 = vmatprep.mubr.bf16.mxu0 %v5521
        %9188 = vmatmul.mubr.bf16.gmra.mrb[0].mxu0 %v5520
        %v9189 = vpop.f32.mrb[0].mxu0
        %v9190 = vadd.f32 %v8837, %v9189
        %v9191 = vpop.f32.mrb[0].mxu0
        %v9192 = vadd.f32 %v8839, %v9191
        %v9193 = vpop.f32.mrb[0].mxu0
        %v9194 = vadd.f32 %v8841, %v9193
        %v9195 = vpop.f32.mrb[0].mxu0
        %v9196 = vadd.f32 %v8843, %v9195
        %9197 = vmatprep.mubr.bf16.mxu0 %v5529
        %9198 = vmatmul.mubr.bf16.gmra.mrb[0].mxu0 %v5528
        %v9199 = vpop.f32.mrb[0].mxu0
        %v9200 = vadd.f32 %v8847, %v9199
        %v9201 = vpop.f32.mrb[0].mxu0
        %v9202 = vadd.f32 %v8849, %v9201
        %v9203 = vpop.f32.mrb[0].mxu0
        %v9204 = vadd.f32 %v8851, %v9203
        %v9205 = vpop.f32.mrb[0].mxu0
        %v9206 = vadd.f32 %v8853, %v9205
        %9207 = vmatprep.mubr.bf16.mxu0 %v5537
        %9208 = vmatmul.mubr.bf16.gmra.mrb[0].mxu0 %v5536
        %v9209 = vpop.f32.mrb[0].mxu0
        %v9210 = vadd.f32 %v8857, %v9209
        %v9211 = vpop.f32.mrb[0].mxu0
        %v9212 = vadd.f32 %v8859, %v9211
        %v9213 = vpop.f32.mrb[0].mxu0
        %v9214 = vadd.f32 %v8861, %v9213
        %v9215 = vpop.f32.mrb[0].mxu0
        %v9216 = vadd.f32 %v8863, %v9215
        %9217 = vdwg.mxu0
        %9218 = vmatprep.subr.bf16.mxu0 %v6719
        %9219 = vmatpush1.bf16.msra.mxu0 %v6718
        %9220 = vmatprep.subr.bf16.mxu0 %v6723
        %9221 = vmatpush1.bf16.msra.mxu0 %v6722
        %9222 = vmatprep.subr.bf16.mxu0 %v6727
        %9223 = vmatpush1.bf16.msra.mxu0 %v6726
        %9224 = vmatprep.subr.bf16.mxu0 %v6731
        %9225 = vmatpush1.bf16.msra.mxu0 %v6730
        %9226 = vmatprep.subr.bf16.mxu0 %v6735
        %9227 = vmatpush1.bf16.msra.mxu0 %v6734
        %9228 = vmatprep.subr.bf16.mxu0 %v6739
        %9229 = vmatpush1.bf16.msra.mxu0 %v6738
        %9230 = vmatprep.subr.bf16.mxu0 %v6743
        %9231 = vmatpush1.bf16.msra.mxu0 %v6742
        %9232 = vmatprep.subr.bf16.mxu0 %v6747
        %9233 = vmatpush1.bf16.msra.mxu0 %v6746
        %9234 = vmatprep.subr.bf16.mxu0 %v6751
        %9235 = vmatpush1.bf16.msra.mxu0 %v6750
        %9236 = vmatprep.subr.bf16.mxu0 %v6755
        %9237 = vmatpush1.bf16.msra.mxu0 %v6754
        %9238 = vmatprep.subr.bf16.mxu0 %v6759
        %9239 = vmatpush1.bf16.msra.mxu0 %v6758
        %9240 = vmatprep.subr.bf16.mxu0 %v6763
        %9241 = vmatpush1.bf16.msra.mxu0 %v6762
        %9242 = vmatprep.subr.bf16.mxu0 %v6767
        %9243 = vmatpush1.bf16.msra.mxu0 %v6766
        %9244 = vmatprep.subr.bf16.mxu0 %v6771
        %9245 = vmatpush1.bf16.msra.mxu0 %v6770
        %9246 = vmatprep.subr.bf16.mxu0 %v6775
        %9247 = vmatpush1.bf16.msra.mxu0 %v6774
        %9248 = vmatprep.subr.bf16.mxu0 %v6779
        %9249 = vmatpush1.bf16.msra.mxu0 %v6778
        %9250 = vmatprep.mubr.bf16.mxu0 %v5291
        %9251 = vmatmul.mubr.bf16.gmra.mrb[0].mxu0 %v5290
        %v9252 = vpop.f32.mrb[0].mxu0
        %v9253 = vadd.f32 %v8900, %v9252
        %v9254 = vpop.f32.mrb[0].mxu0
        %v9255 = vadd.f32 %v8902, %v9254
        %v9256 = vpop.f32.mrb[0].mxu0
        %v9257 = vadd.f32 %v8904, %v9256
        %v9258 = vpop.f32.mrb[0].mxu0
        %v9259 = vadd.f32 %v8906, %v9258
        %9260 = vmatprep.mubr.bf16.mxu0 %v5299
        %9261 = vmatmul.mubr.bf16.gmra.mrb[0].mxu0 %v5298
        %v9262 = vpop.f32.mrb[0].mxu0
        %v9263 = vadd.f32 %v8910, %v9262
        %v9264 = vpop.f32.mrb[0].mxu0
        %v9265 = vadd.f32 %v8912, %v9264
        %v9266 = vpop.f32.mrb[0].mxu0
        %v9267 = vadd.f32 %v8914, %v9266
        %v9268 = vpop.f32.mrb[0].mxu0
        %v9269 = vadd.f32 %v8916, %v9268
        %9270 = vmatprep.mubr.bf16.mxu0 %v5307
        %9271 = vmatmul.mubr.bf16.gmra.mrb[0].mxu0 %v5306
        %v9272 = vpop.f32.mrb[0].mxu0
        %v9273 = vadd.f32 %v8920, %v9272
        %v9274 = vpop.f32.mrb[0].mxu0
        %v9275 = vadd.f32 %v8922, %v9274
        %v9276 = vpop.f32.mrb[0].mxu0
        %v9277 = vadd.f32 %v8924, %v9276
        %v9278 = vpop.f32.mrb[0].mxu0
        %v9279 = vadd.f32 %v8926, %v9278
        %9280 = vmatprep.mubr.bf16.mxu0 %v5315
        %9281 = vmatmul.mubr.bf16.gmra.mrb[0].mxu0 %v5314
        %v9282 = vpop.f32.mrb[0].mxu0
        %v9283 = vadd.f32 %v8930, %v9282
        %v9284 = vpop.f32.mrb[0].mxu0
        %v9285 = vadd.f32 %v8932, %v9284
        %v9286 = vpop.f32.mrb[0].mxu0
        %v9287 = vadd.f32 %v8934, %v9286
        %v9288 = vpop.f32.mrb[0].mxu0
        %v9289 = vadd.f32 %v8936, %v9288
        %9290 = vmatprep.mubr.bf16.mxu0 %v5323
        %9291 = vmatmul.mubr.bf16.gmra.mrb[0].mxu0 %v5322
        %v9292 = vpop.f32.mrb[0].mxu0
        %v9293 = vadd.f32 %v8940, %v9292
        %v9294 = vpop.f32.mrb[0].mxu0
        %v9295 = vadd.f32 %v8942, %v9294
        %v9296 = vpop.f32.mrb[0].mxu0
        %v9297 = vadd.f32 %v8944, %v9296
        %v9298 = vpop.f32.mrb[0].mxu0
        %v9299 = vadd.f32 %v8946, %v9298
        %9300 = vmatprep.mubr.bf16.mxu0 %v5331
        %9301 = vmatmul.mubr.bf16.gmra.mrb[0].mxu0 %v5330
        %v9302 = vpop.f32.mrb[0].mxu0
        %v9303 = vadd.f32 %v8950, %v9302
        %v9304 = vpop.f32.mrb[0].mxu0
        %v9305 = vadd.f32 %v8952, %v9304
        %v9306 = vpop.f32.mrb[0].mxu0
        %v9307 = vadd.f32 %v8954, %v9306
        %v9308 = vpop.f32.mrb[0].mxu0
        %v9309 = vadd.f32 %v8956, %v9308
        %9310 = vmatprep.mubr.bf16.mxu0 %v5339
        %9311 = vmatmul.mubr.bf16.gmra.mrb[0].mxu0 %v5338
        %v9312 = vpop.f32.mrb[0].mxu0
        %v9313 = vadd.f32 %v8960, %v9312
        %v9314 = vpop.f32.mrb[0].mxu0
        %v9315 = vadd.f32 %v8962, %v9314
        %v9316 = vpop.f32.mrb[0].mxu0
        %v9317 = vadd.f32 %v8964, %v9316
        %v9318 = vpop.f32.mrb[0].mxu0
        %v9319 = vadd.f32 %v8966, %v9318
        %9320 = vmatprep.mubr.bf16.mxu0 %v5347
        %9321 = vmatmul.mubr.bf16.gmra.mrb[0].mxu0 %v5346
        %v9322 = vpop.f32.mrb[0].mxu0
        %v9323 = vadd.f32 %v8970, %v9322
        %v9324 = vpop.f32.mrb[0].mxu0
        %v9325 = vadd.f32 %v8972, %v9324
        %v9326 = vpop.f32.mrb[0].mxu0
        %v9327 = vadd.f32 %v8974, %v9326
        %v9328 = vpop.f32.mrb[0].mxu0
        %v9329 = vadd.f32 %v8976, %v9328
        %9330 = vmatprep.mubr.bf16.mxu0 %v5355
        %9331 = vmatmul.mubr.bf16.gmra.mrb[0].mxu0 %v5354
        %v9332 = vpop.f32.mrb[0].mxu0
        %v9333 = vadd.f32 %v8980, %v9332
        %v9334 = vpop.f32.mrb[0].mxu0
        %v9335 = vadd.f32 %v8982, %v9334
        %v9336 = vpop.f32.mrb[0].mxu0
        %v9337 = vadd.f32 %v8984, %v9336
        %v9338 = vpop.f32.mrb[0].mxu0
        %v9339 = vadd.f32 %v8986, %v9338
        %9340 = vmatprep.mubr.bf16.mxu0 %v5363
        %9341 = vmatmul.mubr.bf16.gmra.mrb[0].mxu0 %v5362
        %v9342 = vpop.f32.mrb[0].mxu0
        %v9343 = vadd.f32 %v8990, %v9342
        %v9344 = vpop.f32.mrb[0].mxu0
        %v9345 = vadd.f32 %v8992, %v9344
        %v9346 = vpop.f32.mrb[0].mxu0
        %v9347 = vadd.f32 %v8994, %v9346
        %v9348 = vpop.f32.mrb[0].mxu0
        %v9349 = vadd.f32 %v8996, %v9348
        %9350 = vmatprep.mubr.bf16.mxu0 %v5371
        %9351 = vmatmul.mubr.bf16.gmra.mrb[0].mxu0 %v5370
        %v9352 = vpop.f32.mrb[0].mxu0
        %v9353 = vadd.f32 %v9000, %v9352
        %v9354 = vpop.f32.mrb[0].mxu0
        %v9355 = vadd.f32 %v9002, %v9354
        %v9356 = vpop.f32.mrb[0].mxu0
        %v9357 = vadd.f32 %v9004, %v9356
        %v9358 = vpop.f32.mrb[0].mxu0
        %v9359 = vadd.f32 %v9006, %v9358
        %9360 = vmatprep.mubr.bf16.mxu0 %v5379
        %9361 = vmatmul.mubr.bf16.gmra.mrb[0].mxu0 %v5378
        %v9362 = vpop.f32.mrb[0].mxu0
        %v9363 = vadd.f32 %v9010, %v9362
        %v9364 = vpop.f32.mrb[0].mxu0
        %v9365 = vadd.f32 %v9012, %v9364
        %v9366 = vpop.f32.mrb[0].mxu0
        %v9367 = vadd.f32 %v9014, %v9366
        %v9368 = vpop.f32.mrb[0].mxu0
        %v9369 = vadd.f32 %v9016, %v9368
        %9370 = vmatprep.mubr.bf16.mxu0 %v5387
        %9371 = vmatmul.mubr.bf16.gmra.mrb[0].mxu0 %v5386
        %v9372 = vpop.f32.mrb[0].mxu0
        %v9373 = vadd.f32 %v9020, %v9372
        %v9374 = vpop.f32.mrb[0].mxu0
        %v9375 = vadd.f32 %v9022, %v9374
        %v9376 = vpop.f32.mrb[0].mxu0
        %v9377 = vadd.f32 %v9024, %v9376
        %v9378 = vpop.f32.mrb[0].mxu0
        %v9379 = vadd.f32 %v9026, %v9378
        %9380 = vmatprep.mubr.bf16.mxu0 %v5395
        %9381 = vmatmul.mubr.bf16.gmra.mrb[0].mxu0 %v5394
        %v9382 = vpop.f32.mrb[0].mxu0
        %v9383 = vadd.f32 %v9030, %v9382
        %v9384 = vpop.f32.mrb[0].mxu0
        %v9385 = vadd.f32 %v9032, %v9384
        %v9386 = vpop.f32.mrb[0].mxu0
        %v9387 = vadd.f32 %v9034, %v9386
        %v9388 = vpop.f32.mrb[0].mxu0
        %v9389 = vadd.f32 %v9036, %v9388
        %9390 = vmatprep.mubr.bf16.mxu0 %v5403
        %9391 = vmatmul.mubr.bf16.gmra.mrb[0].mxu0 %v5402
        %v9392 = vpop.f32.mrb[0].mxu0
        %v9393 = vadd.f32 %v9040, %v9392
        %v9394 = vpop.f32.mrb[0].mxu0
        %v9395 = vadd.f32 %v9042, %v9394
        %v9396 = vpop.f32.mrb[0].mxu0
        %v9397 = vadd.f32 %v9044, %v9396
        %v9398 = vpop.f32.mrb[0].mxu0
        %v9399 = vadd.f32 %v9046, %v9398
        %9400 = vmatprep.mubr.bf16.mxu0 %v5411
        %9401 = vmatmul.mubr.bf16.gmra.mrb[0].mxu0 %v5410
        %v9402 = vpop.f32.mrb[0].mxu0
        %v9403 = vadd.f32 %v9050, %v9402
        %v9404 = vpop.f32.mrb[0].mxu0
        %v9405 = vadd.f32 %v9052, %v9404
        %v9406 = vpop.f32.mrb[0].mxu0
        %v9407 = vadd.f32 %v9054, %v9406
        %v9408 = vpop.f32.mrb[0].mxu0
        %v9409 = vadd.f32 %v9056, %v9408
        %9410 = vmatprep.mubr.bf16.mxu0 %v5419
        %9411 = vmatmul.mubr.bf16.gmra.mrb[0].mxu0 %v5418
        %v9412 = vpop.f32.mrb[0].mxu0
        %v9413 = vadd.f32 %v9060, %v9412
        %v9414 = vpop.f32.mrb[0].mxu0
        %v9415 = vadd.f32 %v9062, %v9414
        %v9416 = vpop.f32.mrb[0].mxu0
        %v9417 = vadd.f32 %v9064, %v9416
        %v9418 = vpop.f32.mrb[0].mxu0
        %v9419 = vadd.f32 %v9066, %v9418
        %9420 = vmatprep.mubr.bf16.mxu0 %v5427
        %9421 = vmatmul.mubr.bf16.gmra.mrb[0].mxu0 %v5426
        %v9422 = vpop.f32.mrb[0].mxu0
        %v9423 = vadd.f32 %v9070, %v9422
        %v9424 = vpop.f32.mrb[0].mxu0
        %v9425 = vadd.f32 %v9072, %v9424
        %v9426 = vpop.f32.mrb[0].mxu0
        %v9427 = vadd.f32 %v9074, %v9426
        %v9428 = vpop.f32.mrb[0].mxu0
        %v9429 = vadd.f32 %v9076, %v9428
        %9430 = vmatprep.mubr.bf16.mxu0 %v5435
        %9431 = vmatmul.mubr.bf16.gmra.mrb[0].mxu0 %v5434
        %v9432 = vpop.f32.mrb[0].mxu0
        %v9433 = vadd.f32 %v9080, %v9432
        %v9434 = vpop.f32.mrb[0].mxu0
        %v9435 = vadd.f32 %v9082, %v9434
        %v9436 = vpop.f32.mrb[0].mxu0
        %v9437 = vadd.f32 %v9084, %v9436
        %v9438 = vpop.f32.mrb[0].mxu0
        %v9439 = vadd.f32 %v9086, %v9438
        %9440 = vmatprep.mubr.bf16.mxu0 %v5443
        %9441 = vmatmul.mubr.bf16.gmra.mrb[0].mxu0 %v5442
        %v9442 = vpop.f32.mrb[0].mxu0
        %v9443 = vadd.f32 %v9090, %v9442
        %v9444 = vpop.f32.mrb[0].mxu0
        %v9445 = vadd.f32 %v9092, %v9444
        %v9446 = vpop.f32.mrb[0].mxu0
        %v9447 = vadd.f32 %v9094, %v9446
        %v9448 = vpop.f32.mrb[0].mxu0
        %v9449 = vadd.f32 %v9096, %v9448
        %9450 = vmatprep.mubr.bf16.mxu0 %v5451
        %9451 = vmatmul.mubr.bf16.gmra.mrb[0].mxu0 %v5450
        %v9452 = vpop.f32.mrb[0].mxu0
        %v9453 = vadd.f32 %v9100, %v9452
        %v9454 = vpop.f32.mrb[0].mxu0
        %v9455 = vadd.f32 %v9102, %v9454
        %v9456 = vpop.f32.mrb[0].mxu0
        %v9457 = vadd.f32 %v9104, %v9456
        %v9458 = vpop.f32.mrb[0].mxu0
        %v9459 = vadd.f32 %v9106, %v9458
        %9460 = vmatprep.mubr.bf16.mxu0 %v5459
        %9461 = vmatmul.mubr.bf16.gmra.mrb[0].mxu0 %v5458
        %v9462 = vpop.f32.mrb[0].mxu0
        %v9463 = vadd.f32 %v9110, %v9462
        %v9464 = vpop.f32.mrb[0].mxu0
        %v9465 = vadd.f32 %v9112, %v9464
        %v9466 = vpop.f32.mrb[0].mxu0
        %v9467 = vadd.f32 %v9114, %v9466
        %v9468 = vpop.f32.mrb[0].mxu0
        %v9469 = vadd.f32 %v9116, %v9468
        %9470 = vmatprep.mubr.bf16.mxu0 %v5467
        %9471 = vmatmul.mubr.bf16.gmra.mrb[0].mxu0 %v5466
        %v9472 = vpop.f32.mrb[0].mxu0
        %v9473 = vadd.f32 %v9120, %v9472
        %v9474 = vpop.f32.mrb[0].mxu0
        %v9475 = vadd.f32 %v9122, %v9474
        %v9476 = vpop.f32.mrb[0].mxu0
        %v9477 = vadd.f32 %v9124, %v9476
        %v9478 = vpop.f32.mrb[0].mxu0
        %v9479 = vadd.f32 %v9126, %v9478
        %9480 = vmatprep.mubr.bf16.mxu0 %v5475
        %9481 = vmatmul.mubr.bf16.gmra.mrb[0].mxu0 %v5474
        %v9482 = vpop.f32.mrb[0].mxu0
        %v9483 = vadd.f32 %v9130, %v9482
        %v9484 = vpop.f32.mrb[0].mxu0
        %v9485 = vadd.f32 %v9132, %v9484
        %v9486 = vpop.f32.mrb[0].mxu0
        %v9487 = vadd.f32 %v9134, %v9486
        %v9488 = vpop.f32.mrb[0].mxu0
        %v9489 = vadd.f32 %v9136, %v9488
        %9490 = vmatprep.mubr.bf16.mxu0 %v5483
        %9491 = vmatmul.mubr.bf16.gmra.mrb[0].mxu0 %v5482
        %v9492 = vpop.f32.mrb[0].mxu0
        %v9493 = vadd.f32 %v9140, %v9492
        %v9494 = vpop.f32.mrb[0].mxu0
        %v9495 = vadd.f32 %v9142, %v9494
        %v9496 = vpop.f32.mrb[0].mxu0
        %v9497 = vadd.f32 %v9144, %v9496
        %v9498 = vpop.f32.mrb[0].mxu0
        %v9499 = vadd.f32 %v9146, %v9498
        %9500 = vmatprep.mubr.bf16.mxu0 %v5491
        %9501 = vmatmul.mubr.bf16.gmra.mrb[0].mxu0 %v5490
        %v9502 = vpop.f32.mrb[0].mxu0
        %v9503 = vadd.f32 %v9150, %v9502
        %v9504 = vpop.f32.mrb[0].mxu0
        %v9505 = vadd.f32 %v9152, %v9504
        %v9506 = vpop.f32.mrb[0].mxu0
        %v9507 = vadd.f32 %v9154, %v9506
        %v9508 = vpop.f32.mrb[0].mxu0
        %v9509 = vadd.f32 %v9156, %v9508
        %9510 = vmatprep.mubr.bf16.mxu0 %v5499
        %9511 = vmatmul.mubr.bf16.gmra.mrb[0].mxu0 %v5498
        %v9512 = vpop.f32.mrb[0].mxu0
        %v9513 = vadd.f32 %v9160, %v9512
        %v9514 = vpop.f32.mrb[0].mxu0
        %v9515 = vadd.f32 %v9162, %v9514
        %v9516 = vpop.f32.mrb[0].mxu0
        %v9517 = vadd.f32 %v9164, %v9516
        %v9518 = vpop.f32.mrb[0].mxu0
        %v9519 = vadd.f32 %v9166, %v9518
        %9520 = vmatprep.mubr.bf16.mxu0 %v5507
        %9521 = vmatmul.mubr.bf16.gmra.mrb[0].mxu0 %v5506
        %v9522 = vpop.f32.mrb[0].mxu0
        %v9523 = vadd.f32 %v9170, %v9522
        %v9524 = vpop.f32.mrb[0].mxu0
        %v9525 = vadd.f32 %v9172, %v9524
        %v9526 = vpop.f32.mrb[0].mxu0
        %v9527 = vadd.f32 %v9174, %v9526
        %v9528 = vpop.f32.mrb[0].mxu0
        %v9529 = vadd.f32 %v9176, %v9528
        %9530 = vmatprep.mubr.bf16.mxu0 %v5515
        %9531 = vmatmul.mubr.bf16.gmra.mrb[0].mxu0 %v5514
        %v9532 = vpop.f32.mrb[0].mxu0
        %v9533 = vadd.f32 %v9180, %v9532
        %v9534 = vpop.f32.mrb[0].mxu0
        %v9535 = vadd.f32 %v9182, %v9534
        %v9536 = vpop.f32.mrb[0].mxu0
        %v9537 = vadd.f32 %v9184, %v9536
        %v9538 = vpop.f32.mrb[0].mxu0
        %v9539 = vadd.f32 %v9186, %v9538
        %9540 = vmatprep.mubr.bf16.mxu0 %v5523
        %9541 = vmatmul.mubr.bf16.gmra.mrb[0].mxu0 %v5522
        %v9542 = vpop.f32.mrb[0].mxu0
        %v9543 = vadd.f32 %v9190, %v9542
        %v9544 = vpop.f32.mrb[0].mxu0
        %v9545 = vadd.f32 %v9192, %v9544
        %v9546 = vpop.f32.mrb[0].mxu0
        %v9547 = vadd.f32 %v9194, %v9546
        %v9548 = vpop.f32.mrb[0].mxu0
        %v9549 = vadd.f32 %v9196, %v9548
        %9550 = vmatprep.mubr.bf16.mxu0 %v5531
        %9551 = vmatmul.mubr.bf16.gmra.mrb[0].mxu0 %v5530
        %v9552 = vpop.f32.mrb[0].mxu0
        %v9553 = vadd.f32 %v9200, %v9552
        %v9554 = vpop.f32.mrb[0].mxu0
        %v9555 = vadd.f32 %v9202, %v9554
        %v9556 = vpop.f32.mrb[0].mxu0
        %v9557 = vadd.f32 %v9204, %v9556
        %v9558 = vpop.f32.mrb[0].mxu0
        %v9559 = vadd.f32 %v9206, %v9558
        %9560 = vmatprep.mubr.bf16.mxu0 %v5539
        %9561 = vmatmul.mubr.bf16.gmra.mrb[0].mxu0 %v5538
        %v9562 = vpop.f32.mrb[0].mxu0
        %v9563 = vadd.f32 %v9210, %v9562
        %v9564 = vpop.f32.mrb[0].mxu0
        %v9565 = vadd.f32 %v9212, %v9564
        %v9566 = vpop.f32.mrb[0].mxu0
        %v9567 = vadd.f32 %v9214, %v9566
        %v9568 = vpop.f32.mrb[0].mxu0
        %v9569 = vadd.f32 %v9216, %v9568
        %9570 = vdwg.mxu0
        %9571 = vmatprep.subr.bf16.mxu0 %v6783
        %9572 = vmatpush1.bf16.msra.mxu0 %v6782
        %9573 = vmatprep.subr.bf16.mxu0 %v6787
        %9574 = vmatpush1.bf16.msra.mxu0 %v6786
        %9575 = vmatprep.subr.bf16.mxu0 %v6791
        %9576 = vmatpush1.bf16.msra.mxu0 %v6790
        %9577 = vmatprep.subr.bf16.mxu0 %v6795
        %9578 = vmatpush1.bf16.msra.mxu0 %v6794
        %9579 = vmatprep.subr.bf16.mxu0 %v6799
        %9580 = vmatpush1.bf16.msra.mxu0 %v6798
        %9581 = vmatprep.subr.bf16.mxu0 %v6803
        %9582 = vmatpush1.bf16.msra.mxu0 %v6802
        %9583 = vmatprep.subr.bf16.mxu0 %v6807
        %9584 = vmatpush1.bf16.msra.mxu0 %v6806
        %9585 = vmatprep.subr.bf16.mxu0 %v6811
        %9586 = vmatpush1.bf16.msra.mxu0 %v6810
        %9587 = vmatprep.subr.bf16.mxu0 %v6815
        %9588 = vmatpush1.bf16.msra.mxu0 %v6814
        %9589 = vmatprep.subr.bf16.mxu0 %v6819
        %9590 = vmatpush1.bf16.msra.mxu0 %v6818
        %9591 = vmatprep.subr.bf16.mxu0 %v6823
        %9592 = vmatpush1.bf16.msra.mxu0 %v6822
        %9593 = vmatprep.subr.bf16.mxu0 %v6827
        %9594 = vmatpush1.bf16.msra.mxu0 %v6826
        %9595 = vmatprep.subr.bf16.mxu0 %v6831
        %9596 = vmatpush1.bf16.msra.mxu0 %v6830
        %9597 = vmatprep.subr.bf16.mxu0 %v6835
        %9598 = vmatpush1.bf16.msra.mxu0 %v6834
        %9599 = vmatprep.subr.bf16.mxu0 %v6839
        %9600 = vmatpush1.bf16.msra.mxu0 %v6838
        %9601 = vmatprep.subr.bf16.mxu0 %v6843
        %9602 = vmatpush1.bf16.msra.mxu0 %v6842
        %9603 = vmatprep.mubr.bf16.mxu0 %v5293
        %9604 = vmatmul.mubr.bf16.gmra.mrb[0].mxu0 %v5292
        %v9605 = vpop.f32.mrb[0].mxu0
        %v9606 = vadd.f32 %v9253, %v9605
        %v9607 = vpop.f32.mrb[0].mxu0
        %v9608 = vadd.f32 %v9255, %v9607
        %v9609 = vpop.f32.mrb[0].mxu0
        %v9610 = vadd.f32 %v9257, %v9609
        %v9611 = vpop.f32.mrb[0].mxu0
        %v9612 = vadd.f32 %v9259, %v9611
        %9613 = vmatprep.mubr.bf16.mxu0 %v5301
        %9614 = vmatmul.mubr.bf16.gmra.mrb[0].mxu0 %v5300
        %v9615 = vpop.f32.mrb[0].mxu0
        %v9616 = vadd.f32 %v9263, %v9615
        %v9617 = vpop.f32.mrb[0].mxu0
        %v9618 = vadd.f32 %v9265, %v9617
        %v9619 = vpop.f32.mrb[0].mxu0
        %v9620 = vadd.f32 %v9267, %v9619
        %v9621 = vpop.f32.mrb[0].mxu0
        %v9622 = vadd.f32 %v9269, %v9621
        %9623 = vmatprep.mubr.bf16.mxu0 %v5309
        %9624 = vmatmul.mubr.bf16.gmra.mrb[0].mxu0 %v5308
        %v9625 = vpop.f32.mrb[0].mxu0
        %v9626 = vadd.f32 %v9273, %v9625
        %v9627 = vpop.f32.mrb[0].mxu0
        %v9628 = vadd.f32 %v9275, %v9627
        %v9629 = vpop.f32.mrb[0].mxu0
        %v9630 = vadd.f32 %v9277, %v9629
        %v9631 = vpop.f32.mrb[0].mxu0
        %v9632 = vadd.f32 %v9279, %v9631
        %9633 = vmatprep.mubr.bf16.mxu0 %v5317
        %9634 = vmatmul.mubr.bf16.gmra.mrb[0].mxu0 %v5316
        %v9635 = vpop.f32.mrb[0].mxu0
        %v9636 = vadd.f32 %v9283, %v9635
        %v9637 = vpop.f32.mrb[0].mxu0
        %v9638 = vadd.f32 %v9285, %v9637
        %v9639 = vpop.f32.mrb[0].mxu0
        %v9640 = vadd.f32 %v9287, %v9639
        %v9641 = vpop.f32.mrb[0].mxu0
        %v9642 = vadd.f32 %v9289, %v9641
        %9643 = vmatprep.mubr.bf16.mxu0 %v5325
        %9644 = vmatmul.mubr.bf16.gmra.mrb[0].mxu0 %v5324
        %v9645 = vpop.f32.mrb[0].mxu0
        %v9646 = vadd.f32 %v9293, %v9645
        %v9647 = vpop.f32.mrb[0].mxu0
        %v9648 = vadd.f32 %v9295, %v9647
        %v9649 = vpop.f32.mrb[0].mxu0
        %v9650 = vadd.f32 %v9297, %v9649
        %v9651 = vpop.f32.mrb[0].mxu0
        %v9652 = vadd.f32 %v9299, %v9651
        %9653 = vmatprep.mubr.bf16.mxu0 %v5333
        %9654 = vmatmul.mubr.bf16.gmra.mrb[0].mxu0 %v5332
        %v9655 = vpop.f32.mrb[0].mxu0
        %v9656 = vadd.f32 %v9303, %v9655
        %v9657 = vpop.f32.mrb[0].mxu0
        %v9658 = vadd.f32 %v9305, %v9657
        %v9659 = vpop.f32.mrb[0].mxu0
        %v9660 = vadd.f32 %v9307, %v9659
        %v9661 = vpop.f32.mrb[0].mxu0
        %v9662 = vadd.f32 %v9309, %v9661
        %9663 = vmatprep.mubr.bf16.mxu0 %v5341
        %9664 = vmatmul.mubr.bf16.gmra.mrb[0].mxu0 %v5340
        %v9665 = vpop.f32.mrb[0].mxu0
        %v9666 = vadd.f32 %v9313, %v9665
        %v9667 = vpop.f32.mrb[0].mxu0
        %v9668 = vadd.f32 %v9315, %v9667
        %v9669 = vpop.f32.mrb[0].mxu0
        %v9670 = vadd.f32 %v9317, %v9669
        %v9671 = vpop.f32.mrb[0].mxu0
        %v9672 = vadd.f32 %v9319, %v9671
        %9673 = vmatprep.mubr.bf16.mxu0 %v5349
        %9674 = vmatmul.mubr.bf16.gmra.mrb[0].mxu0 %v5348
        %v9675 = vpop.f32.mrb[0].mxu0
        %v9676 = vadd.f32 %v9323, %v9675
        %v9677 = vpop.f32.mrb[0].mxu0
        %v9678 = vadd.f32 %v9325, %v9677
        %v9679 = vpop.f32.mrb[0].mxu0
        %v9680 = vadd.f32 %v9327, %v9679
        %v9681 = vpop.f32.mrb[0].mxu0
        %v9682 = vadd.f32 %v9329, %v9681
        %9683 = vmatprep.mubr.bf16.mxu0 %v5357
        %9684 = vmatmul.mubr.bf16.gmra.mrb[0].mxu0 %v5356
        %v9685 = vpop.f32.mrb[0].mxu0
        %v9686 = vadd.f32 %v9333, %v9685
        %v9687 = vpop.f32.mrb[0].mxu0
        %v9688 = vadd.f32 %v9335, %v9687
        %v9689 = vpop.f32.mrb[0].mxu0
        %v9690 = vadd.f32 %v9337, %v9689
        %v9691 = vpop.f32.mrb[0].mxu0
        %v9692 = vadd.f32 %v9339, %v9691
        %9693 = vmatprep.mubr.bf16.mxu0 %v5365
        %9694 = vmatmul.mubr.bf16.gmra.mrb[0].mxu0 %v5364
        %v9695 = vpop.f32.mrb[0].mxu0
        %v9696 = vadd.f32 %v9343, %v9695
        %v9697 = vpop.f32.mrb[0].mxu0
        %v9698 = vadd.f32 %v9345, %v9697
        %v9699 = vpop.f32.mrb[0].mxu0
        %v9700 = vadd.f32 %v9347, %v9699
        %v9701 = vpop.f32.mrb[0].mxu0
        %v9702 = vadd.f32 %v9349, %v9701
        %9703 = vmatprep.mubr.bf16.mxu0 %v5373
        %9704 = vmatmul.mubr.bf16.gmra.mrb[0].mxu0 %v5372
        %v9705 = vpop.f32.mrb[0].mxu0
        %v9706 = vadd.f32 %v9353, %v9705
        %v9707 = vpop.f32.mrb[0].mxu0
        %v9708 = vadd.f32 %v9355, %v9707
        %v9709 = vpop.f32.mrb[0].mxu0
        %v9710 = vadd.f32 %v9357, %v9709
        %v9711 = vpop.f32.mrb[0].mxu0
        %v9712 = vadd.f32 %v9359, %v9711
        %9713 = vmatprep.mubr.bf16.mxu0 %v5381
        %9714 = vmatmul.mubr.bf16.gmra.mrb[0].mxu0 %v5380
        %v9715 = vpop.f32.mrb[0].mxu0
        %v9716 = vadd.f32 %v9363, %v9715
        %v9717 = vpop.f32.mrb[0].mxu0
        %v9718 = vadd.f32 %v9365, %v9717
        %v9719 = vpop.f32.mrb[0].mxu0
        %v9720 = vadd.f32 %v9367, %v9719
        %v9721 = vpop.f32.mrb[0].mxu0
        %v9722 = vadd.f32 %v9369, %v9721
        %9723 = vmatprep.mubr.bf16.mxu0 %v5389
        %9724 = vmatmul.mubr.bf16.gmra.mrb[0].mxu0 %v5388
        %v9725 = vpop.f32.mrb[0].mxu0
        %v9726 = vadd.f32 %v9373, %v9725
        %v9727 = vpop.f32.mrb[0].mxu0
        %v9728 = vadd.f32 %v9375, %v9727
        %v9729 = vpop.f32.mrb[0].mxu0
        %v9730 = vadd.f32 %v9377, %v9729
        %v9731 = vpop.f32.mrb[0].mxu0
        %v9732 = vadd.f32 %v9379, %v9731
        %9733 = vmatprep.mubr.bf16.mxu0 %v5397
        %9734 = vmatmul.mubr.bf16.gmra.mrb[0].mxu0 %v5396
        %v9735 = vpop.f32.mrb[0].mxu0
        %v9736 = vadd.f32 %v9383, %v9735
        %v9737 = vpop.f32.mrb[0].mxu0
        %v9738 = vadd.f32 %v9385, %v9737
        %v9739 = vpop.f32.mrb[0].mxu0
        %v9740 = vadd.f32 %v9387, %v9739
        %v9741 = vpop.f32.mrb[0].mxu0
        %v9742 = vadd.f32 %v9389, %v9741
        %9743 = vmatprep.mubr.bf16.mxu0 %v5405
        %9744 = vmatmul.mubr.bf16.gmra.mrb[0].mxu0 %v5404
        %v9745 = vpop.f32.mrb[0].mxu0
        %v9746 = vadd.f32 %v9393, %v9745
        %v9747 = vpop.f32.mrb[0].mxu0
        %v9748 = vadd.f32 %v9395, %v9747
        %v9749 = vpop.f32.mrb[0].mxu0
        %v9750 = vadd.f32 %v9397, %v9749
        %v9751 = vpop.f32.mrb[0].mxu0
        %v9752 = vadd.f32 %v9399, %v9751
        %9753 = vmatprep.mubr.bf16.mxu0 %v5413
        %9754 = vmatmul.mubr.bf16.gmra.mrb[0].mxu0 %v5412
        %v9755 = vpop.f32.mrb[0].mxu0
        %v9756 = vadd.f32 %v9403, %v9755
        %v9757 = vpop.f32.mrb[0].mxu0
        %v9758 = vadd.f32 %v9405, %v9757
        %v9759 = vpop.f32.mrb[0].mxu0
        %v9760 = vadd.f32 %v9407, %v9759
        %v9761 = vpop.f32.mrb[0].mxu0
        %v9762 = vadd.f32 %v9409, %v9761
        %9763 = vmatprep.mubr.bf16.mxu0 %v5421
        %9764 = vmatmul.mubr.bf16.gmra.mrb[0].mxu0 %v5420
        %v9765 = vpop.f32.mrb[0].mxu0
        %v9766 = vadd.f32 %v9413, %v9765
        %v9767 = vpop.f32.mrb[0].mxu0
        %v9768 = vadd.f32 %v9415, %v9767
        %v9769 = vpop.f32.mrb[0].mxu0
        %v9770 = vadd.f32 %v9417, %v9769
        %v9771 = vpop.f32.mrb[0].mxu0
        %v9772 = vadd.f32 %v9419, %v9771
        %9773 = vmatprep.mubr.bf16.mxu0 %v5429
        %9774 = vmatmul.mubr.bf16.gmra.mrb[0].mxu0 %v5428
        %v9775 = vpop.f32.mrb[0].mxu0
        %v9776 = vadd.f32 %v9423, %v9775
        %v9777 = vpop.f32.mrb[0].mxu0
        %v9778 = vadd.f32 %v9425, %v9777
        %v9779 = vpop.f32.mrb[0].mxu0
        %v9780 = vadd.f32 %v9427, %v9779
        %v9781 = vpop.f32.mrb[0].mxu0
        %v9782 = vadd.f32 %v9429, %v9781
        %9783 = vmatprep.mubr.bf16.mxu0 %v5437
        %9784 = vmatmul.mubr.bf16.gmra.mrb[0].mxu0 %v5436
        %v9785 = vpop.f32.mrb[0].mxu0
        %v9786 = vadd.f32 %v9433, %v9785
        %v9787 = vpop.f32.mrb[0].mxu0
        %v9788 = vadd.f32 %v9435, %v9787
        %v9789 = vpop.f32.mrb[0].mxu0
        %v9790 = vadd.f32 %v9437, %v9789
        %v9791 = vpop.f32.mrb[0].mxu0
        %v9792 = vadd.f32 %v9439, %v9791
        %9793 = vmatprep.mubr.bf16.mxu0 %v5445
        %9794 = vmatmul.mubr.bf16.gmra.mrb[0].mxu0 %v5444
        %v9795 = vpop.f32.mrb[0].mxu0
        %v9796 = vadd.f32 %v9443, %v9795
        %v9797 = vpop.f32.mrb[0].mxu0
        %v9798 = vadd.f32 %v9445, %v9797
        %v9799 = vpop.f32.mrb[0].mxu0
        %v9800 = vadd.f32 %v9447, %v9799
        %v9801 = vpop.f32.mrb[0].mxu0
        %v9802 = vadd.f32 %v9449, %v9801
        %9803 = vmatprep.mubr.bf16.mxu0 %v5453
        %9804 = vmatmul.mubr.bf16.gmra.mrb[0].mxu0 %v5452
        %v9805 = vpop.f32.mrb[0].mxu0
        %v9806 = vadd.f32 %v9453, %v9805
        %v9807 = vpop.f32.mrb[0].mxu0
        %v9808 = vadd.f32 %v9455, %v9807
        %v9809 = vpop.f32.mrb[0].mxu0
        %v9810 = vadd.f32 %v9457, %v9809
        %v9811 = vpop.f32.mrb[0].mxu0
        %v9812 = vadd.f32 %v9459, %v9811
        %9813 = vmatprep.mubr.bf16.mxu0 %v5461
        %9814 = vmatmul.mubr.bf16.gmra.mrb[0].mxu0 %v5460
        %v9815 = vpop.f32.mrb[0].mxu0
        %v9816 = vadd.f32 %v9463, %v9815
        %v9817 = vpop.f32.mrb[0].mxu0
        %v9818 = vadd.f32 %v9465, %v9817
        %v9819 = vpop.f32.mrb[0].mxu0
        %v9820 = vadd.f32 %v9467, %v9819
        %v9821 = vpop.f32.mrb[0].mxu0
        %v9822 = vadd.f32 %v9469, %v9821
        %9823 = vmatprep.mubr.bf16.mxu0 %v5469
        %9824 = vmatmul.mubr.bf16.gmra.mrb[0].mxu0 %v5468
        %v9825 = vpop.f32.mrb[0].mxu0
        %v9826 = vadd.f32 %v9473, %v9825
        %v9827 = vpop.f32.mrb[0].mxu0
        %v9828 = vadd.f32 %v9475, %v9827
        %v9829 = vpop.f32.mrb[0].mxu0
        %v9830 = vadd.f32 %v9477, %v9829
        %v9831 = vpop.f32.mrb[0].mxu0
        %v9832 = vadd.f32 %v9479, %v9831
        %9833 = vmatprep.mubr.bf16.mxu0 %v5477
        %9834 = vmatmul.mubr.bf16.gmra.mrb[0].mxu0 %v5476
        %v9835 = vpop.f32.mrb[0].mxu0
        %v9836 = vadd.f32 %v9483, %v9835
        %v9837 = vpop.f32.mrb[0].mxu0
        %v9838 = vadd.f32 %v9485, %v9837
        %v9839 = vpop.f32.mrb[0].mxu0
        %v9840 = vadd.f32 %v9487, %v9839
        %v9841 = vpop.f32.mrb[0].mxu0
        %v9842 = vadd.f32 %v9489, %v9841
        %9843 = vmatprep.mubr.bf16.mxu0 %v5485
        %9844 = vmatmul.mubr.bf16.gmra.mrb[0].mxu0 %v5484
        %v9845 = vpop.f32.mrb[0].mxu0
        %v9846 = vadd.f32 %v9493, %v9845
        %v9847 = vpop.f32.mrb[0].mxu0
        %v9848 = vadd.f32 %v9495, %v9847
        %v9849 = vpop.f32.mrb[0].mxu0
        %v9850 = vadd.f32 %v9497, %v9849
        %v9851 = vpop.f32.mrb[0].mxu0
        %v9852 = vadd.f32 %v9499, %v9851
        %9853 = vmatprep.mubr.bf16.mxu0 %v5493
        %9854 = vmatmul.mubr.bf16.gmra.mrb[0].mxu0 %v5492
        %v9855 = vpop.f32.mrb[0].mxu0
        %v9856 = vadd.f32 %v9503, %v9855
        %v9857 = vpop.f32.mrb[0].mxu0
        %v9858 = vadd.f32 %v9505, %v9857
        %v9859 = vpop.f32.mrb[0].mxu0
        %v9860 = vadd.f32 %v9507, %v9859
        %v9861 = vpop.f32.mrb[0].mxu0
        %v9862 = vadd.f32 %v9509, %v9861
        %9863 = vmatprep.mubr.bf16.mxu0 %v5501
        %9864 = vmatmul.mubr.bf16.gmra.mrb[0].mxu0 %v5500
        %v9865 = vpop.f32.mrb[0].mxu0
        %v9866 = vadd.f32 %v9513, %v9865
        %v9867 = vpop.f32.mrb[0].mxu0
        %v9868 = vadd.f32 %v9515, %v9867
        %v9869 = vpop.f32.mrb[0].mxu0
        %v9870 = vadd.f32 %v9517, %v9869
        %v9871 = vpop.f32.mrb[0].mxu0
        %v9872 = vadd.f32 %v9519, %v9871
        %9873 = vmatprep.mubr.bf16.mxu0 %v5509
        %9874 = vmatmul.mubr.bf16.gmra.mrb[0].mxu0 %v5508
        %v9875 = vpop.f32.mrb[0].mxu0
        %v9876 = vadd.f32 %v9523, %v9875
        %v9877 = vpop.f32.mrb[0].mxu0
        %v9878 = vadd.f32 %v9525, %v9877
        %v9879 = vpop.f32.mrb[0].mxu0
        %v9880 = vadd.f32 %v9527, %v9879
        %v9881 = vpop.f32.mrb[0].mxu0
        %v9882 = vadd.f32 %v9529, %v9881
        %9883 = vmatprep.mubr.bf16.mxu0 %v5517
        %9884 = vmatmul.mubr.bf16.gmra.mrb[0].mxu0 %v5516
        %v9885 = vpop.f32.mrb[0].mxu0
        %v9886 = vadd.f32 %v9533, %v9885
        %v9887 = vpop.f32.mrb[0].mxu0
        %v9888 = vadd.f32 %v9535, %v9887
        %v9889 = vpop.f32.mrb[0].mxu0
        %v9890 = vadd.f32 %v9537, %v9889
        %v9891 = vpop.f32.mrb[0].mxu0
        %v9892 = vadd.f32 %v9539, %v9891
        %9893 = vmatprep.mubr.bf16.mxu0 %v5525
        %9894 = vmatmul.mubr.bf16.gmra.mrb[0].mxu0 %v5524
        %v9895 = vpop.f32.mrb[0].mxu0
        %v9896 = vadd.f32 %v9543, %v9895
        %v9897 = vpop.f32.mrb[0].mxu0
        %v9898 = vadd.f32 %v9545, %v9897
        %v9899 = vpop.f32.mrb[0].mxu0
        %v9900 = vadd.f32 %v9547, %v9899
        %v9901 = vpop.f32.mrb[0].mxu0
        %v9902 = vadd.f32 %v9549, %v9901
        %9903 = vmatprep.mubr.bf16.mxu0 %v5533
        %9904 = vmatmul.mubr.bf16.gmra.mrb[0].mxu0 %v5532
        %v9905 = vpop.f32.mrb[0].mxu0
        %v9906 = vadd.f32 %v9553, %v9905
        %v9907 = vpop.f32.mrb[0].mxu0
        %v9908 = vadd.f32 %v9555, %v9907
        %v9909 = vpop.f32.mrb[0].mxu0
        %v9910 = vadd.f32 %v9557, %v9909
        %v9911 = vpop.f32.mrb[0].mxu0
        %v9912 = vadd.f32 %v9559, %v9911
        %9913 = vmatprep.mubr.bf16.mxu0 %v5541
        %9914 = vmatmul.mubr.bf16.gmra.mrb[0].mxu0 %v5540
        %v9915 = vpop.f32.mrb[0].mxu0
        %v9916 = vadd.f32 %v9563, %v9915
        %v9917 = vpop.f32.mrb[0].mxu0
        %v9918 = vadd.f32 %v9565, %v9917
        %v9919 = vpop.f32.mrb[0].mxu0
        %v9920 = vadd.f32 %v9567, %v9919
        %v9921 = vpop.f32.mrb[0].mxu0
        %v9922 = vadd.f32 %v9569, %v9921
        %9923 = vdwg.mxu0
        %v9924 = vmax.f32 %v8194, 0.0
        %v9925 = vmax.f32 %v8196, 0.0
        %v9926 = vmax.f32 %v9606, 0.0
        %v9927 = vmax.f32 %v9608, 0.0
        %v9928 = vmax.f32 %v8198, 0.0
        %v9929 = vmax.f32 %v8200, 0.0
        %v9930 = vmax.f32 %v9610, 0.0
        %v9931 = vmax.f32 %v9612, 0.0
        %v9932 = vmax.f32 %v8204, 0.0
        %v9933 = vmax.f32 %v8206, 0.0
        %v9934 = vmax.f32 %v9616, 0.0
        %v9935 = vmax.f32 %v9618, 0.0
        %v9936 = vmax.f32 %v8208, 0.0
        %v9937 = vmax.f32 %v8210, 0.0
        %v9938 = vmax.f32 %v9620, 0.0
        %v9939 = vmax.f32 %v9622, 0.0
        %v9940 = vmax.f32 %v8214, 0.0
        %v9941 = vmax.f32 %v8216, 0.0
        %v9942 = vmax.f32 %v9626, 0.0
        %v9943 = vmax.f32 %v9628, 0.0
        %v9944 = vmax.f32 %v8218, 0.0
        %v9945 = vmax.f32 %v8220, 0.0
        %v9946 = vmax.f32 %v9630, 0.0
        %v9947 = vmax.f32 %v9632, 0.0
        %v9948 = vmax.f32 %v8224, 0.0
        %v9949 = vmax.f32 %v8226, 0.0
        %v9950 = vmax.f32 %v9636, 0.0
        %v9951 = vmax.f32 %v9638, 0.0
        %v9952 = vmax.f32 %v8228, 0.0
        %v9953 = vmax.f32 %v8230, 0.0
        %v9954 = vmax.f32 %v9640, 0.0
        %v9955 = vmax.f32 %v9642, 0.0
        %v9956 = vmax.f32 %v8234, 0.0
        %v9957 = vmax.f32 %v8236, 0.0
        %v9958 = vmax.f32 %v9646, 0.0
        %v9959 = vmax.f32 %v9648, 0.0
        %v9960 = vmax.f32 %v8238, 0.0
        %v9961 = vmax.f32 %v8240, 0.0
        %v9962 = vmax.f32 %v9650, 0.0
        %v9963 = vmax.f32 %v9652, 0.0
        %v9964 = vmax.f32 %v8244, 0.0
        %v9965 = vmax.f32 %v8246, 0.0
        %v9966 = vmax.f32 %v9656, 0.0
        %v9967 = vmax.f32 %v9658, 0.0
        %v9968 = vmax.f32 %v8248, 0.0
        %v9969 = vmax.f32 %v8250, 0.0
        %v9970 = vmax.f32 %v9660, 0.0
        %v9971 = vmax.f32 %v9662, 0.0
        %v9972 = vmax.f32 %v8254, 0.0
        %v9973 = vmax.f32 %v8256, 0.0
        %v9974 = vmax.f32 %v9666, 0.0
        %v9975 = vmax.f32 %v9668, 0.0
        %v9976 = vmax.f32 %v8258, 0.0
        %v9977 = vmax.f32 %v8260, 0.0
        %v9978 = vmax.f32 %v9670, 0.0
        %v9979 = vmax.f32 %v9672, 0.0
        %v9980 = vmax.f32 %v8264, 0.0
        %v9981 = vmax.f32 %v8266, 0.0
        %v9982 = vmax.f32 %v9676, 0.0
        %v9983 = vmax.f32 %v9678, 0.0
        %v9984 = vmax.f32 %v8268, 0.0
        %v9985 = vmax.f32 %v8270, 0.0
        %v9986 = vmax.f32 %v9680, 0.0
        %v9987 = vmax.f32 %v9682, 0.0
        %v9988 = vmax.f32 %v8274, 0.0
        %v9989 = vmax.f32 %v8276, 0.0
        %v9990 = vmax.f32 %v9686, 0.0
        %v9991 = vmax.f32 %v9688, 0.0
        %v9992 = vmax.f32 %v8278, 0.0
        %v9993 = vmax.f32 %v8280, 0.0
        %v9994 = vmax.f32 %v9690, 0.0
        %v9995 = vmax.f32 %v9692, 0.0
        %v9996 = vmax.f32 %v8284, 0.0
        %v9997 = vmax.f32 %v8286, 0.0
        %v9998 = vmax.f32 %v9696, 0.0
        %v9999 = vmax.f32 %v9698, 0.0
        %v10000 = vmax.f32 %v8288, 0.0
        %v10001 = vmax.f32 %v8290, 0.0
        %v10002 = vmax.f32 %v9700, 0.0
        %v10003 = vmax.f32 %v9702, 0.0
        %v10004 = vmax.f32 %v8294, 0.0
        %v10005 = vmax.f32 %v8296, 0.0
        %v10006 = vmax.f32 %v9706, 0.0
        %v10007 = vmax.f32 %v9708, 0.0
        %v10008 = vmax.f32 %v8298, 0.0
        %v10009 = vmax.f32 %v8300, 0.0
        %v10010 = vmax.f32 %v9710, 0.0
        %v10011 = vmax.f32 %v9712, 0.0
        %v10012 = vmax.f32 %v8304, 0.0
        %v10013 = vmax.f32 %v8306, 0.0
        %v10014 = vmax.f32 %v9716, 0.0
        %v10015 = vmax.f32 %v9718, 0.0
        %v10016 = vmax.f32 %v8308, 0.0
        %v10017 = vmax.f32 %v8310, 0.0
        %v10018 = vmax.f32 %v9720, 0.0
        %v10019 = vmax.f32 %v9722, 0.0
        %v10020 = vmax.f32 %v8314, 0.0
        %v10021 = vmax.f32 %v8316, 0.0
        %v10022 = vmax.f32 %v9726, 0.0
        %v10023 = vmax.f32 %v9728, 0.0
        %v10024 = vmax.f32 %v8318, 0.0
        %v10025 = vmax.f32 %v8320, 0.0
        %v10026 = vmax.f32 %v9730, 0.0
        %v10027 = vmax.f32 %v9732, 0.0
        %v10028 = vmax.f32 %v8324, 0.0
        %v10029 = vmax.f32 %v8326, 0.0
        %v10030 = vmax.f32 %v9736, 0.0
        %v10031 = vmax.f32 %v9738, 0.0
        %v10032 = vmax.f32 %v8328, 0.0
        %v10033 = vmax.f32 %v8330, 0.0
        %v10034 = vmax.f32 %v9740, 0.0
        %v10035 = vmax.f32 %v9742, 0.0
        %v10036 = vmax.f32 %v8334, 0.0
        %v10037 = vmax.f32 %v8336, 0.0
        %v10038 = vmax.f32 %v9746, 0.0
        %v10039 = vmax.f32 %v9748, 0.0
        %v10040 = vmax.f32 %v8338, 0.0
        %v10041 = vmax.f32 %v8340, 0.0
        %v10042 = vmax.f32 %v9750, 0.0
        %v10043 = vmax.f32 %v9752, 0.0
        %v10044 = vmax.f32 %v8344, 0.0
        %v10045 = vmax.f32 %v8346, 0.0
        %v10046 = vmax.f32 %v9756, 0.0
        %v10047 = vmax.f32 %v9758, 0.0
        %v10048 = vmax.f32 %v8348, 0.0
        %v10049 = vmax.f32 %v8350, 0.0
        %v10050 = vmax.f32 %v9760, 0.0
        %v10051 = vmax.f32 %v9762, 0.0
        %v10052 = vmax.f32 %v8354, 0.0
        %v10053 = vmax.f32 %v8356, 0.0
        %v10054 = vmax.f32 %v9766, 0.0
        %v10055 = vmax.f32 %v9768, 0.0
        %v10056 = vmax.f32 %v8358, 0.0
        %v10057 = vmax.f32 %v8360, 0.0
        %v10058 = vmax.f32 %v9770, 0.0
        %v10059 = vmax.f32 %v9772, 0.0
        %v10060 = vmax.f32 %v8364, 0.0
        %v10061 = vmax.f32 %v8366, 0.0
        %v10062 = vmax.f32 %v9776, 0.0
        %v10063 = vmax.f32 %v9778, 0.0
        %v10064 = vmax.f32 %v8368, 0.0
        %v10065 = vmax.f32 %v8370, 0.0
        %v10066 = vmax.f32 %v9780, 0.0
        %v10067 = vmax.f32 %v9782, 0.0
        %v10068 = vmax.f32 %v8374, 0.0
        %v10069 = vmax.f32 %v8376, 0.0
        %v10070 = vmax.f32 %v9786, 0.0
        %v10071 = vmax.f32 %v9788, 0.0
        %v10072 = vmax.f32 %v8378, 0.0
        %v10073 = vmax.f32 %v8380, 0.0
        %v10074 = vmax.f32 %v9790, 0.0
        %v10075 = vmax.f32 %v9792, 0.0
        %v10076 = vmax.f32 %v8384, 0.0
        %v10077 = vmax.f32 %v8386, 0.0
        %v10078 = vmax.f32 %v9796, 0.0
        %v10079 = vmax.f32 %v9798, 0.0
        %v10080 = vmax.f32 %v8388, 0.0
        %v10081 = vmax.f32 %v8390, 0.0
        %v10082 = vmax.f32 %v9800, 0.0
        %v10083 = vmax.f32 %v9802, 0.0
        %v10084 = vmax.f32 %v8394, 0.0
        %v10085 = vmax.f32 %v8396, 0.0
        %v10086 = vmax.f32 %v9806, 0.0
        %v10087 = vmax.f32 %v9808, 0.0
        %v10088 = vmax.f32 %v8398, 0.0
        %v10089 = vmax.f32 %v8400, 0.0
        %v10090 = vmax.f32 %v9810, 0.0
        %v10091 = vmax.f32 %v9812, 0.0
        %v10092 = vmax.f32 %v8404, 0.0
        %v10093 = vmax.f32 %v8406, 0.0
        %v10094 = vmax.f32 %v9816, 0.0
        %v10095 = vmax.f32 %v9818, 0.0
        %v10096 = vmax.f32 %v8408, 0.0
        %v10097 = vmax.f32 %v8410, 0.0
        %v10098 = vmax.f32 %v9820, 0.0
        %v10099 = vmax.f32 %v9822, 0.0
        %v10100 = vmax.f32 %v8414, 0.0
        %v10101 = vmax.f32 %v8416, 0.0
        %v10102 = vmax.f32 %v9826, 0.0
        %v10103 = vmax.f32 %v9828, 0.0
        %v10104 = vmax.f32 %v8418, 0.0
        %v10105 = vmax.f32 %v8420, 0.0
        %v10106 = vmax.f32 %v9830, 0.0
        %v10107 = vmax.f32 %v9832, 0.0
        %v10108 = vmax.f32 %v8424, 0.0
        %v10109 = vmax.f32 %v8426, 0.0
        %v10110 = vmax.f32 %v9836, 0.0
        %v10111 = vmax.f32 %v9838, 0.0
        %v10112 = vmax.f32 %v8428, 0.0
        %v10113 = vmax.f32 %v8430, 0.0
        %v10114 = vmax.f32 %v9840, 0.0
        %v10115 = vmax.f32 %v9842, 0.0
        %v10116 = vmax.f32 %v8434, 0.0
        %v10117 = vmax.f32 %v8436, 0.0
        %v10118 = vmax.f32 %v9846, 0.0
        %v10119 = vmax.f32 %v9848, 0.0
        %v10120 = vmax.f32 %v8438, 0.0
        %v10121 = vmax.f32 %v8440, 0.0
        %v10122 = vmax.f32 %v9850, 0.0
        %v10123 = vmax.f32 %v9852, 0.0
        %v10124 = vmax.f32 %v8444, 0.0
        %v10125 = vmax.f32 %v8446, 0.0
        %v10126 = vmax.f32 %v9856, 0.0
        %v10127 = vmax.f32 %v9858, 0.0
        %v10128 = vmax.f32 %v8448, 0.0
        %v10129 = vmax.f32 %v8450, 0.0
        %v10130 = vmax.f32 %v9860, 0.0
        %v10131 = vmax.f32 %v9862, 0.0
        %v10132 = vmax.f32 %v8454, 0.0
        %v10133 = vmax.f32 %v8456, 0.0
        %v10134 = vmax.f32 %v9866, 0.0
        %v10135 = vmax.f32 %v9868, 0.0
        %v10136 = vmax.f32 %v8458, 0.0
        %v10137 = vmax.f32 %v8460, 0.0
        %v10138 = vmax.f32 %v9870, 0.0
        %v10139 = vmax.f32 %v9872, 0.0
        %v10140 = vmax.f32 %v8464, 0.0
        %v10141 = vmax.f32 %v8466, 0.0
        %v10142 = vmax.f32 %v9876, 0.0
        %v10143 = vmax.f32 %v9878, 0.0
        %v10144 = vmax.f32 %v8468, 0.0
        %v10145 = vmax.f32 %v8470, 0.0
        %v10146 = vmax.f32 %v9880, 0.0
        %v10147 = vmax.f32 %v9882, 0.0
        %v10148 = vmax.f32 %v8474, 0.0
        %v10149 = vmax.f32 %v8476, 0.0
        %v10150 = vmax.f32 %v9886, 0.0
        %v10151 = vmax.f32 %v9888, 0.0
        %v10152 = vmax.f32 %v8478, 0.0
        %v10153 = vmax.f32 %v8480, 0.0
        %v10154 = vmax.f32 %v9890, 0.0
        %v10155 = vmax.f32 %v9892, 0.0
        %v10156 = vmax.f32 %v8484, 0.0
        %v10157 = vmax.f32 %v8486, 0.0
        %v10158 = vmax.f32 %v9896, 0.0
        %v10159 = vmax.f32 %v9898, 0.0
        %v10160 = vmax.f32 %v8488, 0.0
        %v10161 = vmax.f32 %v8490, 0.0
        %v10162 = vmax.f32 %v9900, 0.0
        %v10163 = vmax.f32 %v9902, 0.0
        %v10164 = vmax.f32 %v8494, 0.0
        %v10165 = vmax.f32 %v8496, 0.0
        %v10166 = vmax.f32 %v9906, 0.0
        %v10167 = vmax.f32 %v9908, 0.0
        %v10168 = vmax.f32 %v8498, 0.0
        %v10169 = vmax.f32 %v8500, 0.0
        %v10170 = vmax.f32 %v9910, 0.0
        %v10171 = vmax.f32 %v9912, 0.0
        %v10172 = vmax.f32 %v8504, 0.0
        %v10173 = vmax.f32 %v8506, 0.0
        %v10174 = vmax.f32 %v9916, 0.0
        %v10175 = vmax.f32 %v9918, 0.0
        %v10176 = vmax.f32 %v8508, 0.0
        %v10177 = vmax.f32 %v8510, 0.0
        %v10178 = vmax.f32 %v9920, 0.0
        %v10179 = vmax.f32 %v9922, 0.0
        %v10180 = vpack.c.bf16 %v9928, %v9924
        %v10181 = vpack.c.bf16 %v9929, %v9925
        %v10182 = vpack.c.bf16 %v9930, %v9926
        %v10183 = vpack.c.bf16 %v9931, %v9927
        %v10184 = vpack.c.bf16 %v9936, %v9932
        %v10185 = vpack.c.bf16 %v9937, %v9933
        %v10186 = vpack.c.bf16 %v9938, %v9934
        %v10187 = vpack.c.bf16 %v9939, %v9935
        %v10188 = vpack.c.bf16 %v9944, %v9940
        %v10189 = vpack.c.bf16 %v9945, %v9941
        %v10190 = vpack.c.bf16 %v9946, %v9942
        %v10191 = vpack.c.bf16 %v9947, %v9943
        %v10192 = vpack.c.bf16 %v9952, %v9948
        %v10193 = vpack.c.bf16 %v9953, %v9949
        %v10194 = vpack.c.bf16 %v9954, %v9950
        %v10195 = vpack.c.bf16 %v9955, %v9951
        %v10196 = vpack.c.bf16 %v9960, %v9956
        %v10197 = vpack.c.bf16 %v9961, %v9957
        %v10198 = vpack.c.bf16 %v9962, %v9958
        %v10199 = vpack.c.bf16 %v9963, %v9959
        %v10200 = vpack.c.bf16 %v9968, %v9964
        %v10201 = vpack.c.bf16 %v9969, %v9965
        %v10202 = vpack.c.bf16 %v9970, %v9966
        %v10203 = vpack.c.bf16 %v9971, %v9967
        %v10204 = vpack.c.bf16 %v9976, %v9972
        %v10205 = vpack.c.bf16 %v9977, %v9973
        %v10206 = vpack.c.bf16 %v9978, %v9974
        %v10207 = vpack.c.bf16 %v9979, %v9975
        %v10208 = vpack.c.bf16 %v9984, %v9980
        %v10209 = vpack.c.bf16 %v9985, %v9981
        %v10210 = vpack.c.bf16 %v9986, %v9982
        %v10211 = vpack.c.bf16 %v9987, %v9983
        %v10212 = vpack.c.bf16 %v9992, %v9988
        %v10213 = vpack.c.bf16 %v9993, %v9989
        %v10214 = vpack.c.bf16 %v9994, %v9990
        %v10215 = vpack.c.bf16 %v9995, %v9991
        %v10216 = vpack.c.bf16 %v10000, %v9996
        %v10217 = vpack.c.bf16 %v10001, %v9997
        %v10218 = vpack.c.bf16 %v10002, %v9998
        %v10219 = vpack.c.bf16 %v10003, %v9999
        %v10220 = vpack.c.bf16 %v10008, %v10004
        %v10221 = vpack.c.bf16 %v10009, %v10005
        %v10222 = vpack.c.bf16 %v10010, %v10006
        %v10223 = vpack.c.bf16 %v10011, %v10007
        %v10224 = vpack.c.bf16 %v10016, %v10012
        %v10225 = vpack.c.bf16 %v10017, %v10013
        %v10226 = vpack.c.bf16 %v10018, %v10014
        %v10227 = vpack.c.bf16 %v10019, %v10015
        %v10228 = vpack.c.bf16 %v10024, %v10020
        %v10229 = vpack.c.bf16 %v10025, %v10021
        %v10230 = vpack.c.bf16 %v10026, %v10022
        %v10231 = vpack.c.bf16 %v10027, %v10023
        %v10232 = vpack.c.bf16 %v10032, %v10028
        %v10233 = vpack.c.bf16 %v10033, %v10029
        %v10234 = vpack.c.bf16 %v10034, %v10030
        %v10235 = vpack.c.bf16 %v10035, %v10031
        %v10236 = vpack.c.bf16 %v10040, %v10036
        %v10237 = vpack.c.bf16 %v10041, %v10037
        %v10238 = vpack.c.bf16 %v10042, %v10038
        %v10239 = vpack.c.bf16 %v10043, %v10039
        %v10240 = vpack.c.bf16 %v10048, %v10044
        %v10241 = vpack.c.bf16 %v10049, %v10045
        %v10242 = vpack.c.bf16 %v10050, %v10046
        %v10243 = vpack.c.bf16 %v10051, %v10047
        %v10244 = vpack.c.bf16 %v10056, %v10052
        %v10245 = vpack.c.bf16 %v10057, %v10053
        %v10246 = vpack.c.bf16 %v10058, %v10054
        %v10247 = vpack.c.bf16 %v10059, %v10055
        %v10248 = vpack.c.bf16 %v10064, %v10060
        %v10249 = vpack.c.bf16 %v10065, %v10061
        %v10250 = vpack.c.bf16 %v10066, %v10062
        %v10251 = vpack.c.bf16 %v10067, %v10063
        %v10252 = vpack.c.bf16 %v10072, %v10068
        %v10253 = vpack.c.bf16 %v10073, %v10069
        %v10254 = vpack.c.bf16 %v10074, %v10070
        %v10255 = vpack.c.bf16 %v10075, %v10071
        %v10256 = vpack.c.bf16 %v10080, %v10076
        %v10257 = vpack.c.bf16 %v10081, %v10077
        %v10258 = vpack.c.bf16 %v10082, %v10078
        %v10259 = vpack.c.bf16 %v10083, %v10079
        %v10260 = vpack.c.bf16 %v10088, %v10084
        %v10261 = vpack.c.bf16 %v10089, %v10085
        %v10262 = vpack.c.bf16 %v10090, %v10086
        %v10263 = vpack.c.bf16 %v10091, %v10087
        %v10264 = vpack.c.bf16 %v10096, %v10092
        %v10265 = vpack.c.bf16 %v10097, %v10093
        %v10266 = vpack.c.bf16 %v10098, %v10094
        %v10267 = vpack.c.bf16 %v10099, %v10095
        %v10268 = vpack.c.bf16 %v10104, %v10100
        %v10269 = vpack.c.bf16 %v10105, %v10101
        %v10270 = vpack.c.bf16 %v10106, %v10102
        %v10271 = vpack.c.bf16 %v10107, %v10103
        %v10272 = vpack.c.bf16 %v10112, %v10108
        %v10273 = vpack.c.bf16 %v10113, %v10109
        %v10274 = vpack.c.bf16 %v10114, %v10110
        %v10275 = vpack.c.bf16 %v10115, %v10111
        %v10276 = vpack.c.bf16 %v10120, %v10116
        %v10277 = vpack.c.bf16 %v10121, %v10117
        %v10278 = vpack.c.bf16 %v10122, %v10118
        %v10279 = vpack.c.bf16 %v10123, %v10119
        %v10280 = vpack.c.bf16 %v10128, %v10124
        %v10281 = vpack.c.bf16 %v10129, %v10125
        %v10282 = vpack.c.bf16 %v10130, %v10126
        %v10283 = vpack.c.bf16 %v10131, %v10127
        %v10284 = vpack.c.bf16 %v10136, %v10132
        %v10285 = vpack.c.bf16 %v10137, %v10133
        %v10286 = vpack.c.bf16 %v10138, %v10134
        %v10287 = vpack.c.bf16 %v10139, %v10135
        %v10288 = vpack.c.bf16 %v10144, %v10140
        %v10289 = vpack.c.bf16 %v10145, %v10141
        %v10290 = vpack.c.bf16 %v10146, %v10142
        %v10291 = vpack.c.bf16 %v10147, %v10143
        %v10292 = vpack.c.bf16 %v10152, %v10148
        %v10293 = vpack.c.bf16 %v10153, %v10149
        %v10294 = vpack.c.bf16 %v10154, %v10150
        %v10295 = vpack.c.bf16 %v10155, %v10151
        %v10296 = vpack.c.bf16 %v10160, %v10156
        %v10297 = vpack.c.bf16 %v10161, %v10157
        %v10298 = vpack.c.bf16 %v10162, %v10158
        %v10299 = vpack.c.bf16 %v10163, %v10159
        %v10300 = vpack.c.bf16 %v10168, %v10164
        %v10301 = vpack.c.bf16 %v10169, %v10165
        %v10302 = vpack.c.bf16 %v10170, %v10166
        %v10303 = vpack.c.bf16 %v10171, %v10167
        %v10304 = vpack.c.bf16 %v10176, %v10172
        %v10305 = vpack.c.bf16 %v10177, %v10173
        %v10306 = vpack.c.bf16 %v10178, %v10174
        %v10307 = vpack.c.bf16 %v10179, %v10175
        %v10308 = vld [vmem:[%s12] sm:$0xff]
        %v10309 = vld [vmem:[%s12 + $0x8] sm:$0xff]
        %v10310 = vld [vmem:[%s12 + $0x10] sm:$0xff]
        %v10311 = vld [vmem:[%s12 + $0x18] sm:$0xff]
        %v10312 = vld [vmem:[%s12 + $0x20] sm:$0xff]
        %v10313 = vld [vmem:[%s12 + $0x28] sm:$0xff]
        %v10314 = vld [vmem:[%s12 + $0x30] sm:$0xff]
        %v10315 = vld [vmem:[%s12 + $0x38] sm:$0xff]
        %v10316 = vld [vmem:[%s12 + $0x40] sm:$0xff]
        %v10317 = vld [vmem:[%s12 + $0x48] sm:$0xff]
        %v10318 = vld [vmem:[%s12 + $0x50] sm:$0xff]
        %v10319 = vld [vmem:[%s12 + $0x58] sm:$0xff]
        %v10320 = vld [vmem:[%s12 + $0x60] sm:$0xff]
        %v10321 = vld [vmem:[%s12 + $0x68] sm:$0xff]
        %v10322 = vld [vmem:[%s12 + $0x70] sm:$0xff]
        %v10323 = vld [vmem:[%s12 + $0x78] sm:$0xff]
        %v10324 = vld [vmem:[%s12 + $0x80] sm:$0xff]
        %v10325 = vld [vmem:[%s12 + $0x88] sm:$0xff]
        %v10326 = vld [vmem:[%s12 + $0x90] sm:$0xff]
        %v10327 = vld [vmem:[%s12 + $0x98] sm:$0xff]
        %v10328 = vld [vmem:[%s12 + $0xa0] sm:$0xff]
        %v10329 = vld [vmem:[%s12 + $0xa8] sm:$0xff]
        %v10330 = vld [vmem:[%s12 + $0xb0] sm:$0xff]
        %v10331 = vld [vmem:[%s12 + $0xb8] sm:$0xff]
        %v10332 = vld [vmem:[%s12 + $0xc0] sm:$0xff]
        %v10333 = vld [vmem:[%s12 + $0xc8] sm:$0xff]
        %v10334 = vld [vmem:[%s12 + $0xd0] sm:$0xff]
        %v10335 = vld [vmem:[%s12 + $0xd8] sm:$0xff]
        %v10336 = vld [vmem:[%s12 + $0xe0] sm:$0xff]
        %v10337 = vld [vmem:[%s12 + $0xe8] sm:$0xff]
        %v10338 = vld [vmem:[%s12 + $0xf0] sm:$0xff]
        %v10339 = vld [vmem:[%s12 + $0xf8] sm:$0xff]
        %v10340 = vld [vmem:[%s12 + $0x100] sm:$0xff]
        %v10341 = vld [vmem:[%s12 + $0x108] sm:$0xff]
        %v10342 = vld [vmem:[%s12 + $0x110] sm:$0xff]
        %v10343 = vld [vmem:[%s12 + $0x118] sm:$0xff]
        %v10344 = vld [vmem:[%s12 + $0x120] sm:$0xff]
        %v10345 = vld [vmem:[%s12 + $0x128] sm:$0xff]
        %v10346 = vld [vmem:[%s12 + $0x130] sm:$0xff]
        %v10347 = vld [vmem:[%s12 + $0x138] sm:$0xff]
        %v10348 = vld [vmem:[%s12 + $0x140] sm:$0xff]
        %v10349 = vld [vmem:[%s12 + $0x148] sm:$0xff]
        %v10350 = vld [vmem:[%s12 + $0x150] sm:$0xff]
        %v10351 = vld [vmem:[%s12 + $0x158] sm:$0xff]
        %v10352 = vld [vmem:[%s12 + $0x160] sm:$0xff]
        %v10353 = vld [vmem:[%s12 + $0x168] sm:$0xff]
        %v10354 = vld [vmem:[%s12 + $0x170] sm:$0xff]
        %v10355 = vld [vmem:[%s12 + $0x178] sm:$0xff]
        %v10356 = vld [vmem:[%s12 + $0x180] sm:$0xff]
        %v10357 = vld [vmem:[%s12 + $0x188] sm:$0xff]
        %v10358 = vld [vmem:[%s12 + $0x190] sm:$0xff]
        %v10359 = vld [vmem:[%s12 + $0x198] sm:$0xff]
        %v10360 = vld [vmem:[%s12 + $0x1a0] sm:$0xff]
        %v10361 = vld [vmem:[%s12 + $0x1a8] sm:$0xff]
        %v10362 = vld [vmem:[%s12 + $0x1b0] sm:$0xff]
        %v10363 = vld [vmem:[%s12 + $0x1b8] sm:$0xff]
        %v10364 = vld [vmem:[%s12 + $0x1c0] sm:$0xff]
        %v10365 = vld [vmem:[%s12 + $0x1c8] sm:$0xff]
        %v10366 = vld [vmem:[%s12 + $0x1d0] sm:$0xff]
        %v10367 = vld [vmem:[%s12 + $0x1d8] sm:$0xff]
        %v10368 = vld [vmem:[%s12 + $0x1e0] sm:$0xff]
        %v10369 = vld [vmem:[%s12 + $0x1e8] sm:$0xff]
        %v10370 = vld [vmem:[%s12 + $0x1f0] sm:$0xff]
        %v10371 = vld [vmem:[%s12 + $0x1f8] sm:$0xff]
        %v10372 = vld [vmem:[%s13] sm:$0x3]
        %v10374 = vlaneseq
        %v10375 = vshrl.u32 %v10374, 7
        %v10376 = vsub.s32 0, %v10375
        %v10377 = vrot.slane %v10372, %v10376
        %v10378 = vlaneseq
        %v10379 = vshrl.u32 %v10378, 7
        %v10380 = vsub.s32 1, %v10379
        %v10381 = vrot.slane %v10372, %v10380
        %v10448 = vunpack.c.l.b16 %v10308
        %v10449 = vunpack.c.h.b16 %v10308
        %v10450 = vunpack.c.l.b16 %v10309
        %v10451 = vunpack.c.h.b16 %v10309
        %v10452 = vunpack.c.l.b16 %v10310
        %v10453 = vunpack.c.h.b16 %v10310
        %v10454 = vunpack.c.l.b16 %v10311
        %v10455 = vunpack.c.h.b16 %v10311
        %v10456 = vunpack.c.l.b16 %v10312
        %v10457 = vunpack.c.h.b16 %v10312
        %v10458 = vunpack.c.l.b16 %v10313
        %v10459 = vunpack.c.h.b16 %v10313
        %v10460 = vunpack.c.l.b16 %v10314
        %v10461 = vunpack.c.h.b16 %v10314
        %v10462 = vunpack.c.l.b16 %v10315
        %v10463 = vunpack.c.h.b16 %v10315
        %v10464 = vunpack.c.l.b16 %v10316
        %v10465 = vunpack.c.h.b16 %v10316
        %v10466 = vunpack.c.l.b16 %v10317
        %v10467 = vunpack.c.h.b16 %v10317
        %v10468 = vunpack.c.l.b16 %v10318
        %v10469 = vunpack.c.h.b16 %v10318
        %v10470 = vunpack.c.l.b16 %v10319
        %v10471 = vunpack.c.h.b16 %v10319
        %v10472 = vunpack.c.l.b16 %v10320
        %v10473 = vunpack.c.h.b16 %v10320
        %v10474 = vunpack.c.l.b16 %v10321
        %v10475 = vunpack.c.h.b16 %v10321
        %v10476 = vunpack.c.l.b16 %v10322
        %v10477 = vunpack.c.h.b16 %v10322
        %v10478 = vunpack.c.l.b16 %v10323
        %v10479 = vunpack.c.h.b16 %v10323
        %v10480 = vunpack.c.l.b16 %v10324
        %v10481 = vunpack.c.h.b16 %v10324
        %v10482 = vunpack.c.l.b16 %v10325
        %v10483 = vunpack.c.h.b16 %v10325
        %v10484 = vunpack.c.l.b16 %v10326
        %v10485 = vunpack.c.h.b16 %v10326
        %v10486 = vunpack.c.l.b16 %v10327
        %v10487 = vunpack.c.h.b16 %v10327
        %v10488 = vunpack.c.l.b16 %v10328
        %v10489 = vunpack.c.h.b16 %v10328
        %v10490 = vunpack.c.l.b16 %v10329
        %v10491 = vunpack.c.h.b16 %v10329
        %v10492 = vunpack.c.l.b16 %v10330
        %v10493 = vunpack.c.h.b16 %v10330
        %v10494 = vunpack.c.l.b16 %v10331
        %v10495 = vunpack.c.h.b16 %v10331
        %v10496 = vunpack.c.l.b16 %v10332
        %v10497 = vunpack.c.h.b16 %v10332
        %v10498 = vunpack.c.l.b16 %v10333
        %v10499 = vunpack.c.h.b16 %v10333
        %v10500 = vunpack.c.l.b16 %v10334
        %v10501 = vunpack.c.h.b16 %v10334
        %v10502 = vunpack.c.l.b16 %v10335
        %v10503 = vunpack.c.h.b16 %v10335
        %v10504 = vunpack.c.l.b16 %v10336
        %v10505 = vunpack.c.h.b16 %v10336
        %v10506 = vunpack.c.l.b16 %v10337
        %v10507 = vunpack.c.h.b16 %v10337
        %v10508 = vunpack.c.l.b16 %v10338
        %v10509 = vunpack.c.h.b16 %v10338
        %v10510 = vunpack.c.l.b16 %v10339
        %v10511 = vunpack.c.h.b16 %v10339
        %v10512 = vunpack.c.l.b16 %v10340
        %v10513 = vunpack.c.h.b16 %v10340
        %v10514 = vunpack.c.l.b16 %v10341
        %v10515 = vunpack.c.h.b16 %v10341
        %v10516 = vunpack.c.l.b16 %v10342
        %v10517 = vunpack.c.h.b16 %v10342
        %v10518 = vunpack.c.l.b16 %v10343
        %v10519 = vunpack.c.h.b16 %v10343
        %v10520 = vunpack.c.l.b16 %v10344
        %v10521 = vunpack.c.h.b16 %v10344
        %v10522 = vunpack.c.l.b16 %v10345
        %v10523 = vunpack.c.h.b16 %v10345
        %v10524 = vunpack.c.l.b16 %v10346
        %v10525 = vunpack.c.h.b16 %v10346
        %v10526 = vunpack.c.l.b16 %v10347
        %v10527 = vunpack.c.h.b16 %v10347
        %v10528 = vunpack.c.l.b16 %v10348
        %v10529 = vunpack.c.h.b16 %v10348
        %v10530 = vunpack.c.l.b16 %v10349
        %v10531 = vunpack.c.h.b16 %v10349
        %v10532 = vunpack.c.l.b16 %v10350
        %v10533 = vunpack.c.h.b16 %v10350
        %v10534 = vunpack.c.l.b16 %v10351
        %v10535 = vunpack.c.h.b16 %v10351
        %v10536 = vunpack.c.l.b16 %v10352
        %v10537 = vunpack.c.h.b16 %v10352
        %v10538 = vunpack.c.l.b16 %v10353
        %v10539 = vunpack.c.h.b16 %v10353
        %v10540 = vunpack.c.l.b16 %v10354
        %v10541 = vunpack.c.h.b16 %v10354
        %v10542 = vunpack.c.l.b16 %v10355
        %v10543 = vunpack.c.h.b16 %v10355
        %v10544 = vunpack.c.l.b16 %v10356
        %v10545 = vunpack.c.h.b16 %v10356
        %v10546 = vunpack.c.l.b16 %v10357
        %v10547 = vunpack.c.h.b16 %v10357
        %v10548 = vunpack.c.l.b16 %v10358
        %v10549 = vunpack.c.h.b16 %v10358
        %v10550 = vunpack.c.l.b16 %v10359
        %v10551 = vunpack.c.h.b16 %v10359
        %v10552 = vunpack.c.l.b16 %v10360
        %v10553 = vunpack.c.h.b16 %v10360
        %v10554 = vunpack.c.l.b16 %v10361
        %v10555 = vunpack.c.h.b16 %v10361
        %v10556 = vunpack.c.l.b16 %v10362
        %v10557 = vunpack.c.h.b16 %v10362
        %v10558 = vunpack.c.l.b16 %v10363
        %v10559 = vunpack.c.h.b16 %v10363
        %v10560 = vunpack.c.l.b16 %v10364
        %v10561 = vunpack.c.h.b16 %v10364
        %v10562 = vunpack.c.l.b16 %v10365
        %v10563 = vunpack.c.h.b16 %v10365
        %v10564 = vunpack.c.l.b16 %v10366
        %v10565 = vunpack.c.h.b16 %v10366
        %v10566 = vunpack.c.l.b16 %v10367
        %v10567 = vunpack.c.h.b16 %v10367
        %v10568 = vunpack.c.l.b16 %v10368
        %v10569 = vunpack.c.h.b16 %v10368
        %v10570 = vunpack.c.l.b16 %v10369
        %v10571 = vunpack.c.h.b16 %v10369
        %v10572 = vunpack.c.l.b16 %v10370
        %v10573 = vunpack.c.h.b16 %v10370
        %v10574 = vunpack.c.l.b16 %v10371
        %v10575 = vunpack.c.h.b16 %v10371
        %v10576 = vpack.c.b16 %v10450, %v10448
        %v10577 = vpack.c.b16 %v10451, %v10449
        %v10578 = vpack.c.b16 %v10454, %v10452
        %v10579 = vpack.c.b16 %v10455, %v10453
        %v10580 = vpack.c.b16 %v10458, %v10456
        %v10581 = vpack.c.b16 %v10459, %v10457
        %v10582 = vpack.c.b16 %v10462, %v10460
        %v10583 = vpack.c.b16 %v10463, %v10461
        %v10584 = vpack.c.b16 %v10466, %v10464
        %v10585 = vpack.c.b16 %v10467, %v10465
        %v10586 = vpack.c.b16 %v10470, %v10468
        %v10587 = vpack.c.b16 %v10471, %v10469
        %v10588 = vpack.c.b16 %v10474, %v10472
        %v10589 = vpack.c.b16 %v10475, %v10473
        %v10590 = vpack.c.b16 %v10478, %v10476
        %v10591 = vpack.c.b16 %v10479, %v10477
        %v10592 = vpack.c.b16 %v10482, %v10480
        %v10593 = vpack.c.b16 %v10483, %v10481
        %v10594 = vpack.c.b16 %v10486, %v10484
        %v10595 = vpack.c.b16 %v10487, %v10485
        %v10596 = vpack.c.b16 %v10490, %v10488
        %v10597 = vpack.c.b16 %v10491, %v10489
        %v10598 = vpack.c.b16 %v10494, %v10492
        %v10599 = vpack.c.b16 %v10495, %v10493
        %v10600 = vpack.c.b16 %v10498, %v10496
        %v10601 = vpack.c.b16 %v10499, %v10497
        %v10602 = vpack.c.b16 %v10502, %v10500
        %v10603 = vpack.c.b16 %v10503, %v10501
        %v10604 = vpack.c.b16 %v10506, %v10504
        %v10605 = vpack.c.b16 %v10507, %v10505
        %v10606 = vpack.c.b16 %v10510, %v10508
        %v10607 = vpack.c.b16 %v10511, %v10509
        %v10608 = vpack.c.b16 %v10514, %v10512
        %v10609 = vpack.c.b16 %v10515, %v10513
        %v10610 = vpack.c.b16 %v10518, %v10516
        %v10611 = vpack.c.b16 %v10519, %v10517
        %v10612 = vpack.c.b16 %v10522, %v10520
        %v10613 = vpack.c.b16 %v10523, %v10521
        %v10614 = vpack.c.b16 %v10526, %v10524
        %v10615 = vpack.c.b16 %v10527, %v10525
        %v10616 = vpack.c.b16 %v10530, %v10528
        %v10617 = vpack.c.b16 %v10531, %v10529
        %v10618 = vpack.c.b16 %v10534, %v10532
        %v10619 = vpack.c.b16 %v10535, %v10533
        %v10620 = vpack.c.b16 %v10538, %v10536
        %v10621 = vpack.c.b16 %v10539, %v10537
        %v10622 = vpack.c.b16 %v10542, %v10540
        %v10623 = vpack.c.b16 %v10543, %v10541
        %v10624 = vpack.c.b16 %v10546, %v10544
        %v10625 = vpack.c.b16 %v10547, %v10545
        %v10626 = vpack.c.b16 %v10550, %v10548
        %v10627 = vpack.c.b16 %v10551, %v10549
        %v10628 = vpack.c.b16 %v10554, %v10552
        %v10629 = vpack.c.b16 %v10555, %v10553
        %v10630 = vpack.c.b16 %v10558, %v10556
        %v10631 = vpack.c.b16 %v10559, %v10557
        %v10632 = vpack.c.b16 %v10562, %v10560
        %v10633 = vpack.c.b16 %v10563, %v10561
        %v10634 = vpack.c.b16 %v10566, %v10564
        %v10635 = vpack.c.b16 %v10567, %v10565
        %v10636 = vpack.c.b16 %v10570, %v10568
        %v10637 = vpack.c.b16 %v10571, %v10569
        %v10638 = vpack.c.b16 %v10574, %v10572
        %v10639 = vpack.c.b16 %v10575, %v10573
        %10704 = vmatprep.subr.bf16.mxu0 %v10577
        %10705 = vmatpush1.bf16.msra.mxu0 %v10576
        %10706 = vmatprep.subr.bf16.mxu0 %v10579
        %10707 = vmatpush1.bf16.msra.mxu0 %v10578
        %10708 = vmatprep.subr.bf16.mxu0 %v10581
        %10709 = vmatpush1.bf16.msra.mxu0 %v10580
        %10710 = vmatprep.subr.bf16.mxu0 %v10583
        %10711 = vmatpush1.bf16.msra.mxu0 %v10582
        %10712 = vmatprep.subr.bf16.mxu0 %v10585
        %10713 = vmatpush1.bf16.msra.mxu0 %v10584
        %10714 = vmatprep.subr.bf16.mxu0 %v10587
        %10715 = vmatpush1.bf16.msra.mxu0 %v10586
        %10716 = vmatprep.subr.bf16.mxu0 %v10589
        %10717 = vmatpush1.bf16.msra.mxu0 %v10588
        %10718 = vmatprep.subr.bf16.mxu0 %v10591
        %10719 = vmatpush1.bf16.msra.mxu0 %v10590
        %10720 = vmatprep.subr.bf16.mxu0 %v10593
        %10721 = vmatpush1.bf16.msra.mxu0 %v10592
        %10722 = vmatprep.subr.bf16.mxu0 %v10595
        %10723 = vmatpush1.bf16.msra.mxu0 %v10594
        %10724 = vmatprep.subr.bf16.mxu0 %v10597
        %10725 = vmatpush1.bf16.msra.mxu0 %v10596
        %10726 = vmatprep.subr.bf16.mxu0 %v10599
        %10727 = vmatpush1.bf16.msra.mxu0 %v10598
        %10728 = vmatprep.subr.bf16.mxu0 %v10601
        %10729 = vmatpush1.bf16.msra.mxu0 %v10600
        %10730 = vmatprep.subr.bf16.mxu0 %v10603
        %10731 = vmatpush1.bf16.msra.mxu0 %v10602
        %10732 = vmatprep.subr.bf16.mxu0 %v10605
        %10733 = vmatpush1.bf16.msra.mxu0 %v10604
        %10734 = vmatprep.subr.bf16.mxu0 %v10607
        %10735 = vmatpush1.bf16.msra.mxu0 %v10606
        %10736 = vmatprep.mubr.bf16.mxu0 %v10181
        %10737 = vmatmul.mubr.bf16.gmra.mrb[0].mxu0 %v10180
        %v10738 = vpop.f32.mrb[0].mxu0
        %v10739 = vadd.f32 %v10377, %v10738
        %v10740 = vpop.f32.mrb[0].mxu0
        %v10741 = vadd.f32 %v10381, %v10740
        %v10742 = vpop.f32.mrb[0].mxu0
        %v10743 = vadd.f32 %v10377, %v10742
        %v10744 = vpop.f32.mrb[0].mxu0
        %v10745 = vadd.f32 %v10381, %v10744
        %10746 = vmatprep.mubr.bf16.mxu0 %v10185
        %10747 = vmatmul.mubr.bf16.gmra.mrb[0].mxu0 %v10184
        %v10748 = vpop.f32.mrb[0].mxu0
        %v10749 = vadd.f32 %v10377, %v10748
        %v10750 = vpop.f32.mrb[0].mxu0
        %v10751 = vadd.f32 %v10381, %v10750
        %v10752 = vpop.f32.mrb[0].mxu0
        %v10753 = vadd.f32 %v10377, %v10752
        %v10754 = vpop.f32.mrb[0].mxu0
        %v10755 = vadd.f32 %v10381, %v10754
        %10756 = vmatprep.mubr.bf16.mxu0 %v10189
        %10757 = vmatmul.mubr.bf16.gmra.mrb[0].mxu0 %v10188
        %v10758 = vpop.f32.mrb[0].mxu0
        %v10759 = vadd.f32 %v10377, %v10758
        %v10760 = vpop.f32.mrb[0].mxu0
        %v10761 = vadd.f32 %v10381, %v10760
        %v10762 = vpop.f32.mrb[0].mxu0
        %v10763 = vadd.f32 %v10377, %v10762
        %v10764 = vpop.f32.mrb[0].mxu0
        %v10765 = vadd.f32 %v10381, %v10764
        %10766 = vmatprep.mubr.bf16.mxu0 %v10193
        %10767 = vmatmul.mubr.bf16.gmra.mrb[0].mxu0 %v10192
        %v10768 = vpop.f32.mrb[0].mxu0
        %v10769 = vadd.f32 %v10377, %v10768
        %v10770 = vpop.f32.mrb[0].mxu0
        %v10771 = vadd.f32 %v10381, %v10770
        %v10772 = vpop.f32.mrb[0].mxu0
        %v10773 = vadd.f32 %v10377, %v10772
        %v10774 = vpop.f32.mrb[0].mxu0
        %v10775 = vadd.f32 %v10381, %v10774
        %10776 = vmatprep.mubr.bf16.mxu0 %v10197
        %10777 = vmatmul.mubr.bf16.gmra.mrb[0].mxu0 %v10196
        %v10778 = vpop.f32.mrb[0].mxu0
        %v10779 = vadd.f32 %v10377, %v10778
        %v10780 = vpop.f32.mrb[0].mxu0
        %v10781 = vadd.f32 %v10381, %v10780
        %v10782 = vpop.f32.mrb[0].mxu0
        %v10783 = vadd.f32 %v10377, %v10782
        %v10784 = vpop.f32.mrb[0].mxu0
        %v10785 = vadd.f32 %v10381, %v10784
        %10786 = vmatprep.mubr.bf16.mxu0 %v10201
        %10787 = vmatmul.mubr.bf16.gmra.mrb[0].mxu0 %v10200
        %v10788 = vpop.f32.mrb[0].mxu0
        %v10789 = vadd.f32 %v10377, %v10788
        %v10790 = vpop.f32.mrb[0].mxu0
        %v10791 = vadd.f32 %v10381, %v10790
        %v10792 = vpop.f32.mrb[0].mxu0
        %v10793 = vadd.f32 %v10377, %v10792
        %v10794 = vpop.f32.mrb[0].mxu0
        %v10795 = vadd.f32 %v10381, %v10794
        %10796 = vmatprep.mubr.bf16.mxu0 %v10205
        %10797 = vmatmul.mubr.bf16.gmra.mrb[0].mxu0 %v10204
        %v10798 = vpop.f32.mrb[0].mxu0
        %v10799 = vadd.f32 %v10377, %v10798
        %v10800 = vpop.f32.mrb[0].mxu0
        %v10801 = vadd.f32 %v10381, %v10800
        %v10802 = vpop.f32.mrb[0].mxu0
        %v10803 = vadd.f32 %v10377, %v10802
        %v10804 = vpop.f32.mrb[0].mxu0
        %v10805 = vadd.f32 %v10381, %v10804
        %10806 = vmatprep.mubr.bf16.mxu0 %v10209
        %10807 = vmatmul.mubr.bf16.gmra.mrb[0].mxu0 %v10208
        %v10808 = vpop.f32.mrb[0].mxu0
        %v10809 = vadd.f32 %v10377, %v10808
        %v10810 = vpop.f32.mrb[0].mxu0
        %v10811 = vadd.f32 %v10381, %v10810
        %v10812 = vpop.f32.mrb[0].mxu0
        %v10813 = vadd.f32 %v10377, %v10812
        %v10814 = vpop.f32.mrb[0].mxu0
        %v10815 = vadd.f32 %v10381, %v10814
        %10816 = vmatprep.mubr.bf16.mxu0 %v10213
        %10817 = vmatmul.mubr.bf16.gmra.mrb[0].mxu0 %v10212
        %v10818 = vpop.f32.mrb[0].mxu0
        %v10819 = vadd.f32 %v10377, %v10818
        %v10820 = vpop.f32.mrb[0].mxu0
        %v10821 = vadd.f32 %v10381, %v10820
        %v10822 = vpop.f32.mrb[0].mxu0
        %v10823 = vadd.f32 %v10377, %v10822
        %v10824 = vpop.f32.mrb[0].mxu0
        %v10825 = vadd.f32 %v10381, %v10824
        %10826 = vmatprep.mubr.bf16.mxu0 %v10217
        %10827 = vmatmul.mubr.bf16.gmra.mrb[0].mxu0 %v10216
        %v10828 = vpop.f32.mrb[0].mxu0
        %v10829 = vadd.f32 %v10377, %v10828
        %v10830 = vpop.f32.mrb[0].mxu0
        %v10831 = vadd.f32 %v10381, %v10830
        %v10832 = vpop.f32.mrb[0].mxu0
        %v10833 = vadd.f32 %v10377, %v10832
        %v10834 = vpop.f32.mrb[0].mxu0
        %v10835 = vadd.f32 %v10381, %v10834
        %10836 = vmatprep.mubr.bf16.mxu0 %v10221
        %10837 = vmatmul.mubr.bf16.gmra.mrb[0].mxu0 %v10220
        %v10838 = vpop.f32.mrb[0].mxu0
        %v10839 = vadd.f32 %v10377, %v10838
        %v10840 = vpop.f32.mrb[0].mxu0
        %v10841 = vadd.f32 %v10381, %v10840
        %v10842 = vpop.f32.mrb[0].mxu0
        %v10843 = vadd.f32 %v10377, %v10842
        %v10844 = vpop.f32.mrb[0].mxu0
        %v10845 = vadd.f32 %v10381, %v10844
        %10846 = vmatprep.mubr.bf16.mxu0 %v10225
        %10847 = vmatmul.mubr.bf16.gmra.mrb[0].mxu0 %v10224
        %v10848 = vpop.f32.mrb[0].mxu0
        %v10849 = vadd.f32 %v10377, %v10848
        %v10850 = vpop.f32.mrb[0].mxu0
        %v10851 = vadd.f32 %v10381, %v10850
        %v10852 = vpop.f32.mrb[0].mxu0
        %v10853 = vadd.f32 %v10377, %v10852
        %v10854 = vpop.f32.mrb[0].mxu0
        %v10855 = vadd.f32 %v10381, %v10854
        %10856 = vmatprep.mubr.bf16.mxu0 %v10229
        %10857 = vmatmul.mubr.bf16.gmra.mrb[0].mxu0 %v10228
        %v10858 = vpop.f32.mrb[0].mxu0
        %v10859 = vadd.f32 %v10377, %v10858
        %v10860 = vpop.f32.mrb[0].mxu0
        %v10861 = vadd.f32 %v10381, %v10860
        %v10862 = vpop.f32.mrb[0].mxu0
        %v10863 = vadd.f32 %v10377, %v10862
        %v10864 = vpop.f32.mrb[0].mxu0
        %v10865 = vadd.f32 %v10381, %v10864
        %10866 = vmatprep.mubr.bf16.mxu0 %v10233
        %10867 = vmatmul.mubr.bf16.gmra.mrb[0].mxu0 %v10232
        %v10868 = vpop.f32.mrb[0].mxu0
        %v10869 = vadd.f32 %v10377, %v10868
        %v10870 = vpop.f32.mrb[0].mxu0
        %v10871 = vadd.f32 %v10381, %v10870
        %v10872 = vpop.f32.mrb[0].mxu0
        %v10873 = vadd.f32 %v10377, %v10872
        %v10874 = vpop.f32.mrb[0].mxu0
        %v10875 = vadd.f32 %v10381, %v10874
        %10876 = vmatprep.mubr.bf16.mxu0 %v10237
        %10877 = vmatmul.mubr.bf16.gmra.mrb[0].mxu0 %v10236
        %v10878 = vpop.f32.mrb[0].mxu0
        %v10879 = vadd.f32 %v10377, %v10878
        %v10880 = vpop.f32.mrb[0].mxu0
        %v10881 = vadd.f32 %v10381, %v10880
        %v10882 = vpop.f32.mrb[0].mxu0
        %v10883 = vadd.f32 %v10377, %v10882
        %v10884 = vpop.f32.mrb[0].mxu0
        %v10885 = vadd.f32 %v10381, %v10884
        %10886 = vmatprep.mubr.bf16.mxu0 %v10241
        %10887 = vmatmul.mubr.bf16.gmra.mrb[0].mxu0 %v10240
        %v10888 = vpop.f32.mrb[0].mxu0
        %v10889 = vadd.f32 %v10377, %v10888
        %v10890 = vpop.f32.mrb[0].mxu0
        %v10891 = vadd.f32 %v10381, %v10890
        %v10892 = vpop.f32.mrb[0].mxu0
        %v10893 = vadd.f32 %v10377, %v10892
        %v10894 = vpop.f32.mrb[0].mxu0
        %v10895 = vadd.f32 %v10381, %v10894
        %10896 = vmatprep.mubr.bf16.mxu0 %v10245
        %10897 = vmatmul.mubr.bf16.gmra.mrb[0].mxu0 %v10244
        %v10898 = vpop.f32.mrb[0].mxu0
        %v10899 = vadd.f32 %v10377, %v10898
        %v10900 = vpop.f32.mrb[0].mxu0
        %v10901 = vadd.f32 %v10381, %v10900
        %v10902 = vpop.f32.mrb[0].mxu0
        %v10903 = vadd.f32 %v10377, %v10902
        %v10904 = vpop.f32.mrb[0].mxu0
        %v10905 = vadd.f32 %v10381, %v10904
        %10906 = vmatprep.mubr.bf16.mxu0 %v10249
        %10907 = vmatmul.mubr.bf16.gmra.mrb[0].mxu0 %v10248
        %v10908 = vpop.f32.mrb[0].mxu0
        %v10909 = vadd.f32 %v10377, %v10908
        %v10910 = vpop.f32.mrb[0].mxu0
        %v10911 = vadd.f32 %v10381, %v10910
        %v10912 = vpop.f32.mrb[0].mxu0
        %v10913 = vadd.f32 %v10377, %v10912
        %v10914 = vpop.f32.mrb[0].mxu0
        %v10915 = vadd.f32 %v10381, %v10914
        %10916 = vmatprep.mubr.bf16.mxu0 %v10253
        %10917 = vmatmul.mubr.bf16.gmra.mrb[0].mxu0 %v10252
        %v10918 = vpop.f32.mrb[0].mxu0
        %v10919 = vadd.f32 %v10377, %v10918
        %v10920 = vpop.f32.mrb[0].mxu0
        %v10921 = vadd.f32 %v10381, %v10920
        %v10922 = vpop.f32.mrb[0].mxu0
        %v10923 = vadd.f32 %v10377, %v10922
        %v10924 = vpop.f32.mrb[0].mxu0
        %v10925 = vadd.f32 %v10381, %v10924
        %10926 = vmatprep.mubr.bf16.mxu0 %v10257
        %10927 = vmatmul.mubr.bf16.gmra.mrb[0].mxu0 %v10256
        %v10928 = vpop.f32.mrb[0].mxu0
        %v10929 = vadd.f32 %v10377, %v10928
        %v10930 = vpop.f32.mrb[0].mxu0
        %v10931 = vadd.f32 %v10381, %v10930
        %v10932 = vpop.f32.mrb[0].mxu0
        %v10933 = vadd.f32 %v10377, %v10932
        %v10934 = vpop.f32.mrb[0].mxu0
        %v10935 = vadd.f32 %v10381, %v10934
        %10936 = vmatprep.mubr.bf16.mxu0 %v10261
        %10937 = vmatmul.mubr.bf16.gmra.mrb[0].mxu0 %v10260
        %v10938 = vpop.f32.mrb[0].mxu0
        %v10939 = vadd.f32 %v10377, %v10938
        %v10940 = vpop.f32.mrb[0].mxu0
        %v10941 = vadd.f32 %v10381, %v10940
        %v10942 = vpop.f32.mrb[0].mxu0
        %v10943 = vadd.f32 %v10377, %v10942
        %v10944 = vpop.f32.mrb[0].mxu0
        %v10945 = vadd.f32 %v10381, %v10944
        %10946 = vmatprep.mubr.bf16.mxu0 %v10265
        %10947 = vmatmul.mubr.bf16.gmra.mrb[0].mxu0 %v10264
        %v10948 = vpop.f32.mrb[0].mxu0
        %v10949 = vadd.f32 %v10377, %v10948
        %v10950 = vpop.f32.mrb[0].mxu0
        %v10951 = vadd.f32 %v10381, %v10950
        %v10952 = vpop.f32.mrb[0].mxu0
        %v10953 = vadd.f32 %v10377, %v10952
        %v10954 = vpop.f32.mrb[0].mxu0
        %v10955 = vadd.f32 %v10381, %v10954
        %10956 = vmatprep.mubr.bf16.mxu0 %v10269
        %10957 = vmatmul.mubr.bf16.gmra.mrb[0].mxu0 %v10268
        %v10958 = vpop.f32.mrb[0].mxu0
        %v10959 = vadd.f32 %v10377, %v10958
        %v10960 = vpop.f32.mrb[0].mxu0
        %v10961 = vadd.f32 %v10381, %v10960
        %v10962 = vpop.f32.mrb[0].mxu0
        %v10963 = vadd.f32 %v10377, %v10962
        %v10964 = vpop.f32.mrb[0].mxu0
        %v10965 = vadd.f32 %v10381, %v10964
        %10966 = vmatprep.mubr.bf16.mxu0 %v10273
        %10967 = vmatmul.mubr.bf16.gmra.mrb[0].mxu0 %v10272
        %v10968 = vpop.f32.mrb[0].mxu0
        %v10969 = vadd.f32 %v10377, %v10968
        %v10970 = vpop.f32.mrb[0].mxu0
        %v10971 = vadd.f32 %v10381, %v10970
        %v10972 = vpop.f32.mrb[0].mxu0
        %v10973 = vadd.f32 %v10377, %v10972
        %v10974 = vpop.f32.mrb[0].mxu0
        %v10975 = vadd.f32 %v10381, %v10974
        %10976 = vmatprep.mubr.bf16.mxu0 %v10277
        %10977 = vmatmul.mubr.bf16.gmra.mrb[0].mxu0 %v10276
        %v10978 = vpop.f32.mrb[0].mxu0
        %v10979 = vadd.f32 %v10377, %v10978
        %v10980 = vpop.f32.mrb[0].mxu0
        %v10981 = vadd.f32 %v10381, %v10980
        %v10982 = vpop.f32.mrb[0].mxu0
        %v10983 = vadd.f32 %v10377, %v10982
        %v10984 = vpop.f32.mrb[0].mxu0
        %v10985 = vadd.f32 %v10381, %v10984
        %10986 = vmatprep.mubr.bf16.mxu0 %v10281
        %10987 = vmatmul.mubr.bf16.gmra.mrb[0].mxu0 %v10280
        %v10988 = vpop.f32.mrb[0].mxu0
        %v10989 = vadd.f32 %v10377, %v10988
        %v10990 = vpop.f32.mrb[0].mxu0
        %v10991 = vadd.f32 %v10381, %v10990
        %v10992 = vpop.f32.mrb[0].mxu0
        %v10993 = vadd.f32 %v10377, %v10992
        %v10994 = vpop.f32.mrb[0].mxu0
        %v10995 = vadd.f32 %v10381, %v10994
        %10996 = vmatprep.mubr.bf16.mxu0 %v10285
        %10997 = vmatmul.mubr.bf16.gmra.mrb[0].mxu0 %v10284
        %v10998 = vpop.f32.mrb[0].mxu0
        %v10999 = vadd.f32 %v10377, %v10998
        %v11000 = vpop.f32.mrb[0].mxu0
        %v11001 = vadd.f32 %v10381, %v11000
        %v11002 = vpop.f32.mrb[0].mxu0
        %v11003 = vadd.f32 %v10377, %v11002
        %v11004 = vpop.f32.mrb[0].mxu0
        %v11005 = vadd.f32 %v10381, %v11004
        %11006 = vmatprep.mubr.bf16.mxu0 %v10289
        %11007 = vmatmul.mubr.bf16.gmra.mrb[0].mxu0 %v10288
        %v11008 = vpop.f32.mrb[0].mxu0
        %v11009 = vadd.f32 %v10377, %v11008
        %v11010 = vpop.f32.mrb[0].mxu0
        %v11011 = vadd.f32 %v10381, %v11010
        %v11012 = vpop.f32.mrb[0].mxu0
        %v11013 = vadd.f32 %v10377, %v11012
        %v11014 = vpop.f32.mrb[0].mxu0
        %v11015 = vadd.f32 %v10381, %v11014
        %11016 = vmatprep.mubr.bf16.mxu0 %v10293
        %11017 = vmatmul.mubr.bf16.gmra.mrb[0].mxu0 %v10292
        %v11018 = vpop.f32.mrb[0].mxu0
        %v11019 = vadd.f32 %v10377, %v11018
        %v11020 = vpop.f32.mrb[0].mxu0
        %v11021 = vadd.f32 %v10381, %v11020
        %v11022 = vpop.f32.mrb[0].mxu0
        %v11023 = vadd.f32 %v10377, %v11022
        %v11024 = vpop.f32.mrb[0].mxu0
        %v11025 = vadd.f32 %v10381, %v11024
        %11026 = vmatprep.mubr.bf16.mxu0 %v10297
        %11027 = vmatmul.mubr.bf16.gmra.mrb[0].mxu0 %v10296
        %v11028 = vpop.f32.mrb[0].mxu0
        %v11029 = vadd.f32 %v10377, %v11028
        %v11030 = vpop.f32.mrb[0].mxu0
        %v11031 = vadd.f32 %v10381, %v11030
        %v11032 = vpop.f32.mrb[0].mxu0
        %v11033 = vadd.f32 %v10377, %v11032
        %v11034 = vpop.f32.mrb[0].mxu0
        %v11035 = vadd.f32 %v10381, %v11034
        %11036 = vmatprep.mubr.bf16.mxu0 %v10301
        %11037 = vmatmul.mubr.bf16.gmra.mrb[0].mxu0 %v10300
        %v11038 = vpop.f32.mrb[0].mxu0
        %v11039 = vadd.f32 %v10377, %v11038
        %v11040 = vpop.f32.mrb[0].mxu0
        %v11041 = vadd.f32 %v10381, %v11040
        %v11042 = vpop.f32.mrb[0].mxu0
        %v11043 = vadd.f32 %v10377, %v11042
        %v11044 = vpop.f32.mrb[0].mxu0
        %v11045 = vadd.f32 %v10381, %v11044
        %11046 = vmatprep.mubr.bf16.mxu0 %v10305
        %11047 = vmatmul.mubr.bf16.gmra.mrb[0].mxu0 %v10304
        %v11048 = vpop.f32.mrb[0].mxu0
        %v11049 = vadd.f32 %v10377, %v11048
        %v11050 = vpop.f32.mrb[0].mxu0
        %v11051 = vadd.f32 %v10381, %v11050
        %v11052 = vpop.f32.mrb[0].mxu0
        %v11053 = vadd.f32 %v10377, %v11052
        %v11054 = vpop.f32.mrb[0].mxu0
        %v11055 = vadd.f32 %v10381, %v11054
        %11056 = vdwg.mxu0
        %11057 = vmatprep.subr.bf16.mxu0 %v10609
        %11058 = vmatpush1.bf16.msra.mxu0 %v10608
        %11059 = vmatprep.subr.bf16.mxu0 %v10611
        %11060 = vmatpush1.bf16.msra.mxu0 %v10610
        %11061 = vmatprep.subr.bf16.mxu0 %v10613
        %11062 = vmatpush1.bf16.msra.mxu0 %v10612
        %11063 = vmatprep.subr.bf16.mxu0 %v10615
        %11064 = vmatpush1.bf16.msra.mxu0 %v10614
        %11065 = vmatprep.subr.bf16.mxu0 %v10617
        %11066 = vmatpush1.bf16.msra.mxu0 %v10616
        %11067 = vmatprep.subr.bf16.mxu0 %v10619
        %11068 = vmatpush1.bf16.msra.mxu0 %v10618
        %11069 = vmatprep.subr.bf16.mxu0 %v10621
        %11070 = vmatpush1.bf16.msra.mxu0 %v10620
        %11071 = vmatprep.subr.bf16.mxu0 %v10623
        %11072 = vmatpush1.bf16.msra.mxu0 %v10622
        %11073 = vmatprep.subr.bf16.mxu0 %v10625
        %11074 = vmatpush1.bf16.msra.mxu0 %v10624
        %11075 = vmatprep.subr.bf16.mxu0 %v10627
        %11076 = vmatpush1.bf16.msra.mxu0 %v10626
        %11077 = vmatprep.subr.bf16.mxu0 %v10629
        %11078 = vmatpush1.bf16.msra.mxu0 %v10628
        %11079 = vmatprep.subr.bf16.mxu0 %v10631
        %11080 = vmatpush1.bf16.msra.mxu0 %v10630
        %11081 = vmatprep.subr.bf16.mxu0 %v10633
        %11082 = vmatpush1.bf16.msra.mxu0 %v10632
        %11083 = vmatprep.subr.bf16.mxu0 %v10635
        %11084 = vmatpush1.bf16.msra.mxu0 %v10634
        %11085 = vmatprep.subr.bf16.mxu0 %v10637
        %11086 = vmatpush1.bf16.msra.mxu0 %v10636
        %11087 = vmatprep.subr.bf16.mxu0 %v10639
        %11088 = vmatpush1.bf16.msra.mxu0 %v10638
        %11089 = vmatprep.mubr.bf16.mxu0 %v10183
        %11090 = vmatmul.mubr.bf16.gmra.mrb[0].mxu0 %v10182
        %v11091 = vpop.f32.mrb[0].mxu0
        %v11092 = vadd.f32 %v10739, %v11091
        %v11093 = vpop.f32.mrb[0].mxu0
        %v11094 = vadd.f32 %v10741, %v11093
        %v11095 = vpop.f32.mrb[0].mxu0
        %v11096 = vadd.f32 %v10743, %v11095
        %v11097 = vpop.f32.mrb[0].mxu0
        %v11098 = vadd.f32 %v10745, %v11097
        %11099 = vmatprep.mubr.bf16.mxu0 %v10187
        %11100 = vmatmul.mubr.bf16.gmra.mrb[0].mxu0 %v10186
        %v11101 = vpop.f32.mrb[0].mxu0
        %v11102 = vadd.f32 %v10749, %v11101
        %v11103 = vpop.f32.mrb[0].mxu0
        %v11104 = vadd.f32 %v10751, %v11103
        %v11105 = vpop.f32.mrb[0].mxu0
        %v11106 = vadd.f32 %v10753, %v11105
        %v11107 = vpop.f32.mrb[0].mxu0
        %v11108 = vadd.f32 %v10755, %v11107
        %11109 = vmatprep.mubr.bf16.mxu0 %v10191
        %11110 = vmatmul.mubr.bf16.gmra.mrb[0].mxu0 %v10190
        %v11111 = vpop.f32.mrb[0].mxu0
        %v11112 = vadd.f32 %v10759, %v11111
        %v11113 = vpop.f32.mrb[0].mxu0
        %v11114 = vadd.f32 %v10761, %v11113
        %v11115 = vpop.f32.mrb[0].mxu0
        %v11116 = vadd.f32 %v10763, %v11115
        %v11117 = vpop.f32.mrb[0].mxu0
        %v11118 = vadd.f32 %v10765, %v11117
        %11119 = vmatprep.mubr.bf16.mxu0 %v10195
        %11120 = vmatmul.mubr.bf16.gmra.mrb[0].mxu0 %v10194
        %v11121 = vpop.f32.mrb[0].mxu0
        %v11122 = vadd.f32 %v10769, %v11121
        %v11123 = vpop.f32.mrb[0].mxu0
        %v11124 = vadd.f32 %v10771, %v11123
        %v11125 = vpop.f32.mrb[0].mxu0
        %v11126 = vadd.f32 %v10773, %v11125
        %v11127 = vpop.f32.mrb[0].mxu0
        %v11128 = vadd.f32 %v10775, %v11127
        %11129 = vmatprep.mubr.bf16.mxu0 %v10199
        %11130 = vmatmul.mubr.bf16.gmra.mrb[0].mxu0 %v10198
        %v11131 = vpop.f32.mrb[0].mxu0
        %v11132 = vadd.f32 %v10779, %v11131
        %v11133 = vpop.f32.mrb[0].mxu0
        %v11134 = vadd.f32 %v10781, %v11133
        %v11135 = vpop.f32.mrb[0].mxu0
        %v11136 = vadd.f32 %v10783, %v11135
        %v11137 = vpop.f32.mrb[0].mxu0
        %v11138 = vadd.f32 %v10785, %v11137
        %11139 = vmatprep.mubr.bf16.mxu0 %v10203
        %11140 = vmatmul.mubr.bf16.gmra.mrb[0].mxu0 %v10202
        %v11141 = vpop.f32.mrb[0].mxu0
        %v11142 = vadd.f32 %v10789, %v11141
        %v11143 = vpop.f32.mrb[0].mxu0
        %v11144 = vadd.f32 %v10791, %v11143
        %v11145 = vpop.f32.mrb[0].mxu0
        %v11146 = vadd.f32 %v10793, %v11145
        %v11147 = vpop.f32.mrb[0].mxu0
        %v11148 = vadd.f32 %v10795, %v11147
        %11149 = vmatprep.mubr.bf16.mxu0 %v10207
        %11150 = vmatmul.mubr.bf16.gmra.mrb[0].mxu0 %v10206
        %v11151 = vpop.f32.mrb[0].mxu0
        %v11152 = vadd.f32 %v10799, %v11151
        %v11153 = vpop.f32.mrb[0].mxu0
        %v11154 = vadd.f32 %v10801, %v11153
        %v11155 = vpop.f32.mrb[0].mxu0
        %v11156 = vadd.f32 %v10803, %v11155
        %v11157 = vpop.f32.mrb[0].mxu0
        %v11158 = vadd.f32 %v10805, %v11157
        %11159 = vmatprep.mubr.bf16.mxu0 %v10211
        %11160 = vmatmul.mubr.bf16.gmra.mrb[0].mxu0 %v10210
        %v11161 = vpop.f32.mrb[0].mxu0
        %v11162 = vadd.f32 %v10809, %v11161
        %v11163 = vpop.f32.mrb[0].mxu0
        %v11164 = vadd.f32 %v10811, %v11163
        %v11165 = vpop.f32.mrb[0].mxu0
        %v11166 = vadd.f32 %v10813, %v11165
        %v11167 = vpop.f32.mrb[0].mxu0
        %v11168 = vadd.f32 %v10815, %v11167
        %11169 = vmatprep.mubr.bf16.mxu0 %v10215
        %11170 = vmatmul.mubr.bf16.gmra.mrb[0].mxu0 %v10214
        %v11171 = vpop.f32.mrb[0].mxu0
        %v11172 = vadd.f32 %v10819, %v11171
        %v11173 = vpop.f32.mrb[0].mxu0
        %v11174 = vadd.f32 %v10821, %v11173
        %v11175 = vpop.f32.mrb[0].mxu0
        %v11176 = vadd.f32 %v10823, %v11175
        %v11177 = vpop.f32.mrb[0].mxu0
        %v11178 = vadd.f32 %v10825, %v11177
        %11179 = vmatprep.mubr.bf16.mxu0 %v10219
        %11180 = vmatmul.mubr.bf16.gmra.mrb[0].mxu0 %v10218
        %v11181 = vpop.f32.mrb[0].mxu0
        %v11182 = vadd.f32 %v10829, %v11181
        %v11183 = vpop.f32.mrb[0].mxu0
        %v11184 = vadd.f32 %v10831, %v11183
        %v11185 = vpop.f32.mrb[0].mxu0
        %v11186 = vadd.f32 %v10833, %v11185
        %v11187 = vpop.f32.mrb[0].mxu0
        %v11188 = vadd.f32 %v10835, %v11187
        %11189 = vmatprep.mubr.bf16.mxu0 %v10223
        %11190 = vmatmul.mubr.bf16.gmra.mrb[0].mxu0 %v10222
        %v11191 = vpop.f32.mrb[0].mxu0
        %v11192 = vadd.f32 %v10839, %v11191
        %v11193 = vpop.f32.mrb[0].mxu0
        %v11194 = vadd.f32 %v10841, %v11193
        %v11195 = vpop.f32.mrb[0].mxu0
        %v11196 = vadd.f32 %v10843, %v11195
        %v11197 = vpop.f32.mrb[0].mxu0
        %v11198 = vadd.f32 %v10845, %v11197
        %11199 = vmatprep.mubr.bf16.mxu0 %v10227
        %11200 = vmatmul.mubr.bf16.gmra.mrb[0].mxu0 %v10226
        %v11201 = vpop.f32.mrb[0].mxu0
        %v11202 = vadd.f32 %v10849, %v11201
        %v11203 = vpop.f32.mrb[0].mxu0
        %v11204 = vadd.f32 %v10851, %v11203
        %v11205 = vpop.f32.mrb[0].mxu0
        %v11206 = vadd.f32 %v10853, %v11205
        %v11207 = vpop.f32.mrb[0].mxu0
        %v11208 = vadd.f32 %v10855, %v11207
        %11209 = vmatprep.mubr.bf16.mxu0 %v10231
        %11210 = vmatmul.mubr.bf16.gmra.mrb[0].mxu0 %v10230
        %v11211 = vpop.f32.mrb[0].mxu0
        %v11212 = vadd.f32 %v10859, %v11211
        %v11213 = vpop.f32.mrb[0].mxu0
        %v11214 = vadd.f32 %v10861, %v11213
        %v11215 = vpop.f32.mrb[0].mxu0
        %v11216 = vadd.f32 %v10863, %v11215
        %v11217 = vpop.f32.mrb[0].mxu0
        %v11218 = vadd.f32 %v10865, %v11217
        %11219 = vmatprep.mubr.bf16.mxu0 %v10235
        %11220 = vmatmul.mubr.bf16.gmra.mrb[0].mxu0 %v10234
        %v11221 = vpop.f32.mrb[0].mxu0
        %v11222 = vadd.f32 %v10869, %v11221
        %v11223 = vpop.f32.mrb[0].mxu0
        %v11224 = vadd.f32 %v10871, %v11223
        %v11225 = vpop.f32.mrb[0].mxu0
        %v11226 = vadd.f32 %v10873, %v11225
        %v11227 = vpop.f32.mrb[0].mxu0
        %v11228 = vadd.f32 %v10875, %v11227
        %11229 = vmatprep.mubr.bf16.mxu0 %v10239
        %11230 = vmatmul.mubr.bf16.gmra.mrb[0].mxu0 %v10238
        %v11231 = vpop.f32.mrb[0].mxu0
        %v11232 = vadd.f32 %v10879, %v11231
        %v11233 = vpop.f32.mrb[0].mxu0
        %v11234 = vadd.f32 %v10881, %v11233
        %v11235 = vpop.f32.mrb[0].mxu0
        %v11236 = vadd.f32 %v10883, %v11235
        %v11237 = vpop.f32.mrb[0].mxu0
        %v11238 = vadd.f32 %v10885, %v11237
        %11239 = vmatprep.mubr.bf16.mxu0 %v10243
        %11240 = vmatmul.mubr.bf16.gmra.mrb[0].mxu0 %v10242
        %v11241 = vpop.f32.mrb[0].mxu0
        %v11242 = vadd.f32 %v10889, %v11241
        %v11243 = vpop.f32.mrb[0].mxu0
        %v11244 = vadd.f32 %v10891, %v11243
        %v11245 = vpop.f32.mrb[0].mxu0
        %v11246 = vadd.f32 %v10893, %v11245
        %v11247 = vpop.f32.mrb[0].mxu0
        %v11248 = vadd.f32 %v10895, %v11247
        %11249 = vmatprep.mubr.bf16.mxu0 %v10247
        %11250 = vmatmul.mubr.bf16.gmra.mrb[0].mxu0 %v10246
        %v11251 = vpop.f32.mrb[0].mxu0
        %v11252 = vadd.f32 %v10899, %v11251
        %v11253 = vpop.f32.mrb[0].mxu0
        %v11254 = vadd.f32 %v10901, %v11253
        %v11255 = vpop.f32.mrb[0].mxu0
        %v11256 = vadd.f32 %v10903, %v11255
        %v11257 = vpop.f32.mrb[0].mxu0
        %v11258 = vadd.f32 %v10905, %v11257
        %11259 = vmatprep.mubr.bf16.mxu0 %v10251
        %11260 = vmatmul.mubr.bf16.gmra.mrb[0].mxu0 %v10250
        %v11261 = vpop.f32.mrb[0].mxu0
        %v11262 = vadd.f32 %v10909, %v11261
        %v11263 = vpop.f32.mrb[0].mxu0
        %v11264 = vadd.f32 %v10911, %v11263
        %v11265 = vpop.f32.mrb[0].mxu0
        %v11266 = vadd.f32 %v10913, %v11265
        %v11267 = vpop.f32.mrb[0].mxu0
        %v11268 = vadd.f32 %v10915, %v11267
        %11269 = vmatprep.mubr.bf16.mxu0 %v10255
        %11270 = vmatmul.mubr.bf16.gmra.mrb[0].mxu0 %v10254
        %v11271 = vpop.f32.mrb[0].mxu0
        %v11272 = vadd.f32 %v10919, %v11271
        %v11273 = vpop.f32.mrb[0].mxu0
        %v11274 = vadd.f32 %v10921, %v11273
        %v11275 = vpop.f32.mrb[0].mxu0
        %v11276 = vadd.f32 %v10923, %v11275
        %v11277 = vpop.f32.mrb[0].mxu0
        %v11278 = vadd.f32 %v10925, %v11277
        %11279 = vmatprep.mubr.bf16.mxu0 %v10259
        %11280 = vmatmul.mubr.bf16.gmra.mrb[0].mxu0 %v10258
        %v11281 = vpop.f32.mrb[0].mxu0
        %v11282 = vadd.f32 %v10929, %v11281
        %v11283 = vpop.f32.mrb[0].mxu0
        %v11284 = vadd.f32 %v10931, %v11283
        %v11285 = vpop.f32.mrb[0].mxu0
        %v11286 = vadd.f32 %v10933, %v11285
        %v11287 = vpop.f32.mrb[0].mxu0
        %v11288 = vadd.f32 %v10935, %v11287
        %11289 = vmatprep.mubr.bf16.mxu0 %v10263
        %11290 = vmatmul.mubr.bf16.gmra.mrb[0].mxu0 %v10262
        %v11291 = vpop.f32.mrb[0].mxu0
        %v11292 = vadd.f32 %v10939, %v11291
        %v11293 = vpop.f32.mrb[0].mxu0
        %v11294 = vadd.f32 %v10941, %v11293
        %v11295 = vpop.f32.mrb[0].mxu0
        %v11296 = vadd.f32 %v10943, %v11295
        %v11297 = vpop.f32.mrb[0].mxu0
        %v11298 = vadd.f32 %v10945, %v11297
        %11299 = vmatprep.mubr.bf16.mxu0 %v10267
        %11300 = vmatmul.mubr.bf16.gmra.mrb[0].mxu0 %v10266
        %v11301 = vpop.f32.mrb[0].mxu0
        %v11302 = vadd.f32 %v10949, %v11301
        %v11303 = vpop.f32.mrb[0].mxu0
        %v11304 = vadd.f32 %v10951, %v11303
        %v11305 = vpop.f32.mrb[0].mxu0
        %v11306 = vadd.f32 %v10953, %v11305
        %v11307 = vpop.f32.mrb[0].mxu0
        %v11308 = vadd.f32 %v10955, %v11307
        %11309 = vmatprep.mubr.bf16.mxu0 %v10271
        %11310 = vmatmul.mubr.bf16.gmra.mrb[0].mxu0 %v10270
        %v11311 = vpop.f32.mrb[0].mxu0
        %v11312 = vadd.f32 %v10959, %v11311
        %v11313 = vpop.f32.mrb[0].mxu0
        %v11314 = vadd.f32 %v10961, %v11313
        %v11315 = vpop.f32.mrb[0].mxu0
        %v11316 = vadd.f32 %v10963, %v11315
        %v11317 = vpop.f32.mrb[0].mxu0
        %v11318 = vadd.f32 %v10965, %v11317
        %11319 = vmatprep.mubr.bf16.mxu0 %v10275
        %11320 = vmatmul.mubr.bf16.gmra.mrb[0].mxu0 %v10274
        %v11321 = vpop.f32.mrb[0].mxu0
        %v11322 = vadd.f32 %v10969, %v11321
        %v11323 = vpop.f32.mrb[0].mxu0
        %v11324 = vadd.f32 %v10971, %v11323
        %v11325 = vpop.f32.mrb[0].mxu0
        %v11326 = vadd.f32 %v10973, %v11325
        %v11327 = vpop.f32.mrb[0].mxu0
        %v11328 = vadd.f32 %v10975, %v11327
        %11329 = vmatprep.mubr.bf16.mxu0 %v10279
        %11330 = vmatmul.mubr.bf16.gmra.mrb[0].mxu0 %v10278
        %v11331 = vpop.f32.mrb[0].mxu0
        %v11332 = vadd.f32 %v10979, %v11331
        %v11333 = vpop.f32.mrb[0].mxu0
        %v11334 = vadd.f32 %v10981, %v11333
        %v11335 = vpop.f32.mrb[0].mxu0
        %v11336 = vadd.f32 %v10983, %v11335
        %v11337 = vpop.f32.mrb[0].mxu0
        %v11338 = vadd.f32 %v10985, %v11337
        %11339 = vmatprep.mubr.bf16.mxu0 %v10283
        %11340 = vmatmul.mubr.bf16.gmra.mrb[0].mxu0 %v10282
        %v11341 = vpop.f32.mrb[0].mxu0
        %v11342 = vadd.f32 %v10989, %v11341
        %v11343 = vpop.f32.mrb[0].mxu0
        %v11344 = vadd.f32 %v10991, %v11343
        %v11345 = vpop.f32.mrb[0].mxu0
        %v11346 = vadd.f32 %v10993, %v11345
        %v11347 = vpop.f32.mrb[0].mxu0
        %v11348 = vadd.f32 %v10995, %v11347
        %11349 = vmatprep.mubr.bf16.mxu0 %v10287
        %11350 = vmatmul.mubr.bf16.gmra.mrb[0].mxu0 %v10286
        %v11351 = vpop.f32.mrb[0].mxu0
        %v11352 = vadd.f32 %v10999, %v11351
        %v11353 = vpop.f32.mrb[0].mxu0
        %v11354 = vadd.f32 %v11001, %v11353
        %v11355 = vpop.f32.mrb[0].mxu0
        %v11356 = vadd.f32 %v11003, %v11355
        %v11357 = vpop.f32.mrb[0].mxu0
        %v11358 = vadd.f32 %v11005, %v11357
        %11359 = vmatprep.mubr.bf16.mxu0 %v10291
        %11360 = vmatmul.mubr.bf16.gmra.mrb[0].mxu0 %v10290
        %v11361 = vpop.f32.mrb[0].mxu0
        %v11362 = vadd.f32 %v11009, %v11361
        %v11363 = vpop.f32.mrb[0].mxu0
        %v11364 = vadd.f32 %v11011, %v11363
        %v11365 = vpop.f32.mrb[0].mxu0
        %v11366 = vadd.f32 %v11013, %v11365
        %v11367 = vpop.f32.mrb[0].mxu0
        %v11368 = vadd.f32 %v11015, %v11367
        %11369 = vmatprep.mubr.bf16.mxu0 %v10295
        %11370 = vmatmul.mubr.bf16.gmra.mrb[0].mxu0 %v10294
        %v11371 = vpop.f32.mrb[0].mxu0
        %v11372 = vadd.f32 %v11019, %v11371
        %v11373 = vpop.f32.mrb[0].mxu0
        %v11374 = vadd.f32 %v11021, %v11373
        %v11375 = vpop.f32.mrb[0].mxu0
        %v11376 = vadd.f32 %v11023, %v11375
        %v11377 = vpop.f32.mrb[0].mxu0
        %v11378 = vadd.f32 %v11025, %v11377
        %11379 = vmatprep.mubr.bf16.mxu0 %v10299
        %11380 = vmatmul.mubr.bf16.gmra.mrb[0].mxu0 %v10298
        %v11381 = vpop.f32.mrb[0].mxu0
        %v11382 = vadd.f32 %v11029, %v11381
        %v11383 = vpop.f32.mrb[0].mxu0
        %v11384 = vadd.f32 %v11031, %v11383
        %v11385 = vpop.f32.mrb[0].mxu0
        %v11386 = vadd.f32 %v11033, %v11385
        %v11387 = vpop.f32.mrb[0].mxu0
        %v11388 = vadd.f32 %v11035, %v11387
        %11389 = vmatprep.mubr.bf16.mxu0 %v10303
        %11390 = vmatmul.mubr.bf16.gmra.mrb[0].mxu0 %v10302
        %v11391 = vpop.f32.mrb[0].mxu0
        %v11392 = vadd.f32 %v11039, %v11391
        %v11393 = vpop.f32.mrb[0].mxu0
        %v11394 = vadd.f32 %v11041, %v11393
        %v11395 = vpop.f32.mrb[0].mxu0
        %v11396 = vadd.f32 %v11043, %v11395
        %v11397 = vpop.f32.mrb[0].mxu0
        %v11398 = vadd.f32 %v11045, %v11397
        %11399 = vmatprep.mubr.bf16.mxu0 %v10307
        %11400 = vmatmul.mubr.bf16.gmra.mrb[0].mxu0 %v10306
        %v11401 = vpop.f32.mrb[0].mxu0
        %v11402 = vadd.f32 %v11049, %v11401
        %v11403 = vpop.f32.mrb[0].mxu0
        %v11404 = vadd.f32 %v11051, %v11403
        %v11405 = vpop.f32.mrb[0].mxu0
        %v11406 = vadd.f32 %v11053, %v11405
        %v11407 = vpop.f32.mrb[0].mxu0
        %v11408 = vadd.f32 %v11055, %v11407
        %11409 = vdwg.mxu0
        %v11410 = vtanh.pop %v11092
        %v11411 = vtanh.pop %v11094
        %v11412 = vtanh.pop %v11096
        %v11413 = vtanh.pop %v11098
        %v11414 = vtanh.pop %v11102
        %v11415 = vtanh.pop %v11104
        %v11416 = vtanh.pop %v11106
        %v11417 = vtanh.pop %v11108
        %v11418 = vtanh.pop %v11112
        %v11419 = vtanh.pop %v11114
        %v11420 = vtanh.pop %v11116
        %v11421 = vtanh.pop %v11118
        %v11422 = vtanh.pop %v11122
        %v11423 = vtanh.pop %v11124
        %v11424 = vtanh.pop %v11126
        %v11425 = vtanh.pop %v11128
        %v11426 = vtanh.pop %v11132
        %v11427 = vtanh.pop %v11134
        %v11428 = vtanh.pop %v11136
        %v11429 = vtanh.pop %v11138
        %v11430 = vtanh.pop %v11142
        %v11431 = vtanh.pop %v11144
        %v11432 = vtanh.pop %v11146
        %v11433 = vtanh.pop %v11148
        %v11434 = vtanh.pop %v11152
        %v11435 = vtanh.pop %v11154
        %v11436 = vtanh.pop %v11156
        %v11437 = vtanh.pop %v11158
        %v11438 = vtanh.pop %v11162
        %v11439 = vtanh.pop %v11164
        %v11440 = vtanh.pop %v11166
        %v11441 = vtanh.pop %v11168
        %v11442 = vtanh.pop %v11172
        %v11443 = vtanh.pop %v11174
        %v11444 = vtanh.pop %v11176
        %v11445 = vtanh.pop %v11178
        %v11446 = vtanh.pop %v11182
        %v11447 = vtanh.pop %v11184
        %v11448 = vtanh.pop %v11186
        %v11449 = vtanh.pop %v11188
        %v11450 = vtanh.pop %v11192
        %v11451 = vtanh.pop %v11194
        %v11452 = vtanh.pop %v11196
        %v11453 = vtanh.pop %v11198
        %v11454 = vtanh.pop %v11202
        %v11455 = vtanh.pop %v11204
        %v11456 = vtanh.pop %v11206
        %v11457 = vtanh.pop %v11208
        %v11458 = vtanh.pop %v11212
        %v11459 = vtanh.pop %v11214
        %v11460 = vtanh.pop %v11216
        %v11461 = vtanh.pop %v11218
        %v11462 = vtanh.pop %v11222
        %v11463 = vtanh.pop %v11224
        %v11464 = vtanh.pop %v11226
        %v11465 = vtanh.pop %v11228
        %v11466 = vtanh.pop %v11232
        %v11467 = vtanh.pop %v11234
        %v11468 = vtanh.pop %v11236
        %v11469 = vtanh.pop %v11238
        %v11470 = vtanh.pop %v11242
        %v11471 = vtanh.pop %v11244
        %v11472 = vtanh.pop %v11246
        %v11473 = vtanh.pop %v11248
        %v11474 = vtanh.pop %v11252
        %v11475 = vtanh.pop %v11254
        %v11476 = vtanh.pop %v11256
        %v11477 = vtanh.pop %v11258
        %v11478 = vtanh.pop %v11262
        %v11479 = vtanh.pop %v11264
        %v11480 = vtanh.pop %v11266
        %v11481 = vtanh.pop %v11268
        %v11482 = vtanh.pop %v11272
        %v11483 = vtanh.pop %v11274
        %v11484 = vtanh.pop %v11276
        %v11485 = vtanh.pop %v11278
        %v11486 = vtanh.pop %v11282
        %v11487 = vtanh.pop %v11284
        %v11488 = vtanh.pop %v11286
        %v11489 = vtanh.pop %v11288
        %v11490 = vtanh.pop %v11292
        %v11491 = vtanh.pop %v11294
        %v11492 = vtanh.pop %v11296
        %v11493 = vtanh.pop %v11298
        %v11494 = vtanh.pop %v11302
        %v11495 = vtanh.pop %v11304
        %v11496 = vtanh.pop %v11306
        %v11497 = vtanh.pop %v11308
        %v11498 = vtanh.pop %v11312
        %v11499 = vtanh.pop %v11314
        %v11500 = vtanh.pop %v11316
        %v11501 = vtanh.pop %v11318
        %v11502 = vtanh.pop %v11322
        %v11503 = vtanh.pop %v11324
        %v11504 = vtanh.pop %v11326
        %v11505 = vtanh.pop %v11328
        %v11506 = vtanh.pop %v11332
        %v11507 = vtanh.pop %v11334
        %v11508 = vtanh.pop %v11336
        %v11509 = vtanh.pop %v11338
        %v11510 = vtanh.pop %v11342
        %v11511 = vtanh.pop %v11344
        %v11512 = vtanh.pop %v11346
        %v11513 = vtanh.pop %v11348
        %v11514 = vtanh.pop %v11352
        %v11515 = vtanh.pop %v11354
        %v11516 = vtanh.pop %v11356
        %v11517 = vtanh.pop %v11358
        %v11518 = vtanh.pop %v11362
        %v11519 = vtanh.pop %v11364
        %v11520 = vtanh.pop %v11366
        %v11521 = vtanh.pop %v11368
        %v11522 = vtanh.pop %v11372
        %v11523 = vtanh.pop %v11374
        %v11524 = vtanh.pop %v11376
        %v11525 = vtanh.pop %v11378
        %v11526 = vtanh.pop %v11382
        %v11527 = vtanh.pop %v11384
        %v11528 = vtanh.pop %v11386
        %v11529 = vtanh.pop %v11388
        %v11530 = vtanh.pop %v11392
        %v11531 = vtanh.pop %v11394
        %v11532 = vtanh.pop %v11396
        %v11533 = vtanh.pop %v11398
        %v11534 = vtanh.pop %v11402
        %v11535 = vtanh.pop %v11404
        %v11536 = vtanh.pop %v11406
        %v11537 = vtanh.pop %v11408
        %11538 = vst [vmem:[%s518] sm:$0xff] %v11410
        %11539 = vst [vmem:[%s518 + $0x8] sm:$0xff] %v11411
        %11540 = vst [vmem:[%s518 + $0x10] sm:$0xff] %v11412
        %11541 = vst [vmem:[%s518 + $0x18] sm:$0xff] %v11413
        %11542 = vst [vmem:[%s518 + $0x20] sm:$0xff] %v11414
        %11543 = vst [vmem:[%s518 + $0x28] sm:$0xff] %v11415
        %11544 = vst [vmem:[%s518 + $0x30] sm:$0xff] %v11416
        %11545 = vst [vmem:[%s518 + $0x38] sm:$0xff] %v11417
        %11546 = vst [vmem:[%s518 + $0x40] sm:$0xff] %v11418
        %11547 = vst [vmem:[%s518 + $0x48] sm:$0xff] %v11419
        %11548 = vst [vmem:[%s518 + $0x50] sm:$0xff] %v11420
        %11549 = vst [vmem:[%s518 + $0x58] sm:$0xff] %v11421
        %11550 = vst [vmem:[%s518 + $0x60] sm:$0xff] %v11422
        %11551 = vst [vmem:[%s518 + $0x68] sm:$0xff] %v11423
        %11552 = vst [vmem:[%s518 + $0x70] sm:$0xff] %v11424
        %11553 = vst [vmem:[%s518 + $0x78] sm:$0xff] %v11425
        %11554 = vst [vmem:[%s518 + $0x80] sm:$0xff] %v11426
        %11555 = vst [vmem:[%s518 + $0x88] sm:$0xff] %v11427
        %11556 = vst [vmem:[%s518 + $0x90] sm:$0xff] %v11428
        %11557 = vst [vmem:[%s518 + $0x98] sm:$0xff] %v11429
        %11558 = vst [vmem:[%s518 + $0xa0] sm:$0xff] %v11430
        %11559 = vst [vmem:[%s518 + $0xa8] sm:$0xff] %v11431
        %11560 = vst [vmem:[%s518 + $0xb0] sm:$0xff] %v11432
        %11561 = vst [vmem:[%s518 + $0xb8] sm:$0xff] %v11433
        %11562 = vst [vmem:[%s518 + $0xc0] sm:$0xff] %v11434
        %11563 = vst [vmem:[%s518 + $0xc8] sm:$0xff] %v11435
        %11564 = vst [vmem:[%s518 + $0xd0] sm:$0xff] %v11436
        %11565 = vst [vmem:[%s518 + $0xd8] sm:$0xff] %v11437
        %11566 = vst [vmem:[%s518 + $0xe0] sm:$0xff] %v11438
        %11567 = vst [vmem:[%s518 + $0xe8] sm:$0xff] %v11439
        %11568 = vst [vmem:[%s518 + $0xf0] sm:$0xff] %v11440
        %11569 = vst [vmem:[%s518 + $0xf8] sm:$0xff] %v11441
        %11570 = vst [vmem:[%s518 + $0x100] sm:$0xff] %v11442
        %11571 = vst [vmem:[%s518 + $0x108] sm:$0xff] %v11443
        %11572 = vst [vmem:[%s518 + $0x110] sm:$0xff] %v11444
        %11573 = vst [vmem:[%s518 + $0x118] sm:$0xff] %v11445
        %11574 = vst [vmem:[%s518 + $0x120] sm:$0xff] %v11446
        %11575 = vst [vmem:[%s518 + $0x128] sm:$0xff] %v11447
        %11576 = vst [vmem:[%s518 + $0x130] sm:$0xff] %v11448
        %11577 = vst [vmem:[%s518 + $0x138] sm:$0xff] %v11449
        %11578 = vst [vmem:[%s518 + $0x140] sm:$0xff] %v11450
        %11579 = vst [vmem:[%s518 + $0x148] sm:$0xff] %v11451
        %11580 = vst [vmem:[%s518 + $0x150] sm:$0xff] %v11452
        %11581 = vst [vmem:[%s518 + $0x158] sm:$0xff] %v11453
        %11582 = vst [vmem:[%s518 + $0x160] sm:$0xff] %v11454
        %11583 = vst [vmem:[%s518 + $0x168] sm:$0xff] %v11455
        %11584 = vst [vmem:[%s518 + $0x170] sm:$0xff] %v11456
        %11585 = vst [vmem:[%s518 + $0x178] sm:$0xff] %v11457
        %11586 = vst [vmem:[%s518 + $0x180] sm:$0xff] %v11458
        %11587 = vst [vmem:[%s518 + $0x188] sm:$0xff] %v11459
        %11588 = vst [vmem:[%s518 + $0x190] sm:$0xff] %v11460
        %11589 = vst [vmem:[%s518 + $0x198] sm:$0xff] %v11461
        %11590 = vst [vmem:[%s518 + $0x1a0] sm:$0xff] %v11462
        %11591 = vst [vmem:[%s518 + $0x1a8] sm:$0xff] %v11463
        %11592 = vst [vmem:[%s518 + $0x1b0] sm:$0xff] %v11464
        %11593 = vst [vmem:[%s518 + $0x1b8] sm:$0xff] %v11465
        %11594 = vst [vmem:[%s518 + $0x1c0] sm:$0xff] %v11466
        %11595 = vst [vmem:[%s518 + $0x1c8] sm:$0xff] %v11467
        %11596 = vst [vmem:[%s518 + $0x1d0] sm:$0xff] %v11468
        %11597 = vst [vmem:[%s518 + $0x1d8] sm:$0xff] %v11469
        %11598 = vst [vmem:[%s518 + $0x1e0] sm:$0xff] %v11470
        %11599 = vst [vmem:[%s518 + $0x1e8] sm:$0xff] %v11471
        %11600 = vst [vmem:[%s518 + $0x1f0] sm:$0xff] %v11472
        %11601 = vst [vmem:[%s518 + $0x1f8] sm:$0xff] %v11473
        %11602 = vst [vmem:[%s518 + $0x200] sm:$0xff] %v11474
        %11603 = vst [vmem:[%s518 + $0x208] sm:$0xff] %v11475
        %11604 = vst [vmem:[%s518 + $0x210] sm:$0xff] %v11476
        %11605 = vst [vmem:[%s518 + $0x218] sm:$0xff] %v11477
        %11606 = vst [vmem:[%s518 + $0x220] sm:$0xff] %v11478
        %11607 = vst [vmem:[%s518 + $0x228] sm:$0xff] %v11479
        %11608 = vst [vmem:[%s518 + $0x230] sm:$0xff] %v11480
        %11609 = vst [vmem:[%s518 + $0x238] sm:$0xff] %v11481
        %11610 = vst [vmem:[%s518 + $0x240] sm:$0xff] %v11482
        %11611 = vst [vmem:[%s518 + $0x248] sm:$0xff] %v11483
        %11612 = vst [vmem:[%s518 + $0x250] sm:$0xff] %v11484
        %11613 = vst [vmem:[%s518 + $0x258] sm:$0xff] %v11485
        %11614 = vst [vmem:[%s518 + $0x260] sm:$0xff] %v11486
        %11615 = vst [vmem:[%s518 + $0x268] sm:$0xff] %v11487
        %11616 = vst [vmem:[%s518 + $0x270] sm:$0xff] %v11488
        %11617 = vst [vmem:[%s518 + $0x278] sm:$0xff] %v11489
        %11618 = vst [vmem:[%s518 + $0x280] sm:$0xff] %v11490
        %11619 = vst [vmem:[%s518 + $0x288] sm:$0xff] %v11491
        %11620 = vst [vmem:[%s518 + $0x290] sm:$0xff] %v11492
        %11621 = vst [vmem:[%s518 + $0x298] sm:$0xff] %v11493
        %11622 = vst [vmem:[%s518 + $0x2a0] sm:$0xff] %v11494
        %11623 = vst [vmem:[%s518 + $0x2a8] sm:$0xff] %v11495
        %11624 = vst [vmem:[%s518 + $0x2b0] sm:$0xff] %v11496
        %11625 = vst [vmem:[%s518 + $0x2b8] sm:$0xff] %v11497
        %11626 = vst [vmem:[%s518 + $0x2c0] sm:$0xff] %v11498
        %11627 = vst [vmem:[%s518 + $0x2c8] sm:$0xff] %v11499
        %11628 = vst [vmem:[%s518 + $0x2d0] sm:$0xff] %v11500
        %11629 = vst [vmem:[%s518 + $0x2d8] sm:$0xff] %v11501
        %11630 = vst [vmem:[%s518 + $0x2e0] sm:$0xff] %v11502
        %11631 = vst [vmem:[%s518 + $0x2e8] sm:$0xff] %v11503
        %11632 = vst [vmem:[%s518 + $0x2f0] sm:$0xff] %v11504
        %11633 = vst [vmem:[%s518 + $0x2f8] sm:$0xff] %v11505
        %11634 = vst [vmem:[%s518 + $0x300] sm:$0xff] %v11506
        %11635 = vst [vmem:[%s518 + $0x308] sm:$0xff] %v11507
        %11636 = vst [vmem:[%s518 + $0x310] sm:$0xff] %v11508
        %11637 = vst [vmem:[%s518 + $0x318] sm:$0xff] %v11509
        %11638 = vst [vmem:[%s518 + $0x320] sm:$0xff] %v11510
        %11639 = vst [vmem:[%s518 + $0x328] sm:$0xff] %v11511
        %11640 = vst [vmem:[%s518 + $0x330] sm:$0xff] %v11512
        %11641 = vst [vmem:[%s518 + $0x338] sm:$0xff] %v11513
        %11642 = vst [vmem:[%s518 + $0x340] sm:$0xff] %v11514
        %11643 = vst [vmem:[%s518 + $0x348] sm:$0xff] %v11515
        %11644 = vst [vmem:[%s518 + $0x350] sm:$0xff] %v11516
        %11645 = vst [vmem:[%s518 + $0x358] sm:$0xff] %v11517
        %11646 = vst [vmem:[%s518 + $0x360] sm:$0xff] %v11518
        %11647 = vst [vmem:[%s518 + $0x368] sm:$0xff] %v11519
        %11648 = vst [vmem:[%s518 + $0x370] sm:$0xff] %v11520
        %11649 = vst [vmem:[%s518 + $0x378] sm:$0xff] %v11521
        %11650 = vst [vmem:[%s518 + $0x380] sm:$0xff] %v11522
        %11651 = vst [vmem:[%s518 + $0x388] sm:$0xff] %v11523
        %11652 = vst [vmem:[%s518 + $0x390] sm:$0xff] %v11524
        %11653 = vst [vmem:[%s518 + $0x398] sm:$0xff] %v11525
        %11654 = vst [vmem:[%s518 + $0x3a0] sm:$0xff] %v11526
        %11655 = vst [vmem:[%s518 + $0x3a8] sm:$0xff] %v11527
        %11656 = vst [vmem:[%s518 + $0x3b0] sm:$0xff] %v11528
        %11657 = vst [vmem:[%s518 + $0x3b8] sm:$0xff] %v11529
        %11658 = vst [vmem:[%s518 + $0x3c0] sm:$0xff] %v11530
        %11659 = vst [vmem:[%s518 + $0x3c8] sm:$0xff] %v11531
        %11660 = vst [vmem:[%s518 + $0x3d0] sm:$0xff] %v11532
        %11661 = vst [vmem:[%s518 + $0x3d8] sm:$0xff] %v11533
        %11662 = vst [vmem:[%s518 + $0x3e0] sm:$0xff] %v11534
        %11663 = vst [vmem:[%s518 + $0x3e8] sm:$0xff] %v11535
        %11664 = vst [vmem:[%s518 + $0x3f0] sm:$0xff] %v11536
        %11665 = vst [vmem:[%s518 + $0x3f8] sm:$0xff] %v11537
        %s11666 = sand.u32 %s338, 1
        %s11667 = scalar_lea.sflag [#allocation4], %s11666
        %s11668 = sand.u32 %s338, 1
        %s11669 = smul.addr %s11668, 1024
        %s11670 = scalar_lea.vmem [#allocation10], %s11669
        // Predicated region
        $region93: #{tpu_custom_call.1} parent=75 // pred_check
          %p11671 = pneg %p348
        $region94: #{tpu_custom_call.1} parent=75 // pred_check_branch
          %11673 = sbr.rel (%p11671) target = $region96
        $region95: #{tpu_custom_call.1} parent=75 // pred_region
          %s11674 = smul.u32 64, %s31
          %s11676 = ssub.s32 16384, 16384
          %11677 = vsyncadd %s11667, %s11676
          %s11678 = smul.addr %s11674, 2
          %s11679 = smul.addr %s11678, 128
          %s11680 = scalar_lea.hbm %s14, %s11679
          %s11681 = sshll.u32 %s11670, 4
          %s11682 = int_to_ptr.vmem [resolvable:$true] %s11681
          %11687 = dma.vmem_to_hbm [thread:$0]  %s11682, 16384, %s11680, %s11667, 256, 256, 16
        $region96: #{tpu_custom_call.1} parent=75 // pred_fallthru
          _
      $region76: #{tpu_custom_call.1} parent=5 // pred_fallthru
        _
      %p11688 = scmp.le.s32.totalorder 2, %s26
      // Predicated region
      $region97: #{tpu_custom_call.1} parent=5 // pred_check
        %p11689 = pneg %p11688
      $region98: #{tpu_custom_call.1} parent=5 // pred_check_branch
        %11691 = sbr.rel (%p11689) target = $region100
      $region99: #{tpu_custom_call.1} parent=5 // pred_region
        %s11692 = ssub.s32 %s26, 2
        // Predicated region
        $region101: #{tpu_custom_call.1} parent=99 // pred_check
          %p11693 = pneg %p354
        $region102: #{tpu_custom_call.1} parent=99 // pred_check_branch
          %11695 = sbr.rel (%p11693) target = $region104
        $region103: #{tpu_custom_call.1} parent=99 // pred_region
          %s11696 = sand.u32 %s339, 1
          %s11697 = scalar_lea.sflag [#allocation4], %s11696
          %s11698 = sand.u32 %s339, 1
          %s11699 = smul.addr %s11698, 1024
          %s11700 = scalar_lea.vmem [#allocation10], %s11699
          %11701 = dma.done %s11697, 16384
        $region104: #{tpu_custom_call.1} parent=99 // pred_fallthru
          _
      $region100: #{tpu_custom_call.1} parent=5 // pred_fallthru
        _
    $region6: #{tpu_custom_call.1} parent=1 // loop_footer
      %s30 = sadd.s32 1, %s26
    $region7: #{tpu_custom_call.1} parent=1 // loop_footer_branch
      %25 = sbr.rel target = $region3
    $region8: #{tpu_custom_call.1} parent=1 // loop_exit
      _
    %11702 = vsyncpa [#allocation3], 1
    %s11703 = scalar_lea.sflag [#allocation3], 1
    %11704 = vsyncpa %s11703, 1
    %11705 = vsyncpa [#allocation6], 1
    %11706 = vsyncpa [#allocation9], 1
    %11707 = vsyncpa [#allocation4], 1
    %s11708 = scalar_lea.sflag [#allocation4], 1
    %11709 = vsyncpa %s11708, 1

</llo_original>
